<compile_context>
chip_gen: v6e
topology: v6e:2x2x1
jax: 0.10.0
libtpu: 0.0.40
codegen_flags: <defaults>
</compile_context>

<pallas_src>
import functools
import math

import jax
import jax.numpy as jnp
from jax.experimental import pallas as pl
from jax.experimental.pallas import tpu as pltpu


# ------------------------------------------------------------- small helpers

def _dot(a, b):
    # bf16 x bf16 -> f32 accumulation on the MXU.
    return jnp.dot(a, b, preferred_element_type=jnp.float32)


def _dot_nt(a, b):
    # a @ b.T (contract last dims) without materializing the transpose.
    return jax.lax.dot_general(a, b, (((1,), (1,)), ((), ())),
                               preferred_element_type=jnp.float32)


def _add_layernorm(x, y, gamma, beta):
    # LayerNorm(x + y) over the last dim, eps=1e-5 (PyTorch default).
    z = x + y
    mu = jnp.mean(z, axis=-1, keepdims=True)
    var = jnp.mean((z - mu) * (z - mu), axis=-1, keepdims=True)
    return (z - mu) * jax.lax.rsqrt(var + 1e-5) * gamma + beta


def _const(shape):
    # Grid-invariant (broadcast) block: same block for every grid step.
    nd = len(shape)
    return pl.BlockSpec(shape, lambda *_: (0,) * nd)


# ----------------------------------------------------- attention sublayer kernel

def _attn_sublayer_kernel(xq_ref, xkv_ref, m_ref,
                          wq_ref, bq_ref, wk_ref, bk_ref, wv_ref, bv_ref,
                          wo_ref, bo_ref, g_ref, b_ref,
                          o_ref,
                          q_sc, acc_sc, m_sc, l_sc,
                          *, n_heads, dk):
    """Grid (b, q-tile, kv-tile): flash-style LN(xq + MHA(q=xq, k=v=xkv, mask))."""
    ki = pl.program_id(2)
    tq = q_sc.shape[1]
    d = n_heads * dk
    scale = 1.0 / math.sqrt(dk)

    # ---- prologue (once per (batch, q-tile)): project Q, reset online-softmax stats
    @pl.when(ki == 0)
    def _():
        xq_bf = xq_ref[0].astype(jnp.bfloat16)                    # [tq, D]

        def q_proj(h, carry):
            q_h = _dot(xq_bf, wq_ref[h]) + bq_ref[h]              # [tq, dk] f32
            q_sc[h] = q_h.astype(jnp.bfloat16)
            return carry

        jax.lax.fori_loop(0, n_heads, q_proj, 0)
        m_sc[...] = jnp.full(m_sc.shape, -1e30, m_sc.dtype)
        l_sc[...] = jnp.zeros(l_sc.shape, l_sc.dtype)
        acc_sc[...] = jnp.zeros(acc_sc.shape, acc_sc.dtype)

    # ---- per-KV-tile flash step (project K/V for this tile, online softmax per head)
    xkv_bf = xkv_ref[0].astype(jnp.bfloat16)                      # [tk, D]
    keep = m_ref[0] != 0                                          # [tq, tk] bool

    def head_step(h, carry):
        k_h = (_dot(xkv_bf, wk_ref[h]) + bk_ref[h]).astype(jnp.bfloat16)   # [tk, dk]
        v_h = (_dot(xkv_bf, wv_ref[h]) + bv_ref[h]).astype(jnp.bfloat16)   # [tk, dk]
        s = _dot_nt(q_sc[h], k_h) * scale                         # [tq, tk] f32
        s = jnp.where(keep, s, jnp.float32(-1e9))
        m_prev = m_sc[h]                                          # [tq, 1]
        m_new = jnp.maximum(m_prev, jnp.max(s, axis=-1, keepdims=True))
        alpha = jnp.exp(m_prev - m_new)
        p = jnp.exp(s - m_new)                                    # [tq, tk]
        l_sc[h] = alpha * l_sc[h] + jnp.sum(p, axis=-1, keepdims=True)
        acc_sc[h] = alpha * acc_sc[h] + _dot(p.astype(jnp.bfloat16), v_h)
        m_sc[h] = m_new
        return carry

    jax.lax.fori_loop(0, n_heads, head_step, 0)

    # ---- epilogue (last KV tile): normalize, output projection, residual + LayerNorm
    @pl.when(ki == pl.num_programs(2) - 1)
    def _():
        def out_proj(h, y):
            ctx = acc_sc[h] * pl.reciprocal(l_sc[h], approx=True)  # [tq, dk]
            return y + _dot(ctx.astype(jnp.bfloat16), wo_ref[h])   # [tq, D]

        y = jax.lax.fori_loop(0, n_heads, out_proj,
                              jnp.zeros((tq, d), jnp.float32))
        y = y + bo_ref[...]
        o_ref[0] = _add_layernorm(xq_ref[0], y, g_ref[...], b_ref[...])


# ----------------------------------------------------------- FFN sublayer kernel

def _ffn_sublayer_kernel(x_ref, w1_ref, b1_ref, w2_ref, b2_ref, g_ref, b_ref, o_ref):
    """Row tile: LN(x + W2 @ relu(W1 @ x + b1) + b2)."""
    x = x_ref[...]                                                # [tm, D] f32 (residual)
    x_bf = x.astype(jnp.bfloat16)
    h1 = _dot(x_bf, w1_ref[...]) + b1_ref[...]                    # [tm, Dff]
    h1 = jnp.maximum(h1, 0.0)
    y = _dot(h1.astype(jnp.bfloat16), w2_ref[...]) + b2_ref[...]  # [tm, D]
    o_ref[...] = _add_layernorm(x, y, g_ref[...], b_ref[...])


# ----------------------------------------------------------------- pallas wrappers

def attn_sublayer(x_q, x_kv, mask, p, gamma, beta, n_heads):
    """x_q:[B,Sq,D], x_kv:[B,Sk,D], mask:[B,Sq,Sk] -> LN(x_q + MHA(...)) : [B,Sq,D]"""
    b, sq, d = x_q.shape
    sk = x_kv.shape[1]
    dk = d // n_heads

    tq = sq if sq <= 128 else 128
    tk = sk if sk <= 128 else 128
    # TODO(synk): ragged seq lengths would need padded blocks + in-kernel length masking.
    assert sq % tq == 0 and sk % tk == 0, "sequence lengths must tile by 128"
    nq, nkv = sq // tq, sk // tk

    mask_i8 = (mask != 0).astype(jnp.int8)

    # VMEM budget: double-buffered activation blocks + (double-buffered) const weights
    # + scratch, with generous headroom.
    blk_bytes = 2 * 4 * (tq * d + tk * d + tq * d) + 2 * tq * tk
    wt_bytes = 2 * (4 * d * d * 2 + 4 * (3 * d + 4 * d))
    scr_bytes = n_heads * tq * (dk * (2 + 4) + 2 * 128 * 4)
    vmem_limit = min(2 * (blk_bytes + wt_bytes + scr_bytes) + (16 << 20), 64 << 20)

    flops = b * (2 * sq * d * d            # Q projection
                 + nq * 4 * sk * d * d     # K/V projection (recomputed per q tile)
                 + 4 * sq * sk * d         # scores + context, all heads
                 + 2 * sq * d * d)         # output projection
    cost = pl.CostEstimate(
        flops=flops,
        transcendentals=b * n_heads * sq * sk,
        bytes_accessed=4 * (2 * b * sq * d + b * sk * d) + b * sq * sk + 8 * d * d)

    kernel = functools.partial(_attn_sublayer_kernel, n_heads=n_heads, dk=dk)
    return pl.pallas_call(
        kernel,
        out_shape=jax.ShapeDtypeStruct((b, sq, d), jnp.float32),
        grid=(b, nq, nkv),
        in_specs=[
            pl.BlockSpec((1, tq, d), lambda bi, qi, ki: (bi, qi, 0)),    # x_q (residual + Q)
            pl.BlockSpec((1, tk, d), lambda bi, qi, ki: (bi, ki, 0)),    # x_kv
            pl.BlockSpec((1, tq, tk), lambda bi, qi, ki: (bi, qi, ki)),  # mask (int8)
            _const((n_heads, d, dk)),   # wq  [H,D,dk] bf16
            _const((n_heads, 1, dk)),   # bq
            _const((n_heads, d, dk)),   # wk
            _const((n_heads, 1, dk)),   # bk
            _const((n_heads, d, dk)),   # wv
            _const((n_heads, 1, dk)),   # bv
            _const((n_heads, dk, d)),   # wo  [H,dk,D] bf16
            _const((1, d)),             # bo
            _const((1, d)),             # LN gamma
            _const((1, d)),             # LN beta
        ],
        out_specs=pl.BlockSpec((1, tq, d), lambda bi, qi, ki: (bi, qi, 0)),
        scratch_shapes=[
            pltpu.VMEM((n_heads, tq, dk), jnp.bfloat16),   # per-head Q (bf16, cast once)
            pltpu.VMEM((n_heads, tq, dk), jnp.float32),    # per-head context accumulator
            pltpu.VMEM((n_heads, tq, 1), jnp.float32),     # running max
            pltpu.VMEM((n_heads, tq, 1), jnp.float32),     # running denominator
        ],
        compiler_params=pltpu.CompilerParams(
            dimension_semantics=("parallel", "parallel", "arbitrary"),
            vmem_limit_bytes=int(vmem_limit)),
        cost_estimate=cost,
    )(x_q, x_kv, mask_i8,
      p["wq3"], p["bq3"], p["wk3"], p["bk3"], p["wv3"], p["bv3"],
      p["wo3"], p["bo"], gamma, beta)


def ffn_sublayer(x2d, w1, b1, w2, b2, gamma, beta):
    """x2d:[N,D] -> LN(x + W2 relu(W1 x + b1) + b2) : [N,D]"""
    n, d = x2d.shape
    dff = w1.shape[1]
    tm = min(256, n)                       # big row tile keeps the MXU M-dim busy
    grid = (pl.cdiv(n, tm),)               # remainder handled by padded/masked edge block

    blk_bytes = 2 * 4 * (2 * tm * d)
    wt_bytes = 2 * (2 * (d * dff + dff * d) + 4 * (dff + 3 * d))
    vmem_limit = min(2 * (blk_bytes + wt_bytes) + (16 << 20), 64 << 20)

    cost = pl.CostEstimate(flops=4 * n * d * dff, transcendentals=0,
                           bytes_accessed=4 * 2 * n * d + 2 * 2 * d * dff)

    return pl.pallas_call(
        _ffn_sublayer_kernel,
        out_shape=jax.ShapeDtypeStruct((n, d), jnp.float32),
        grid=grid,
        in_specs=[
            pl.BlockSpec((tm, d), lambda i: (i, 0)),
            _const((d, dff)),    # w1 (bf16)
            _const((1, dff)),    # b1
            _const((dff, d)),    # w2 (bf16)
            _const((1, d)),      # b2
            _const((1, d)),      # LN gamma
            _const((1, d)),      # LN beta
        ],
        out_specs=pl.BlockSpec((tm, d), lambda i: (i, 0)),
        compiler_params=pltpu.CompilerParams(
            dimension_semantics=("parallel",),
            vmem_limit_bytes=int(vmem_limit)),
        cost_estimate=cost,
    )(x2d, w1, b1, w2, b2, gamma, beta)


# --------------------------------------------------------------------- model glue

def decoder_layer(x, mem, source_mask, target_mask, params, h):
    b, sq, d = x.shape

    # SelfAttention sublayer: x = LN(x + MHA(x, x, x, target_mask))
    x = attn_sublayer(x, x, target_mask, params["self_attn"],
                      params["ln1_g"], params["ln1_b"], h)

    # SourceTargetAttention sublayer: x = LN(x + MHA(q=x, k=v=mem, source_mask))
    x = attn_sublayer(x, mem, source_mask, params["st_attn"],
                      params["ln2_g"], params["ln2_b"], h)

    # FFN sublayer: x = LN(x + W2 relu(W1 x + b1) + b2)
    y = ffn_sublayer(x.reshape(b * sq, d),
                     params["ff_w1"], params["ff_b1"],
                     params["ff_w2"], params["ff_b2"],
                     params["ln3_g"], params["ln3_b"])
    return y.reshape(b, sq, d)


# ------------------------------------------------------------------------- params

def _split_cols(arr2d, h):
    # [R, D] -> [H, R, dk]: per-head column blocks (matches split of a D->D Linear).
    r, d = arr2d.shape
    return jnp.transpose(arr2d.reshape(r, h, d // h), (1, 0, 2))


def init_params(key, d_model, d_ff, h):
    ks = jax.random.split(key, 8)
    s = 0.02
    bf16 = jnp.bfloat16
    dk = d_model // h

    def attn_block(k):
        kk = jax.random.split(k, 8)

        def w(i, shape):
            return s * jax.random.normal(kk[i], shape, jnp.float32)

        wq, wk, wv = (w(0, (d_model, d_model)), w(1, (d_model, d_model)),
                      w(2, (d_model, d_model)))
        bq, bk, bv = w(3, (1, d_model)), w(4, (1, d_model)), w(5, (1, d_model))
        wo, bo = w(6, (d_model, d_model)), w(7, (1, d_model))
        return {
            "wq3": _split_cols(wq, h).astype(bf16),   # [H, D, dk]
            "bq3": _split_cols(bq, h),                # [H, 1, dk]
            "wk3": _split_cols(wk, h).astype(bf16),
            "bk3": _split_cols(bk, h),
            "wv3": _split_cols(wv, h).astype(bf16),
            "bv3": _split_cols(bv, h),
            "wo3": wo.reshape(h, dk, d_model).astype(bf16),   # [H, dk, D]
            "bo": bo,
        }

    return {
        "self_attn": attn_block(ks[0]),
        "st_attn": attn_block(ks[1]),
        "ff_w1": (s * jax.random.normal(ks[2], (d_model, d_ff), jnp.float32)).astype(bf16),
        "ff_b1": s * jax.random.normal(ks[3], (1, d_ff), jnp.float32),
        "ff_w2": (s * jax.random.normal(ks[4], (d_ff, d_model), jnp.float32)).astype(bf16),
        "ff_b2": s * jax.random.normal(ks[5], (1, d_model), jnp.float32),
        "ln1_g": jnp.ones((1, d_model), jnp.float32),
        "ln1_b": jnp.zeros((1, d_model), jnp.float32),
        "ln2_g": jnp.ones((1, d_model), jnp.float32),
        "ln2_b": jnp.zeros((1, d_model), jnp.float32),
        "ln3_g": jnp.ones((1, d_model), jnp.float32),
        "ln3_b": jnp.zeros((1, d_model), jnp.float32),
    }


# ----------------------------------------------------------------------------- main

if __name__ == "__main__":
    # Small, lane-dense configuration (scaled-down h=8/d_model=512/d_ff=2048 module):
    H = 2           # heads
    D_MODEL = 256   # d_model (dk = 128 -> lane-dense per-head tiles)
    D_FF = 512      # feed-forward hidden
    B = 2           # batch
    S_TGT = 128     # target (decoder) sequence length -> 1 q tile
    S_SRC = 256     # source (memory) sequence length -> 2 kv tiles (online softmax)

    key = jax.random.PRNGKey(0)
    k_x, k_mem, k_p = jax.random.split(key, 3)

    x = jax.random.normal(k_x, (B, S_TGT, D_MODEL), jnp.float32)
    mem = jax.random.normal(k_mem, (B, S_SRC, D_MODEL), jnp.float32)

    # target mask: causal [B, S_TGT, S_TGT]; source mask: all-ones [B, S_TGT, S_SRC]
    causal = jnp.tril(jnp.ones((S_TGT, S_TGT), jnp.float32))
    target_mask = jnp.broadcast_to(causal, (B, S_TGT, S_TGT))
    source_mask = jnp.ones((B, S_TGT, S_SRC), jnp.float32)

    params = init_params(k_p, D_MODEL, D_FF, H)

    fwd = jax.jit(functools.partial(decoder_layer, h=H))
    out = jax.block_until_ready(fwd(x, mem, source_mask, target_mask, params))

    assert out.shape == (B, S_TGT, D_MODEL), out.shape
    assert bool(jnp.all(jnp.isfinite(out)))
    print("KERNEL_OK")
</pallas_src>

<mosaic_0001>
module attributes {stable_mosaic.version = 11 : i64} {
  func.func @_attn_sublayer_kernel(%arg0: i32, %arg1: i32, %arg2: i32, %arg3: memref<1x128x256xf32, #tpu.memory_space<vmem>>, %arg4: memref<1x128x256xf32, #tpu.memory_space<vmem>>, %arg5: memref<1x128x128xi8, #tpu.memory_space<vmem>>, %arg6: memref<2x256x128xbf16, #tpu.memory_space<vmem>>, %arg7: memref<2x1x128xf32, #tpu.memory_space<vmem>>, %arg8: memref<2x256x128xbf16, #tpu.memory_space<vmem>>, %arg9: memref<2x1x128xf32, #tpu.memory_space<vmem>>, %arg10: memref<2x256x128xbf16, #tpu.memory_space<vmem>>, %arg11: memref<2x1x128xf32, #tpu.memory_space<vmem>>, %arg12: memref<2x128x256xbf16, #tpu.memory_space<vmem>>, %arg13: memref<1x256xf32, #tpu.memory_space<vmem>>, %arg14: memref<1x256xf32, #tpu.memory_space<vmem>>, %arg15: memref<1x256xf32, #tpu.memory_space<vmem>>, %arg16: memref<1x128x256xf32, #tpu.memory_space<vmem>>, %arg17: memref<2x128x128xbf16, #tpu.memory_space<vmem>>, %arg18: memref<2x128x128xf32, #tpu.memory_space<vmem>>, %arg19: memref<2x128x1xf32, #tpu.memory_space<vmem>>, %arg20: memref<2x128x1xf32, #tpu.memory_space<vmem>>) attributes {dimension_semantics = [#tpu.dimension_semantics<parallel>, #tpu.dimension_semantics<parallel>, #tpu.dimension_semantics<arbitrary>], iteration_bounds = array<i64: 2, 1, 2>, scalar_prefetch = 0 : i64, scratch_operands = 4 : i64, tpu.core_type = #tpu.core_type<tc>, window_params = [{transform_indices = @transform_0, window_bounds = array<i64: 1, 128, 256>}, {transform_indices = @transform_1, window_bounds = array<i64: 1, 128, 256>}, {transform_indices = @transform_2, window_bounds = array<i64: 1, 128, 128>}, {pipeline_mode = #tpu.pipeline_mode<synchronous>, transform_indices = @transform_3, window_bounds = array<i64: 2, 256, 128>}, {pipeline_mode = #tpu.pipeline_mode<synchronous>, transform_indices = @transform_4, window_bounds = array<i64: 2, 1, 128>}, {pipeline_mode = #tpu.pipeline_mode<synchronous>, transform_indices = @transform_5, window_bounds = array<i64: 2, 256, 128>}, {pipeline_mode = #tpu.pipeline_mode<synchronous>, transform_indices = @transform_6, window_bounds = array<i64: 2, 1, 128>}, {pipeline_mode = #tpu.pipeline_mode<synchronous>, transform_indices = @transform_7, window_bounds = array<i64: 2, 256, 128>}, {pipeline_mode = #tpu.pipeline_mode<synchronous>, transform_indices = @transform_8, window_bounds = array<i64: 2, 1, 128>}, {pipeline_mode = #tpu.pipeline_mode<synchronous>, transform_indices = @transform_9, window_bounds = array<i64: 2, 128, 256>}, {pipeline_mode = #tpu.pipeline_mode<synchronous>, transform_indices = @transform_10, window_bounds = array<i64: 1, 256>}, {pipeline_mode = #tpu.pipeline_mode<synchronous>, transform_indices = @transform_11, window_bounds = array<i64: 1, 256>}, {pipeline_mode = #tpu.pipeline_mode<synchronous>, transform_indices = @transform_12, window_bounds = array<i64: 1, 256>}, {transform_indices = @transform_13, window_bounds = array<i64: 1, 128, 256>}]} {
    %c0_i32 = arith.constant 0 : i32
    %0 = arith.cmpi eq, %arg2, %c0_i32 : i32
    %1 = arith.extui %0 : i1 to i32
    %c0_i32_0 = arith.constant 0 : i32
    %2 = arith.cmpi ne, %1, %c0_i32_0 : i32
    scf.if %2 {
      %c0_10 = arith.constant 0 : index
      %c0_11 = arith.constant 0 : index
      %c0_12 = arith.constant 0 : index
      %14 = vector.load %arg3[%c0_10, %c0_11, %c0_12] : memref<1x128x256xf32, #tpu.memory_space<vmem>>, vector<1x128x256xf32>
      %15 = vector.shape_cast %14 : vector<1x128x256xf32> to vector<128x256xf32>
      %16 = arith.truncf %15 : vector<128x256xf32> to vector<128x256xbf16>
      %c0_i32_13 = arith.constant 0 : i32
      %c2_i32_14 = arith.constant 2 : i32
      %17 = arith.addi %c0_i32_13, %c2_i32_14 : i32
      %c1_i32_15 = arith.constant 1 : i32
      scf.for %arg21 = %c0_i32_13 to %17 step %c1_i32_15  : i32 {
        %24 = arith.index_cast %arg21 : i32 to index
        %c0_28 = arith.constant 0 : index
        %c0_29 = arith.constant 0 : index
        %25 = vector.load %arg6[%24, %c0_28, %c0_29] : memref<2x256x128xbf16, #tpu.memory_space<vmem>>, vector<1x256x128xbf16>
        %26 = vector.shape_cast %25 : vector<1x256x128xbf16> to vector<256x128xbf16>
        %cst_30 = arith.constant dense<0.000000e+00> : vector<128x128xf32>
        %27 = tpu.matmul %16, %26, %cst_30 {dimension_numbers = #tpu.dot_dimension_numbers<[1], [0], [0], [1], [0, 0, 1, 1], [], []>} : vector<128x256xbf16>, vector<256x128xbf16>, vector<128x128xf32> -> vector<128x128xf32>
        %28 = arith.index_cast %arg21 : i32 to index
        %c0_31 = arith.constant 0 : index
        %c0_32 = arith.constant 0 : index
        %29 = vector.load %arg7[%28, %c0_31, %c0_32] : memref<2x1x128xf32, #tpu.memory_space<vmem>>, vector<1x1x128xf32>
        %30 = vector.shape_cast %29 : vector<1x1x128xf32> to vector<1x128xf32>
        %31 = vector.broadcast %30 : vector<1x128xf32> to vector<128x128xf32>
        %32 = arith.addf %27, %31 : vector<128x128xf32>
        %33 = arith.truncf %32 : vector<128x128xf32> to vector<128x128xbf16>
        %34 = arith.index_cast %arg21 : i32 to index
        %c0_33 = arith.constant 0 : index
        %c0_34 = arith.constant 0 : index
        %35 = vector.load %arg17[%34, %c0_33, %c0_34] : memref<2x128x128xbf16, #tpu.memory_space<vmem>>, vector<1x128x128xbf16>
        %36 = vector.shape_cast %35 : vector<1x128x128xbf16> to vector<128x128xbf16>
        %37 = vector.shape_cast %33 : vector<128x128xbf16> to vector<1x128x128xbf16>
        tpu.vector_store %arg17[%34, %c0_33, %c0_34], %37 {strides = array<i32>} : memref<2x128x128xbf16, #tpu.memory_space<vmem>>, vector<1x128x128xbf16>,
      }
      %c2_i32_16 = arith.constant 2 : i32
      %cst = arith.constant -1.000000e+30 : f32
      %18 = vector.broadcast %cst : f32 to vector<2x128x1xf32>
      %c0_17 = arith.constant 0 : index
      %c0_18 = arith.constant 0 : index
      %c0_19 = arith.constant 0 : index
      %19 = vector.load %arg19[%c0_17, %c0_18, %c0_19] : memref<2x128x1xf32, #tpu.memory_space<vmem>>, vector<2x128x1xf32>
      tpu.vector_store %arg19[%c0_17, %c0_18, %c0_19], %18 {strides = array<i32>} : memref<2x128x1xf32, #tpu.memory_space<vmem>>, vector<2x128x1xf32>,
      %cst_20 = arith.constant 0.000000e+00 : f32
      %20 = vector.broadcast %cst_20 : f32 to vector<2x128x1xf32>
      %c0_21 = arith.constant 0 : index
      %c0_22 = arith.constant 0 : index
      %c0_23 = arith.constant 0 : index
      %21 = vector.load %arg20[%c0_21, %c0_22, %c0_23] : memref<2x128x1xf32, #tpu.memory_space<vmem>>, vector<2x128x1xf32>
      tpu.vector_store %arg20[%c0_21, %c0_22, %c0_23], %20 {strides = array<i32>} : memref<2x128x1xf32, #tpu.memory_space<vmem>>, vector<2x128x1xf32>,
      %cst_24 = arith.constant 0.000000e+00 : f32
      %22 = vector.broadcast %cst_24 : f32 to vector<2x128x128xf32>
      %c0_25 = arith.constant 0 : index
      %c0_26 = arith.constant 0 : index
      %c0_27 = arith.constant 0 : index
      %23 = vector.load %arg18[%c0_25, %c0_26, %c0_27] : memref<2x128x128xf32, #tpu.memory_space<vmem>>, vector<2x128x128xf32>
      tpu.vector_store %arg18[%c0_25, %c0_26, %c0_27], %22 {strides = array<i32>} : memref<2x128x128xf32, #tpu.memory_space<vmem>>, vector<2x128x128xf32>,
    } else {
    }
    %c0 = arith.constant 0 : index
    %c0_1 = arith.constant 0 : index
    %c0_2 = arith.constant 0 : index
    %3 = vector.load %arg4[%c0, %c0_1, %c0_2] : memref<1x128x256xf32, #tpu.memory_space<vmem>>, vector<1x128x256xf32>
    %4 = vector.shape_cast %3 : vector<1x128x256xf32> to vector<128x256xf32>
    %5 = arith.truncf %4 : vector<128x256xf32> to vector<128x256xbf16>
    %c0_3 = arith.constant 0 : index
    %c0_4 = arith.constant 0 : index
    %c0_5 = arith.constant 0 : index
    %6 = vector.load %arg5[%c0_3, %c0_4, %c0_5] : memref<1x128x128xi8, #tpu.memory_space<vmem>>, vector<1x128x128xi8>
    %7 = vector.shape_cast %6 : vector<1x128x128xi8> to vector<128x128xi8>
    %c0_i8 = arith.constant 0 : i8
    %8 = vector.broadcast %c0_i8 : i8 to vector<128x128xi8>
    %9 = arith.cmpi ne, %7, %8 : vector<128x128xi8>
    %c0_i32_6 = arith.constant 0 : i32
    %c2_i32 = arith.constant 2 : i32
    %10 = arith.addi %c0_i32_6, %c2_i32 : i32
    %c1_i32 = arith.constant 1 : i32
    scf.for %arg21 = %c0_i32_6 to %10 step %c1_i32  : i32 {
      %14 = arith.index_cast %arg21 : i32 to index
      %c0_10 = arith.constant 0 : index
      %c0_11 = arith.constant 0 : index
      %15 = vector.load %arg8[%14, %c0_10, %c0_11] : memref<2x256x128xbf16, #tpu.memory_space<vmem>>, vector<1x256x128xbf16>
      %16 = vector.shape_cast %15 : vector<1x256x128xbf16> to vector<256x128xbf16>
      %cst = arith.constant dense<0.000000e+00> : vector<128x128xf32>
      %17 = tpu.matmul %5, %16, %cst {dimension_numbers = #tpu.dot_dimension_numbers<[1], [0], [0], [1], [0, 0, 1, 1], [], []>} : vector<128x256xbf16>, vector<256x128xbf16>, vector<128x128xf32> -> vector<128x128xf32>
      %18 = arith.index_cast %arg21 : i32 to index
      %c0_12 = arith.constant 0 : index
      %c0_13 = arith.constant 0 : index
      %19 = vector.load %arg9[%18, %c0_12, %c0_13] : memref<2x1x128xf32, #tpu.memory_space<vmem>>, vector<1x1x128xf32>
      %20 = vector.shape_cast %19 : vector<1x1x128xf32> to vector<1x128xf32>
      %21 = vector.broadcast %20 : vector<1x128xf32> to vector<128x128xf32>
      %22 = arith.addf %17, %21 : vector<128x128xf32>
      %23 = arith.truncf %22 : vector<128x128xf32> to vector<128x128xbf16>
      %24 = arith.index_cast %arg21 : i32 to index
      %c0_14 = arith.constant 0 : index
      %c0_15 = arith.constant 0 : index
      %25 = vector.load %arg10[%24, %c0_14, %c0_15] : memref<2x256x128xbf16, #tpu.memory_space<vmem>>, vector<1x256x128xbf16>
      %26 = vector.shape_cast %25 : vector<1x256x128xbf16> to vector<256x128xbf16>
      %cst_16 = arith.constant dense<0.000000e+00> : vector<128x128xf32>
      %27 = tpu.matmul %5, %26, %cst_16 {dimension_numbers = #tpu.dot_dimension_numbers<[1], [0], [0], [1], [0, 0, 1, 1], [], []>} : vector<128x256xbf16>, vector<256x128xbf16>, vector<128x128xf32> -> vector<128x128xf32>
      %28 = arith.index_cast %arg21 : i32 to index
      %c0_17 = arith.constant 0 : index
      %c0_18 = arith.constant 0 : index
      %29 = vector.load %arg11[%28, %c0_17, %c0_18] : memref<2x1x128xf32, #tpu.memory_space<vmem>>, vector<1x1x128xf32>
      %30 = vector.shape_cast %29 : vector<1x1x128xf32> to vector<1x128xf32>
      %31 = vector.broadcast %30 : vector<1x128xf32> to vector<128x128xf32>
      %32 = arith.addf %27, %31 : vector<128x128xf32>
      %33 = arith.truncf %32 : vector<128x128xf32> to vector<128x128xbf16>
      %34 = arith.index_cast %arg21 : i32 to index
      %c0_19 = arith.constant 0 : index
      %c0_20 = arith.constant 0 : index
      %35 = vector.load %arg17[%34, %c0_19, %c0_20] : memref<2x128x128xbf16, #tpu.memory_space<vmem>>, vector<1x128x128xbf16>
      %36 = vector.shape_cast %35 : vector<1x128x128xbf16> to vector<128x128xbf16>
      %cst_21 = arith.constant dense<0.000000e+00> : vector<128x128xf32>
      %37 = tpu.matmul %36, %23, %cst_21 {dimension_numbers = #tpu.dot_dimension_numbers<[1], [1], [0], [0], [0, 0, 1, 0], [], []>} : vector<128x128xbf16>, vector<128x128xbf16>, vector<128x128xf32> -> vector<128x128xf32>
      %cst_22 = arith.constant 0.0883883461 : f32
      %38 = vector.broadcast %cst_22 : f32 to vector<128x128xf32>
      %39 = arith.mulf %37, %38 : vector<128x128xf32>
      %cst_23 = arith.constant -1.000000e+09 : f32
      %40 = vector.broadcast %cst_23 : f32 to vector<128x128xf32>
      %41 = arith.select %9, %39, %40 : vector<128x128xi1>, vector<128x128xf32>
      %42 = arith.index_cast %arg21 : i32 to index
      %c0_24 = arith.constant 0 : index
      %c0_25 = arith.constant 0 : index
      %43 = vector.load %arg19[%42, %c0_24, %c0_25] : memref<2x128x1xf32, #tpu.memory_space<vmem>>, vector<1x128x1xf32>
      %44 = vector.shape_cast %43 : vector<1x128x1xf32> to vector<128x1xf32>
      %cst_26 = arith.constant dense<0xFF800000> : vector<128xf32>
      %45 = vector.multi_reduction <maximumf>, %41, %cst_26 [1] : vector<128x128xf32> to vector<128xf32>
      %46 = vector.shape_cast %45 : vector<128xf32> to vector<128x1xf32>
      %47 = arith.maximumf %44, %46 : vector<128x1xf32>
      %48 = arith.subf %44, %47 : vector<128x1xf32>
      %49 = math.exp %48 : vector<128x1xf32>
      %50 = vector.broadcast %47 : vector<128x1xf32> to vector<128x128xf32>
      %51 = arith.subf %41, %50 : vector<128x128xf32>
      %52 = math.exp %51 : vector<128x128xf32>
      %53 = arith.index_cast %arg21 : i32 to index
      %c0_27 = arith.constant 0 : index
      %c0_28 = arith.constant 0 : index
      %54 = vector.load %arg20[%53, %c0_27, %c0_28] : memref<2x128x1xf32, #tpu.memory_space<vmem>>, vector<1x128x1xf32>
      %55 = vector.shape_cast %54 : vector<1x128x1xf32> to vector<128x1xf32>
      %56 = arith.mulf %49, %55 : vector<128x1xf32>
      %cst_29 = arith.constant dense<0.000000e+00> : vector<128xf32>
      %57 = vector.multi_reduction <add>, %52, %cst_29 [1] : vector<128x128xf32> to vector<128xf32>
      %58 = vector.shape_cast %57 : vector<128xf32> to vector<128x1xf32>
      %59 = arith.addf %56, %58 : vector<128x1xf32>
      %60 = arith.index_cast %arg21 : i32 to index
      %c0_30 = arith.constant 0 : index
      %c0_31 = arith.constant 0 : index
      %61 = vector.load %arg20[%60, %c0_30, %c0_31] : memref<2x128x1xf32, #tpu.memory_space<vmem>>, vector<1x128x1xf32>
      %62 = vector.shape_cast %61 : vector<1x128x1xf32> to vector<128x1xf32>
      %63 = vector.shape_cast %59 : vector<128x1xf32> to vector<1x128x1xf32>
      tpu.vector_store %arg20[%60, %c0_30, %c0_31], %63 {strides = array<i32>} : memref<2x128x1xf32, #tpu.memory_space<vmem>>, vector<1x128x1xf32>,
      %64 = arith.index_cast %arg21 : i32 to index
      %c0_32 = arith.constant 0 : index
      %c0_33 = arith.constant 0 : index
      %65 = vector.load %arg18[%64, %c0_32, %c0_33] : memref<2x128x128xf32, #tpu.memory_space<vmem>>, vector<1x128x128xf32>
      %66 = vector.shape_cast %65 : vector<1x128x128xf32> to vector<128x128xf32>
      %67 = vector.broadcast %49 : vector<128x1xf32> to vector<128x128xf32>
      %68 = arith.mulf %67, %66 : vector<128x128xf32>
      %69 = arith.truncf %52 : vector<128x128xf32> to vector<128x128xbf16>
      %cst_34 = arith.constant dense<0.000000e+00> : vector<128x128xf32>
      %70 = tpu.matmul %69, %33, %cst_34 {dimension_numbers = #tpu.dot_dimension_numbers<[1], [0], [0], [1], [0, 0, 1, 1], [], []>} : vector<128x128xbf16>, vector<128x128xbf16>, vector<128x128xf32> -> vector<128x128xf32>
      %71 = arith.addf %68, %70 : vector<128x128xf32>
      %72 = arith.index_cast %arg21 : i32 to index
      %c0_35 = arith.constant 0 : index
      %c0_36 = arith.constant 0 : index
      %73 = vector.load %arg18[%72, %c0_35, %c0_36] : memref<2x128x128xf32, #tpu.memory_space<vmem>>, vector<1x128x128xf32>
      %74 = vector.shape_cast %73 : vector<1x128x128xf32> to vector<128x128xf32>
      %75 = vector.shape_cast %71 : vector<128x128xf32> to vector<1x128x128xf32>
      tpu.vector_store %arg18[%72, %c0_35, %c0_36], %75 {strides = array<i32>} : memref<2x128x128xf32, #tpu.memory_space<vmem>>, vector<1x128x128xf32>,
      %76 = arith.index_cast %arg21 : i32 to index
      %c0_37 = arith.constant 0 : index
      %c0_38 = arith.constant 0 : index
      %77 = vector.load %arg19[%76, %c0_37, %c0_38] : memref<2x128x1xf32, #tpu.memory_space<vmem>>, vector<1x128x1xf32>
      %78 = vector.shape_cast %77 : vector<1x128x1xf32> to vector<128x1xf32>
      %79 = vector.shape_cast %47 : vector<128x1xf32> to vector<1x128x1xf32>
      tpu.vector_store %arg19[%76, %c0_37, %c0_38], %79 {strides = array<i32>} : memref<2x128x1xf32, #tpu.memory_space<vmem>>, vector<1x128x1xf32>,
    }
    %c2_i32_7 = arith.constant 2 : i32
    %c1_i32_8 = arith.constant 1 : i32
    %11 = arith.cmpi eq, %arg2, %c1_i32_8 : i32
    %12 = arith.extui %11 : i1 to i32
    %c0_i32_9 = arith.constant 0 : i32
    %13 = arith.cmpi ne, %12, %c0_i32_9 : i32
    scf.if %13 {
      %cst = arith.constant 0.000000e+00 : f32
      %14 = vector.broadcast %cst : f32 to vector<128x256xf32>
      %c0_i32_10 = arith.constant 0 : i32
      %c2_i32_11 = arith.constant 2 : i32
      %15 = arith.addi %c0_i32_10, %c2_i32_11 : i32
      %c1_i32_12 = arith.constant 1 : i32
      %16 = scf.for %arg21 = %c0_i32_10 to %15 step %c1_i32_12 iter_args(%arg22 = %14) -> (vector<128x256xf32>)  : i32 {
        %52 = arith.index_cast %arg21 : i32 to index
        %c0_31 = arith.constant 0 : index
        %c0_32 = arith.constant 0 : index
        %53 = vector.load %arg18[%52, %c0_31, %c0_32] : memref<2x128x128xf32, #tpu.memory_space<vmem>>, vector<1x128x128xf32>
        %54 = vector.shape_cast %53 : vector<1x128x128xf32> to vector<128x128xf32>
        %55 = arith.index_cast %arg21 : i32 to index
        %c0_33 = arith.constant 0 : index
        %c0_34 = arith.constant 0 : index
        %56 = vector.load %arg20[%55, %c0_33, %c0_34] : memref<2x128x1xf32, #tpu.memory_space<vmem>>, vector<1x128x1xf32>
        %57 = vector.shape_cast %56 : vector<1x128x1xf32> to vector<128x1xf32>
        %58 = tpu.reciprocal %57 {approx = true} : vector<128x1xf32> -> vector<128x1xf32>
        %59 = vector.broadcast %58 : vector<128x1xf32> to vector<128x128xf32>
        %60 = arith.mulf %54, %59 : vector<128x128xf32>
        %61 = arith.truncf %60 : vector<128x128xf32> to vector<128x128xbf16>
        %62 = arith.index_cast %arg21 : i32 to index
        %c0_35 = arith.constant 0 : index
        %c0_36 = arith.constant 0 : index
        %63 = vector.load %arg12[%62, %c0_35, %c0_36] : memref<2x128x256xbf16, #tpu.memory_space<vmem>>, vector<1x128x256xbf16>
        %64 = vector.shape_cast %63 : vector<1x128x256xbf16> to vector<128x256xbf16>
        %cst_37 = arith.constant dense<0.000000e+00> : vector<128x256xf32>
        %65 = tpu.matmul %61, %64, %cst_37 {dimension_numbers = #tpu.dot_dimension_numbers<[1], [0], [0], [1], [0, 0, 1, 1], [], []>} : vector<128x128xbf16>, vector<128x256xbf16>, vector<128x256xf32> -> vector<128x256xf32>
        %66 = arith.addf %arg22, %65 : vector<128x256xf32>
        scf.yield %66 : vector<128x256xf32>
      }
      %c2_i32_13 = arith.constant 2 : i32
      %c0_14 = arith.constant 0 : index
      %c0_15 = arith.constant 0 : index
      %17 = vector.load %arg13[%c0_14, %c0_15] : memref<1x256xf32, #tpu.memory_space<vmem>>, vector<1x256xf32>
      %18 = vector.broadcast %17 : vector<1x256xf32> to vector<128x256xf32>
      %19 = arith.addf %16, %18 : vector<128x256xf32>
      %c0_16 = arith.constant 0 : index
      %c0_17 = arith.constant 0 : index
      %c0_18 = arith.constant 0 : index
      %20 = vector.load %arg3[%c0_16, %c0_17, %c0_18] : memref<1x128x256xf32, #tpu.memory_space<vmem>>, vector<1x128x256xf32>
      %21 = vector.shape_cast %20 : vector<1x128x256xf32> to vector<128x256xf32>
      %c0_19 = arith.constant 0 : index
      %c0_20 = arith.constant 0 : index
      %22 = vector.load %arg14[%c0_19, %c0_20] : memref<1x256xf32, #tpu.memory_space<vmem>>, vector<1x256xf32>
      %c0_21 = arith.constant 0 : index
      %c0_22 = arith.constant 0 : index
      %23 = vector.load %arg15[%c0_21, %c0_22] : memref<1x256xf32, #tpu.memory_space<vmem>>, vector<1x256xf32>
      %24 = arith.addf %21, %19 : vector<128x256xf32>
      %cst_23 = arith.constant dense<0.000000e+00> : vector<128xf32>
      %25 = vector.multi_reduction <add>, %24, %cst_23 [1] : vector<128x256xf32> to vector<128xf32>
      %26 = vector.shape_cast %25 : vector<128xf32> to vector<128x1xf32>
      %cst_24 = arith.constant 2.560000e+02 : f32
      %27 = vector.broadcast %cst_24 : f32 to vector<128x1xf32>
      %28 = arith.divf %26, %27 : vector<128x1xf32>
      %29 = vector.broadcast %28 : vector<128x1xf32> to vector<128x256xf32>
      %30 = arith.subf %24, %29 : vector<128x256xf32>
      %31 = vector.broadcast %28 : vector<128x1xf32> to vector<128x256xf32>
      %32 = arith.subf %24, %31 : vector<128x256xf32>
      %33 = arith.mulf %30, %32 : vector<128x256xf32>
      %cst_25 = arith.constant dense<0.000000e+00> : vector<128xf32>
      %34 = vector.multi_reduction <add>, %33, %cst_25 [1] : vector<128x256xf32> to vector<128xf32>
      %35 = vector.shape_cast %34 : vector<128xf32> to vector<128x1xf32>
      %cst_26 = arith.constant 2.560000e+02 : f32
      %36 = vector.broadcast %cst_26 : f32 to vector<128x1xf32>
      %37 = arith.divf %35, %36 : vector<128x1xf32>
      %38 = vector.broadcast %28 : vector<128x1xf32> to vector<128x256xf32>
      %39 = arith.subf %24, %38 : vector<128x256xf32>
      %cst_27 = arith.constant 9.99999974E-6 : f32
      %40 = vector.broadcast %cst_27 : f32 to vector<128x1xf32>
      %41 = arith.addf %37, %40 : vector<128x1xf32>
      %42 = math.rsqrt %41 : vector<128x1xf32>
      %43 = vector.broadcast %42 : vector<128x1xf32> to vector<128x256xf32>
      %44 = arith.mulf %39, %43 : vector<128x256xf32>
      %45 = vector.broadcast %22 : vector<1x256xf32> to vector<128x256xf32>
      %46 = arith.mulf %44, %45 : vector<128x256xf32>
      %47 = vector.broadcast %23 : vector<1x256xf32> to vector<128x256xf32>
      %48 = arith.addf %46, %47 : vector<128x256xf32>
      %c0_28 = arith.constant 0 : index
      %c0_29 = arith.constant 0 : index
      %c0_30 = arith.constant 0 : index
      %49 = vector.load %arg16[%c0_28, %c0_29, %c0_30] : memref<1x128x256xf32, #tpu.memory_space<vmem>>, vector<1x128x256xf32>
      %50 = vector.shape_cast %49 : vector<1x128x256xf32> to vector<128x256xf32>
      %51 = vector.shape_cast %48 : vector<128x256xf32> to vector<1x128x256xf32>
      tpu.vector_store %arg16[%c0_28, %c0_29, %c0_30], %51 {strides = array<i32>} : memref<1x128x256xf32, #tpu.memory_space<vmem>>, vector<1x128x256xf32>,
    } else {
    }
    return
  }
  func.func @transform_0(%arg0: i32, %arg1: i32, %arg2: i32) -> (i32, i32, i32) {
    %c0_i32 = arith.constant 0 : i32
    %c0_i32_0 = arith.constant 0 : i32
    return %arg0, %arg1, %c0_i32 : i32, i32, i32
  }
  func.func @transform_1(%arg0: i32, %arg1: i32, %arg2: i32) -> (i32, i32, i32) {
    %c0_i32 = arith.constant 0 : i32
    %c0_i32_0 = arith.constant 0 : i32
    return %arg0, %arg2, %c0_i32 : i32, i32, i32
  }
  func.func @transform_2(%arg0: i32, %arg1: i32, %arg2: i32) -> (i32, i32, i32) {
    %c0_i32 = arith.constant 0 : i32
    return %arg0, %arg1, %arg2 : i32, i32, i32
  }
  func.func @transform_3(%arg0: i32, %arg1: i32, %arg2: i32) -> (i32, i32, i32) {
    %c0_i32 = arith.constant 0 : i32
    %c0_i32_0 = arith.constant 0 : i32
    %c0_i32_1 = arith.constant 0 : i32
    %c0_i32_2 = arith.constant 0 : i32
    return %c0_i32, %c0_i32_0, %c0_i32_1 : i32, i32, i32
  }
  func.func @transform_4(%arg0: i32, %arg1: i32, %arg2: i32) -> (i32, i32, i32) {
    %c0_i32 = arith.constant 0 : i32
    %c0_i32_0 = arith.constant 0 : i32
    %c0_i32_1 = arith.constant 0 : i32
    %c0_i32_2 = arith.constant 0 : i32
    return %c0_i32, %c0_i32_0, %c0_i32_1 : i32, i32, i32
  }
  func.func @transform_5(%arg0: i32, %arg1: i32, %arg2: i32) -> (i32, i32, i32) {
    %c0_i32 = arith.constant 0 : i32
    %c0_i32_0 = arith.constant 0 : i32
    %c0_i32_1 = arith.constant 0 : i32
    %c0_i32_2 = arith.constant 0 : i32
    return %c0_i32, %c0_i32_0, %c0_i32_1 : i32, i32, i32
  }
  func.func @transform_6(%arg0: i32, %arg1: i32, %arg2: i32) -> (i32, i32, i32) {
    %c0_i32 = arith.constant 0 : i32
    %c0_i32_0 = arith.constant 0 : i32
    %c0_i32_1 = arith.constant 0 : i32
    %c0_i32_2 = arith.constant 0 : i32
    return %c0_i32, %c0_i32_0, %c0_i32_1 : i32, i32, i32
  }
  func.func @transform_7(%arg0: i32, %arg1: i32, %arg2: i32) -> (i32, i32, i32) {
    %c0_i32 = arith.constant 0 : i32
    %c0_i32_0 = arith.constant 0 : i32
    %c0_i32_1 = arith.constant 0 : i32
    %c0_i32_2 = arith.constant 0 : i32
    return %c0_i32, %c0_i32_0, %c0_i32_1 : i32, i32, i32
  }
  func.func @transform_8(%arg0: i32, %arg1: i32, %arg2: i32) -> (i32, i32, i32) {
    %c0_i32 = arith.constant 0 : i32
    %c0_i32_0 = arith.constant 0 : i32
    %c0_i32_1 = arith.constant 0 : i32
    %c0_i32_2 = arith.constant 0 : i32
    return %c0_i32, %c0_i32_0, %c0_i32_1 : i32, i32, i32
  }
  func.func @transform_9(%arg0: i32, %arg1: i32, %arg2: i32) -> (i32, i32, i32) {
    %c0_i32 = arith.constant 0 : i32
    %c0_i32_0 = arith.constant 0 : i32
    %c0_i32_1 = arith.constant 0 : i32
    %c0_i32_2 = arith.constant 0 : i32
    return %c0_i32, %c0_i32_0, %c0_i32_1 : i32, i32, i32
  }
  func.func @transform_10(%arg0: i32, %arg1: i32, %arg2: i32) -> (i32, i32) {
    %c0_i32 = arith.constant 0 : i32
    %c0_i32_0 = arith.constant 0 : i32
    %c0_i32_1 = arith.constant 0 : i32
    return %c0_i32, %c0_i32_0 : i32, i32
  }
  func.func @transform_11(%arg0: i32, %arg1: i32, %arg2: i32) -> (i32, i32) {
    %c0_i32 = arith.constant 0 : i32
    %c0_i32_0 = arith.constant 0 : i32
    %c0_i32_1 = arith.constant 0 : i32
    return %c0_i32, %c0_i32_0 : i32, i32
  }
  func.func @transform_12(%arg0: i32, %arg1: i32, %arg2: i32) -> (i32, i32) {
    %c0_i32 = arith.constant 0 : i32
    %c0_i32_0 = arith.constant 0 : i32
    %c0_i32_1 = arith.constant 0 : i32
    return %c0_i32, %c0_i32_0 : i32, i32
  }
  func.func @transform_13(%arg0: i32, %arg1: i32, %arg2: i32) -> (i32, i32, i32) {
    %c0_i32 = arith.constant 0 : i32
    %c0_i32_0 = arith.constant 0 : i32
    return %arg0, %arg1, %c0_i32 : i32, i32, i32
  }
}

module attributes {stable_mosaic.version = 11 : i64} {
  func.func @_attn_sublayer_kernel(%arg0: i32, %arg1: i32, %arg2: i32, %arg3: memref<1x128x256xf32, #tpu.memory_space<vmem>>, %arg4: memref<1x128x256xf32, #tpu.memory_space<vmem>>, %arg5: memref<1x128x128xi8, #tpu.memory_space<vmem>>, %arg6: memref<2x256x128xbf16, #tpu.memory_space<vmem>>, %arg7: memref<2x1x128xf32, #tpu.memory_space<vmem>>, %arg8: memref<2x256x128xbf16, #tpu.memory_space<vmem>>, %arg9: memref<2x1x128xf32, #tpu.memory_space<vmem>>, %arg10: memref<2x256x128xbf16, #tpu.memory_space<vmem>>, %arg11: memref<2x1x128xf32, #tpu.memory_space<vmem>>, %arg12: memref<2x128x256xbf16, #tpu.memory_space<vmem>>, %arg13: memref<1x256xf32, #tpu.memory_space<vmem>>, %arg14: memref<1x256xf32, #tpu.memory_space<vmem>>, %arg15: memref<1x256xf32, #tpu.memory_space<vmem>>, %arg16: memref<1x128x256xf32, #tpu.memory_space<vmem>>, %arg17: memref<2x128x128xbf16, #tpu.memory_space<vmem>>, %arg18: memref<2x128x128xf32, #tpu.memory_space<vmem>>, %arg19: memref<2x128x1xf32, #tpu.memory_space<vmem>>, %arg20: memref<2x128x1xf32, #tpu.memory_space<vmem>>) attributes {dimension_semantics = [#tpu.dimension_semantics<parallel>, #tpu.dimension_semantics<parallel>, #tpu.dimension_semantics<arbitrary>], iteration_bounds = array<i64: 2, 1, 1>, scalar_prefetch = 0 : i64, scratch_operands = 4 : i64, tpu.core_type = #tpu.core_type<tc>, window_params = [{transform_indices = @transform_0, window_bounds = array<i64: 1, 128, 256>}, {transform_indices = @transform_1, window_bounds = array<i64: 1, 128, 256>}, {transform_indices = @transform_2, window_bounds = array<i64: 1, 128, 128>}, {pipeline_mode = #tpu.pipeline_mode<synchronous>, transform_indices = @transform_3, window_bounds = array<i64: 2, 256, 128>}, {pipeline_mode = #tpu.pipeline_mode<synchronous>, transform_indices = @transform_4, window_bounds = array<i64: 2, 1, 128>}, {pipeline_mode = #tpu.pipeline_mode<synchronous>, transform_indices = @transform_5, window_bounds = array<i64: 2, 256, 128>}, {pipeline_mode = #tpu.pipeline_mode<synchronous>, transform_indices = @transform_6, window_bounds = array<i64: 2, 1, 128>}, {pipeline_mode = #tpu.pipeline_mode<synchronous>, transform_indices = @transform_7, window_bounds = array<i64: 2, 256, 128>}, {pipeline_mode = #tpu.pipeline_mode<synchronous>, transform_indices = @transform_8, window_bounds = array<i64: 2, 1, 128>}, {pipeline_mode = #tpu.pipeline_mode<synchronous>, transform_indices = @transform_9, window_bounds = array<i64: 2, 128, 256>}, {pipeline_mode = #tpu.pipeline_mode<synchronous>, transform_indices = @transform_10, window_bounds = array<i64: 1, 256>}, {pipeline_mode = #tpu.pipeline_mode<synchronous>, transform_indices = @transform_11, window_bounds = array<i64: 1, 256>}, {pipeline_mode = #tpu.pipeline_mode<synchronous>, transform_indices = @transform_12, window_bounds = array<i64: 1, 256>}, {transform_indices = @transform_13, window_bounds = array<i64: 1, 128, 256>}]} {
    %c0_i32 = arith.constant 0 : i32
    %0 = arith.cmpi eq, %arg2, %c0_i32 : i32
    %1 = arith.extui %0 : i1 to i32
    %c0_i32_0 = arith.constant 0 : i32
    %2 = arith.cmpi ne, %1, %c0_i32_0 : i32
    scf.if %2 {
      %c0_10 = arith.constant 0 : index
      %c0_11 = arith.constant 0 : index
      %c0_12 = arith.constant 0 : index
      %14 = vector.load %arg3[%c0_10, %c0_11, %c0_12] : memref<1x128x256xf32, #tpu.memory_space<vmem>>, vector<1x128x256xf32>
      %15 = vector.shape_cast %14 : vector<1x128x256xf32> to vector<128x256xf32>
      %16 = arith.truncf %15 : vector<128x256xf32> to vector<128x256xbf16>
      %c0_i32_13 = arith.constant 0 : i32
      %c2_i32_14 = arith.constant 2 : i32
      %17 = arith.addi %c0_i32_13, %c2_i32_14 : i32
      %c1_i32_15 = arith.constant 1 : i32
      scf.for %arg21 = %c0_i32_13 to %17 step %c1_i32_15  : i32 {
        %24 = arith.index_cast %arg21 : i32 to index
        %c0_28 = arith.constant 0 : index
        %c0_29 = arith.constant 0 : index
        %25 = vector.load %arg6[%24, %c0_28, %c0_29] : memref<2x256x128xbf16, #tpu.memory_space<vmem>>, vector<1x256x128xbf16>
        %26 = vector.shape_cast %25 : vector<1x256x128xbf16> to vector<256x128xbf16>
        %cst_30 = arith.constant dense<0.000000e+00> : vector<128x128xf32>
        %27 = tpu.matmul %16, %26, %cst_30 {dimension_numbers = #tpu.dot_dimension_numbers<[1], [0], [0], [1], [0, 0, 1, 1], [], []>} : vector<128x256xbf16>, vector<256x128xbf16>, vector<128x128xf32> -> vector<128x128xf32>
        %28 = arith.index_cast %arg21 : i32 to index
        %c0_31 = arith.constant 0 : index
        %c0_32 = arith.constant 0 : index
        %29 = vector.load %arg7[%28, %c0_31, %c0_32] : memref<2x1x128xf32, #tpu.memory_space<vmem>>, vector<1x1x128xf32>
        %30 = vector.shape_cast %29 : vector<1x1x128xf32> to vector<1x128xf32>
        %31 = vector.broadcast %30 : vector<1x128xf32> to vector<128x128xf32>
        %32 = arith.addf %27, %31 : vector<128x128xf32>
        %33 = arith.truncf %32 : vector<128x128xf32> to vector<128x128xbf16>
        %34 = arith.index_cast %arg21 : i32 to index
        %c0_33 = arith.constant 0 : index
        %c0_34 = arith.constant 0 : index
        %35 = vector.load %arg17[%34, %c0_33, %c0_34] : memref<2x128x128xbf16, #tpu.memory_space<vmem>>, vector<1x128x128xbf16>
        %36 = vector.shape_cast %35 : vector<1x128x128xbf16> to vector<128x128xbf16>
        %37 = vector.shape_cast %33 : vector<128x128xbf16> to vector<1x128x128xbf16>
        tpu.vector_store %arg17[%34, %c0_33, %c0_34], %37 {strides = array<i32>} : memref<2x128x128xbf16, #tpu.memory_space<vmem>>, vector<1x128x128xbf16>,
      }
      %c2_i32_16 = arith.constant 2 : i32
      %cst = arith.constant -1.000000e+30 : f32
      %18 = vector.broadcast %cst : f32 to vector<2x128x1xf32>
      %c0_17 = arith.constant 0 : index
      %c0_18 = arith.constant 0 : index
      %c0_19 = arith.constant 0 : index
      %19 = vector.load %arg19[%c0_17, %c0_18, %c0_19] : memref<2x128x1xf32, #tpu.memory_space<vmem>>, vector<2x128x1xf32>
      tpu.vector_store %arg19[%c0_17, %c0_18, %c0_19], %18 {strides = array<i32>} : memref<2x128x1xf32, #tpu.memory_space<vmem>>, vector<2x128x1xf32>,
      %cst_20 = arith.constant 0.000000e+00 : f32
      %20 = vector.broadcast %cst_20 : f32 to vector<2x128x1xf32>
      %c0_21 = arith.constant 0 : index
      %c0_22 = arith.constant 0 : index
      %c0_23 = arith.constant 0 : index
      %21 = vector.load %arg20[%c0_21, %c0_22, %c0_23] : memref<2x128x1xf32, #tpu.memory_space<vmem>>, vector<2x128x1xf32>
      tpu.vector_store %arg20[%c0_21, %c0_22, %c0_23], %20 {strides = array<i32>} : memref<2x128x1xf32, #tpu.memory_space<vmem>>, vector<2x128x1xf32>,
      %cst_24 = arith.constant 0.000000e+00 : f32
      %22 = vector.broadcast %cst_24 : f32 to vector<2x128x128xf32>
      %c0_25 = arith.constant 0 : index
      %c0_26 = arith.constant 0 : index
      %c0_27 = arith.constant 0 : index
      %23 = vector.load %arg18[%c0_25, %c0_26, %c0_27] : memref<2x128x128xf32, #tpu.memory_space<vmem>>, vector<2x128x128xf32>
      tpu.vector_store %arg18[%c0_25, %c0_26, %c0_27], %22 {strides = array<i32>} : memref<2x128x128xf32, #tpu.memory_space<vmem>>, vector<2x128x128xf32>,
    } else {
    }
    %c0 = arith.constant 0 : index
    %c0_1 = arith.constant 0 : index
    %c0_2 = arith.constant 0 : index
    %3 = vector.load %arg4[%c0, %c0_1, %c0_2] : memref<1x128x256xf32, #tpu.memory_space<vmem>>, vector<1x128x256xf32>
    %4 = vector.shape_cast %3 : vector<1x128x256xf32> to vector<128x256xf32>
    %5 = arith.truncf %4 : vector<128x256xf32> to vector<128x256xbf16>
    %c0_3 = arith.constant 0 : index
    %c0_4 = arith.constant 0 : index
    %c0_5 = arith.constant 0 : index
    %6 = vector.load %arg5[%c0_3, %c0_4, %c0_5] : memref<1x128x128xi8, #tpu.memory_space<vmem>>, vector<1x128x128xi8>
    %7 = vector.shape_cast %6 : vector<1x128x128xi8> to vector<128x128xi8>
    %c0_i8 = arith.constant 0 : i8
    %8 = vector.broadcast %c0_i8 : i8 to vector<128x128xi8>
    %9 = arith.cmpi ne, %7, %8 : vector<128x128xi8>
    %c0_i32_6 = arith.constant 0 : i32
    %c2_i32 = arith.constant 2 : i32
    %10 = arith.addi %c0_i32_6, %c2_i32 : i32
    %c1_i32 = arith.constant 1 : i32
    scf.for %arg21 = %c0_i32_6 to %10 step %c1_i32  : i32 {
      %14 = arith.index_cast %arg21 : i32 to index
      %c0_10 = arith.constant 0 : index
      %c0_11 = arith.constant 0 : index
      %15 = vector.load %arg8[%14, %c0_10, %c0_11] : memref<2x256x128xbf16, #tpu.memory_space<vmem>>, vector<1x256x128xbf16>
      %16 = vector.shape_cast %15 : vector<1x256x128xbf16> to vector<256x128xbf16>
      %cst = arith.constant dense<0.000000e+00> : vector<128x128xf32>
      %17 = tpu.matmul %5, %16, %cst {dimension_numbers = #tpu.dot_dimension_numbers<[1], [0], [0], [1], [0, 0, 1, 1], [], []>} : vector<128x256xbf16>, vector<256x128xbf16>, vector<128x128xf32> -> vector<128x128xf32>
      %18 = arith.index_cast %arg21 : i32 to index
      %c0_12 = arith.constant 0 : index
      %c0_13 = arith.constant 0 : index
      %19 = vector.load %arg9[%18, %c0_12, %c0_13] : memref<2x1x128xf32, #tpu.memory_space<vmem>>, vector<1x1x128xf32>
      %20 = vector.shape_cast %19 : vector<1x1x128xf32> to vector<1x128xf32>
      %21 = vector.broadcast %20 : vector<1x128xf32> to vector<128x128xf32>
      %22 = arith.addf %17, %21 : vector<128x128xf32>
      %23 = arith.truncf %22 : vector<128x128xf32> to vector<128x128xbf16>
      %24 = arith.index_cast %arg21 : i32 to index
      %c0_14 = arith.constant 0 : index
      %c0_15 = arith.constant 0 : index
      %25 = vector.load %arg10[%24, %c0_14, %c0_15] : memref<2x256x128xbf16, #tpu.memory_space<vmem>>, vector<1x256x128xbf16>
      %26 = vector.shape_cast %25 : vector<1x256x128xbf16> to vector<256x128xbf16>
      %cst_16 = arith.constant dense<0.000000e+00> : vector<128x128xf32>
      %27 = tpu.matmul %5, %26, %cst_16 {dimension_numbers = #tpu.dot_dimension_numbers<[1], [0], [0], [1], [0, 0, 1, 1], [], []>} : vector<128x256xbf16>, vector<256x128xbf16>, vector<128x128xf32> -> vector<128x128xf32>
      %28 = arith.index_cast %arg21 : i32 to index
      %c0_17 = arith.constant 0 : index
      %c0_18 = arith.constant 0 : index
      %29 = vector.load %arg11[%28, %c0_17, %c0_18] : memref<2x1x128xf32, #tpu.memory_space<vmem>>, vector<1x1x128xf32>
      %30 = vector.shape_cast %29 : vector<1x1x128xf32> to vector<1x128xf32>
      %31 = vector.broadcast %30 : vector<1x128xf32> to vector<128x128xf32>
      %32 = arith.addf %27, %31 : vector<128x128xf32>
      %33 = arith.truncf %32 : vector<128x128xf32> to vector<128x128xbf16>
      %34 = arith.index_cast %arg21 : i32 to index
      %c0_19 = arith.constant 0 : index
      %c0_20 = arith.constant 0 : index
      %35 = vector.load %arg17[%34, %c0_19, %c0_20] : memref<2x128x128xbf16, #tpu.memory_space<vmem>>, vector<1x128x128xbf16>
      %36 = vector.shape_cast %35 : vector<1x128x128xbf16> to vector<128x128xbf16>
      %cst_21 = arith.constant dense<0.000000e+00> : vector<128x128xf32>
      %37 = tpu.matmul %36, %23, %cst_21 {dimension_numbers = #tpu.dot_dimension_numbers<[1], [1], [0], [0], [0, 0, 1, 0], [], []>} : vector<128x128xbf16>, vector<128x128xbf16>, vector<128x128xf32> -> vector<128x128xf32>
      %cst_22 = arith.constant 0.0883883461 : f32
      %38 = vector.broadcast %cst_22 : f32 to vector<128x128xf32>
      %39 = arith.mulf %37, %38 : vector<128x128xf32>
      %cst_23 = arith.constant -1.000000e+09 : f32
      %40 = vector.broadcast %cst_23 : f32 to vector<128x128xf32>
      %41 = arith.select %9, %39, %40 : vector<128x128xi1>, vector<128x128xf32>
      %42 = arith.index_cast %arg21 : i32 to index
      %c0_24 = arith.constant 0 : index
      %c0_25 = arith.constant 0 : index
      %43 = vector.load %arg19[%42, %c0_24, %c0_25] : memref<2x128x1xf32, #tpu.memory_space<vmem>>, vector<1x128x1xf32>
      %44 = vector.shape_cast %43 : vector<1x128x1xf32> to vector<128x1xf32>
      %cst_26 = arith.constant dense<0xFF800000> : vector<128xf32>
      %45 = vector.multi_reduction <maximumf>, %41, %cst_26 [1] : vector<128x128xf32> to vector<128xf32>
      %46 = vector.shape_cast %45 : vector<128xf32> to vector<128x1xf32>
      %47 = arith.maximumf %44, %46 : vector<128x1xf32>
      %48 = arith.subf %44, %47 : vector<128x1xf32>
      %49 = math.exp %48 : vector<128x1xf32>
      %50 = vector.broadcast %47 : vector<128x1xf32> to vector<128x128xf32>
      %51 = arith.subf %41, %50 : vector<128x128xf32>
      %52 = math.exp %51 : vector<128x128xf32>
      %53 = arith.index_cast %arg21 : i32 to index
      %c0_27 = arith.constant 0 : index
      %c0_28 = arith.constant 0 : index
      %54 = vector.load %arg20[%53, %c0_27, %c0_28] : memref<2x128x1xf32, #tpu.memory_space<vmem>>, vector<1x128x1xf32>
      %55 = vector.shape_cast %54 : vector<1x128x1xf32> to vector<128x1xf32>
      %56 = arith.mulf %49, %55 : vector<128x1xf32>
      %cst_29 = arith.constant dense<0.000000e+00> : vector<128xf32>
      %57 = vector.multi_reduction <add>, %52, %cst_29 [1] : vector<128x128xf32> to vector<128xf32>
      %58 = vector.shape_cast %57 : vector<128xf32> to vector<128x1xf32>
      %59 = arith.addf %56, %58 : vector<128x1xf32>
      %60 = arith.index_cast %arg21 : i32 to index
      %c0_30 = arith.constant 0 : index
      %c0_31 = arith.constant 0 : index
      %61 = vector.load %arg20[%60, %c0_30, %c0_31] : memref<2x128x1xf32, #tpu.memory_space<vmem>>, vector<1x128x1xf32>
      %62 = vector.shape_cast %61 : vector<1x128x1xf32> to vector<128x1xf32>
      %63 = vector.shape_cast %59 : vector<128x1xf32> to vector<1x128x1xf32>
      tpu.vector_store %arg20[%60, %c0_30, %c0_31], %63 {strides = array<i32>} : memref<2x128x1xf32, #tpu.memory_space<vmem>>, vector<1x128x1xf32>,
      %64 = arith.index_cast %arg21 : i32 to index
      %c0_32 = arith.constant 0 : index
      %c0_33 = arith.constant 0 : index
      %65 = vector.load %arg18[%64, %c0_32, %c0_33] : memref<2x128x128xf32, #tpu.memory_space<vmem>>, vector<1x128x128xf32>
      %66 = vector.shape_cast %65 : vector<1x128x128xf32> to vector<128x128xf32>
      %67 = vector.broadcast %49 : vector<128x1xf32> to vector<128x128xf32>
      %68 = arith.mulf %67, %66 : vector<128x128xf32>
      %69 = arith.truncf %52 : vector<128x128xf32> to vector<128x128xbf16>
      %cst_34 = arith.constant dense<0.000000e+00> : vector<128x128xf32>
      %70 = tpu.matmul %69, %33, %cst_34 {dimension_numbers = #tpu.dot_dimension_numbers<[1], [0], [0], [1], [0, 0, 1, 1], [], []>} : vector<128x128xbf16>, vector<128x128xbf16>, vector<128x128xf32> -> vector<128x128xf32>
      %71 = arith.addf %68, %70 : vector<128x128xf32>
      %72 = arith.index_cast %arg21 : i32 to index
      %c0_35 = arith.constant 0 : index
      %c0_36 = arith.constant 0 : index
      %73 = vector.load %arg18[%72, %c0_35, %c0_36] : memref<2x128x128xf32, #tpu.memory_space<vmem>>, vector<1x128x128xf32>
      %74 = vector.shape_cast %73 : vector<1x128x128xf32> to vector<128x128xf32>
      %75 = vector.shape_cast %71 : vector<128x128xf32> to vector<1x128x128xf32>
      tpu.vector_store %arg18[%72, %c0_35, %c0_36], %75 {strides = array<i32>} : memref<2x128x128xf32, #tpu.memory_space<vmem>>, vector<1x128x128xf32>,
      %76 = arith.index_cast %arg21 : i32 to index
      %c0_37 = arith.constant 0 : index
      %c0_38 = arith.constant 0 : index
      %77 = vector.load %arg19[%76, %c0_37, %c0_38] : memref<2x128x1xf32, #tpu.memory_space<vmem>>, vector<1x128x1xf32>
      %78 = vector.shape_cast %77 : vector<1x128x1xf32> to vector<128x1xf32>
      %79 = vector.shape_cast %47 : vector<128x1xf32> to vector<1x128x1xf32>
      tpu.vector_store %arg19[%76, %c0_37, %c0_38], %79 {strides = array<i32>} : memref<2x128x1xf32, #tpu.memory_space<vmem>>, vector<1x128x1xf32>,
    }
    %c2_i32_7 = arith.constant 2 : i32
    %c0_i32_8 = arith.constant 0 : i32
    %11 = arith.cmpi eq, %arg2, %c0_i32_8 : i32
    %12 = arith.extui %11 : i1 to i32
    %c0_i32_9 = arith.constant 0 : i32
    %13 = arith.cmpi ne, %12, %c0_i32_9 : i32
    scf.if %13 {
      %cst = arith.constant 0.000000e+00 : f32
      %14 = vector.broadcast %cst : f32 to vector<128x256xf32>
      %c0_i32_10 = arith.constant 0 : i32
      %c2_i32_11 = arith.constant 2 : i32
      %15 = arith.addi %c0_i32_10, %c2_i32_11 : i32
      %c1_i32_12 = arith.constant 1 : i32
      %16 = scf.for %arg21 = %c0_i32_10 to %15 step %c1_i32_12 iter_args(%arg22 = %14) -> (vector<128x256xf32>)  : i32 {
        %52 = arith.index_cast %arg21 : i32 to index
        %c0_31 = arith.constant 0 : index
        %c0_32 = arith.constant 0 : index
        %53 = vector.load %arg18[%52, %c0_31, %c0_32] : memref<2x128x128xf32, #tpu.memory_space<vmem>>, vector<1x128x128xf32>
        %54 = vector.shape_cast %53 : vector<1x128x128xf32> to vector<128x128xf32>
        %55 = arith.index_cast %arg21 : i32 to index
        %c0_33 = arith.constant 0 : index
        %c0_34 = arith.constant 0 : index
        %56 = vector.load %arg20[%55, %c0_33, %c0_34] : memref<2x128x1xf32, #tpu.memory_space<vmem>>, vector<1x128x1xf32>
        %57 = vector.shape_cast %56 : vector<1x128x1xf32> to vector<128x1xf32>
        %58 = tpu.reciprocal %57 {approx = true} : vector<128x1xf32> -> vector<128x1xf32>
        %59 = vector.broadcast %58 : vector<128x1xf32> to vector<128x128xf32>
        %60 = arith.mulf %54, %59 : vector<128x128xf32>
        %61 = arith.truncf %60 : vector<128x128xf32> to vector<128x128xbf16>
        %62 = arith.index_cast %arg21 : i32 to index
        %c0_35 = arith.constant 0 : index
        %c0_36 = arith.constant 0 : index
        %63 = vector.load %arg12[%62, %c0_35, %c0_36] : memref<2x128x256xbf16, #tpu.memory_space<vmem>>, vector<1x128x256xbf16>
        %64 = vector.shape_cast %63 : vector<1x128x256xbf16> to vector<128x256xbf16>
        %cst_37 = arith.constant dense<0.000000e+00> : vector<128x256xf32>
        %65 = tpu.matmul %61, %64, %cst_37 {dimension_numbers = #tpu.dot_dimension_numbers<[1], [0], [0], [1], [0, 0, 1, 1], [], []>} : vector<128x128xbf16>, vector<128x256xbf16>, vector<128x256xf32> -> vector<128x256xf32>
        %66 = arith.addf %arg22, %65 : vector<128x256xf32>
        scf.yield %66 : vector<128x256xf32>
      }
      %c2_i32_13 = arith.constant 2 : i32
      %c0_14 = arith.constant 0 : index
      %c0_15 = arith.constant 0 : index
      %17 = vector.load %arg13[%c0_14, %c0_15] : memref<1x256xf32, #tpu.memory_space<vmem>>, vector<1x256xf32>
      %18 = vector.broadcast %17 : vector<1x256xf32> to vector<128x256xf32>
      %19 = arith.addf %16, %18 : vector<128x256xf32>
      %c0_16 = arith.constant 0 : index
      %c0_17 = arith.constant 0 : index
      %c0_18 = arith.constant 0 : index
      %20 = vector.load %arg3[%c0_16, %c0_17, %c0_18] : memref<1x128x256xf32, #tpu.memory_space<vmem>>, vector<1x128x256xf32>
      %21 = vector.shape_cast %20 : vector<1x128x256xf32> to vector<128x256xf32>
      %c0_19 = arith.constant 0 : index
      %c0_20 = arith.constant 0 : index
      %22 = vector.load %arg14[%c0_19, %c0_20] : memref<1x256xf32, #tpu.memory_space<vmem>>, vector<1x256xf32>
      %c0_21 = arith.constant 0 : index
      %c0_22 = arith.constant 0 : index
      %23 = vector.load %arg15[%c0_21, %c0_22] : memref<1x256xf32, #tpu.memory_space<vmem>>, vector<1x256xf32>
      %24 = arith.addf %21, %19 : vector<128x256xf32>
      %cst_23 = arith.constant dense<0.000000e+00> : vector<128xf32>
      %25 = vector.multi_reduction <add>, %24, %cst_23 [1] : vector<128x256xf32> to vector<128xf32>
      %26 = vector.shape_cast %25 : vector<128xf32> to vector<128x1xf32>
      %cst_24 = arith.constant 2.560000e+02 : f32
      %27 = vector.broadcast %cst_24 : f32 to vector<128x1xf32>
      %28 = arith.divf %26, %27 : vector<128x1xf32>
      %29 = vector.broadcast %28 : vector<128x1xf32> to vector<128x256xf32>
      %30 = arith.subf %24, %29 : vector<128x256xf32>
      %31 = vector.broadcast %28 : vector<128x1xf32> to vector<128x256xf32>
      %32 = arith.subf %24, %31 : vector<128x256xf32>
      %33 = arith.mulf %30, %32 : vector<128x256xf32>
      %cst_25 = arith.constant dense<0.000000e+00> : vector<128xf32>
      %34 = vector.multi_reduction <add>, %33, %cst_25 [1] : vector<128x256xf32> to vector<128xf32>
      %35 = vector.shape_cast %34 : vector<128xf32> to vector<128x1xf32>
      %cst_26 = arith.constant 2.560000e+02 : f32
      %36 = vector.broadcast %cst_26 : f32 to vector<128x1xf32>
      %37 = arith.divf %35, %36 : vector<128x1xf32>
      %38 = vector.broadcast %28 : vector<128x1xf32> to vector<128x256xf32>
      %39 = arith.subf %24, %38 : vector<128x256xf32>
      %cst_27 = arith.constant 9.99999974E-6 : f32
      %40 = vector.broadcast %cst_27 : f32 to vector<128x1xf32>
      %41 = arith.addf %37, %40 : vector<128x1xf32>
      %42 = math.rsqrt %41 : vector<128x1xf32>
      %43 = vector.broadcast %42 : vector<128x1xf32> to vector<128x256xf32>
      %44 = arith.mulf %39, %43 : vector<128x256xf32>
      %45 = vector.broadcast %22 : vector<1x256xf32> to vector<128x256xf32>
      %46 = arith.mulf %44, %45 : vector<128x256xf32>
      %47 = vector.broadcast %23 : vector<1x256xf32> to vector<128x256xf32>
      %48 = arith.addf %46, %47 : vector<128x256xf32>
      %c0_28 = arith.constant 0 : index
      %c0_29 = arith.constant 0 : index
      %c0_30 = arith.constant 0 : index
      %49 = vector.load %arg16[%c0_28, %c0_29, %c0_30] : memref<1x128x256xf32, #tpu.memory_space<vmem>>, vector<1x128x256xf32>
      %50 = vector.shape_cast %49 : vector<1x128x256xf32> to vector<128x256xf32>
      %51 = vector.shape_cast %48 : vector<128x256xf32> to vector<1x128x256xf32>
      tpu.vector_store %arg16[%c0_28, %c0_29, %c0_30], %51 {strides = array<i32>} : memref<1x128x256xf32, #tpu.memory_space<vmem>>, vector<1x128x256xf32>,
    } else {
    }
    return
  }
  func.func @transform_0(%arg0: i32, %arg1: i32, %arg2: i32) -> (i32, i32, i32) {
    %c0_i32 = arith.constant 0 : i32
    %c0_i32_0 = arith.constant 0 : i32
    return %arg0, %arg1, %c0_i32 : i32, i32, i32
  }
  func.func @transform_1(%arg0: i32, %arg1: i32, %arg2: i32) -> (i32, i32, i32) {
    %c0_i32 = arith.constant 0 : i32
    %c0_i32_0 = arith.constant 0 : i32
    return %arg0, %arg2, %c0_i32 : i32, i32, i32
  }
  func.func @transform_2(%arg0: i32, %arg1: i32, %arg2: i32) -> (i32, i32, i32) {
    %c0_i32 = arith.constant 0 : i32
    return %arg0, %arg1, %arg2 : i32, i32, i32
  }
  func.func @transform_3(%arg0: i32, %arg1: i32, %arg2: i32) -> (i32, i32, i32) {
    %c0_i32 = arith.constant 0 : i32
    %c0_i32_0 = arith.constant 0 : i32
    %c0_i32_1 = arith.constant 0 : i32
    %c0_i32_2 = arith.constant 0 : i32
    return %c0_i32, %c0_i32_0, %c0_i32_1 : i32, i32, i32
  }
  func.func @transform_4(%arg0: i32, %arg1: i32, %arg2: i32) -> (i32, i32, i32) {
    %c0_i32 = arith.constant 0 : i32
    %c0_i32_0 = arith.constant 0 : i32
    %c0_i32_1 = arith.constant 0 : i32
    %c0_i32_2 = arith.constant 0 : i32
    return %c0_i32, %c0_i32_0, %c0_i32_1 : i32, i32, i32
  }
  func.func @transform_5(%arg0: i32, %arg1: i32, %arg2: i32) -> (i32, i32, i32) {
    %c0_i32 = arith.constant 0 : i32
    %c0_i32_0 = arith.constant 0 : i32
    %c0_i32_1 = arith.constant 0 : i32
    %c0_i32_2 = arith.constant 0 : i32
    return %c0_i32, %c0_i32_0, %c0_i32_1 : i32, i32, i32
  }
  func.func @transform_6(%arg0: i32, %arg1: i32, %arg2: i32) -> (i32, i32, i32) {
    %c0_i32 = arith.constant 0 : i32
    %c0_i32_0 = arith.constant 0 : i32
    %c0_i32_1 = arith.constant 0 : i32
    %c0_i32_2 = arith.constant 0 : i32
    return %c0_i32, %c0_i32_0, %c0_i32_1 : i32, i32, i32
  }
  func.func @transform_7(%arg0: i32, %arg1: i32, %arg2: i32) -> (i32, i32, i32) {
    %c0_i32 = arith.constant 0 : i32
    %c0_i32_0 = arith.constant 0 : i32
    %c0_i32_1 = arith.constant 0 : i32
    %c0_i32_2 = arith.constant 0 : i32
    return %c0_i32, %c0_i32_0, %c0_i32_1 : i32, i32, i32
  }
  func.func @transform_8(%arg0: i32, %arg1: i32, %arg2: i32) -> (i32, i32, i32) {
    %c0_i32 = arith.constant 0 : i32
    %c0_i32_0 = arith.constant 0 : i32
    %c0_i32_1 = arith.constant 0 : i32
    %c0_i32_2 = arith.constant 0 : i32
    return %c0_i32, %c0_i32_0, %c0_i32_1 : i32, i32, i32
  }
  func.func @transform_9(%arg0: i32, %arg1: i32, %arg2: i32) -> (i32, i32, i32) {
    %c0_i32 = arith.constant 0 : i32
    %c0_i32_0 = arith.constant 0 : i32
    %c0_i32_1 = arith.constant 0 : i32
    %c0_i32_2 = arith.constant 0 : i32
    return %c0_i32, %c0_i32_0, %c0_i32_1 : i32, i32, i32
  }
  func.func @transform_10(%arg0: i32, %arg1: i32, %arg2: i32) -> (i32, i32) {
    %c0_i32 = arith.constant 0 : i32
    %c0_i32_0 = arith.constant 0 : i32
    %c0_i32_1 = arith.constant 0 : i32
    return %c0_i32, %c0_i32_0 : i32, i32
  }
  func.func @transform_11(%arg0: i32, %arg1: i32, %arg2: i32) -> (i32, i32) {
    %c0_i32 = arith.constant 0 : i32
    %c0_i32_0 = arith.constant 0 : i32
    %c0_i32_1 = arith.constant 0 : i32
    return %c0_i32, %c0_i32_0 : i32, i32
  }
  func.func @transform_12(%arg0: i32, %arg1: i32, %arg2: i32) -> (i32, i32) {
    %c0_i32 = arith.constant 0 : i32
    %c0_i32_0 = arith.constant 0 : i32
    %c0_i32_1 = arith.constant 0 : i32
    return %c0_i32, %c0_i32_0 : i32, i32
  }
  func.func @transform_13(%arg0: i32, %arg1: i32, %arg2: i32) -> (i32, i32, i32) {
    %c0_i32 = arith.constant 0 : i32
    %c0_i32_0 = arith.constant 0 : i32
    return %arg0, %arg1, %c0_i32 : i32, i32, i32
  }
}

module attributes {stable_mosaic.version = 11 : i64} {
  func.func @_ffn_sublayer_kernel(%arg0: i32, %arg1: memref<256x256xf32, #tpu.memory_space<vmem>>, %arg2: memref<256x512xbf16, #tpu.memory_space<vmem>>, %arg3: memref<1x512xf32, #tpu.memory_space<vmem>>, %arg4: memref<512x256xbf16, #tpu.memory_space<vmem>>, %arg5: memref<1x256xf32, #tpu.memory_space<vmem>>, %arg6: memref<1x256xf32, #tpu.memory_space<vmem>>, %arg7: memref<1x256xf32, #tpu.memory_space<vmem>>, %arg8: memref<256x256xf32, #tpu.memory_space<vmem>>) attributes {dimension_semantics = [#tpu.dimension_semantics<parallel>], iteration_bounds = array<i64: 1>, scalar_prefetch = 0 : i64, scratch_operands = 0 : i64, tpu.core_type = #tpu.core_type<tc>, window_params = [{transform_indices = @transform_0, window_bounds = array<i64: 256, 256>}, {pipeline_mode = #tpu.pipeline_mode<synchronous>, transform_indices = @transform_1, window_bounds = array<i64: 256, 512>}, {pipeline_mode = #tpu.pipeline_mode<synchronous>, transform_indices = @transform_2, window_bounds = array<i64: 1, 512>}, {pipeline_mode = #tpu.pipeline_mode<synchronous>, transform_indices = @transform_3, window_bounds = array<i64: 512, 256>}, {pipeline_mode = #tpu.pipeline_mode<synchronous>, transform_indices = @transform_4, window_bounds = array<i64: 1, 256>}, {pipeline_mode = #tpu.pipeline_mode<synchronous>, transform_indices = @transform_5, window_bounds = array<i64: 1, 256>}, {pipeline_mode = #tpu.pipeline_mode<synchronous>, transform_indices = @transform_6, window_bounds = array<i64: 1, 256>}, {transform_indices = @transform_7, window_bounds = array<i64: 256, 256>}]} {
    %c0 = arith.constant 0 : index
    %c0_0 = arith.constant 0 : index
    %0 = vector.load %arg1[%c0, %c0_0] : memref<256x256xf32, #tpu.memory_space<vmem>>, vector<256x256xf32>
    %1 = arith.truncf %0 : vector<256x256xf32> to vector<256x256xbf16>
    %c0_1 = arith.constant 0 : index
    %c0_2 = arith.constant 0 : index
    %2 = vector.load %arg2[%c0_1, %c0_2] : memref<256x512xbf16, #tpu.memory_space<vmem>>, vector<256x512xbf16>
    %cst = arith.constant dense<0.000000e+00> : vector<256x512xf32>
    %3 = tpu.matmul %1, %2, %cst {dimension_numbers = #tpu.dot_dimension_numbers<[1], [0], [0], [1], [0, 0, 1, 1], [], []>} : vector<256x256xbf16>, vector<256x512xbf16>, vector<256x512xf32> -> vector<256x512xf32>
    %c0_3 = arith.constant 0 : index
    %c0_4 = arith.constant 0 : index
    %4 = vector.load %arg3[%c0_3, %c0_4] : memref<1x512xf32, #tpu.memory_space<vmem>>, vector<1x512xf32>
    %5 = vector.broadcast %4 : vector<1x512xf32> to vector<256x512xf32>
    %6 = arith.addf %3, %5 : vector<256x512xf32>
    %cst_5 = arith.constant 0.000000e+00 : f32
    %7 = vector.broadcast %cst_5 : f32 to vector<256x512xf32>
    %8 = arith.maximumf %6, %7 : vector<256x512xf32>
    %9 = arith.truncf %8 : vector<256x512xf32> to vector<256x512xbf16>
    %c0_6 = arith.constant 0 : index
    %c0_7 = arith.constant 0 : index
    %10 = vector.load %arg4[%c0_6, %c0_7] : memref<512x256xbf16, #tpu.memory_space<vmem>>, vector<512x256xbf16>
    %cst_8 = arith.constant dense<0.000000e+00> : vector<256x256xf32>
    %11 = tpu.matmul %9, %10, %cst_8 {dimension_numbers = #tpu.dot_dimension_numbers<[1], [0], [0], [1], [0, 0, 1, 1], [], []>} : vector<256x512xbf16>, vector<512x256xbf16>, vector<256x256xf32> -> vector<256x256xf32>
    %c0_9 = arith.constant 0 : index
    %c0_10 = arith.constant 0 : index
    %12 = vector.load %arg5[%c0_9, %c0_10] : memref<1x256xf32, #tpu.memory_space<vmem>>, vector<1x256xf32>
    %13 = vector.broadcast %12 : vector<1x256xf32> to vector<256x256xf32>
    %14 = arith.addf %11, %13 : vector<256x256xf32>
    %c0_11 = arith.constant 0 : index
    %c0_12 = arith.constant 0 : index
    %15 = vector.load %arg6[%c0_11, %c0_12] : memref<1x256xf32, #tpu.memory_space<vmem>>, vector<1x256xf32>
    %c0_13 = arith.constant 0 : index
    %c0_14 = arith.constant 0 : index
    %16 = vector.load %arg7[%c0_13, %c0_14] : memref<1x256xf32, #tpu.memory_space<vmem>>, vector<1x256xf32>
    %17 = arith.addf %0, %14 : vector<256x256xf32>
    %cst_15 = arith.constant dense<0.000000e+00> : vector<256xf32>
    %18 = vector.multi_reduction <add>, %17, %cst_15 [1] : vector<256x256xf32> to vector<256xf32>
    %19 = vector.shape_cast %18 : vector<256xf32> to vector<256x1xf32>
    %cst_16 = arith.constant 2.560000e+02 : f32
    %20 = vector.broadcast %cst_16 : f32 to vector<256x1xf32>
    %21 = arith.divf %19, %20 : vector<256x1xf32>
    %22 = vector.broadcast %21 : vector<256x1xf32> to vector<256x256xf32>
    %23 = arith.subf %17, %22 : vector<256x256xf32>
    %24 = vector.broadcast %21 : vector<256x1xf32> to vector<256x256xf32>
    %25 = arith.subf %17, %24 : vector<256x256xf32>
    %26 = arith.mulf %23, %25 : vector<256x256xf32>
    %cst_17 = arith.constant dense<0.000000e+00> : vector<256xf32>
    %27 = vector.multi_reduction <add>, %26, %cst_17 [1] : vector<256x256xf32> to vector<256xf32>
    %28 = vector.shape_cast %27 : vector<256xf32> to vector<256x1xf32>
    %cst_18 = arith.constant 2.560000e+02 : f32
    %29 = vector.broadcast %cst_18 : f32 to vector<256x1xf32>
    %30 = arith.divf %28, %29 : vector<256x1xf32>
    %31 = vector.broadcast %21 : vector<256x1xf32> to vector<256x256xf32>
    %32 = arith.subf %17, %31 : vector<256x256xf32>
    %cst_19 = arith.constant 9.99999974E-6 : f32
    %33 = vector.broadcast %cst_19 : f32 to vector<256x1xf32>
    %34 = arith.addf %30, %33 : vector<256x1xf32>
    %35 = math.rsqrt %34 : vector<256x1xf32>
    %36 = vector.broadcast %35 : vector<256x1xf32> to vector<256x256xf32>
    %37 = arith.mulf %32, %36 : vector<256x256xf32>
    %38 = vector.broadcast %15 : vector<1x256xf32> to vector<256x256xf32>
    %39 = arith.mulf %37, %38 : vector<256x256xf32>
    %40 = vector.broadcast %16 : vector<1x256xf32> to vector<256x256xf32>
    %41 = arith.addf %39, %40 : vector<256x256xf32>
    %c0_20 = arith.constant 0 : index
    %c0_21 = arith.constant 0 : index
    %42 = vector.load %arg8[%c0_20, %c0_21] : memref<256x256xf32, #tpu.memory_space<vmem>>, vector<256x256xf32>
    tpu.vector_store %arg8[%c0_20, %c0_21], %41 {strides = array<i32>} : memref<256x256xf32, #tpu.memory_space<vmem>>, vector<256x256xf32>,
    return
  }
  func.func @transform_0(%arg0: i32) -> (i32, i32) {
    %c0_i32 = arith.constant 0 : i32
    %c0_i32_0 = arith.constant 0 : i32
    return %arg0, %c0_i32 : i32, i32
  }
  func.func @transform_1(%arg0: i32) -> (i32, i32) {
    %c0_i32 = arith.constant 0 : i32
    %c0_i32_0 = arith.constant 0 : i32
    %c0_i32_1 = arith.constant 0 : i32
    return %c0_i32, %c0_i32_0 : i32, i32
  }
  func.func @transform_2(%arg0: i32) -> (i32, i32) {
    %c0_i32 = arith.constant 0 : i32
    %c0_i32_0 = arith.constant 0 : i32
    %c0_i32_1 = arith.constant 0 : i32
    return %c0_i32, %c0_i32_0 : i32, i32
  }
  func.func @transform_3(%arg0: i32) -> (i32, i32) {
    %c0_i32 = arith.constant 0 : i32
    %c0_i32_0 = arith.constant 0 : i32
    %c0_i32_1 = arith.constant 0 : i32
    return %c0_i32, %c0_i32_0 : i32, i32
  }
  func.func @transform_4(%arg0: i32) -> (i32, i32) {
    %c0_i32 = arith.constant 0 : i32
    %c0_i32_0 = arith.constant 0 : i32
    %c0_i32_1 = arith.constant 0 : i32
    return %c0_i32, %c0_i32_0 : i32, i32
  }
  func.func @transform_5(%arg0: i32) -> (i32, i32) {
    %c0_i32 = arith.constant 0 : i32
    %c0_i32_0 = arith.constant 0 : i32
    %c0_i32_1 = arith.constant 0 : i32
    return %c0_i32, %c0_i32_0 : i32, i32
  }
  func.func @transform_6(%arg0: i32) -> (i32, i32) {
    %c0_i32 = arith.constant 0 : i32
    %c0_i32_0 = arith.constant 0 : i32
    %c0_i32_1 = arith.constant 0 : i32
    return %c0_i32, %c0_i32_0 : i32, i32
  }
  func.func @transform_7(%arg0: i32) -> (i32, i32) {
    %c0_i32 = arith.constant 0 : i32
    %c0_i32_0 = arith.constant 0 : i32
    return %arg0, %c0_i32 : i32, i32
  }
}

</mosaic_0001>

<llo_original>
// kernel: decoder_layer.5
$region0: #{decoder_layer.5}
  #allocation0 [shape = 'u32[]', space=smem, size = 0x4, offset = 0x4, fixed_abs, tag = 'smem constant byte address 0x4 - core index']
  #allocation1 [shape = 'u32[144,128]{1,0:T(1,128)}', space=vmem, size = 0x12000, scoped, tag = 'internal scratch']
  %s0 = inlined_call_operand.vmem [shape: f32[256,256], index: 0, kind: input, shape index: {}]
  %s1 = inlined_call_operand.vmem [shape: bf16[256,512], index: 1, kind: input, shape index: {}]
  %s2 = inlined_call_operand.vmem [shape: f32[1,512], index: 2, kind: input, shape index: {}]
  %s3 = inlined_call_operand.vmem [shape: bf16[512,256], index: 3, kind: input, shape index: {}]
  %s4 = inlined_call_operand.vmem [shape: f32[1,256], index: 4, kind: input, shape index: {}]
  %s5 = inlined_call_operand.vmem [shape: f32[1,256], index: 5, kind: input, shape index: {}]
  %s6 = inlined_call_operand.vmem [shape: f32[1,256], index: 6, kind: input, shape index: {}]
  %s7 = inlined_call_operand.hbm [shape: f32[256,256], index: 7, kind: output, shape index: {}]
  %s8 = sld [smem:[#allocation0]]
  $region38: #{decoder_layer.5} parent=0
    _
  %s10 = ssub.s32 1, %s8
  %s11 = scalar_select 0, %s10, %s8
  $region1: #{decoder_layer.5} parent=0
    #allocation2 [shape = 'u8[262144]{0}', space=vmem, size = 0x40000, scoped, tag = 'output window, operand 0, single buffered']
    #allocation3 [shape = 's32[1]{0}', space=sflag, size = 0x4, scoped, tag = 'scoped memory for decoder_layer.5']
    %12 = vsyncpa [#allocation3], 0
    // Predicated region
    $region2: #{decoder_layer.5} parent=1 // pred_check
      _
    $region3: #{decoder_layer.5} parent=1 // pred_check_branch
      %14 = sbr.rel (0) target = $region5
    $region4: #{decoder_layer.5} parent=1 // pred_region
      _
    $region5: #{decoder_layer.5} parent=1 // pred_fallthru
      _
    // Predicated region
    $region6: #{decoder_layer.5} parent=1 // pred_check
      _
    $region7: #{decoder_layer.5} parent=1 // pred_check_branch
      %16 = sbr.rel (0) target = $region9
    $region8: #{decoder_layer.5} parent=1 // pred_region
      _
    $region9: #{decoder_layer.5} parent=1 // pred_fallthru
      _
    // Predicated region
    $region10: #{decoder_layer.5} parent=1 // pred_check
      _
    $region11: #{decoder_layer.5} parent=1 // pred_check_branch
      %18 = sbr.rel (0) target = $region13
    $region12: #{decoder_layer.5} parent=1 // pred_region
      _
    $region13: #{decoder_layer.5} parent=1 // pred_fallthru
      _
    // Predicated region
    $region14: #{decoder_layer.5} parent=1 // pred_check
      _
    $region15: #{decoder_layer.5} parent=1 // pred_check_branch
      %20 = sbr.rel (0) target = $region17
    $region16: #{decoder_layer.5} parent=1 // pred_region
      _
    $region17: #{decoder_layer.5} parent=1 // pred_fallthru
      _
    // Predicated region
    $region18: #{decoder_layer.5} parent=1 // pred_check
      _
    $region19: #{decoder_layer.5} parent=1 // pred_check_branch
      %22 = sbr.rel (0) target = $region21
    $region20: #{decoder_layer.5} parent=1 // pred_region
      _
    $region21: #{decoder_layer.5} parent=1 // pred_fallthru
      _
    // Predicated region
    $region22: #{decoder_layer.5} parent=1 // pred_check
      _
    $region23: #{decoder_layer.5} parent=1 // pred_check_branch
      %24 = sbr.rel (0) target = $region25
    $region24: #{decoder_layer.5} parent=1 // pred_region
      _
    $region25: #{decoder_layer.5} parent=1 // pred_fallthru
      _
    // Predicated region
    $region26: #{decoder_layer.5} parent=1 // pred_check
      _
    $region27: #{decoder_layer.5} parent=1 // pred_check_branch
      %26 = sbr.rel (0) target = $region29
    $region28: #{decoder_layer.5} parent=1 // pred_region
      _
    $region29: #{decoder_layer.5} parent=1 // pred_fallthru
      _
    %v27 = vld [vmem:[%s0] sm:$0xff]
    %v28 = vld [vmem:[%s0 + $0x8] sm:$0xff]
    %v29 = vld [vmem:[%s0 + $0x10] sm:$0xff]
    %v30 = vld [vmem:[%s0 + $0x18] sm:$0xff]
    %v31 = vld [vmem:[%s0 + $0x20] sm:$0xff]
    %v32 = vld [vmem:[%s0 + $0x28] sm:$0xff]
    %v33 = vld [vmem:[%s0 + $0x30] sm:$0xff]
    %v34 = vld [vmem:[%s0 + $0x38] sm:$0xff]
    %v35 = vld [vmem:[%s0 + $0x40] sm:$0xff]
    %v36 = vld [vmem:[%s0 + $0x48] sm:$0xff]
    %v37 = vld [vmem:[%s0 + $0x50] sm:$0xff]
    %v38 = vld [vmem:[%s0 + $0x58] sm:$0xff]
    %v39 = vld [vmem:[%s0 + $0x60] sm:$0xff]
    %v40 = vld [vmem:[%s0 + $0x68] sm:$0xff]
    %v41 = vld [vmem:[%s0 + $0x70] sm:$0xff]
    %v42 = vld [vmem:[%s0 + $0x78] sm:$0xff]
    %v43 = vld [vmem:[%s0 + $0x80] sm:$0xff]
    %v44 = vld [vmem:[%s0 + $0x88] sm:$0xff]
    %v45 = vld [vmem:[%s0 + $0x90] sm:$0xff]
    %v46 = vld [vmem:[%s0 + $0x98] sm:$0xff]
    %v47 = vld [vmem:[%s0 + $0xa0] sm:$0xff]
    %v48 = vld [vmem:[%s0 + $0xa8] sm:$0xff]
    %v49 = vld [vmem:[%s0 + $0xb0] sm:$0xff]
    %v50 = vld [vmem:[%s0 + $0xb8] sm:$0xff]
    %v51 = vld [vmem:[%s0 + $0xc0] sm:$0xff]
    %v52 = vld [vmem:[%s0 + $0xc8] sm:$0xff]
    %v53 = vld [vmem:[%s0 + $0xd0] sm:$0xff]
    %v54 = vld [vmem:[%s0 + $0xd8] sm:$0xff]
    %v55 = vld [vmem:[%s0 + $0xe0] sm:$0xff]
    %v56 = vld [vmem:[%s0 + $0xe8] sm:$0xff]
    %v57 = vld [vmem:[%s0 + $0xf0] sm:$0xff]
    %v58 = vld [vmem:[%s0 + $0xf8] sm:$0xff]
    %v59 = vld [vmem:[%s0 + $0x100] sm:$0xff]
    %v60 = vld [vmem:[%s0 + $0x108] sm:$0xff]
    %v61 = vld [vmem:[%s0 + $0x110] sm:$0xff]
    %v62 = vld [vmem:[%s0 + $0x118] sm:$0xff]
    %v63 = vld [vmem:[%s0 + $0x120] sm:$0xff]
    %v64 = vld [vmem:[%s0 + $0x128] sm:$0xff]
    %v65 = vld [vmem:[%s0 + $0x130] sm:$0xff]
    %v66 = vld [vmem:[%s0 + $0x138] sm:$0xff]
    %v67 = vld [vmem:[%s0 + $0x140] sm:$0xff]
    %v68 = vld [vmem:[%s0 + $0x148] sm:$0xff]
    %v69 = vld [vmem:[%s0 + $0x150] sm:$0xff]
    %v70 = vld [vmem:[%s0 + $0x158] sm:$0xff]
    %v71 = vld [vmem:[%s0 + $0x160] sm:$0xff]
    %v72 = vld [vmem:[%s0 + $0x168] sm:$0xff]
    %v73 = vld [vmem:[%s0 + $0x170] sm:$0xff]
    %v74 = vld [vmem:[%s0 + $0x178] sm:$0xff]
    %v75 = vld [vmem:[%s0 + $0x180] sm:$0xff]
    %v76 = vld [vmem:[%s0 + $0x188] sm:$0xff]
    %v77 = vld [vmem:[%s0 + $0x190] sm:$0xff]
    %v78 = vld [vmem:[%s0 + $0x198] sm:$0xff]
    %v79 = vld [vmem:[%s0 + $0x1a0] sm:$0xff]
    %v80 = vld [vmem:[%s0 + $0x1a8] sm:$0xff]
    %v81 = vld [vmem:[%s0 + $0x1b0] sm:$0xff]
    %v82 = vld [vmem:[%s0 + $0x1b8] sm:$0xff]
    %v83 = vld [vmem:[%s0 + $0x1c0] sm:$0xff]
    %v84 = vld [vmem:[%s0 + $0x1c8] sm:$0xff]
    %v85 = vld [vmem:[%s0 + $0x1d0] sm:$0xff]
    %v86 = vld [vmem:[%s0 + $0x1d8] sm:$0xff]
    %v87 = vld [vmem:[%s0 + $0x1e0] sm:$0xff]
    %v88 = vld [vmem:[%s0 + $0x1e8] sm:$0xff]
    %v89 = vld [vmem:[%s0 + $0x1f0] sm:$0xff]
    %v90 = vld [vmem:[%s0 + $0x1f8] sm:$0xff]
    %v91 = vpack.c.bf16 %v29, %v27
    %v92 = vpack.c.bf16 %v30, %v28
    %v93 = vpack.c.bf16 %v33, %v31
    %v94 = vpack.c.bf16 %v34, %v32
    %v95 = vpack.c.bf16 %v37, %v35
    %v96 = vpack.c.bf16 %v38, %v36
    %v97 = vpack.c.bf16 %v41, %v39
    %v98 = vpack.c.bf16 %v42, %v40
    %v99 = vpack.c.bf16 %v45, %v43
    %v100 = vpack.c.bf16 %v46, %v44
    %v101 = vpack.c.bf16 %v49, %v47
    %v102 = vpack.c.bf16 %v50, %v48
    %v103 = vpack.c.bf16 %v53, %v51
    %v104 = vpack.c.bf16 %v54, %v52
    %v105 = vpack.c.bf16 %v57, %v55
    %v106 = vpack.c.bf16 %v58, %v56
    %v107 = vpack.c.bf16 %v61, %v59
    %v108 = vpack.c.bf16 %v62, %v60
    %v109 = vpack.c.bf16 %v65, %v63
    %v110 = vpack.c.bf16 %v66, %v64
    %v111 = vpack.c.bf16 %v69, %v67
    %v112 = vpack.c.bf16 %v70, %v68
    %v113 = vpack.c.bf16 %v73, %v71
    %v114 = vpack.c.bf16 %v74, %v72
    %v115 = vpack.c.bf16 %v77, %v75
    %v116 = vpack.c.bf16 %v78, %v76
    %v117 = vpack.c.bf16 %v81, %v79
    %v118 = vpack.c.bf16 %v82, %v80
    %v119 = vpack.c.bf16 %v85, %v83
    %v120 = vpack.c.bf16 %v86, %v84
    %v121 = vpack.c.bf16 %v89, %v87
    %v122 = vpack.c.bf16 %v90, %v88
    %v123 = vld [vmem:[%s1] sm:$0xff]
    %v124 = vld [vmem:[%s1 + $0x8] sm:$0xff]
    %v125 = vld [vmem:[%s1 + $0x10] sm:$0xff]
    %v126 = vld [vmem:[%s1 + $0x18] sm:$0xff]
    %v127 = vld [vmem:[%s1 + $0x20] sm:$0xff]
    %v128 = vld [vmem:[%s1 + $0x28] sm:$0xff]
    %v129 = vld [vmem:[%s1 + $0x30] sm:$0xff]
    %v130 = vld [vmem:[%s1 + $0x38] sm:$0xff]
    %v131 = vld [vmem:[%s1 + $0x40] sm:$0xff]
    %v132 = vld [vmem:[%s1 + $0x48] sm:$0xff]
    %v133 = vld [vmem:[%s1 + $0x50] sm:$0xff]
    %v134 = vld [vmem:[%s1 + $0x58] sm:$0xff]
    %v135 = vld [vmem:[%s1 + $0x60] sm:$0xff]
    %v136 = vld [vmem:[%s1 + $0x68] sm:$0xff]
    %v137 = vld [vmem:[%s1 + $0x70] sm:$0xff]
    %v138 = vld [vmem:[%s1 + $0x78] sm:$0xff]
    %v139 = vld [vmem:[%s1 + $0x80] sm:$0xff]
    %v140 = vld [vmem:[%s1 + $0x88] sm:$0xff]
    %v141 = vld [vmem:[%s1 + $0x90] sm:$0xff]
    %v142 = vld [vmem:[%s1 + $0x98] sm:$0xff]
    %v143 = vld [vmem:[%s1 + $0xa0] sm:$0xff]
    %v144 = vld [vmem:[%s1 + $0xa8] sm:$0xff]
    %v145 = vld [vmem:[%s1 + $0xb0] sm:$0xff]
    %v146 = vld [vmem:[%s1 + $0xb8] sm:$0xff]
    %v147 = vld [vmem:[%s1 + $0xc0] sm:$0xff]
    %v148 = vld [vmem:[%s1 + $0xc8] sm:$0xff]
    %v149 = vld [vmem:[%s1 + $0xd0] sm:$0xff]
    %v150 = vld [vmem:[%s1 + $0xd8] sm:$0xff]
    %v151 = vld [vmem:[%s1 + $0xe0] sm:$0xff]
    %v152 = vld [vmem:[%s1 + $0xe8] sm:$0xff]
    %v153 = vld [vmem:[%s1 + $0xf0] sm:$0xff]
    %v154 = vld [vmem:[%s1 + $0xf8] sm:$0xff]
    %v155 = vld [vmem:[%s1 + $0x100] sm:$0xff]
    %v156 = vld [vmem:[%s1 + $0x108] sm:$0xff]
    %v157 = vld [vmem:[%s1 + $0x110] sm:$0xff]
    %v158 = vld [vmem:[%s1 + $0x118] sm:$0xff]
    %v159 = vld [vmem:[%s1 + $0x120] sm:$0xff]
    %v160 = vld [vmem:[%s1 + $0x128] sm:$0xff]
    %v161 = vld [vmem:[%s1 + $0x130] sm:$0xff]
    %v162 = vld [vmem:[%s1 + $0x138] sm:$0xff]
    %v163 = vld [vmem:[%s1 + $0x140] sm:$0xff]
    %v164 = vld [vmem:[%s1 + $0x148] sm:$0xff]
    %v165 = vld [vmem:[%s1 + $0x150] sm:$0xff]
    %v166 = vld [vmem:[%s1 + $0x158] sm:$0xff]
    %v167 = vld [vmem:[%s1 + $0x160] sm:$0xff]
    %v168 = vld [vmem:[%s1 + $0x168] sm:$0xff]
    %v169 = vld [vmem:[%s1 + $0x170] sm:$0xff]
    %v170 = vld [vmem:[%s1 + $0x178] sm:$0xff]
    %v171 = vld [vmem:[%s1 + $0x180] sm:$0xff]
    %v172 = vld [vmem:[%s1 + $0x188] sm:$0xff]
    %v173 = vld [vmem:[%s1 + $0x190] sm:$0xff]
    %v174 = vld [vmem:[%s1 + $0x198] sm:$0xff]
    %v175 = vld [vmem:[%s1 + $0x1a0] sm:$0xff]
    %v176 = vld [vmem:[%s1 + $0x1a8] sm:$0xff]
    %v177 = vld [vmem:[%s1 + $0x1b0] sm:$0xff]
    %v178 = vld [vmem:[%s1 + $0x1b8] sm:$0xff]
    %v179 = vld [vmem:[%s1 + $0x1c0] sm:$0xff]
    %v180 = vld [vmem:[%s1 + $0x1c8] sm:$0xff]
    %v181 = vld [vmem:[%s1 + $0x1d0] sm:$0xff]
    %v182 = vld [vmem:[%s1 + $0x1d8] sm:$0xff]
    %v183 = vld [vmem:[%s1 + $0x1e0] sm:$0xff]
    %v184 = vld [vmem:[%s1 + $0x1e8] sm:$0xff]
    %v185 = vld [vmem:[%s1 + $0x1f0] sm:$0xff]
    %v186 = vld [vmem:[%s1 + $0x1f8] sm:$0xff]
    %v187 = vld [vmem:[%s2] sm:$0xf]
    %v189 = vlaneseq
    %v190 = vshrl.u32 %v189, 7
    %v191 = vsub.s32 0, %v190
    %v192 = vrot.slane %v187, %v191
    %v193 = vlaneseq
    %v194 = vshrl.u32 %v193, 7
    %v195 = vsub.s32 1, %v194
    %v196 = vrot.slane %v187, %v195
    %v197 = vlaneseq
    %v198 = vshrl.u32 %v197, 7
    %v199 = vsub.s32 2, %v198
    %v200 = vrot.slane %v187, %v199
    %v201 = vlaneseq
    %v202 = vshrl.u32 %v201, 7
    %v203 = vsub.s32 3, %v202
    %v204 = vrot.slane %v187, %v203
    %v273 = vunpack.c.l.b16 %v123
    %v274 = vunpack.c.h.b16 %v123
    %v275 = vunpack.c.l.b16 %v124
    %v276 = vunpack.c.h.b16 %v124
    %v277 = vunpack.c.l.b16 %v125
    %v278 = vunpack.c.h.b16 %v125
    %v279 = vunpack.c.l.b16 %v126
    %v280 = vunpack.c.h.b16 %v126
    %v281 = vunpack.c.l.b16 %v127
    %v282 = vunpack.c.h.b16 %v127
    %v283 = vunpack.c.l.b16 %v128
    %v284 = vunpack.c.h.b16 %v128
    %v285 = vunpack.c.l.b16 %v129
    %v286 = vunpack.c.h.b16 %v129
    %v287 = vunpack.c.l.b16 %v130
    %v288 = vunpack.c.h.b16 %v130
    %v289 = vunpack.c.l.b16 %v131
    %v290 = vunpack.c.h.b16 %v131
    %v291 = vunpack.c.l.b16 %v132
    %v292 = vunpack.c.h.b16 %v132
    %v293 = vunpack.c.l.b16 %v133
    %v294 = vunpack.c.h.b16 %v133
    %v295 = vunpack.c.l.b16 %v134
    %v296 = vunpack.c.h.b16 %v134
    %v297 = vunpack.c.l.b16 %v135
    %v298 = vunpack.c.h.b16 %v135
    %v299 = vunpack.c.l.b16 %v136
    %v300 = vunpack.c.h.b16 %v136
    %v301 = vunpack.c.l.b16 %v137
    %v302 = vunpack.c.h.b16 %v137
    %v303 = vunpack.c.l.b16 %v138
    %v304 = vunpack.c.h.b16 %v138
    %v305 = vunpack.c.l.b16 %v139
    %v306 = vunpack.c.h.b16 %v139
    %v307 = vunpack.c.l.b16 %v140
    %v308 = vunpack.c.h.b16 %v140
    %v309 = vunpack.c.l.b16 %v141
    %v310 = vunpack.c.h.b16 %v141
    %v311 = vunpack.c.l.b16 %v142
    %v312 = vunpack.c.h.b16 %v142
    %v313 = vunpack.c.l.b16 %v143
    %v314 = vunpack.c.h.b16 %v143
    %v315 = vunpack.c.l.b16 %v144
    %v316 = vunpack.c.h.b16 %v144
    %v317 = vunpack.c.l.b16 %v145
    %v318 = vunpack.c.h.b16 %v145
    %v319 = vunpack.c.l.b16 %v146
    %v320 = vunpack.c.h.b16 %v146
    %v321 = vunpack.c.l.b16 %v147
    %v322 = vunpack.c.h.b16 %v147
    %v323 = vunpack.c.l.b16 %v148
    %v324 = vunpack.c.h.b16 %v148
    %v325 = vunpack.c.l.b16 %v149
    %v326 = vunpack.c.h.b16 %v149
    %v327 = vunpack.c.l.b16 %v150
    %v328 = vunpack.c.h.b16 %v150
    %v329 = vunpack.c.l.b16 %v151
    %v330 = vunpack.c.h.b16 %v151
    %v331 = vunpack.c.l.b16 %v152
    %v332 = vunpack.c.h.b16 %v152
    %v333 = vunpack.c.l.b16 %v153
    %v334 = vunpack.c.h.b16 %v153
    %v335 = vunpack.c.l.b16 %v154
    %v336 = vunpack.c.h.b16 %v154
    %v337 = vunpack.c.l.b16 %v155
    %v338 = vunpack.c.h.b16 %v155
    %v339 = vunpack.c.l.b16 %v156
    %v340 = vunpack.c.h.b16 %v156
    %v341 = vunpack.c.l.b16 %v157
    %v342 = vunpack.c.h.b16 %v157
    %v343 = vunpack.c.l.b16 %v158
    %v344 = vunpack.c.h.b16 %v158
    %v345 = vunpack.c.l.b16 %v159
    %v346 = vunpack.c.h.b16 %v159
    %v347 = vunpack.c.l.b16 %v160
    %v348 = vunpack.c.h.b16 %v160
    %v349 = vunpack.c.l.b16 %v161
    %v350 = vunpack.c.h.b16 %v161
    %v351 = vunpack.c.l.b16 %v162
    %v352 = vunpack.c.h.b16 %v162
    %v353 = vunpack.c.l.b16 %v163
    %v354 = vunpack.c.h.b16 %v163
    %v355 = vunpack.c.l.b16 %v164
    %v356 = vunpack.c.h.b16 %v164
    %v357 = vunpack.c.l.b16 %v165
    %v358 = vunpack.c.h.b16 %v165
    %v359 = vunpack.c.l.b16 %v166
    %v360 = vunpack.c.h.b16 %v166
    %v361 = vunpack.c.l.b16 %v167
    %v362 = vunpack.c.h.b16 %v167
    %v363 = vunpack.c.l.b16 %v168
    %v364 = vunpack.c.h.b16 %v168
    %v365 = vunpack.c.l.b16 %v169
    %v366 = vunpack.c.h.b16 %v169
    %v367 = vunpack.c.l.b16 %v170
    %v368 = vunpack.c.h.b16 %v170
    %v369 = vunpack.c.l.b16 %v171
    %v370 = vunpack.c.h.b16 %v171
    %v371 = vunpack.c.l.b16 %v172
    %v372 = vunpack.c.h.b16 %v172
    %v373 = vunpack.c.l.b16 %v173
    %v374 = vunpack.c.h.b16 %v173
    %v375 = vunpack.c.l.b16 %v174
    %v376 = vunpack.c.h.b16 %v174
    %v377 = vunpack.c.l.b16 %v175
    %v378 = vunpack.c.h.b16 %v175
    %v379 = vunpack.c.l.b16 %v176
    %v380 = vunpack.c.h.b16 %v176
    %v381 = vunpack.c.l.b16 %v177
    %v382 = vunpack.c.h.b16 %v177
    %v383 = vunpack.c.l.b16 %v178
    %v384 = vunpack.c.h.b16 %v178
    %v385 = vunpack.c.l.b16 %v179
    %v386 = vunpack.c.h.b16 %v179
    %v387 = vunpack.c.l.b16 %v180
    %v388 = vunpack.c.h.b16 %v180
    %v389 = vunpack.c.l.b16 %v181
    %v390 = vunpack.c.h.b16 %v181
    %v391 = vunpack.c.l.b16 %v182
    %v392 = vunpack.c.h.b16 %v182
    %v393 = vunpack.c.l.b16 %v183
    %v394 = vunpack.c.h.b16 %v183
    %v395 = vunpack.c.l.b16 %v184
    %v396 = vunpack.c.h.b16 %v184
    %v397 = vunpack.c.l.b16 %v185
    %v398 = vunpack.c.h.b16 %v185
    %v399 = vunpack.c.l.b16 %v186
    %v400 = vunpack.c.h.b16 %v186
    %v401 = vpack.c.b16 %v277, %v273
    %v402 = vpack.c.b16 %v278, %v274
    %v403 = vpack.c.b16 %v279, %v275
    %v404 = vpack.c.b16 %v280, %v276
    %v405 = vpack.c.b16 %v285, %v281
    %v406 = vpack.c.b16 %v286, %v282
    %v407 = vpack.c.b16 %v287, %v283
    %v408 = vpack.c.b16 %v288, %v284
    %v409 = vpack.c.b16 %v293, %v289
    %v410 = vpack.c.b16 %v294, %v290
    %v411 = vpack.c.b16 %v295, %v291
    %v412 = vpack.c.b16 %v296, %v292
    %v413 = vpack.c.b16 %v301, %v297
    %v414 = vpack.c.b16 %v302, %v298
    %v415 = vpack.c.b16 %v303, %v299
    %v416 = vpack.c.b16 %v304, %v300
    %v417 = vpack.c.b16 %v309, %v305
    %v418 = vpack.c.b16 %v310, %v306
    %v419 = vpack.c.b16 %v311, %v307
    %v420 = vpack.c.b16 %v312, %v308
    %v421 = vpack.c.b16 %v317, %v313
    %v422 = vpack.c.b16 %v318, %v314
    %v423 = vpack.c.b16 %v319, %v315
    %v424 = vpack.c.b16 %v320, %v316
    %v425 = vpack.c.b16 %v325, %v321
    %v426 = vpack.c.b16 %v326, %v322
    %v427 = vpack.c.b16 %v327, %v323
    %v428 = vpack.c.b16 %v328, %v324
    %v429 = vpack.c.b16 %v333, %v329
    %v430 = vpack.c.b16 %v334, %v330
    %v431 = vpack.c.b16 %v335, %v331
    %v432 = vpack.c.b16 %v336, %v332
    %v433 = vpack.c.b16 %v341, %v337
    %v434 = vpack.c.b16 %v342, %v338
    %v435 = vpack.c.b16 %v343, %v339
    %v436 = vpack.c.b16 %v344, %v340
    %v437 = vpack.c.b16 %v349, %v345
    %v438 = vpack.c.b16 %v350, %v346
    %v439 = vpack.c.b16 %v351, %v347
    %v440 = vpack.c.b16 %v352, %v348
    %v441 = vpack.c.b16 %v357, %v353
    %v442 = vpack.c.b16 %v358, %v354
    %v443 = vpack.c.b16 %v359, %v355
    %v444 = vpack.c.b16 %v360, %v356
    %v445 = vpack.c.b16 %v365, %v361
    %v446 = vpack.c.b16 %v366, %v362
    %v447 = vpack.c.b16 %v367, %v363
    %v448 = vpack.c.b16 %v368, %v364
    %v449 = vpack.c.b16 %v373, %v369
    %v450 = vpack.c.b16 %v374, %v370
    %v451 = vpack.c.b16 %v375, %v371
    %v452 = vpack.c.b16 %v376, %v372
    %v453 = vpack.c.b16 %v381, %v377
    %v454 = vpack.c.b16 %v382, %v378
    %v455 = vpack.c.b16 %v383, %v379
    %v456 = vpack.c.b16 %v384, %v380
    %v457 = vpack.c.b16 %v389, %v385
    %v458 = vpack.c.b16 %v390, %v386
    %v459 = vpack.c.b16 %v391, %v387
    %v460 = vpack.c.b16 %v392, %v388
    %v461 = vpack.c.b16 %v397, %v393
    %v462 = vpack.c.b16 %v398, %v394
    %v463 = vpack.c.b16 %v399, %v395
    %v464 = vpack.c.b16 %v400, %v396
    %529 = vmatprep.subr.bf16.mxu0 %v430
    %530 = vmatpush1.bf16.msra.mxu0 %v429
    %531 = vmatprep.subr.bf16.mxu0 %v426
    %532 = vmatpush1.bf16.msra.mxu0 %v425
    %533 = vmatprep.subr.bf16.mxu0 %v422
    %534 = vmatpush1.bf16.msra.mxu0 %v421
    %535 = vmatprep.subr.bf16.mxu0 %v418
    %536 = vmatpush1.bf16.msra.mxu0 %v417
    %537 = vmatprep.subr.bf16.mxu0 %v414
    %538 = vmatpush1.bf16.msra.mxu0 %v413
    %539 = vmatprep.subr.bf16.mxu0 %v410
    %540 = vmatpush1.bf16.msra.mxu0 %v409
    %541 = vmatprep.subr.bf16.mxu0 %v406
    %542 = vmatpush1.bf16.msra.mxu0 %v405
    %543 = vmatprep.subr.bf16.mxu0 %v402
    %544 = vmatpush1.bf16.msra.mxu0 %v401
    %545 = vmatprep.subr.bf16.mxu0 %v462
    %546 = vmatpush2.bf16.msra.mxu0 %v461
    %547 = vmatprep.subr.bf16.mxu0 %v458
    %548 = vmatpush2.bf16.msra.mxu0 %v457
    %549 = vmatprep.subr.bf16.mxu0 %v454
    %550 = vmatpush2.bf16.msra.mxu0 %v453
    %551 = vmatprep.subr.bf16.mxu0 %v450
    %552 = vmatpush2.bf16.msra.mxu0 %v449
    %553 = vmatprep.subr.bf16.mxu0 %v446
    %554 = vmatpush2.bf16.msra.mxu0 %v445
    %555 = vmatprep.subr.bf16.mxu0 %v442
    %556 = vmatpush2.bf16.msra.mxu0 %v441
    %557 = vmatprep.subr.bf16.mxu0 %v438
    %558 = vmatpush2.bf16.msra.mxu0 %v437
    %559 = vmatprep.subr.bf16.mxu0 %v434
    %560 = vmatpush2.bf16.msra.mxu0 %v433
    %561 = vmatprep.mubr.bf16.mxu0 %v92
    %562 = vmatmul.mubr.bf16.gmra.mxu0 %v91
    %v563 = vpop.f32.mrf.mxu0
    %v564 = vadd.f32 %v192, %v563
    %v565 = vpop.f32.mrf.mxu0
    %v566 = vadd.f32 %v196, %v565
    %v567 = vpop.f32.mrf.mxu0
    %v568 = vadd.f32 %v192, %v567
    %v569 = vpop.f32.mrf.mxu0
    %v570 = vadd.f32 %v196, %v569
    %571 = vmatprep.mubr.bf16.mxu0 %v94
    %572 = vmatmul.mubr.bf16.gmra.mxu0 %v93
    %v573 = vpop.f32.mrf.mxu0
    %v574 = vadd.f32 %v192, %v573
    %v575 = vpop.f32.mrf.mxu0
    %v576 = vadd.f32 %v196, %v575
    %v577 = vpop.f32.mrf.mxu0
    %v578 = vadd.f32 %v192, %v577
    %v579 = vpop.f32.mrf.mxu0
    %v580 = vadd.f32 %v196, %v579
    %581 = vmatprep.mubr.bf16.mxu0 %v96
    %582 = vmatmul.mubr.bf16.gmra.mxu0 %v95
    %v583 = vpop.f32.mrf.mxu0
    %v584 = vadd.f32 %v192, %v583
    %v585 = vpop.f32.mrf.mxu0
    %v586 = vadd.f32 %v196, %v585
    %v587 = vpop.f32.mrf.mxu0
    %v588 = vadd.f32 %v192, %v587
    %v589 = vpop.f32.mrf.mxu0
    %v590 = vadd.f32 %v196, %v589
    %591 = vmatprep.mubr.bf16.mxu0 %v98
    %592 = vmatmul.mubr.bf16.gmra.mxu0 %v97
    %v593 = vpop.f32.mrf.mxu0
    %v594 = vadd.f32 %v192, %v593
    %v595 = vpop.f32.mrf.mxu0
    %v596 = vadd.f32 %v196, %v595
    %v597 = vpop.f32.mrf.mxu0
    %v598 = vadd.f32 %v192, %v597
    %v599 = vpop.f32.mrf.mxu0
    %v600 = vadd.f32 %v196, %v599
    %601 = vmatprep.mubr.bf16.mxu0 %v100
    %602 = vmatmul.mubr.bf16.gmra.mxu0 %v99
    %v603 = vpop.f32.mrf.mxu0
    %v604 = vadd.f32 %v192, %v603
    %v605 = vpop.f32.mrf.mxu0
    %v606 = vadd.f32 %v196, %v605
    %v607 = vpop.f32.mrf.mxu0
    %v608 = vadd.f32 %v192, %v607
    %v609 = vpop.f32.mrf.mxu0
    %v610 = vadd.f32 %v196, %v609
    %611 = vmatprep.mubr.bf16.mxu0 %v102
    %612 = vmatmul.mubr.bf16.gmra.mxu0 %v101
    %v613 = vpop.f32.mrf.mxu0
    %v614 = vadd.f32 %v192, %v613
    %v615 = vpop.f32.mrf.mxu0
    %v616 = vadd.f32 %v196, %v615
    %v617 = vpop.f32.mrf.mxu0
    %v618 = vadd.f32 %v192, %v617
    %v619 = vpop.f32.mrf.mxu0
    %v620 = vadd.f32 %v196, %v619
    %621 = vmatprep.mubr.bf16.mxu0 %v104
    %622 = vmatmul.mubr.bf16.gmra.mxu0 %v103
    %v623 = vpop.f32.mrf.mxu0
    %v624 = vadd.f32 %v192, %v623
    %v625 = vpop.f32.mrf.mxu0
    %v626 = vadd.f32 %v196, %v625
    %v627 = vpop.f32.mrf.mxu0
    %v628 = vadd.f32 %v192, %v627
    %v629 = vpop.f32.mrf.mxu0
    %v630 = vadd.f32 %v196, %v629
    %631 = vmatprep.mubr.bf16.mxu0 %v106
    %632 = vmatmul.mubr.bf16.gmra.mxu0 %v105
    %v633 = vpop.f32.mrf.mxu0
    %v634 = vadd.f32 %v192, %v633
    %v635 = vpop.f32.mrf.mxu0
    %v636 = vadd.f32 %v196, %v635
    %v637 = vpop.f32.mrf.mxu0
    %v638 = vadd.f32 %v192, %v637
    %v639 = vpop.f32.mrf.mxu0
    %v640 = vadd.f32 %v196, %v639
    %641 = vmatprep.mubr.bf16.mxu0 %v108
    %642 = vmatmul.mubr.bf16.gmra.mxu0 %v107
    %v643 = vpop.f32.mrf.mxu0
    %v644 = vadd.f32 %v192, %v643
    %v645 = vpop.f32.mrf.mxu0
    %v646 = vadd.f32 %v196, %v645
    %v647 = vpop.f32.mrf.mxu0
    %v648 = vadd.f32 %v192, %v647
    %v649 = vpop.f32.mrf.mxu0
    %v650 = vadd.f32 %v196, %v649
    %651 = vmatprep.mubr.bf16.mxu0 %v110
    %652 = vmatmul.mubr.bf16.gmra.mxu0 %v109
    %v653 = vpop.f32.mrf.mxu0
    %v654 = vadd.f32 %v192, %v653
    %v655 = vpop.f32.mrf.mxu0
    %v656 = vadd.f32 %v196, %v655
    %v657 = vpop.f32.mrf.mxu0
    %v658 = vadd.f32 %v192, %v657
    %v659 = vpop.f32.mrf.mxu0
    %v660 = vadd.f32 %v196, %v659
    %661 = vmatprep.mubr.bf16.mxu0 %v112
    %662 = vmatmul.mubr.bf16.gmra.mxu0 %v111
    %v663 = vpop.f32.mrf.mxu0
    %v664 = vadd.f32 %v192, %v663
    %v665 = vpop.f32.mrf.mxu0
    %v666 = vadd.f32 %v196, %v665
    %v667 = vpop.f32.mrf.mxu0
    %v668 = vadd.f32 %v192, %v667
    %v669 = vpop.f32.mrf.mxu0
    %v670 = vadd.f32 %v196, %v669
    %671 = vmatprep.mubr.bf16.mxu0 %v114
    %672 = vmatmul.mubr.bf16.gmra.mxu0 %v113
    %v673 = vpop.f32.mrf.mxu0
    %v674 = vadd.f32 %v192, %v673
    %v675 = vpop.f32.mrf.mxu0
    %v676 = vadd.f32 %v196, %v675
    %v677 = vpop.f32.mrf.mxu0
    %v678 = vadd.f32 %v192, %v677
    %v679 = vpop.f32.mrf.mxu0
    %v680 = vadd.f32 %v196, %v679
    %681 = vmatprep.mubr.bf16.mxu0 %v116
    %682 = vmatmul.mubr.bf16.gmra.mxu0 %v115
    %v683 = vpop.f32.mrf.mxu0
    %v684 = vadd.f32 %v192, %v683
    %v685 = vpop.f32.mrf.mxu0
    %v686 = vadd.f32 %v196, %v685
    %v687 = vpop.f32.mrf.mxu0
    %v688 = vadd.f32 %v192, %v687
    %v689 = vpop.f32.mrf.mxu0
    %v690 = vadd.f32 %v196, %v689
    %691 = vmatprep.mubr.bf16.mxu0 %v118
    %692 = vmatmul.mubr.bf16.gmra.mxu0 %v117
    %v693 = vpop.f32.mrf.mxu0
    %v694 = vadd.f32 %v192, %v693
    %v695 = vpop.f32.mrf.mxu0
    %v696 = vadd.f32 %v196, %v695
    %v697 = vpop.f32.mrf.mxu0
    %v698 = vadd.f32 %v192, %v697
    %v699 = vpop.f32.mrf.mxu0
    %v700 = vadd.f32 %v196, %v699
    %701 = vmatprep.mubr.bf16.mxu0 %v120
    %702 = vmatmul.mubr.bf16.gmra.mxu0 %v119
    %v703 = vpop.f32.mrf.mxu0
    %v704 = vadd.f32 %v192, %v703
    %v705 = vpop.f32.mrf.mxu0
    %v706 = vadd.f32 %v196, %v705
    %v707 = vpop.f32.mrf.mxu0
    %v708 = vadd.f32 %v192, %v707
    %v709 = vpop.f32.mrf.mxu0
    %v710 = vadd.f32 %v196, %v709
    %711 = vmatprep.mubr.bf16.mxu0 %v122
    %712 = vmatmul.mubr.bf16.gmra.mxu0 %v121
    %v713 = vpop.f32.mrf.mxu0
    %v714 = vadd.f32 %v192, %v713
    %v715 = vpop.f32.mrf.mxu0
    %v716 = vadd.f32 %v196, %v715
    %v717 = vpop.f32.mrf.mxu0
    %v718 = vadd.f32 %v192, %v717
    %v719 = vpop.f32.mrf.mxu0
    %v720 = vadd.f32 %v196, %v719
    %721 = vdwg.mxu0
    %722 = vmatprep.subr.bf16.mxu0 %v432
    %723 = vmatpush1.bf16.msra.mxu0 %v431
    %724 = vmatprep.subr.bf16.mxu0 %v428
    %725 = vmatpush1.bf16.msra.mxu0 %v427
    %726 = vmatprep.subr.bf16.mxu0 %v424
    %727 = vmatpush1.bf16.msra.mxu0 %v423
    %728 = vmatprep.subr.bf16.mxu0 %v420
    %729 = vmatpush1.bf16.msra.mxu0 %v419
    %730 = vmatprep.subr.bf16.mxu0 %v416
    %731 = vmatpush1.bf16.msra.mxu0 %v415
    %732 = vmatprep.subr.bf16.mxu0 %v412
    %733 = vmatpush1.bf16.msra.mxu0 %v411
    %734 = vmatprep.subr.bf16.mxu0 %v408
    %735 = vmatpush1.bf16.msra.mxu0 %v407
    %736 = vmatprep.subr.bf16.mxu0 %v404
    %737 = vmatpush1.bf16.msra.mxu0 %v403
    %738 = vmatprep.subr.bf16.mxu0 %v464
    %739 = vmatpush2.bf16.msra.mxu0 %v463
    %740 = vmatprep.subr.bf16.mxu0 %v460
    %741 = vmatpush2.bf16.msra.mxu0 %v459
    %742 = vmatprep.subr.bf16.mxu0 %v456
    %743 = vmatpush2.bf16.msra.mxu0 %v455
    %744 = vmatprep.subr.bf16.mxu0 %v452
    %745 = vmatpush2.bf16.msra.mxu0 %v451
    %746 = vmatprep.subr.bf16.mxu0 %v448
    %747 = vmatpush2.bf16.msra.mxu0 %v447
    %748 = vmatprep.subr.bf16.mxu0 %v444
    %749 = vmatpush2.bf16.msra.mxu0 %v443
    %750 = vmatprep.subr.bf16.mxu0 %v440
    %751 = vmatpush2.bf16.msra.mxu0 %v439
    %752 = vmatprep.subr.bf16.mxu0 %v436
    %753 = vmatpush2.bf16.msra.mxu0 %v435
    %754 = vmatprep.mubr.bf16.mxu0 %v92
    %755 = vmatmul.mubr.bf16.gmra.mxu0 %v91
    %v756 = vpop.f32.mrf.mxu0
    %v757 = vadd.f32 %v200, %v756
    %v758 = vpop.f32.mrf.mxu0
    %v759 = vadd.f32 %v204, %v758
    %v760 = vpop.f32.mrf.mxu0
    %v761 = vadd.f32 %v200, %v760
    %v762 = vpop.f32.mrf.mxu0
    %v763 = vadd.f32 %v204, %v762
    %764 = vmatprep.mubr.bf16.mxu0 %v94
    %765 = vmatmul.mubr.bf16.gmra.mxu0 %v93
    %v766 = vpop.f32.mrf.mxu0
    %v767 = vadd.f32 %v200, %v766
    %v768 = vpop.f32.mrf.mxu0
    %v769 = vadd.f32 %v204, %v768
    %v770 = vpop.f32.mrf.mxu0
    %v771 = vadd.f32 %v200, %v770
    %v772 = vpop.f32.mrf.mxu0
    %v773 = vadd.f32 %v204, %v772
    %774 = vmatprep.mubr.bf16.mxu0 %v96
    %775 = vmatmul.mubr.bf16.gmra.mxu0 %v95
    %v776 = vpop.f32.mrf.mxu0
    %v777 = vadd.f32 %v200, %v776
    %v778 = vpop.f32.mrf.mxu0
    %v779 = vadd.f32 %v204, %v778
    %v780 = vpop.f32.mrf.mxu0
    %v781 = vadd.f32 %v200, %v780
    %v782 = vpop.f32.mrf.mxu0
    %v783 = vadd.f32 %v204, %v782
    %784 = vmatprep.mubr.bf16.mxu0 %v98
    %785 = vmatmul.mubr.bf16.gmra.mxu0 %v97
    %v786 = vpop.f32.mrf.mxu0
    %v787 = vadd.f32 %v200, %v786
    %v788 = vpop.f32.mrf.mxu0
    %v789 = vadd.f32 %v204, %v788
    %v790 = vpop.f32.mrf.mxu0
    %v791 = vadd.f32 %v200, %v790
    %v792 = vpop.f32.mrf.mxu0
    %v793 = vadd.f32 %v204, %v792
    %794 = vmatprep.mubr.bf16.mxu0 %v100
    %795 = vmatmul.mubr.bf16.gmra.mxu0 %v99
    %v796 = vpop.f32.mrf.mxu0
    %v797 = vadd.f32 %v200, %v796
    %v798 = vpop.f32.mrf.mxu0
    %v799 = vadd.f32 %v204, %v798
    %v800 = vpop.f32.mrf.mxu0
    %v801 = vadd.f32 %v200, %v800
    %v802 = vpop.f32.mrf.mxu0
    %v803 = vadd.f32 %v204, %v802
    %804 = vmatprep.mubr.bf16.mxu0 %v102
    %805 = vmatmul.mubr.bf16.gmra.mxu0 %v101
    %v806 = vpop.f32.mrf.mxu0
    %v807 = vadd.f32 %v200, %v806
    %v808 = vpop.f32.mrf.mxu0
    %v809 = vadd.f32 %v204, %v808
    %v810 = vpop.f32.mrf.mxu0
    %v811 = vadd.f32 %v200, %v810
    %v812 = vpop.f32.mrf.mxu0
    %v813 = vadd.f32 %v204, %v812
    %814 = vmatprep.mubr.bf16.mxu0 %v104
    %815 = vmatmul.mubr.bf16.gmra.mxu0 %v103
    %v816 = vpop.f32.mrf.mxu0
    %v817 = vadd.f32 %v200, %v816
    %v818 = vpop.f32.mrf.mxu0
    %v819 = vadd.f32 %v204, %v818
    %v820 = vpop.f32.mrf.mxu0
    %v821 = vadd.f32 %v200, %v820
    %v822 = vpop.f32.mrf.mxu0
    %v823 = vadd.f32 %v204, %v822
    %824 = vmatprep.mubr.bf16.mxu0 %v106
    %825 = vmatmul.mubr.bf16.gmra.mxu0 %v105
    %v826 = vpop.f32.mrf.mxu0
    %v827 = vadd.f32 %v200, %v826
    %v828 = vpop.f32.mrf.mxu0
    %v829 = vadd.f32 %v204, %v828
    %v830 = vpop.f32.mrf.mxu0
    %v831 = vadd.f32 %v200, %v830
    %v832 = vpop.f32.mrf.mxu0
    %v833 = vadd.f32 %v204, %v832
    %834 = vmatprep.mubr.bf16.mxu0 %v108
    %835 = vmatmul.mubr.bf16.gmra.mxu0 %v107
    %v836 = vpop.f32.mrf.mxu0
    %v837 = vadd.f32 %v200, %v836
    %v838 = vpop.f32.mrf.mxu0
    %v839 = vadd.f32 %v204, %v838
    %v840 = vpop.f32.mrf.mxu0
    %v841 = vadd.f32 %v200, %v840
    %v842 = vpop.f32.mrf.mxu0
    %v843 = vadd.f32 %v204, %v842
    %844 = vmatprep.mubr.bf16.mxu0 %v110
    %845 = vmatmul.mubr.bf16.gmra.mxu0 %v109
    %v846 = vpop.f32.mrf.mxu0
    %v847 = vadd.f32 %v200, %v846
    %v848 = vpop.f32.mrf.mxu0
    %v849 = vadd.f32 %v204, %v848
    %v850 = vpop.f32.mrf.mxu0
    %v851 = vadd.f32 %v200, %v850
    %v852 = vpop.f32.mrf.mxu0
    %v853 = vadd.f32 %v204, %v852
    %854 = vmatprep.mubr.bf16.mxu0 %v112
    %855 = vmatmul.mubr.bf16.gmra.mxu0 %v111
    %v856 = vpop.f32.mrf.mxu0
    %v857 = vadd.f32 %v200, %v856
    %v858 = vpop.f32.mrf.mxu0
    %v859 = vadd.f32 %v204, %v858
    %v860 = vpop.f32.mrf.mxu0
    %v861 = vadd.f32 %v200, %v860
    %v862 = vpop.f32.mrf.mxu0
    %v863 = vadd.f32 %v204, %v862
    %864 = vmatprep.mubr.bf16.mxu0 %v114
    %865 = vmatmul.mubr.bf16.gmra.mxu0 %v113
    %v866 = vpop.f32.mrf.mxu0
    %v867 = vadd.f32 %v200, %v866
    %v868 = vpop.f32.mrf.mxu0
    %v869 = vadd.f32 %v204, %v868
    %v870 = vpop.f32.mrf.mxu0
    %v871 = vadd.f32 %v200, %v870
    %v872 = vpop.f32.mrf.mxu0
    %v873 = vadd.f32 %v204, %v872
    %874 = vmatprep.mubr.bf16.mxu0 %v116
    %875 = vmatmul.mubr.bf16.gmra.mxu0 %v115
    %v876 = vpop.f32.mrf.mxu0
    %v877 = vadd.f32 %v200, %v876
    %v878 = vpop.f32.mrf.mxu0
    %v879 = vadd.f32 %v204, %v878
    %v880 = vpop.f32.mrf.mxu0
    %v881 = vadd.f32 %v200, %v880
    %v882 = vpop.f32.mrf.mxu0
    %v883 = vadd.f32 %v204, %v882
    %884 = vmatprep.mubr.bf16.mxu0 %v118
    %885 = vmatmul.mubr.bf16.gmra.mxu0 %v117
    %v886 = vpop.f32.mrf.mxu0
    %v887 = vadd.f32 %v200, %v886
    %v888 = vpop.f32.mrf.mxu0
    %v889 = vadd.f32 %v204, %v888
    %v890 = vpop.f32.mrf.mxu0
    %v891 = vadd.f32 %v200, %v890
    %v892 = vpop.f32.mrf.mxu0
    %v893 = vadd.f32 %v204, %v892
    %894 = vmatprep.mubr.bf16.mxu0 %v120
    %895 = vmatmul.mubr.bf16.gmra.mxu0 %v119
    %v896 = vpop.f32.mrf.mxu0
    %v897 = vadd.f32 %v200, %v896
    %v898 = vpop.f32.mrf.mxu0
    %v899 = vadd.f32 %v204, %v898
    %v900 = vpop.f32.mrf.mxu0
    %v901 = vadd.f32 %v200, %v900
    %v902 = vpop.f32.mrf.mxu0
    %v903 = vadd.f32 %v204, %v902
    %904 = vmatprep.mubr.bf16.mxu0 %v122
    %905 = vmatmul.mubr.bf16.gmra.mxu0 %v121
    %v906 = vpop.f32.mrf.mxu0
    %v907 = vadd.f32 %v200, %v906
    %v908 = vpop.f32.mrf.mxu0
    %v909 = vadd.f32 %v204, %v908
    %v910 = vpop.f32.mrf.mxu0
    %v911 = vadd.f32 %v200, %v910
    %v912 = vpop.f32.mrf.mxu0
    %v913 = vadd.f32 %v204, %v912
    %914 = vdwg.mxu0
    %v915 = vmax.f32 %v564, 0.0
    %v916 = vmax.f32 %v566, 0.0
    %v917 = vmax.f32 %v757, 0.0
    %v918 = vmax.f32 %v759, 0.0
    %v919 = vmax.f32 %v568, 0.0
    %v920 = vmax.f32 %v570, 0.0
    %v921 = vmax.f32 %v761, 0.0
    %v922 = vmax.f32 %v763, 0.0
    %v923 = vmax.f32 %v574, 0.0
    %v924 = vmax.f32 %v576, 0.0
    %v925 = vmax.f32 %v767, 0.0
    %v926 = vmax.f32 %v769, 0.0
    %v927 = vmax.f32 %v578, 0.0
    %v928 = vmax.f32 %v580, 0.0
    %v929 = vmax.f32 %v771, 0.0
    %v930 = vmax.f32 %v773, 0.0
    %v931 = vmax.f32 %v584, 0.0
    %v932 = vmax.f32 %v586, 0.0
    %v933 = vmax.f32 %v777, 0.0
    %v934 = vmax.f32 %v779, 0.0
    %v935 = vmax.f32 %v588, 0.0
    %v936 = vmax.f32 %v590, 0.0
    %v937 = vmax.f32 %v781, 0.0
    %v938 = vmax.f32 %v783, 0.0
    %v939 = vmax.f32 %v594, 0.0
    %v940 = vmax.f32 %v596, 0.0
    %v941 = vmax.f32 %v787, 0.0
    %v942 = vmax.f32 %v789, 0.0
    %v943 = vmax.f32 %v598, 0.0
    %v944 = vmax.f32 %v600, 0.0
    %v945 = vmax.f32 %v791, 0.0
    %v946 = vmax.f32 %v793, 0.0
    %v947 = vmax.f32 %v604, 0.0
    %v948 = vmax.f32 %v606, 0.0
    %v949 = vmax.f32 %v797, 0.0
    %v950 = vmax.f32 %v799, 0.0
    %v951 = vmax.f32 %v608, 0.0
    %v952 = vmax.f32 %v610, 0.0
    %v953 = vmax.f32 %v801, 0.0
    %v954 = vmax.f32 %v803, 0.0
    %v955 = vmax.f32 %v614, 0.0
    %v956 = vmax.f32 %v616, 0.0
    %v957 = vmax.f32 %v807, 0.0
    %v958 = vmax.f32 %v809, 0.0
    %v959 = vmax.f32 %v618, 0.0
    %v960 = vmax.f32 %v620, 0.0
    %v961 = vmax.f32 %v811, 0.0
    %v962 = vmax.f32 %v813, 0.0
    %v963 = vmax.f32 %v624, 0.0
    %v964 = vmax.f32 %v626, 0.0
    %v965 = vmax.f32 %v817, 0.0
    %v966 = vmax.f32 %v819, 0.0
    %v967 = vmax.f32 %v628, 0.0
    %v968 = vmax.f32 %v630, 0.0
    %v969 = vmax.f32 %v821, 0.0
    %v970 = vmax.f32 %v823, 0.0
    %v971 = vmax.f32 %v634, 0.0
    %v972 = vmax.f32 %v636, 0.0
    %v973 = vmax.f32 %v827, 0.0
    %v974 = vmax.f32 %v829, 0.0
    %v975 = vmax.f32 %v638, 0.0
    %v976 = vmax.f32 %v640, 0.0
    %v977 = vmax.f32 %v831, 0.0
    %v978 = vmax.f32 %v833, 0.0
    %v979 = vmax.f32 %v644, 0.0
    %v980 = vmax.f32 %v646, 0.0
    %v981 = vmax.f32 %v837, 0.0
    %v982 = vmax.f32 %v839, 0.0
    %v983 = vmax.f32 %v648, 0.0
    %v984 = vmax.f32 %v650, 0.0
    %v985 = vmax.f32 %v841, 0.0
    %v986 = vmax.f32 %v843, 0.0
    %v987 = vmax.f32 %v654, 0.0
    %v988 = vmax.f32 %v656, 0.0
    %v989 = vmax.f32 %v847, 0.0
    %v990 = vmax.f32 %v849, 0.0
    %v991 = vmax.f32 %v658, 0.0
    %v992 = vmax.f32 %v660, 0.0
    %v993 = vmax.f32 %v851, 0.0
    %v994 = vmax.f32 %v853, 0.0
    %v995 = vmax.f32 %v664, 0.0
    %v996 = vmax.f32 %v666, 0.0
    %v997 = vmax.f32 %v857, 0.0
    %v998 = vmax.f32 %v859, 0.0
    %v999 = vmax.f32 %v668, 0.0
    %v1000 = vmax.f32 %v670, 0.0
    %v1001 = vmax.f32 %v861, 0.0
    %v1002 = vmax.f32 %v863, 0.0
    %v1003 = vmax.f32 %v674, 0.0
    %v1004 = vmax.f32 %v676, 0.0
    %v1005 = vmax.f32 %v867, 0.0
    %v1006 = vmax.f32 %v869, 0.0
    %v1007 = vmax.f32 %v678, 0.0
    %v1008 = vmax.f32 %v680, 0.0
    %v1009 = vmax.f32 %v871, 0.0
    %v1010 = vmax.f32 %v873, 0.0
    %v1011 = vmax.f32 %v684, 0.0
    %v1012 = vmax.f32 %v686, 0.0
    %v1013 = vmax.f32 %v877, 0.0
    %v1014 = vmax.f32 %v879, 0.0
    %v1015 = vmax.f32 %v688, 0.0
    %v1016 = vmax.f32 %v690, 0.0
    %v1017 = vmax.f32 %v881, 0.0
    %v1018 = vmax.f32 %v883, 0.0
    %v1019 = vmax.f32 %v694, 0.0
    %v1020 = vmax.f32 %v696, 0.0
    %v1021 = vmax.f32 %v887, 0.0
    %v1022 = vmax.f32 %v889, 0.0
    %v1023 = vmax.f32 %v698, 0.0
    %v1024 = vmax.f32 %v700, 0.0
    %v1025 = vmax.f32 %v891, 0.0
    %v1026 = vmax.f32 %v893, 0.0
    %v1027 = vmax.f32 %v704, 0.0
    %v1028 = vmax.f32 %v706, 0.0
    %v1029 = vmax.f32 %v897, 0.0
    %v1030 = vmax.f32 %v899, 0.0
    %v1031 = vmax.f32 %v708, 0.0
    %v1032 = vmax.f32 %v710, 0.0
    %v1033 = vmax.f32 %v901, 0.0
    %v1034 = vmax.f32 %v903, 0.0
    %v1035 = vmax.f32 %v714, 0.0
    %v1036 = vmax.f32 %v716, 0.0
    %v1037 = vmax.f32 %v907, 0.0
    %v1038 = vmax.f32 %v909, 0.0
    %v1039 = vmax.f32 %v718, 0.0
    %v1040 = vmax.f32 %v720, 0.0
    %v1041 = vmax.f32 %v911, 0.0
    %v1042 = vmax.f32 %v913, 0.0
    %v1043 = vpack.c.bf16 %v919, %v915
    %v1044 = vpack.c.bf16 %v920, %v916
    %v1045 = vpack.c.bf16 %v921, %v917
    %v1046 = vpack.c.bf16 %v922, %v918
    %v1047 = vpack.c.bf16 %v927, %v923
    %v1048 = vpack.c.bf16 %v928, %v924
    %v1049 = vpack.c.bf16 %v929, %v925
    %v1050 = vpack.c.bf16 %v930, %v926
    %v1051 = vpack.c.bf16 %v935, %v931
    %v1052 = vpack.c.bf16 %v936, %v932
    %v1053 = vpack.c.bf16 %v937, %v933
    %v1054 = vpack.c.bf16 %v938, %v934
    %v1055 = vpack.c.bf16 %v943, %v939
    %v1056 = vpack.c.bf16 %v944, %v940
    %v1057 = vpack.c.bf16 %v945, %v941
    %v1058 = vpack.c.bf16 %v946, %v942
    %v1059 = vpack.c.bf16 %v951, %v947
    %v1060 = vpack.c.bf16 %v952, %v948
    %v1061 = vpack.c.bf16 %v953, %v949
    %v1062 = vpack.c.bf16 %v954, %v950
    %v1063 = vpack.c.bf16 %v959, %v955
    %v1064 = vpack.c.bf16 %v960, %v956
    %v1065 = vpack.c.bf16 %v961, %v957
    %v1066 = vpack.c.bf16 %v962, %v958
    %v1067 = vpack.c.bf16 %v967, %v963
    %v1068 = vpack.c.bf16 %v968, %v964
    %v1069 = vpack.c.bf16 %v969, %v965
    %v1070 = vpack.c.bf16 %v970, %v966
    %v1071 = vpack.c.bf16 %v975, %v971
    %v1072 = vpack.c.bf16 %v976, %v972
    %v1073 = vpack.c.bf16 %v977, %v973
    %v1074 = vpack.c.bf16 %v978, %v974
    %v1075 = vpack.c.bf16 %v983, %v979
    %v1076 = vpack.c.bf16 %v984, %v980
    %v1077 = vpack.c.bf16 %v985, %v981
    %v1078 = vpack.c.bf16 %v986, %v982
    %v1079 = vpack.c.bf16 %v991, %v987
    %v1080 = vpack.c.bf16 %v992, %v988
    %v1081 = vpack.c.bf16 %v993, %v989
    %v1082 = vpack.c.bf16 %v994, %v990
    %v1083 = vpack.c.bf16 %v999, %v995
    %v1084 = vpack.c.bf16 %v1000, %v996
    %v1085 = vpack.c.bf16 %v1001, %v997
    %v1086 = vpack.c.bf16 %v1002, %v998
    %v1087 = vpack.c.bf16 %v1007, %v1003
    %v1088 = vpack.c.bf16 %v1008, %v1004
    %v1089 = vpack.c.bf16 %v1009, %v1005
    %v1090 = vpack.c.bf16 %v1010, %v1006
    %v1091 = vpack.c.bf16 %v1015, %v1011
    %v1092 = vpack.c.bf16 %v1016, %v1012
    %v1093 = vpack.c.bf16 %v1017, %v1013
    %v1094 = vpack.c.bf16 %v1018, %v1014
    %v1095 = vpack.c.bf16 %v1023, %v1019
    %v1096 = vpack.c.bf16 %v1024, %v1020
    %v1097 = vpack.c.bf16 %v1025, %v1021
    %v1098 = vpack.c.bf16 %v1026, %v1022
    %v1099 = vpack.c.bf16 %v1031, %v1027
    %v1100 = vpack.c.bf16 %v1032, %v1028
    %v1101 = vpack.c.bf16 %v1033, %v1029
    %v1102 = vpack.c.bf16 %v1034, %v1030
    %v1103 = vpack.c.bf16 %v1039, %v1035
    %v1104 = vpack.c.bf16 %v1040, %v1036
    %v1105 = vpack.c.bf16 %v1041, %v1037
    %v1106 = vpack.c.bf16 %v1042, %v1038
    %v1107 = vld [vmem:[%s3] sm:$0xff]
    %v1108 = vld [vmem:[%s3 + $0x8] sm:$0xff]
    %v1109 = vld [vmem:[%s3 + $0x10] sm:$0xff]
    %v1110 = vld [vmem:[%s3 + $0x18] sm:$0xff]
    %v1111 = vld [vmem:[%s3 + $0x20] sm:$0xff]
    %v1112 = vld [vmem:[%s3 + $0x28] sm:$0xff]
    %v1113 = vld [vmem:[%s3 + $0x30] sm:$0xff]
    %v1114 = vld [vmem:[%s3 + $0x38] sm:$0xff]
    %v1115 = vld [vmem:[%s3 + $0x40] sm:$0xff]
    %v1116 = vld [vmem:[%s3 + $0x48] sm:$0xff]
    %v1117 = vld [vmem:[%s3 + $0x50] sm:$0xff]
    %v1118 = vld [vmem:[%s3 + $0x58] sm:$0xff]
    %v1119 = vld [vmem:[%s3 + $0x60] sm:$0xff]
    %v1120 = vld [vmem:[%s3 + $0x68] sm:$0xff]
    %v1121 = vld [vmem:[%s3 + $0x70] sm:$0xff]
    %v1122 = vld [vmem:[%s3 + $0x78] sm:$0xff]
    %v1123 = vld [vmem:[%s3 + $0x80] sm:$0xff]
    %v1124 = vld [vmem:[%s3 + $0x88] sm:$0xff]
    %v1125 = vld [vmem:[%s3 + $0x90] sm:$0xff]
    %v1126 = vld [vmem:[%s3 + $0x98] sm:$0xff]
    %v1127 = vld [vmem:[%s3 + $0xa0] sm:$0xff]
    %v1128 = vld [vmem:[%s3 + $0xa8] sm:$0xff]
    %v1129 = vld [vmem:[%s3 + $0xb0] sm:$0xff]
    %v1130 = vld [vmem:[%s3 + $0xb8] sm:$0xff]
    %v1131 = vld [vmem:[%s3 + $0xc0] sm:$0xff]
    %v1132 = vld [vmem:[%s3 + $0xc8] sm:$0xff]
    %v1133 = vld [vmem:[%s3 + $0xd0] sm:$0xff]
    %v1134 = vld [vmem:[%s3 + $0xd8] sm:$0xff]
    %v1135 = vld [vmem:[%s3 + $0xe0] sm:$0xff]
    %v1136 = vld [vmem:[%s3 + $0xe8] sm:$0xff]
    %v1137 = vld [vmem:[%s3 + $0xf0] sm:$0xff]
    %v1138 = vld [vmem:[%s3 + $0xf8] sm:$0xff]
    %v1139 = vld [vmem:[%s3 + $0x100] sm:$0xff]
    %v1140 = vld [vmem:[%s3 + $0x108] sm:$0xff]
    %v1141 = vld [vmem:[%s3 + $0x110] sm:$0xff]
    %v1142 = vld [vmem:[%s3 + $0x118] sm:$0xff]
    %v1143 = vld [vmem:[%s3 + $0x120] sm:$0xff]
    %v1144 = vld [vmem:[%s3 + $0x128] sm:$0xff]
    %v1145 = vld [vmem:[%s3 + $0x130] sm:$0xff]
    %v1146 = vld [vmem:[%s3 + $0x138] sm:$0xff]
    %v1147 = vld [vmem:[%s3 + $0x140] sm:$0xff]
    %v1148 = vld [vmem:[%s3 + $0x148] sm:$0xff]
    %v1149 = vld [vmem:[%s3 + $0x150] sm:$0xff]
    %v1150 = vld [vmem:[%s3 + $0x158] sm:$0xff]
    %v1151 = vld [vmem:[%s3 + $0x160] sm:$0xff]
    %v1152 = vld [vmem:[%s3 + $0x168] sm:$0xff]
    %v1153 = vld [vmem:[%s3 + $0x170] sm:$0xff]
    %v1154 = vld [vmem:[%s3 + $0x178] sm:$0xff]
    %v1155 = vld [vmem:[%s3 + $0x180] sm:$0xff]
    %v1156 = vld [vmem:[%s3 + $0x188] sm:$0xff]
    %v1157 = vld [vmem:[%s3 + $0x190] sm:$0xff]
    %v1158 = vld [vmem:[%s3 + $0x198] sm:$0xff]
    %v1159 = vld [vmem:[%s3 + $0x1a0] sm:$0xff]
    %v1160 = vld [vmem:[%s3 + $0x1a8] sm:$0xff]
    %v1161 = vld [vmem:[%s3 + $0x1b0] sm:$0xff]
    %v1162 = vld [vmem:[%s3 + $0x1b8] sm:$0xff]
    %v1163 = vld [vmem:[%s3 + $0x1c0] sm:$0xff]
    %v1164 = vld [vmem:[%s3 + $0x1c8] sm:$0xff]
    %v1165 = vld [vmem:[%s3 + $0x1d0] sm:$0xff]
    %v1166 = vld [vmem:[%s3 + $0x1d8] sm:$0xff]
    %v1167 = vld [vmem:[%s3 + $0x1e0] sm:$0xff]
    %v1168 = vld [vmem:[%s3 + $0x1e8] sm:$0xff]
    %v1169 = vld [vmem:[%s3 + $0x1f0] sm:$0xff]
    %v1170 = vld [vmem:[%s3 + $0x1f8] sm:$0xff]
    %v1171 = vld [vmem:[%s4] sm:$0x3]
    %v1173 = vlaneseq
    %v1174 = vshrl.u32 %v1173, 7
    %v1175 = vsub.s32 0, %v1174
    %v1176 = vrot.slane %v1171, %v1175
    %v1177 = vlaneseq
    %v1178 = vshrl.u32 %v1177, 7
    %v1179 = vsub.s32 1, %v1178
    %v1180 = vrot.slane %v1171, %v1179
    %v1247 = vunpack.c.l.b16 %v1107
    %v1248 = vunpack.c.h.b16 %v1107
    %v1249 = vunpack.c.l.b16 %v1108
    %v1250 = vunpack.c.h.b16 %v1108
    %v1251 = vunpack.c.l.b16 %v1109
    %v1252 = vunpack.c.h.b16 %v1109
    %v1253 = vunpack.c.l.b16 %v1110
    %v1254 = vunpack.c.h.b16 %v1110
    %v1255 = vunpack.c.l.b16 %v1111
    %v1256 = vunpack.c.h.b16 %v1111
    %v1257 = vunpack.c.l.b16 %v1112
    %v1258 = vunpack.c.h.b16 %v1112
    %v1259 = vunpack.c.l.b16 %v1113
    %v1260 = vunpack.c.h.b16 %v1113
    %v1261 = vunpack.c.l.b16 %v1114
    %v1262 = vunpack.c.h.b16 %v1114
    %v1263 = vunpack.c.l.b16 %v1115
    %v1264 = vunpack.c.h.b16 %v1115
    %v1265 = vunpack.c.l.b16 %v1116
    %v1266 = vunpack.c.h.b16 %v1116
    %v1267 = vunpack.c.l.b16 %v1117
    %v1268 = vunpack.c.h.b16 %v1117
    %v1269 = vunpack.c.l.b16 %v1118
    %v1270 = vunpack.c.h.b16 %v1118
    %v1271 = vunpack.c.l.b16 %v1119
    %v1272 = vunpack.c.h.b16 %v1119
    %v1273 = vunpack.c.l.b16 %v1120
    %v1274 = vunpack.c.h.b16 %v1120
    %v1275 = vunpack.c.l.b16 %v1121
    %v1276 = vunpack.c.h.b16 %v1121
    %v1277 = vunpack.c.l.b16 %v1122
    %v1278 = vunpack.c.h.b16 %v1122
    %v1279 = vunpack.c.l.b16 %v1123
    %v1280 = vunpack.c.h.b16 %v1123
    %v1281 = vunpack.c.l.b16 %v1124
    %v1282 = vunpack.c.h.b16 %v1124
    %v1283 = vunpack.c.l.b16 %v1125
    %v1284 = vunpack.c.h.b16 %v1125
    %v1285 = vunpack.c.l.b16 %v1126
    %v1286 = vunpack.c.h.b16 %v1126
    %v1287 = vunpack.c.l.b16 %v1127
    %v1288 = vunpack.c.h.b16 %v1127
    %v1289 = vunpack.c.l.b16 %v1128
    %v1290 = vunpack.c.h.b16 %v1128
    %v1291 = vunpack.c.l.b16 %v1129
    %v1292 = vunpack.c.h.b16 %v1129
    %v1293 = vunpack.c.l.b16 %v1130
    %v1294 = vunpack.c.h.b16 %v1130
    %v1295 = vunpack.c.l.b16 %v1131
    %v1296 = vunpack.c.h.b16 %v1131
    %v1297 = vunpack.c.l.b16 %v1132
    %v1298 = vunpack.c.h.b16 %v1132
    %v1299 = vunpack.c.l.b16 %v1133
    %v1300 = vunpack.c.h.b16 %v1133
    %v1301 = vunpack.c.l.b16 %v1134
    %v1302 = vunpack.c.h.b16 %v1134
    %v1303 = vunpack.c.l.b16 %v1135
    %v1304 = vunpack.c.h.b16 %v1135
    %v1305 = vunpack.c.l.b16 %v1136
    %v1306 = vunpack.c.h.b16 %v1136
    %v1307 = vunpack.c.l.b16 %v1137
    %v1308 = vunpack.c.h.b16 %v1137
    %v1309 = vunpack.c.l.b16 %v1138
    %v1310 = vunpack.c.h.b16 %v1138
    %v1311 = vunpack.c.l.b16 %v1139
    %v1312 = vunpack.c.h.b16 %v1139
    %v1313 = vunpack.c.l.b16 %v1140
    %v1314 = vunpack.c.h.b16 %v1140
    %v1315 = vunpack.c.l.b16 %v1141
    %v1316 = vunpack.c.h.b16 %v1141
    %v1317 = vunpack.c.l.b16 %v1142
    %v1318 = vunpack.c.h.b16 %v1142
    %v1319 = vunpack.c.l.b16 %v1143
    %v1320 = vunpack.c.h.b16 %v1143
    %v1321 = vunpack.c.l.b16 %v1144
    %v1322 = vunpack.c.h.b16 %v1144
    %v1323 = vunpack.c.l.b16 %v1145
    %v1324 = vunpack.c.h.b16 %v1145
    %v1325 = vunpack.c.l.b16 %v1146
    %v1326 = vunpack.c.h.b16 %v1146
    %v1327 = vunpack.c.l.b16 %v1147
    %v1328 = vunpack.c.h.b16 %v1147
    %v1329 = vunpack.c.l.b16 %v1148
    %v1330 = vunpack.c.h.b16 %v1148
    %v1331 = vunpack.c.l.b16 %v1149
    %v1332 = vunpack.c.h.b16 %v1149
    %v1333 = vunpack.c.l.b16 %v1150
    %v1334 = vunpack.c.h.b16 %v1150
    %v1335 = vunpack.c.l.b16 %v1151
    %v1336 = vunpack.c.h.b16 %v1151
    %v1337 = vunpack.c.l.b16 %v1152
    %v1338 = vunpack.c.h.b16 %v1152
    %v1339 = vunpack.c.l.b16 %v1153
    %v1340 = vunpack.c.h.b16 %v1153
    %v1341 = vunpack.c.l.b16 %v1154
    %v1342 = vunpack.c.h.b16 %v1154
    %v1343 = vunpack.c.l.b16 %v1155
    %v1344 = vunpack.c.h.b16 %v1155
    %v1345 = vunpack.c.l.b16 %v1156
    %v1346 = vunpack.c.h.b16 %v1156
    %v1347 = vunpack.c.l.b16 %v1157
    %v1348 = vunpack.c.h.b16 %v1157
    %v1349 = vunpack.c.l.b16 %v1158
    %v1350 = vunpack.c.h.b16 %v1158
    %v1351 = vunpack.c.l.b16 %v1159
    %v1352 = vunpack.c.h.b16 %v1159
    %v1353 = vunpack.c.l.b16 %v1160
    %v1354 = vunpack.c.h.b16 %v1160
    %v1355 = vunpack.c.l.b16 %v1161
    %v1356 = vunpack.c.h.b16 %v1161
    %v1357 = vunpack.c.l.b16 %v1162
    %v1358 = vunpack.c.h.b16 %v1162
    %v1359 = vunpack.c.l.b16 %v1163
    %v1360 = vunpack.c.h.b16 %v1163
    %v1361 = vunpack.c.l.b16 %v1164
    %v1362 = vunpack.c.h.b16 %v1164
    %v1363 = vunpack.c.l.b16 %v1165
    %v1364 = vunpack.c.h.b16 %v1165
    %v1365 = vunpack.c.l.b16 %v1166
    %v1366 = vunpack.c.h.b16 %v1166
    %v1367 = vunpack.c.l.b16 %v1167
    %v1368 = vunpack.c.h.b16 %v1167
    %v1369 = vunpack.c.l.b16 %v1168
    %v1370 = vunpack.c.h.b16 %v1168
    %v1371 = vunpack.c.l.b16 %v1169
    %v1372 = vunpack.c.h.b16 %v1169
    %v1373 = vunpack.c.l.b16 %v1170
    %v1374 = vunpack.c.h.b16 %v1170
    %v1375 = vpack.c.b16 %v1249, %v1247
    %v1376 = vpack.c.b16 %v1250, %v1248
    %v1377 = vpack.c.b16 %v1253, %v1251
    %v1378 = vpack.c.b16 %v1254, %v1252
    %v1379 = vpack.c.b16 %v1257, %v1255
    %v1380 = vpack.c.b16 %v1258, %v1256
    %v1381 = vpack.c.b16 %v1261, %v1259
    %v1382 = vpack.c.b16 %v1262, %v1260
    %v1383 = vpack.c.b16 %v1265, %v1263
    %v1384 = vpack.c.b16 %v1266, %v1264
    %v1385 = vpack.c.b16 %v1269, %v1267
    %v1386 = vpack.c.b16 %v1270, %v1268
    %v1387 = vpack.c.b16 %v1273, %v1271
    %v1388 = vpack.c.b16 %v1274, %v1272
    %v1389 = vpack.c.b16 %v1277, %v1275
    %v1390 = vpack.c.b16 %v1278, %v1276
    %v1391 = vpack.c.b16 %v1281, %v1279
    %v1392 = vpack.c.b16 %v1282, %v1280
    %v1393 = vpack.c.b16 %v1285, %v1283
    %v1394 = vpack.c.b16 %v1286, %v1284
    %v1395 = vpack.c.b16 %v1289, %v1287
    %v1396 = vpack.c.b16 %v1290, %v1288
    %v1397 = vpack.c.b16 %v1293, %v1291
    %v1398 = vpack.c.b16 %v1294, %v1292
    %v1399 = vpack.c.b16 %v1297, %v1295
    %v1400 = vpack.c.b16 %v1298, %v1296
    %v1401 = vpack.c.b16 %v1301, %v1299
    %v1402 = vpack.c.b16 %v1302, %v1300
    %v1403 = vpack.c.b16 %v1305, %v1303
    %v1404 = vpack.c.b16 %v1306, %v1304
    %v1405 = vpack.c.b16 %v1309, %v1307
    %v1406 = vpack.c.b16 %v1310, %v1308
    %v1407 = vpack.c.b16 %v1313, %v1311
    %v1408 = vpack.c.b16 %v1314, %v1312
    %v1409 = vpack.c.b16 %v1317, %v1315
    %v1410 = vpack.c.b16 %v1318, %v1316
    %v1411 = vpack.c.b16 %v1321, %v1319
    %v1412 = vpack.c.b16 %v1322, %v1320
    %v1413 = vpack.c.b16 %v1325, %v1323
    %v1414 = vpack.c.b16 %v1326, %v1324
    %v1415 = vpack.c.b16 %v1329, %v1327
    %v1416 = vpack.c.b16 %v1330, %v1328
    %v1417 = vpack.c.b16 %v1333, %v1331
    %v1418 = vpack.c.b16 %v1334, %v1332
    %v1419 = vpack.c.b16 %v1337, %v1335
    %v1420 = vpack.c.b16 %v1338, %v1336
    %v1421 = vpack.c.b16 %v1341, %v1339
    %v1422 = vpack.c.b16 %v1342, %v1340
    %v1423 = vpack.c.b16 %v1345, %v1343
    %v1424 = vpack.c.b16 %v1346, %v1344
    %v1425 = vpack.c.b16 %v1349, %v1347
    %v1426 = vpack.c.b16 %v1350, %v1348
    %v1427 = vpack.c.b16 %v1353, %v1351
    %v1428 = vpack.c.b16 %v1354, %v1352
    %v1429 = vpack.c.b16 %v1357, %v1355
    %v1430 = vpack.c.b16 %v1358, %v1356
    %v1431 = vpack.c.b16 %v1361, %v1359
    %v1432 = vpack.c.b16 %v1362, %v1360
    %v1433 = vpack.c.b16 %v1365, %v1363
    %v1434 = vpack.c.b16 %v1366, %v1364
    %v1435 = vpack.c.b16 %v1369, %v1367
    %v1436 = vpack.c.b16 %v1370, %v1368
    %v1437 = vpack.c.b16 %v1373, %v1371
    %v1438 = vpack.c.b16 %v1374, %v1372
    %1503 = vmatprep.subr.bf16.mxu0 %v1390
    %1504 = vmatpush1.bf16.msra.mxu0 %v1389
    %1505 = vmatprep.subr.bf16.mxu0 %v1388
    %1506 = vmatpush1.bf16.msra.mxu0 %v1387
    %1507 = vmatprep.subr.bf16.mxu0 %v1386
    %1508 = vmatpush1.bf16.msra.mxu0 %v1385
    %1509 = vmatprep.subr.bf16.mxu0 %v1384
    %1510 = vmatpush1.bf16.msra.mxu0 %v1383
    %1511 = vmatprep.subr.bf16.mxu0 %v1382
    %1512 = vmatpush1.bf16.msra.mxu0 %v1381
    %1513 = vmatprep.subr.bf16.mxu0 %v1380
    %1514 = vmatpush1.bf16.msra.mxu0 %v1379
    %1515 = vmatprep.subr.bf16.mxu0 %v1378
    %1516 = vmatpush1.bf16.msra.mxu0 %v1377
    %1517 = vmatprep.subr.bf16.mxu0 %v1376
    %1518 = vmatpush1.bf16.msra.mxu0 %v1375
    %1519 = vmatprep.subr.bf16.mxu0 %v1406
    %1520 = vmatpush2.bf16.msra.mxu0 %v1405
    %1521 = vmatprep.subr.bf16.mxu0 %v1404
    %1522 = vmatpush2.bf16.msra.mxu0 %v1403
    %1523 = vmatprep.subr.bf16.mxu0 %v1402
    %1524 = vmatpush2.bf16.msra.mxu0 %v1401
    %1525 = vmatprep.subr.bf16.mxu0 %v1400
    %1526 = vmatpush2.bf16.msra.mxu0 %v1399
    %1527 = vmatprep.subr.bf16.mxu0 %v1398
    %1528 = vmatpush2.bf16.msra.mxu0 %v1397
    %1529 = vmatprep.subr.bf16.mxu0 %v1396
    %1530 = vmatpush2.bf16.msra.mxu0 %v1395
    %1531 = vmatprep.subr.bf16.mxu0 %v1394
    %1532 = vmatpush2.bf16.msra.mxu0 %v1393
    %1533 = vmatprep.subr.bf16.mxu0 %v1392
    %1534 = vmatpush2.bf16.msra.mxu0 %v1391
    %1535 = vmatprep.mubr.bf16.mxu0 %v1044
    %1536 = vmatmul.mubr.bf16.gmra.mxu0 %v1043
    %v1537 = vpop.f32.mrf.mxu0
    %v1538 = vadd.f32 %v1176, %v1537
    %v1539 = vpop.f32.mrf.mxu0
    %v1540 = vadd.f32 %v1180, %v1539
    %v1541 = vpop.f32.mrf.mxu0
    %v1542 = vadd.f32 %v1176, %v1541
    %v1543 = vpop.f32.mrf.mxu0
    %v1544 = vadd.f32 %v1180, %v1543
    %1545 = vmatprep.mubr.bf16.mxu0 %v1048
    %1546 = vmatmul.mubr.bf16.gmra.mxu0 %v1047
    %v1547 = vpop.f32.mrf.mxu0
    %v1548 = vadd.f32 %v1176, %v1547
    %v1549 = vpop.f32.mrf.mxu0
    %v1550 = vadd.f32 %v1180, %v1549
    %v1551 = vpop.f32.mrf.mxu0
    %v1552 = vadd.f32 %v1176, %v1551
    %v1553 = vpop.f32.mrf.mxu0
    %v1554 = vadd.f32 %v1180, %v1553
    %1555 = vmatprep.mubr.bf16.mxu0 %v1052
    %1556 = vmatmul.mubr.bf16.gmra.mxu0 %v1051
    %v1557 = vpop.f32.mrf.mxu0
    %v1558 = vadd.f32 %v1176, %v1557
    %v1559 = vpop.f32.mrf.mxu0
    %v1560 = vadd.f32 %v1180, %v1559
    %v1561 = vpop.f32.mrf.mxu0
    %v1562 = vadd.f32 %v1176, %v1561
    %v1563 = vpop.f32.mrf.mxu0
    %v1564 = vadd.f32 %v1180, %v1563
    %1565 = vmatprep.mubr.bf16.mxu0 %v1056
    %1566 = vmatmul.mubr.bf16.gmra.mxu0 %v1055
    %v1567 = vpop.f32.mrf.mxu0
    %v1568 = vadd.f32 %v1176, %v1567
    %v1569 = vpop.f32.mrf.mxu0
    %v1570 = vadd.f32 %v1180, %v1569
    %v1571 = vpop.f32.mrf.mxu0
    %v1572 = vadd.f32 %v1176, %v1571
    %v1573 = vpop.f32.mrf.mxu0
    %v1574 = vadd.f32 %v1180, %v1573
    %1575 = vmatprep.mubr.bf16.mxu0 %v1060
    %1576 = vmatmul.mubr.bf16.gmra.mxu0 %v1059
    %v1577 = vpop.f32.mrf.mxu0
    %v1578 = vadd.f32 %v1176, %v1577
    %v1579 = vpop.f32.mrf.mxu0
    %v1580 = vadd.f32 %v1180, %v1579
    %v1581 = vpop.f32.mrf.mxu0
    %v1582 = vadd.f32 %v1176, %v1581
    %v1583 = vpop.f32.mrf.mxu0
    %v1584 = vadd.f32 %v1180, %v1583
    %1585 = vmatprep.mubr.bf16.mxu0 %v1064
    %1586 = vmatmul.mubr.bf16.gmra.mxu0 %v1063
    %v1587 = vpop.f32.mrf.mxu0
    %v1588 = vadd.f32 %v1176, %v1587
    %v1589 = vpop.f32.mrf.mxu0
    %v1590 = vadd.f32 %v1180, %v1589
    %v1591 = vpop.f32.mrf.mxu0
    %v1592 = vadd.f32 %v1176, %v1591
    %v1593 = vpop.f32.mrf.mxu0
    %v1594 = vadd.f32 %v1180, %v1593
    %1595 = vmatprep.mubr.bf16.mxu0 %v1068
    %1596 = vmatmul.mubr.bf16.gmra.mxu0 %v1067
    %v1597 = vpop.f32.mrf.mxu0
    %v1598 = vadd.f32 %v1176, %v1597
    %v1599 = vpop.f32.mrf.mxu0
    %v1600 = vadd.f32 %v1180, %v1599
    %v1601 = vpop.f32.mrf.mxu0
    %v1602 = vadd.f32 %v1176, %v1601
    %v1603 = vpop.f32.mrf.mxu0
    %v1604 = vadd.f32 %v1180, %v1603
    %1605 = vmatprep.mubr.bf16.mxu0 %v1072
    %1606 = vmatmul.mubr.bf16.gmra.mxu0 %v1071
    %v1607 = vpop.f32.mrf.mxu0
    %v1608 = vadd.f32 %v1176, %v1607
    %v1609 = vpop.f32.mrf.mxu0
    %v1610 = vadd.f32 %v1180, %v1609
    %v1611 = vpop.f32.mrf.mxu0
    %v1612 = vadd.f32 %v1176, %v1611
    %v1613 = vpop.f32.mrf.mxu0
    %v1614 = vadd.f32 %v1180, %v1613
    %1615 = vmatprep.mubr.bf16.mxu0 %v1076
    %1616 = vmatmul.mubr.bf16.gmra.mxu0 %v1075
    %v1617 = vpop.f32.mrf.mxu0
    %v1618 = vadd.f32 %v1176, %v1617
    %v1619 = vpop.f32.mrf.mxu0
    %v1620 = vadd.f32 %v1180, %v1619
    %v1621 = vpop.f32.mrf.mxu0
    %v1622 = vadd.f32 %v1176, %v1621
    %v1623 = vpop.f32.mrf.mxu0
    %v1624 = vadd.f32 %v1180, %v1623
    %1625 = vmatprep.mubr.bf16.mxu0 %v1080
    %1626 = vmatmul.mubr.bf16.gmra.mxu0 %v1079
    %v1627 = vpop.f32.mrf.mxu0
    %v1628 = vadd.f32 %v1176, %v1627
    %v1629 = vpop.f32.mrf.mxu0
    %v1630 = vadd.f32 %v1180, %v1629
    %v1631 = vpop.f32.mrf.mxu0
    %v1632 = vadd.f32 %v1176, %v1631
    %v1633 = vpop.f32.mrf.mxu0
    %v1634 = vadd.f32 %v1180, %v1633
    %1635 = vmatprep.mubr.bf16.mxu0 %v1084
    %1636 = vmatmul.mubr.bf16.gmra.mxu0 %v1083
    %v1637 = vpop.f32.mrf.mxu0
    %v1638 = vadd.f32 %v1176, %v1637
    %v1639 = vpop.f32.mrf.mxu0
    %v1640 = vadd.f32 %v1180, %v1639
    %v1641 = vpop.f32.mrf.mxu0
    %v1642 = vadd.f32 %v1176, %v1641
    %v1643 = vpop.f32.mrf.mxu0
    %v1644 = vadd.f32 %v1180, %v1643
    %1645 = vmatprep.mubr.bf16.mxu0 %v1088
    %1646 = vmatmul.mubr.bf16.gmra.mxu0 %v1087
    %v1647 = vpop.f32.mrf.mxu0
    %v1648 = vadd.f32 %v1176, %v1647
    %v1649 = vpop.f32.mrf.mxu0
    %v1650 = vadd.f32 %v1180, %v1649
    %v1651 = vpop.f32.mrf.mxu0
    %v1652 = vadd.f32 %v1176, %v1651
    %v1653 = vpop.f32.mrf.mxu0
    %v1654 = vadd.f32 %v1180, %v1653
    %1655 = vmatprep.mubr.bf16.mxu0 %v1092
    %1656 = vmatmul.mubr.bf16.gmra.mxu0 %v1091
    %v1657 = vpop.f32.mrf.mxu0
    %v1658 = vadd.f32 %v1176, %v1657
    %v1659 = vpop.f32.mrf.mxu0
    %v1660 = vadd.f32 %v1180, %v1659
    %v1661 = vpop.f32.mrf.mxu0
    %v1662 = vadd.f32 %v1176, %v1661
    %v1663 = vpop.f32.mrf.mxu0
    %v1664 = vadd.f32 %v1180, %v1663
    %1665 = vmatprep.mubr.bf16.mxu0 %v1096
    %1666 = vmatmul.mubr.bf16.gmra.mxu0 %v1095
    %v1667 = vpop.f32.mrf.mxu0
    %v1668 = vadd.f32 %v1176, %v1667
    %v1669 = vpop.f32.mrf.mxu0
    %v1670 = vadd.f32 %v1180, %v1669
    %v1671 = vpop.f32.mrf.mxu0
    %v1672 = vadd.f32 %v1176, %v1671
    %v1673 = vpop.f32.mrf.mxu0
    %v1674 = vadd.f32 %v1180, %v1673
    %1675 = vmatprep.mubr.bf16.mxu0 %v1100
    %1676 = vmatmul.mubr.bf16.gmra.mxu0 %v1099
    %v1677 = vpop.f32.mrf.mxu0
    %v1678 = vadd.f32 %v1176, %v1677
    %v1679 = vpop.f32.mrf.mxu0
    %v1680 = vadd.f32 %v1180, %v1679
    %v1681 = vpop.f32.mrf.mxu0
    %v1682 = vadd.f32 %v1176, %v1681
    %v1683 = vpop.f32.mrf.mxu0
    %v1684 = vadd.f32 %v1180, %v1683
    %1685 = vmatprep.mubr.bf16.mxu0 %v1104
    %1686 = vmatmul.mubr.bf16.gmra.mxu0 %v1103
    %v1687 = vpop.f32.mrf.mxu0
    %v1688 = vadd.f32 %v1176, %v1687
    %v1689 = vpop.f32.mrf.mxu0
    %v1690 = vadd.f32 %v1180, %v1689
    %v1691 = vpop.f32.mrf.mxu0
    %v1692 = vadd.f32 %v1176, %v1691
    %v1693 = vpop.f32.mrf.mxu0
    %v1694 = vadd.f32 %v1180, %v1693
    %1695 = vdwg.mxu0
    %1696 = vmatprep.subr.bf16.mxu0 %v1422
    %1697 = vmatpush1.bf16.msra.mxu0 %v1421
    %1698 = vmatprep.subr.bf16.mxu0 %v1420
    %1699 = vmatpush1.bf16.msra.mxu0 %v1419
    %1700 = vmatprep.subr.bf16.mxu0 %v1418
    %1701 = vmatpush1.bf16.msra.mxu0 %v1417
    %1702 = vmatprep.subr.bf16.mxu0 %v1416
    %1703 = vmatpush1.bf16.msra.mxu0 %v1415
    %1704 = vmatprep.subr.bf16.mxu0 %v1414
    %1705 = vmatpush1.bf16.msra.mxu0 %v1413
    %1706 = vmatprep.subr.bf16.mxu0 %v1412
    %1707 = vmatpush1.bf16.msra.mxu0 %v1411
    %1708 = vmatprep.subr.bf16.mxu0 %v1410
    %1709 = vmatpush1.bf16.msra.mxu0 %v1409
    %1710 = vmatprep.subr.bf16.mxu0 %v1408
    %1711 = vmatpush1.bf16.msra.mxu0 %v1407
    %1712 = vmatprep.subr.bf16.mxu0 %v1438
    %1713 = vmatpush2.bf16.msra.mxu0 %v1437
    %1714 = vmatprep.subr.bf16.mxu0 %v1436
    %1715 = vmatpush2.bf16.msra.mxu0 %v1435
    %1716 = vmatprep.subr.bf16.mxu0 %v1434
    %1717 = vmatpush2.bf16.msra.mxu0 %v1433
    %1718 = vmatprep.subr.bf16.mxu0 %v1432
    %1719 = vmatpush2.bf16.msra.mxu0 %v1431
    %1720 = vmatprep.subr.bf16.mxu0 %v1430
    %1721 = vmatpush2.bf16.msra.mxu0 %v1429
    %1722 = vmatprep.subr.bf16.mxu0 %v1428
    %1723 = vmatpush2.bf16.msra.mxu0 %v1427
    %1724 = vmatprep.subr.bf16.mxu0 %v1426
    %1725 = vmatpush2.bf16.msra.mxu0 %v1425
    %1726 = vmatprep.subr.bf16.mxu0 %v1424
    %1727 = vmatpush2.bf16.msra.mxu0 %v1423
    %1728 = vmatprep.mubr.bf16.mxu0 %v1046
    %1729 = vmatmul.mubr.bf16.gmra.mxu0 %v1045
    %v1730 = vpop.f32.mrf.mxu0
    %v1731 = vadd.f32 %v1538, %v1730
    %v1732 = vpop.f32.mrf.mxu0
    %v1733 = vadd.f32 %v1540, %v1732
    %v1734 = vpop.f32.mrf.mxu0
    %v1735 = vadd.f32 %v1542, %v1734
    %v1736 = vpop.f32.mrf.mxu0
    %v1737 = vadd.f32 %v1544, %v1736
    %1738 = vmatprep.mubr.bf16.mxu0 %v1050
    %1739 = vmatmul.mubr.bf16.gmra.mxu0 %v1049
    %v1740 = vpop.f32.mrf.mxu0
    %v1741 = vadd.f32 %v1548, %v1740
    %v1742 = vpop.f32.mrf.mxu0
    %v1743 = vadd.f32 %v1550, %v1742
    %v1744 = vpop.f32.mrf.mxu0
    %v1745 = vadd.f32 %v1552, %v1744
    %v1746 = vpop.f32.mrf.mxu0
    %v1747 = vadd.f32 %v1554, %v1746
    %1748 = vmatprep.mubr.bf16.mxu0 %v1054
    %1749 = vmatmul.mubr.bf16.gmra.mxu0 %v1053
    %v1750 = vpop.f32.mrf.mxu0
    %v1751 = vadd.f32 %v1558, %v1750
    %v1752 = vpop.f32.mrf.mxu0
    %v1753 = vadd.f32 %v1560, %v1752
    %v1754 = vpop.f32.mrf.mxu0
    %v1755 = vadd.f32 %v1562, %v1754
    %v1756 = vpop.f32.mrf.mxu0
    %v1757 = vadd.f32 %v1564, %v1756
    %1758 = vmatprep.mubr.bf16.mxu0 %v1058
    %1759 = vmatmul.mubr.bf16.gmra.mxu0 %v1057
    %v1760 = vpop.f32.mrf.mxu0
    %v1761 = vadd.f32 %v1568, %v1760
    %v1762 = vpop.f32.mrf.mxu0
    %v1763 = vadd.f32 %v1570, %v1762
    %v1764 = vpop.f32.mrf.mxu0
    %v1765 = vadd.f32 %v1572, %v1764
    %v1766 = vpop.f32.mrf.mxu0
    %v1767 = vadd.f32 %v1574, %v1766
    %1768 = vmatprep.mubr.bf16.mxu0 %v1062
    %1769 = vmatmul.mubr.bf16.gmra.mxu0 %v1061
    %v1770 = vpop.f32.mrf.mxu0
    %v1771 = vadd.f32 %v1578, %v1770
    %v1772 = vpop.f32.mrf.mxu0
    %v1773 = vadd.f32 %v1580, %v1772
    %v1774 = vpop.f32.mrf.mxu0
    %v1775 = vadd.f32 %v1582, %v1774
    %v1776 = vpop.f32.mrf.mxu0
    %v1777 = vadd.f32 %v1584, %v1776
    %1778 = vmatprep.mubr.bf16.mxu0 %v1066
    %1779 = vmatmul.mubr.bf16.gmra.mxu0 %v1065
    %v1780 = vpop.f32.mrf.mxu0
    %v1781 = vadd.f32 %v1588, %v1780
    %v1782 = vpop.f32.mrf.mxu0
    %v1783 = vadd.f32 %v1590, %v1782
    %v1784 = vpop.f32.mrf.mxu0
    %v1785 = vadd.f32 %v1592, %v1784
    %v1786 = vpop.f32.mrf.mxu0
    %v1787 = vadd.f32 %v1594, %v1786
    %1788 = vmatprep.mubr.bf16.mxu0 %v1070
    %1789 = vmatmul.mubr.bf16.gmra.mxu0 %v1069
    %v1790 = vpop.f32.mrf.mxu0
    %v1791 = vadd.f32 %v1598, %v1790
    %v1792 = vpop.f32.mrf.mxu0
    %v1793 = vadd.f32 %v1600, %v1792
    %v1794 = vpop.f32.mrf.mxu0
    %v1795 = vadd.f32 %v1602, %v1794
    %v1796 = vpop.f32.mrf.mxu0
    %v1797 = vadd.f32 %v1604, %v1796
    %1798 = vmatprep.mubr.bf16.mxu0 %v1074
    %1799 = vmatmul.mubr.bf16.gmra.mxu0 %v1073
    %v1800 = vpop.f32.mrf.mxu0
    %v1801 = vadd.f32 %v1608, %v1800
    %v1802 = vpop.f32.mrf.mxu0
    %v1803 = vadd.f32 %v1610, %v1802
    %v1804 = vpop.f32.mrf.mxu0
    %v1805 = vadd.f32 %v1612, %v1804
    %v1806 = vpop.f32.mrf.mxu0
    %v1807 = vadd.f32 %v1614, %v1806
    %1808 = vmatprep.mubr.bf16.mxu0 %v1078
    %1809 = vmatmul.mubr.bf16.gmra.mxu0 %v1077
    %v1810 = vpop.f32.mrf.mxu0
    %v1811 = vadd.f32 %v1618, %v1810
    %v1812 = vpop.f32.mrf.mxu0
    %v1813 = vadd.f32 %v1620, %v1812
    %v1814 = vpop.f32.mrf.mxu0
    %v1815 = vadd.f32 %v1622, %v1814
    %v1816 = vpop.f32.mrf.mxu0
    %v1817 = vadd.f32 %v1624, %v1816
    %1818 = vmatprep.mubr.bf16.mxu0 %v1082
    %1819 = vmatmul.mubr.bf16.gmra.mxu0 %v1081
    %v1820 = vpop.f32.mrf.mxu0
    %v1821 = vadd.f32 %v1628, %v1820
    %v1822 = vpop.f32.mrf.mxu0
    %v1823 = vadd.f32 %v1630, %v1822
    %v1824 = vpop.f32.mrf.mxu0
    %v1825 = vadd.f32 %v1632, %v1824
    %v1826 = vpop.f32.mrf.mxu0
    %v1827 = vadd.f32 %v1634, %v1826
    %1828 = vmatprep.mubr.bf16.mxu0 %v1086
    %1829 = vmatmul.mubr.bf16.gmra.mxu0 %v1085
    %v1830 = vpop.f32.mrf.mxu0
    %v1831 = vadd.f32 %v1638, %v1830
    %v1832 = vpop.f32.mrf.mxu0
    %v1833 = vadd.f32 %v1640, %v1832
    %v1834 = vpop.f32.mrf.mxu0
    %v1835 = vadd.f32 %v1642, %v1834
    %v1836 = vpop.f32.mrf.mxu0
    %v1837 = vadd.f32 %v1644, %v1836
    %1838 = vmatprep.mubr.bf16.mxu0 %v1090
    %1839 = vmatmul.mubr.bf16.gmra.mxu0 %v1089
    %v1840 = vpop.f32.mrf.mxu0
    %v1841 = vadd.f32 %v1648, %v1840
    %v1842 = vpop.f32.mrf.mxu0
    %v1843 = vadd.f32 %v1650, %v1842
    %v1844 = vpop.f32.mrf.mxu0
    %v1845 = vadd.f32 %v1652, %v1844
    %v1846 = vpop.f32.mrf.mxu0
    %v1847 = vadd.f32 %v1654, %v1846
    %1848 = vmatprep.mubr.bf16.mxu0 %v1094
    %1849 = vmatmul.mubr.bf16.gmra.mxu0 %v1093
    %v1850 = vpop.f32.mrf.mxu0
    %v1851 = vadd.f32 %v1658, %v1850
    %v1852 = vpop.f32.mrf.mxu0
    %v1853 = vadd.f32 %v1660, %v1852
    %v1854 = vpop.f32.mrf.mxu0
    %v1855 = vadd.f32 %v1662, %v1854
    %v1856 = vpop.f32.mrf.mxu0
    %v1857 = vadd.f32 %v1664, %v1856
    %1858 = vmatprep.mubr.bf16.mxu0 %v1098
    %1859 = vmatmul.mubr.bf16.gmra.mxu0 %v1097
    %v1860 = vpop.f32.mrf.mxu0
    %v1861 = vadd.f32 %v1668, %v1860
    %v1862 = vpop.f32.mrf.mxu0
    %v1863 = vadd.f32 %v1670, %v1862
    %v1864 = vpop.f32.mrf.mxu0
    %v1865 = vadd.f32 %v1672, %v1864
    %v1866 = vpop.f32.mrf.mxu0
    %v1867 = vadd.f32 %v1674, %v1866
    %1868 = vmatprep.mubr.bf16.mxu0 %v1102
    %1869 = vmatmul.mubr.bf16.gmra.mxu0 %v1101
    %v1870 = vpop.f32.mrf.mxu0
    %v1871 = vadd.f32 %v1678, %v1870
    %v1872 = vpop.f32.mrf.mxu0
    %v1873 = vadd.f32 %v1680, %v1872
    %v1874 = vpop.f32.mrf.mxu0
    %v1875 = vadd.f32 %v1682, %v1874
    %v1876 = vpop.f32.mrf.mxu0
    %v1877 = vadd.f32 %v1684, %v1876
    %1878 = vmatprep.mubr.bf16.mxu0 %v1106
    %1879 = vmatmul.mubr.bf16.gmra.mxu0 %v1105
    %v1880 = vpop.f32.mrf.mxu0
    %v1881 = vadd.f32 %v1688, %v1880
    %v1882 = vpop.f32.mrf.mxu0
    %v1883 = vadd.f32 %v1690, %v1882
    %v1884 = vpop.f32.mrf.mxu0
    %v1885 = vadd.f32 %v1692, %v1884
    %v1886 = vpop.f32.mrf.mxu0
    %v1887 = vadd.f32 %v1694, %v1886
    %1888 = vdwg.mxu0
    %v1889 = vld [vmem:[%s5] sm:$0x3]
    %v1890 = vld [vmem:[%s6] sm:$0x3]
    %v1891 = vadd.f32 %v27, %v1731
    %v1892 = vadd.f32 %v28, %v1733
    %v1893 = vadd.f32 %v29, %v1735
    %v1894 = vadd.f32 %v30, %v1737
    %v1895 = vadd.f32 %v31, %v1741
    %v1896 = vadd.f32 %v32, %v1743
    %v1897 = vadd.f32 %v33, %v1745
    %v1898 = vadd.f32 %v34, %v1747
    %v1899 = vadd.f32 %v35, %v1751
    %v1900 = vadd.f32 %v36, %v1753
    %v1901 = vadd.f32 %v37, %v1755
    %v1902 = vadd.f32 %v38, %v1757
    %v1903 = vadd.f32 %v39, %v1761
    %v1904 = vadd.f32 %v40, %v1763
    %v1905 = vadd.f32 %v41, %v1765
    %v1906 = vadd.f32 %v42, %v1767
    %v1907 = vadd.f32 %v43, %v1771
    %v1908 = vadd.f32 %v44, %v1773
    %v1909 = vadd.f32 %v45, %v1775
    %v1910 = vadd.f32 %v46, %v1777
    %v1911 = vadd.f32 %v47, %v1781
    %v1912 = vadd.f32 %v48, %v1783
    %v1913 = vadd.f32 %v49, %v1785
    %v1914 = vadd.f32 %v50, %v1787
    %v1915 = vadd.f32 %v51, %v1791
    %v1916 = vadd.f32 %v52, %v1793
    %v1917 = vadd.f32 %v53, %v1795
    %v1918 = vadd.f32 %v54, %v1797
    %v1919 = vadd.f32 %v55, %v1801
    %v1920 = vadd.f32 %v56, %v1803
    %v1921 = vadd.f32 %v57, %v1805
    %v1922 = vadd.f32 %v58, %v1807
    %v1923 = vadd.f32 %v59, %v1811
    %v1924 = vadd.f32 %v60, %v1813
    %v1925 = vadd.f32 %v61, %v1815
    %v1926 = vadd.f32 %v62, %v1817
    %v1927 = vadd.f32 %v63, %v1821
    %v1928 = vadd.f32 %v64, %v1823
    %v1929 = vadd.f32 %v65, %v1825
    %v1930 = vadd.f32 %v66, %v1827
    %v1931 = vadd.f32 %v67, %v1831
    %v1932 = vadd.f32 %v68, %v1833
    %v1933 = vadd.f32 %v69, %v1835
    %v1934 = vadd.f32 %v70, %v1837
    %v1935 = vadd.f32 %v71, %v1841
    %v1936 = vadd.f32 %v72, %v1843
    %v1937 = vadd.f32 %v73, %v1845
    %v1938 = vadd.f32 %v74, %v1847
    %v1939 = vadd.f32 %v75, %v1851
    %v1940 = vadd.f32 %v76, %v1853
    %v1941 = vadd.f32 %v77, %v1855
    %v1942 = vadd.f32 %v78, %v1857
    %v1943 = vadd.f32 %v79, %v1861
    %v1944 = vadd.f32 %v80, %v1863
    %v1945 = vadd.f32 %v81, %v1865
    %v1946 = vadd.f32 %v82, %v1867
    %v1947 = vadd.f32 %v83, %v1871
    %v1948 = vadd.f32 %v84, %v1873
    %v1949 = vadd.f32 %v85, %v1875
    %v1950 = vadd.f32 %v86, %v1877
    %v1951 = vadd.f32 %v87, %v1881
    %v1952 = vadd.f32 %v88, %v1883
    %v1953 = vadd.f32 %v89, %v1885
    %v1954 = vadd.f32 %v90, %v1887
    %v1955 = vadd.f32 %v1891, %v1892
    %1956 = vadd.xlane.f32.xlu0 %v1955
    %v1957 = vpop.xlane.xlu0 %1956
    %v1958 = vadd.f32 %v1893, %v1894
    %1959 = vadd.xlane.f32.xlu0 %v1958
    %v1960 = vpop.xlane.xlu0 %1959
    %v1961 = vadd.f32 %v1895, %v1896
    %1962 = vadd.xlane.f32.xlu0 %v1961
    %v1963 = vpop.xlane.xlu0 %1962
    %v1964 = vadd.f32 %v1897, %v1898
    %1965 = vadd.xlane.f32.xlu0 %v1964
    %v1966 = vpop.xlane.xlu0 %1965
    %v1967 = vadd.f32 %v1899, %v1900
    %1968 = vadd.xlane.f32.xlu0 %v1967
    %v1969 = vpop.xlane.xlu0 %1968
    %v1970 = vadd.f32 %v1901, %v1902
    %1971 = vadd.xlane.f32.xlu0 %v1970
    %v1972 = vpop.xlane.xlu0 %1971
    %v1973 = vadd.f32 %v1903, %v1904
    %1974 = vadd.xlane.f32.xlu0 %v1973
    %v1975 = vpop.xlane.xlu0 %1974
    %v1976 = vadd.f32 %v1905, %v1906
    %1977 = vadd.xlane.f32.xlu0 %v1976
    %v1978 = vpop.xlane.xlu0 %1977
    %v1979 = vadd.f32 %v1907, %v1908
    %1980 = vadd.xlane.f32.xlu0 %v1979
    %v1981 = vpop.xlane.xlu0 %1980
    %v1982 = vadd.f32 %v1909, %v1910
    %1983 = vadd.xlane.f32.xlu0 %v1982
    %v1984 = vpop.xlane.xlu0 %1983
    %v1985 = vadd.f32 %v1911, %v1912
    %1986 = vadd.xlane.f32.xlu0 %v1985
    %v1987 = vpop.xlane.xlu0 %1986
    %v1988 = vadd.f32 %v1913, %v1914
    %1989 = vadd.xlane.f32.xlu0 %v1988
    %v1990 = vpop.xlane.xlu0 %1989
    %v1991 = vadd.f32 %v1915, %v1916
    %1992 = vadd.xlane.f32.xlu0 %v1991
    %v1993 = vpop.xlane.xlu0 %1992
    %v1994 = vadd.f32 %v1917, %v1918
    %1995 = vadd.xlane.f32.xlu0 %v1994
    %v1996 = vpop.xlane.xlu0 %1995
    %v1997 = vadd.f32 %v1919, %v1920
    %1998 = vadd.xlane.f32.xlu0 %v1997
    %v1999 = vpop.xlane.xlu0 %1998
    %v2000 = vadd.f32 %v1921, %v1922
    %2001 = vadd.xlane.f32.xlu0 %v2000
    %v2002 = vpop.xlane.xlu0 %2001
    %v2003 = vadd.f32 %v1923, %v1924
    %2004 = vadd.xlane.f32.xlu0 %v2003
    %v2005 = vpop.xlane.xlu0 %2004
    %v2006 = vadd.f32 %v1925, %v1926
    %2007 = vadd.xlane.f32.xlu0 %v2006
    %v2008 = vpop.xlane.xlu0 %2007
    %v2009 = vadd.f32 %v1927, %v1928
    %2010 = vadd.xlane.f32.xlu0 %v2009
    %v2011 = vpop.xlane.xlu0 %2010
    %v2012 = vadd.f32 %v1929, %v1930
    %2013 = vadd.xlane.f32.xlu0 %v2012
    %v2014 = vpop.xlane.xlu0 %2013
    %v2015 = vadd.f32 %v1931, %v1932
    %2016 = vadd.xlane.f32.xlu0 %v2015
    %v2017 = vpop.xlane.xlu0 %2016
    %v2018 = vadd.f32 %v1933, %v1934
    %2019 = vadd.xlane.f32.xlu0 %v2018
    %v2020 = vpop.xlane.xlu0 %2019
    %v2021 = vadd.f32 %v1935, %v1936
    %2022 = vadd.xlane.f32.xlu0 %v2021
    %v2023 = vpop.xlane.xlu0 %2022
    %v2024 = vadd.f32 %v1937, %v1938
    %2025 = vadd.xlane.f32.xlu0 %v2024
    %v2026 = vpop.xlane.xlu0 %2025
    %v2027 = vadd.f32 %v1939, %v1940
    %2028 = vadd.xlane.f32.xlu0 %v2027
    %v2029 = vpop.xlane.xlu0 %2028
    %v2030 = vadd.f32 %v1941, %v1942
    %2031 = vadd.xlane.f32.xlu0 %v2030
    %v2032 = vpop.xlane.xlu0 %2031
    %v2033 = vadd.f32 %v1943, %v1944
    %2034 = vadd.xlane.f32.xlu0 %v2033
    %v2035 = vpop.xlane.xlu0 %2034
    %v2036 = vadd.f32 %v1945, %v1946
    %2037 = vadd.xlane.f32.xlu0 %v2036
    %v2038 = vpop.xlane.xlu0 %2037
    %v2039 = vadd.f32 %v1947, %v1948
    %2040 = vadd.xlane.f32.xlu0 %v2039
    %v2041 = vpop.xlane.xlu0 %2040
    %v2042 = vadd.f32 %v1949, %v1950
    %2043 = vadd.xlane.f32.xlu0 %v2042
    %v2044 = vpop.xlane.xlu0 %2043
    %v2045 = vadd.f32 %v1951, %v1952
    %2046 = vadd.xlane.f32.xlu0 %v2045
    %v2047 = vpop.xlane.xlu0 %2046
    %v2048 = vadd.f32 %v1953, %v1954
    %2049 = vadd.xlane.f32.xlu0 %v2048
    %v2050 = vpop.xlane.xlu0 %2049
    %v2051 = vrcp.pop 256.0
    %v2052 = vmul.f32 %v1957, %v2051
    %v2053 = vmul.f32 %v1960, %v2051
    %v2054 = vmul.f32 %v1963, %v2051
    %v2055 = vmul.f32 %v1966, %v2051
    %v2056 = vmul.f32 %v1969, %v2051
    %v2057 = vmul.f32 %v1972, %v2051
    %v2058 = vmul.f32 %v1975, %v2051
    %v2059 = vmul.f32 %v1978, %v2051
    %v2060 = vmul.f32 %v1981, %v2051
    %v2061 = vmul.f32 %v1984, %v2051
    %v2062 = vmul.f32 %v1987, %v2051
    %v2063 = vmul.f32 %v1990, %v2051
    %v2064 = vmul.f32 %v1993, %v2051
    %v2065 = vmul.f32 %v1996, %v2051
    %v2066 = vmul.f32 %v1999, %v2051
    %v2067 = vmul.f32 %v2002, %v2051
    %v2068 = vmul.f32 %v2005, %v2051
    %v2069 = vmul.f32 %v2008, %v2051
    %v2070 = vmul.f32 %v2011, %v2051
    %v2071 = vmul.f32 %v2014, %v2051
    %v2072 = vmul.f32 %v2017, %v2051
    %v2073 = vmul.f32 %v2020, %v2051
    %v2074 = vmul.f32 %v2023, %v2051
    %v2075 = vmul.f32 %v2026, %v2051
    %v2076 = vmul.f32 %v2029, %v2051
    %v2077 = vmul.f32 %v2032, %v2051
    %v2078 = vmul.f32 %v2035, %v2051
    %v2079 = vmul.f32 %v2038, %v2051
    %v2080 = vmul.f32 %v2041, %v2051
    %v2081 = vmul.f32 %v2044, %v2051
    %v2082 = vmul.f32 %v2047, %v2051
    %v2083 = vmul.f32 %v2050, %v2051
    %v2084 = vsub.f32 %v1891, %v2052
    %v2085 = vsub.f32 %v1892, %v2052
    %v2086 = vsub.f32 %v1893, %v2053
    %v2087 = vsub.f32 %v1894, %v2053
    %v2088 = vsub.f32 %v1895, %v2054
    %v2089 = vsub.f32 %v1896, %v2054
    %v2090 = vsub.f32 %v1897, %v2055
    %v2091 = vsub.f32 %v1898, %v2055
    %v2092 = vsub.f32 %v1899, %v2056
    %v2093 = vsub.f32 %v1900, %v2056
    %v2094 = vsub.f32 %v1901, %v2057
    %v2095 = vsub.f32 %v1902, %v2057
    %v2096 = vsub.f32 %v1903, %v2058
    %v2097 = vsub.f32 %v1904, %v2058
    %v2098 = vsub.f32 %v1905, %v2059
    %v2099 = vsub.f32 %v1906, %v2059
    %v2100 = vsub.f32 %v1907, %v2060
    %v2101 = vsub.f32 %v1908, %v2060
    %v2102 = vsub.f32 %v1909, %v2061
    %v2103 = vsub.f32 %v1910, %v2061
    %v2104 = vsub.f32 %v1911, %v2062
    %v2105 = vsub.f32 %v1912, %v2062
    %v2106 = vsub.f32 %v1913, %v2063
    %v2107 = vsub.f32 %v1914, %v2063
    %v2108 = vsub.f32 %v1915, %v2064
    %v2109 = vsub.f32 %v1916, %v2064
    %v2110 = vsub.f32 %v1917, %v2065
    %v2111 = vsub.f32 %v1918, %v2065
    %v2112 = vsub.f32 %v1919, %v2066
    %v2113 = vsub.f32 %v1920, %v2066
    %v2114 = vsub.f32 %v1921, %v2067
    %v2115 = vsub.f32 %v1922, %v2067
    %v2116 = vsub.f32 %v1923, %v2068
    %v2117 = vsub.f32 %v1924, %v2068
    %v2118 = vsub.f32 %v1925, %v2069
    %v2119 = vsub.f32 %v1926, %v2069
    %v2120 = vsub.f32 %v1927, %v2070
    %v2121 = vsub.f32 %v1928, %v2070
    %v2122 = vsub.f32 %v1929, %v2071
    %v2123 = vsub.f32 %v1930, %v2071
    %v2124 = vsub.f32 %v1931, %v2072
    %v2125 = vsub.f32 %v1932, %v2072
    %v2126 = vsub.f32 %v1933, %v2073
    %v2127 = vsub.f32 %v1934, %v2073
    %v2128 = vsub.f32 %v1935, %v2074
    %v2129 = vsub.f32 %v1936, %v2074
    %v2130 = vsub.f32 %v1937, %v2075
    %v2131 = vsub.f32 %v1938, %v2075
    %v2132 = vsub.f32 %v1939, %v2076
    %v2133 = vsub.f32 %v1940, %v2076
    %v2134 = vsub.f32 %v1941, %v2077
    %v2135 = vsub.f32 %v1942, %v2077
    %v2136 = vsub.f32 %v1943, %v2078
    %v2137 = vsub.f32 %v1944, %v2078
    %v2138 = vsub.f32 %v1945, %v2079
    %v2139 = vsub.f32 %v1946, %v2079
    %v2140 = vsub.f32 %v1947, %v2080
    %v2141 = vsub.f32 %v1948, %v2080
    %v2142 = vsub.f32 %v1949, %v2081
    %v2143 = vsub.f32 %v1950, %v2081
    %v2144 = vsub.f32 %v1951, %v2082
    %v2145 = vsub.f32 %v1952, %v2082
    %v2146 = vsub.f32 %v1953, %v2083
    %v2147 = vsub.f32 %v1954, %v2083
    %v2148 = vmul.f32 %v2084, %v2084
    %v2149 = vmul.f32 %v2085, %v2085
    %v2150 = vmul.f32 %v2086, %v2086
    %v2151 = vmul.f32 %v2087, %v2087
    %v2152 = vmul.f32 %v2088, %v2088
    %v2153 = vmul.f32 %v2089, %v2089
    %v2154 = vmul.f32 %v2090, %v2090
    %v2155 = vmul.f32 %v2091, %v2091
    %v2156 = vmul.f32 %v2092, %v2092
    %v2157 = vmul.f32 %v2093, %v2093
    %v2158 = vmul.f32 %v2094, %v2094
    %v2159 = vmul.f32 %v2095, %v2095
    %v2160 = vmul.f32 %v2096, %v2096
    %v2161 = vmul.f32 %v2097, %v2097
    %v2162 = vmul.f32 %v2098, %v2098
    %v2163 = vmul.f32 %v2099, %v2099
    %v2164 = vmul.f32 %v2100, %v2100
    %v2165 = vmul.f32 %v2101, %v2101
    %v2166 = vmul.f32 %v2102, %v2102
    %v2167 = vmul.f32 %v2103, %v2103
    %v2168 = vmul.f32 %v2104, %v2104
    %v2169 = vmul.f32 %v2105, %v2105
    %v2170 = vmul.f32 %v2106, %v2106
    %v2171 = vmul.f32 %v2107, %v2107
    %v2172 = vmul.f32 %v2108, %v2108
    %v2173 = vmul.f32 %v2109, %v2109
    %v2174 = vmul.f32 %v2110, %v2110
    %v2175 = vmul.f32 %v2111, %v2111
    %v2176 = vmul.f32 %v2112, %v2112
    %v2177 = vmul.f32 %v2113, %v2113
    %v2178 = vmul.f32 %v2114, %v2114
    %v2179 = vmul.f32 %v2115, %v2115
    %v2180 = vmul.f32 %v2116, %v2116
    %v2181 = vmul.f32 %v2117, %v2117
    %v2182 = vmul.f32 %v2118, %v2118
    %v2183 = vmul.f32 %v2119, %v2119
    %v2184 = vmul.f32 %v2120, %v2120
    %v2185 = vmul.f32 %v2121, %v2121
    %v2186 = vmul.f32 %v2122, %v2122
    %v2187 = vmul.f32 %v2123, %v2123
    %v2188 = vmul.f32 %v2124, %v2124
    %v2189 = vmul.f32 %v2125, %v2125
    %v2190 = vmul.f32 %v2126, %v2126
    %v2191 = vmul.f32 %v2127, %v2127
    %v2192 = vmul.f32 %v2128, %v2128
    %v2193 = vmul.f32 %v2129, %v2129
    %v2194 = vmul.f32 %v2130, %v2130
    %v2195 = vmul.f32 %v2131, %v2131
    %v2196 = vmul.f32 %v2132, %v2132
    %v2197 = vmul.f32 %v2133, %v2133
    %v2198 = vmul.f32 %v2134, %v2134
    %v2199 = vmul.f32 %v2135, %v2135
    %v2200 = vmul.f32 %v2136, %v2136
    %v2201 = vmul.f32 %v2137, %v2137
    %v2202 = vmul.f32 %v2138, %v2138
    %v2203 = vmul.f32 %v2139, %v2139
    %v2204 = vmul.f32 %v2140, %v2140
    %v2205 = vmul.f32 %v2141, %v2141
    %v2206 = vmul.f32 %v2142, %v2142
    %v2207 = vmul.f32 %v2143, %v2143
    %v2208 = vmul.f32 %v2144, %v2144
    %v2209 = vmul.f32 %v2145, %v2145
    %v2210 = vmul.f32 %v2146, %v2146
    %v2211 = vmul.f32 %v2147, %v2147
    %v2212 = vadd.f32 %v2148, %v2149
    %2213 = vadd.xlane.f32.xlu0 %v2212
    %v2214 = vpop.xlane.xlu0 %2213
    %v2215 = vadd.f32 %v2150, %v2151
    %2216 = vadd.xlane.f32.xlu0 %v2215
    %v2217 = vpop.xlane.xlu0 %2216
    %v2218 = vadd.f32 %v2152, %v2153
    %2219 = vadd.xlane.f32.xlu0 %v2218
    %v2220 = vpop.xlane.xlu0 %2219
    %v2221 = vadd.f32 %v2154, %v2155
    %2222 = vadd.xlane.f32.xlu0 %v2221
    %v2223 = vpop.xlane.xlu0 %2222
    %v2224 = vadd.f32 %v2156, %v2157
    %2225 = vadd.xlane.f32.xlu0 %v2224
    %v2226 = vpop.xlane.xlu0 %2225
    %v2227 = vadd.f32 %v2158, %v2159
    %2228 = vadd.xlane.f32.xlu0 %v2227
    %v2229 = vpop.xlane.xlu0 %2228
    %v2230 = vadd.f32 %v2160, %v2161
    %2231 = vadd.xlane.f32.xlu0 %v2230
    %v2232 = vpop.xlane.xlu0 %2231
    %v2233 = vadd.f32 %v2162, %v2163
    %2234 = vadd.xlane.f32.xlu0 %v2233
    %v2235 = vpop.xlane.xlu0 %2234
    %v2236 = vadd.f32 %v2164, %v2165
    %2237 = vadd.xlane.f32.xlu0 %v2236
    %v2238 = vpop.xlane.xlu0 %2237
    %v2239 = vadd.f32 %v2166, %v2167
    %2240 = vadd.xlane.f32.xlu0 %v2239
    %v2241 = vpop.xlane.xlu0 %2240
    %v2242 = vadd.f32 %v2168, %v2169
    %2243 = vadd.xlane.f32.xlu0 %v2242
    %v2244 = vpop.xlane.xlu0 %2243
    %v2245 = vadd.f32 %v2170, %v2171
    %2246 = vadd.xlane.f32.xlu0 %v2245
    %v2247 = vpop.xlane.xlu0 %2246
    %v2248 = vadd.f32 %v2172, %v2173
    %2249 = vadd.xlane.f32.xlu0 %v2248
    %v2250 = vpop.xlane.xlu0 %2249
    %v2251 = vadd.f32 %v2174, %v2175
    %2252 = vadd.xlane.f32.xlu0 %v2251
    %v2253 = vpop.xlane.xlu0 %2252
    %v2254 = vadd.f32 %v2176, %v2177
    %2255 = vadd.xlane.f32.xlu0 %v2254
    %v2256 = vpop.xlane.xlu0 %2255
    %v2257 = vadd.f32 %v2178, %v2179
    %2258 = vadd.xlane.f32.xlu0 %v2257
    %v2259 = vpop.xlane.xlu0 %2258
    %v2260 = vadd.f32 %v2180, %v2181
    %2261 = vadd.xlane.f32.xlu0 %v2260
    %v2262 = vpop.xlane.xlu0 %2261
    %v2263 = vadd.f32 %v2182, %v2183
    %2264 = vadd.xlane.f32.xlu0 %v2263
    %v2265 = vpop.xlane.xlu0 %2264
    %v2266 = vadd.f32 %v2184, %v2185
    %2267 = vadd.xlane.f32.xlu0 %v2266
    %v2268 = vpop.xlane.xlu0 %2267
    %v2269 = vadd.f32 %v2186, %v2187
    %2270 = vadd.xlane.f32.xlu0 %v2269
    %v2271 = vpop.xlane.xlu0 %2270
    %v2272 = vadd.f32 %v2188, %v2189
    %2273 = vadd.xlane.f32.xlu0 %v2272
    %v2274 = vpop.xlane.xlu0 %2273
    %v2275 = vadd.f32 %v2190, %v2191
    %2276 = vadd.xlane.f32.xlu0 %v2275
    %v2277 = vpop.xlane.xlu0 %2276
    %v2278 = vadd.f32 %v2192, %v2193
    %2279 = vadd.xlane.f32.xlu0 %v2278
    %v2280 = vpop.xlane.xlu0 %2279
    %v2281 = vadd.f32 %v2194, %v2195
    %2282 = vadd.xlane.f32.xlu0 %v2281
    %v2283 = vpop.xlane.xlu0 %2282
    %v2284 = vadd.f32 %v2196, %v2197
    %2285 = vadd.xlane.f32.xlu0 %v2284
    %v2286 = vpop.xlane.xlu0 %2285
    %v2287 = vadd.f32 %v2198, %v2199
    %2288 = vadd.xlane.f32.xlu0 %v2287
    %v2289 = vpop.xlane.xlu0 %2288
    %v2290 = vadd.f32 %v2200, %v2201
    %2291 = vadd.xlane.f32.xlu0 %v2290
    %v2292 = vpop.xlane.xlu0 %2291
    %v2293 = vadd.f32 %v2202, %v2203
    %2294 = vadd.xlane.f32.xlu0 %v2293
    %v2295 = vpop.xlane.xlu0 %2294
    %v2296 = vadd.f32 %v2204, %v2205
    %2297 = vadd.xlane.f32.xlu0 %v2296
    %v2298 = vpop.xlane.xlu0 %2297
    %v2299 = vadd.f32 %v2206, %v2207
    %2300 = vadd.xlane.f32.xlu0 %v2299
    %v2301 = vpop.xlane.xlu0 %2300
    %v2302 = vadd.f32 %v2208, %v2209
    %2303 = vadd.xlane.f32.xlu0 %v2302
    %v2304 = vpop.xlane.xlu0 %2303
    %v2305 = vadd.f32 %v2210, %v2211
    %2306 = vadd.xlane.f32.xlu0 %v2305
    %v2307 = vpop.xlane.xlu0 %2306
    %v2308 = vmul.f32 %v2214, %v2051
    %v2309 = vmul.f32 %v2217, %v2051
    %v2310 = vmul.f32 %v2220, %v2051
    %v2311 = vmul.f32 %v2223, %v2051
    %v2312 = vmul.f32 %v2226, %v2051
    %v2313 = vmul.f32 %v2229, %v2051
    %v2314 = vmul.f32 %v2232, %v2051
    %v2315 = vmul.f32 %v2235, %v2051
    %v2316 = vmul.f32 %v2238, %v2051
    %v2317 = vmul.f32 %v2241, %v2051
    %v2318 = vmul.f32 %v2244, %v2051
    %v2319 = vmul.f32 %v2247, %v2051
    %v2320 = vmul.f32 %v2250, %v2051
    %v2321 = vmul.f32 %v2253, %v2051
    %v2322 = vmul.f32 %v2256, %v2051
    %v2323 = vmul.f32 %v2259, %v2051
    %v2324 = vmul.f32 %v2262, %v2051
    %v2325 = vmul.f32 %v2265, %v2051
    %v2326 = vmul.f32 %v2268, %v2051
    %v2327 = vmul.f32 %v2271, %v2051
    %v2328 = vmul.f32 %v2274, %v2051
    %v2329 = vmul.f32 %v2277, %v2051
    %v2330 = vmul.f32 %v2280, %v2051
    %v2331 = vmul.f32 %v2283, %v2051
    %v2332 = vmul.f32 %v2286, %v2051
    %v2333 = vmul.f32 %v2289, %v2051
    %v2334 = vmul.f32 %v2292, %v2051
    %v2335 = vmul.f32 %v2295, %v2051
    %v2336 = vmul.f32 %v2298, %v2051
    %v2337 = vmul.f32 %v2301, %v2051
    %v2338 = vmul.f32 %v2304, %v2051
    %v2339 = vmul.f32 %v2307, %v2051
    %v2340 = vadd.f32 %v2308, 1e-05
    %v2341 = vadd.f32 %v2309, 1e-05
    %v2342 = vadd.f32 %v2310, 1e-05
    %v2343 = vadd.f32 %v2311, 1e-05
    %v2344 = vadd.f32 %v2312, 1e-05
    %v2345 = vadd.f32 %v2313, 1e-05
    %v2346 = vadd.f32 %v2314, 1e-05
    %v2347 = vadd.f32 %v2315, 1e-05
    %v2348 = vadd.f32 %v2316, 1e-05
    %v2349 = vadd.f32 %v2317, 1e-05
    %v2350 = vadd.f32 %v2318, 1e-05
    %v2351 = vadd.f32 %v2319, 1e-05
    %v2352 = vadd.f32 %v2320, 1e-05
    %v2353 = vadd.f32 %v2321, 1e-05
    %v2354 = vadd.f32 %v2322, 1e-05
    %v2355 = vadd.f32 %v2323, 1e-05
    %v2356 = vadd.f32 %v2324, 1e-05
    %v2357 = vadd.f32 %v2325, 1e-05
    %v2358 = vadd.f32 %v2326, 1e-05
    %v2359 = vadd.f32 %v2327, 1e-05
    %v2360 = vadd.f32 %v2328, 1e-05
    %v2361 = vadd.f32 %v2329, 1e-05
    %v2362 = vadd.f32 %v2330, 1e-05
    %v2363 = vadd.f32 %v2331, 1e-05
    %v2364 = vadd.f32 %v2332, 1e-05
    %v2365 = vadd.f32 %v2333, 1e-05
    %v2366 = vadd.f32 %v2334, 1e-05
    %v2367 = vadd.f32 %v2335, 1e-05
    %v2368 = vadd.f32 %v2336, 1e-05
    %v2369 = vadd.f32 %v2337, 1e-05
    %v2370 = vadd.f32 %v2338, 1e-05
    %v2371 = vadd.f32 %v2339, 1e-05
    %v2372 = vrsqrt.pop %v2340
    %v2373 = vrsqrt.pop %v2341
    %v2374 = vrsqrt.pop %v2342
    %v2375 = vrsqrt.pop %v2343
    %v2376 = vrsqrt.pop %v2344
    %v2377 = vrsqrt.pop %v2345
    %v2378 = vrsqrt.pop %v2346
    %v2379 = vrsqrt.pop %v2347
    %v2380 = vrsqrt.pop %v2348
    %v2381 = vrsqrt.pop %v2349
    %v2382 = vrsqrt.pop %v2350
    %v2383 = vrsqrt.pop %v2351
    %v2384 = vrsqrt.pop %v2352
    %v2385 = vrsqrt.pop %v2353
    %v2386 = vrsqrt.pop %v2354
    %v2387 = vrsqrt.pop %v2355
    %v2388 = vrsqrt.pop %v2356
    %v2389 = vrsqrt.pop %v2357
    %v2390 = vrsqrt.pop %v2358
    %v2391 = vrsqrt.pop %v2359
    %v2392 = vrsqrt.pop %v2360
    %v2393 = vrsqrt.pop %v2361
    %v2394 = vrsqrt.pop %v2362
    %v2395 = vrsqrt.pop %v2363
    %v2396 = vrsqrt.pop %v2364
    %v2397 = vrsqrt.pop %v2365
    %v2398 = vrsqrt.pop %v2366
    %v2399 = vrsqrt.pop %v2367
    %v2400 = vrsqrt.pop %v2368
    %v2401 = vrsqrt.pop %v2369
    %v2402 = vrsqrt.pop %v2370
    %v2403 = vrsqrt.pop %v2371
    %v2404 = vmul.f32 %v2084, %v2372
    %v2405 = vmul.f32 %v2085, %v2372
    %v2406 = vmul.f32 %v2086, %v2373
    %v2407 = vmul.f32 %v2087, %v2373
    %v2408 = vmul.f32 %v2088, %v2374
    %v2409 = vmul.f32 %v2089, %v2374
    %v2410 = vmul.f32 %v2090, %v2375
    %v2411 = vmul.f32 %v2091, %v2375
    %v2412 = vmul.f32 %v2092, %v2376
    %v2413 = vmul.f32 %v2093, %v2376
    %v2414 = vmul.f32 %v2094, %v2377
    %v2415 = vmul.f32 %v2095, %v2377
    %v2416 = vmul.f32 %v2096, %v2378
    %v2417 = vmul.f32 %v2097, %v2378
    %v2418 = vmul.f32 %v2098, %v2379
    %v2419 = vmul.f32 %v2099, %v2379
    %v2420 = vmul.f32 %v2100, %v2380
    %v2421 = vmul.f32 %v2101, %v2380
    %v2422 = vmul.f32 %v2102, %v2381
    %v2423 = vmul.f32 %v2103, %v2381
    %v2424 = vmul.f32 %v2104, %v2382
    %v2425 = vmul.f32 %v2105, %v2382
    %v2426 = vmul.f32 %v2106, %v2383
    %v2427 = vmul.f32 %v2107, %v2383
    %v2428 = vmul.f32 %v2108, %v2384
    %v2429 = vmul.f32 %v2109, %v2384
    %v2430 = vmul.f32 %v2110, %v2385
    %v2431 = vmul.f32 %v2111, %v2385
    %v2432 = vmul.f32 %v2112, %v2386
    %v2433 = vmul.f32 %v2113, %v2386
    %v2434 = vmul.f32 %v2114, %v2387
    %v2435 = vmul.f32 %v2115, %v2387
    %v2436 = vmul.f32 %v2116, %v2388
    %v2437 = vmul.f32 %v2117, %v2388
    %v2438 = vmul.f32 %v2118, %v2389
    %v2439 = vmul.f32 %v2119, %v2389
    %v2440 = vmul.f32 %v2120, %v2390
    %v2441 = vmul.f32 %v2121, %v2390
    %v2442 = vmul.f32 %v2122, %v2391
    %v2443 = vmul.f32 %v2123, %v2391
    %v2444 = vmul.f32 %v2124, %v2392
    %v2445 = vmul.f32 %v2125, %v2392
    %v2446 = vmul.f32 %v2126, %v2393
    %v2447 = vmul.f32 %v2127, %v2393
    %v2448 = vmul.f32 %v2128, %v2394
    %v2449 = vmul.f32 %v2129, %v2394
    %v2450 = vmul.f32 %v2130, %v2395
    %v2451 = vmul.f32 %v2131, %v2395
    %v2452 = vmul.f32 %v2132, %v2396
    %v2453 = vmul.f32 %v2133, %v2396
    %v2454 = vmul.f32 %v2134, %v2397
    %v2455 = vmul.f32 %v2135, %v2397
    %v2456 = vmul.f32 %v2136, %v2398
    %v2457 = vmul.f32 %v2137, %v2398
    %v2458 = vmul.f32 %v2138, %v2399
    %v2459 = vmul.f32 %v2139, %v2399
    %v2460 = vmul.f32 %v2140, %v2400
    %v2461 = vmul.f32 %v2141, %v2400
    %v2462 = vmul.f32 %v2142, %v2401
    %v2463 = vmul.f32 %v2143, %v2401
    %v2464 = vmul.f32 %v2144, %v2402
    %v2465 = vmul.f32 %v2145, %v2402
    %v2466 = vmul.f32 %v2146, %v2403
    %v2467 = vmul.f32 %v2147, %v2403
    %v2469 = vlaneseq
    %v2470 = vshrl.u32 %v2469, 7
    %v2471 = vsub.s32 0, %v2470
    %v2472 = vrot.slane %v1889, %v2471
    %v2473 = vlaneseq
    %v2474 = vshrl.u32 %v2473, 7
    %v2475 = vsub.s32 1, %v2474
    %v2476 = vrot.slane %v1889, %v2475
    %v2479 = vmul.f32 %v2404, %v2472
    %v2480 = vmul.f32 %v2405, %v2476
    %v2481 = vmul.f32 %v2406, %v2472
    %v2482 = vmul.f32 %v2407, %v2476
    %v2483 = vmul.f32 %v2408, %v2472
    %v2484 = vmul.f32 %v2409, %v2476
    %v2485 = vmul.f32 %v2410, %v2472
    %v2486 = vmul.f32 %v2411, %v2476
    %v2487 = vmul.f32 %v2412, %v2472
    %v2488 = vmul.f32 %v2413, %v2476
    %v2489 = vmul.f32 %v2414, %v2472
    %v2490 = vmul.f32 %v2415, %v2476
    %v2491 = vmul.f32 %v2416, %v2472
    %v2492 = vmul.f32 %v2417, %v2476
    %v2493 = vmul.f32 %v2418, %v2472
    %v2494 = vmul.f32 %v2419, %v2476
    %v2495 = vmul.f32 %v2420, %v2472
    %v2496 = vmul.f32 %v2421, %v2476
    %v2497 = vmul.f32 %v2422, %v2472
    %v2498 = vmul.f32 %v2423, %v2476
    %v2499 = vmul.f32 %v2424, %v2472
    %v2500 = vmul.f32 %v2425, %v2476
    %v2501 = vmul.f32 %v2426, %v2472
    %v2502 = vmul.f32 %v2427, %v2476
    %v2503 = vmul.f32 %v2428, %v2472
    %v2504 = vmul.f32 %v2429, %v2476
    %v2505 = vmul.f32 %v2430, %v2472
    %v2506 = vmul.f32 %v2431, %v2476
    %v2507 = vmul.f32 %v2432, %v2472
    %v2508 = vmul.f32 %v2433, %v2476
    %v2509 = vmul.f32 %v2434, %v2472
    %v2510 = vmul.f32 %v2435, %v2476
    %v2511 = vmul.f32 %v2436, %v2472
    %v2512 = vmul.f32 %v2437, %v2476
    %v2513 = vmul.f32 %v2438, %v2472
    %v2514 = vmul.f32 %v2439, %v2476
    %v2515 = vmul.f32 %v2440, %v2472
    %v2516 = vmul.f32 %v2441, %v2476
    %v2517 = vmul.f32 %v2442, %v2472
    %v2518 = vmul.f32 %v2443, %v2476
    %v2519 = vmul.f32 %v2444, %v2472
    %v2520 = vmul.f32 %v2445, %v2476
    %v2521 = vmul.f32 %v2446, %v2472
    %v2522 = vmul.f32 %v2447, %v2476
    %v2523 = vmul.f32 %v2448, %v2472
    %v2524 = vmul.f32 %v2449, %v2476
    %v2525 = vmul.f32 %v2450, %v2472
    %v2526 = vmul.f32 %v2451, %v2476
    %v2527 = vmul.f32 %v2452, %v2472
    %v2528 = vmul.f32 %v2453, %v2476
    %v2529 = vmul.f32 %v2454, %v2472
    %v2530 = vmul.f32 %v2455, %v2476
    %v2531 = vmul.f32 %v2456, %v2472
    %v2532 = vmul.f32 %v2457, %v2476
    %v2533 = vmul.f32 %v2458, %v2472
    %v2534 = vmul.f32 %v2459, %v2476
    %v2535 = vmul.f32 %v2460, %v2472
    %v2536 = vmul.f32 %v2461, %v2476
    %v2537 = vmul.f32 %v2462, %v2472
    %v2538 = vmul.f32 %v2463, %v2476
    %v2539 = vmul.f32 %v2464, %v2472
    %v2540 = vmul.f32 %v2465, %v2476
    %v2541 = vmul.f32 %v2466, %v2472
    %v2542 = vmul.f32 %v2467, %v2476
    %v2544 = vlaneseq
    %v2545 = vshrl.u32 %v2544, 7
    %v2546 = vsub.s32 0, %v2545
    %v2547 = vrot.slane %v1890, %v2546
    %v2548 = vlaneseq
    %v2549 = vshrl.u32 %v2548, 7
    %v2550 = vsub.s32 1, %v2549
    %v2551 = vrot.slane %v1890, %v2550
    %v2554 = vadd.f32 %v2479, %v2547
    %v2555 = vadd.f32 %v2480, %v2551
    %v2556 = vadd.f32 %v2481, %v2547
    %v2557 = vadd.f32 %v2482, %v2551
    %v2558 = vadd.f32 %v2483, %v2547
    %v2559 = vadd.f32 %v2484, %v2551
    %v2560 = vadd.f32 %v2485, %v2547
    %v2561 = vadd.f32 %v2486, %v2551
    %v2562 = vadd.f32 %v2487, %v2547
    %v2563 = vadd.f32 %v2488, %v2551
    %v2564 = vadd.f32 %v2489, %v2547
    %v2565 = vadd.f32 %v2490, %v2551
    %v2566 = vadd.f32 %v2491, %v2547
    %v2567 = vadd.f32 %v2492, %v2551
    %v2568 = vadd.f32 %v2493, %v2547
    %v2569 = vadd.f32 %v2494, %v2551
    %v2570 = vadd.f32 %v2495, %v2547
    %v2571 = vadd.f32 %v2496, %v2551
    %v2572 = vadd.f32 %v2497, %v2547
    %v2573 = vadd.f32 %v2498, %v2551
    %v2574 = vadd.f32 %v2499, %v2547
    %v2575 = vadd.f32 %v2500, %v2551
    %v2576 = vadd.f32 %v2501, %v2547
    %v2577 = vadd.f32 %v2502, %v2551
    %v2578 = vadd.f32 %v2503, %v2547
    %v2579 = vadd.f32 %v2504, %v2551
    %v2580 = vadd.f32 %v2505, %v2547
    %v2581 = vadd.f32 %v2506, %v2551
    %v2582 = vadd.f32 %v2507, %v2547
    %v2583 = vadd.f32 %v2508, %v2551
    %v2584 = vadd.f32 %v2509, %v2547
    %v2585 = vadd.f32 %v2510, %v2551
    %v2586 = vadd.f32 %v2511, %v2547
    %v2587 = vadd.f32 %v2512, %v2551
    %v2588 = vadd.f32 %v2513, %v2547
    %v2589 = vadd.f32 %v2514, %v2551
    %v2590 = vadd.f32 %v2515, %v2547
    %v2591 = vadd.f32 %v2516, %v2551
    %v2592 = vadd.f32 %v2517, %v2547
    %v2593 = vadd.f32 %v2518, %v2551
    %v2594 = vadd.f32 %v2519, %v2547
    %v2595 = vadd.f32 %v2520, %v2551
    %v2596 = vadd.f32 %v2521, %v2547
    %v2597 = vadd.f32 %v2522, %v2551
    %v2598 = vadd.f32 %v2523, %v2547
    %v2599 = vadd.f32 %v2524, %v2551
    %v2600 = vadd.f32 %v2525, %v2547
    %v2601 = vadd.f32 %v2526, %v2551
    %v2602 = vadd.f32 %v2527, %v2547
    %v2603 = vadd.f32 %v2528, %v2551
    %v2604 = vadd.f32 %v2529, %v2547
    %v2605 = vadd.f32 %v2530, %v2551
    %v2606 = vadd.f32 %v2531, %v2547
    %v2607 = vadd.f32 %v2532, %v2551
    %v2608 = vadd.f32 %v2533, %v2547
    %v2609 = vadd.f32 %v2534, %v2551
    %v2610 = vadd.f32 %v2535, %v2547
    %v2611 = vadd.f32 %v2536, %v2551
    %v2612 = vadd.f32 %v2537, %v2547
    %v2613 = vadd.f32 %v2538, %v2551
    %v2614 = vadd.f32 %v2539, %v2547
    %v2615 = vadd.f32 %v2540, %v2551
    %v2616 = vadd.f32 %v2541, %v2547
    %v2617 = vadd.f32 %v2542, %v2551
    %2618 = vst [vmem:[#allocation2] sm:$0xff] %v2554
    %2619 = vst [vmem:[#allocation2 + $0x8] sm:$0xff] %v2555
    %2620 = vst [vmem:[#allocation2 + $0x10] sm:$0xff] %v2556
    %2621 = vst [vmem:[#allocation2 + $0x18] sm:$0xff] %v2557
    %2622 = vst [vmem:[#allocation2 + $0x20] sm:$0xff] %v2558
    %2623 = vst [vmem:[#allocation2 + $0x28] sm:$0xff] %v2559
    %2624 = vst [vmem:[#allocation2 + $0x30] sm:$0xff] %v2560
    %2625 = vst [vmem:[#allocation2 + $0x38] sm:$0xff] %v2561
    %2626 = vst [vmem:[#allocation2 + $0x40] sm:$0xff] %v2562
    %2627 = vst [vmem:[#allocation2 + $0x48] sm:$0xff] %v2563
    %2628 = vst [vmem:[#allocation2 + $0x50] sm:$0xff] %v2564
    %2629 = vst [vmem:[#allocation2 + $0x58] sm:$0xff] %v2565
    %2630 = vst [vmem:[#allocation2 + $0x60] sm:$0xff] %v2566
    %2631 = vst [vmem:[#allocation2 + $0x68] sm:$0xff] %v2567
    %2632 = vst [vmem:[#allocation2 + $0x70] sm:$0xff] %v2568
    %2633 = vst [vmem:[#allocation2 + $0x78] sm:$0xff] %v2569
    %2634 = vst [vmem:[#allocation2 + $0x80] sm:$0xff] %v2570
    %2635 = vst [vmem:[#allocation2 + $0x88] sm:$0xff] %v2571
    %2636 = vst [vmem:[#allocation2 + $0x90] sm:$0xff] %v2572
    %2637 = vst [vmem:[#allocation2 + $0x98] sm:$0xff] %v2573
    %2638 = vst [vmem:[#allocation2 + $0xa0] sm:$0xff] %v2574
    %2639 = vst [vmem:[#allocation2 + $0xa8] sm:$0xff] %v2575
    %2640 = vst [vmem:[#allocation2 + $0xb0] sm:$0xff] %v2576
    %2641 = vst [vmem:[#allocation2 + $0xb8] sm:$0xff] %v2577
    %2642 = vst [vmem:[#allocation2 + $0xc0] sm:$0xff] %v2578
    %2643 = vst [vmem:[#allocation2 + $0xc8] sm:$0xff] %v2579
    %2644 = vst [vmem:[#allocation2 + $0xd0] sm:$0xff] %v2580
    %2645 = vst [vmem:[#allocation2 + $0xd8] sm:$0xff] %v2581
    %2646 = vst [vmem:[#allocation2 + $0xe0] sm:$0xff] %v2582
    %2647 = vst [vmem:[#allocation2 + $0xe8] sm:$0xff] %v2583
    %2648 = vst [vmem:[#allocation2 + $0xf0] sm:$0xff] %v2584
    %2649 = vst [vmem:[#allocation2 + $0xf8] sm:$0xff] %v2585
    %2650 = vst [vmem:[#allocation2 + $0x100] sm:$0xff] %v2586
    %2651 = vst [vmem:[#allocation2 + $0x108] sm:$0xff] %v2587
    %2652 = vst [vmem:[#allocation2 + $0x110] sm:$0xff] %v2588
    %2653 = vst [vmem:[#allocation2 + $0x118] sm:$0xff] %v2589
    %2654 = vst [vmem:[#allocation2 + $0x120] sm:$0xff] %v2590
    %2655 = vst [vmem:[#allocation2 + $0x128] sm:$0xff] %v2591
    %2656 = vst [vmem:[#allocation2 + $0x130] sm:$0xff] %v2592
    %2657 = vst [vmem:[#allocation2 + $0x138] sm:$0xff] %v2593
    %2658 = vst [vmem:[#allocation2 + $0x140] sm:$0xff] %v2594
    %2659 = vst [vmem:[#allocation2 + $0x148] sm:$0xff] %v2595
    %2660 = vst [vmem:[#allocation2 + $0x150] sm:$0xff] %v2596
    %2661 = vst [vmem:[#allocation2 + $0x158] sm:$0xff] %v2597
    %2662 = vst [vmem:[#allocation2 + $0x160] sm:$0xff] %v2598
    %2663 = vst [vmem:[#allocation2 + $0x168] sm:$0xff] %v2599
    %2664 = vst [vmem:[#allocation2 + $0x170] sm:$0xff] %v2600
    %2665 = vst [vmem:[#allocation2 + $0x178] sm:$0xff] %v2601
    %2666 = vst [vmem:[#allocation2 + $0x180] sm:$0xff] %v2602
    %2667 = vst [vmem:[#allocation2 + $0x188] sm:$0xff] %v2603
    %2668 = vst [vmem:[#allocation2 + $0x190] sm:$0xff] %v2604
    %2669 = vst [vmem:[#allocation2 + $0x198] sm:$0xff] %v2605
    %2670 = vst [vmem:[#allocation2 + $0x1a0] sm:$0xff] %v2606
    %2671 = vst [vmem:[#allocation2 + $0x1a8] sm:$0xff] %v2607
    %2672 = vst [vmem:[#allocation2 + $0x1b0] sm:$0xff] %v2608
    %2673 = vst [vmem:[#allocation2 + $0x1b8] sm:$0xff] %v2609
    %2674 = vst [vmem:[#allocation2 + $0x1c0] sm:$0xff] %v2610
    %2675 = vst [vmem:[#allocation2 + $0x1c8] sm:$0xff] %v2611
    %2676 = vst [vmem:[#allocation2 + $0x1d0] sm:$0xff] %v2612
    %2677 = vst [vmem:[#allocation2 + $0x1d8] sm:$0xff] %v2613
    %2678 = vst [vmem:[#allocation2 + $0x1e0] sm:$0xff] %v2614
    %2679 = vst [vmem:[#allocation2 + $0x1e8] sm:$0xff] %v2615
    %2680 = vst [vmem:[#allocation2 + $0x1f0] sm:$0xff] %v2616
    %2681 = vst [vmem:[#allocation2 + $0x1f8] sm:$0xff] %v2617
    // Predicated region
    $region30: #{decoder_layer.5} parent=1 // pred_check
      _
    $region31: #{decoder_layer.5} parent=1 // pred_check_branch
      %2683 = sbr.rel (0) target = $region33
    $region32: #{decoder_layer.5} parent=1 // pred_region
      %s2685 = ssub.s32 8192, 8192
      %2686 = vsyncadd [#allocation3], %s2685
      %s2687 = sshll.u32 [#allocation2], 4
      %s2688 = int_to_ptr.vmem [resolvable:$true] %s2687
      %2693 = dma.vmem_to_hbm [thread:$0]  %s2688, 8192, %s7, [#allocation3], 256, 256, 16
    $region33: #{decoder_layer.5} parent=1 // pred_fallthru
      _
    // Predicated region
    $region34: #{decoder_layer.5} parent=1 // pred_check
      _
    $region35: #{decoder_layer.5} parent=1 // pred_check_branch
      %2695 = sbr.rel (0) target = $region37
    $region36: #{decoder_layer.5} parent=1 // pred_region
      %2696 = dma.done [#allocation3], 8192
    $region37: #{decoder_layer.5} parent=1 // pred_fallthru
      _
    %2697 = vsyncpa [#allocation3], 1

// kernel: decoder_layer.3
$region0: #{decoder_layer.3}
  #allocation0 [shape = 'u32[]', space=smem, size = 0x4, offset = 0x4, fixed_abs, tag = 'smem constant byte address 0x4 - core index']
  #allocation1 [shape = 'u32[144,128]{1,0:T(1,128)}', space=vmem, size = 0x12000, scoped, tag = 'internal scratch']
  #allocation2 [shape = 'bf16[2,128,128]{2,1,0:T(8,128)(2,1)}', space=vmem, size = 0x10000, scoped, tag = 'scratch operand']
  #allocation3 [shape = 'f32[2,128,128]{2,1,0:T(8,128)}', space=vmem, size = 0x20000, scoped, tag = 'scratch operand']
  #allocation4 [shape = 'f32[2,128,1]{2,1,0:T(8,128)}', space=vmem, size = 0x20000, scoped, tag = 'scratch operand']
  #allocation5 [shape = 'f32[2,128,1]{2,1,0:T(8,128)}', space=vmem, size = 0x20000, scoped, tag = 'scratch operand']
  %s0 = inlined_call_operand.vmem [shape: f32[2,128,256], index: 0, kind: input, shape index: {}, may-alias: {0,1}]
  %s1 = inlined_call_operand.vmem [shape: f32[2,128,256], index: 1, kind: input, shape index: {}, may-alias: {0,1}]
  %s2 = inlined_call_operand.vmem [shape: s8[2,128,128], index: 2, kind: input, shape index: {}]
  %s3 = inlined_call_operand.vmem [shape: bf16[2,256,128], index: 3, kind: input, shape index: {}]
  %s4 = inlined_call_operand.vmem [shape: f32[2,1,128], index: 4, kind: input, shape index: {}]
  %s5 = inlined_call_operand.hbm [shape: bf16[2,256,128], index: 5, kind: input, shape index: {}]
  %s6 = inlined_call_operand.vmem [shape: f32[2,1,128], index: 6, kind: input, shape index: {}]
  %s7 = inlined_call_operand.hbm [shape: bf16[2,256,128], index: 7, kind: input, shape index: {}]
  %s8 = inlined_call_operand.vmem [shape: f32[2,1,128], index: 8, kind: input, shape index: {}]
  %s9 = inlined_call_operand.hbm [shape: bf16[2,128,256], index: 9, kind: input, shape index: {}]
  %s10 = inlined_call_operand.vmem [shape: f32[1,256], index: 10, kind: input, shape index: {}]
  %s11 = inlined_call_operand.vmem [shape: f32[1,256], index: 11, kind: input, shape index: {}]
  %s12 = inlined_call_operand.vmem [shape: f32[1,256], index: 12, kind: input, shape index: {}]
  %s13 = inlined_call_operand.vmem [shape: f32[2,128,256], index: 13, kind: output, shape index: {}]
  %s14 = sld [smem:[#allocation0]]
  $region126: #{decoder_layer.3} parent=0
    _
  %s16 = ssub.s32 1, %s14
  %s17 = scalar_select 0, %s16, %s14
  $region1: #{decoder_layer.3} parent=0
    #allocation6 [shape = 'u8[131072]{0}', space=vmem, size = 0x20000, scoped, tag = 'input window, operand 5, single buffered']
    #allocation7 [shape = 's32[2]{0}', space=sflag, size = 0x8, scoped, tag = 'scoped memory for decoder_layer.3']
    #allocation8 [shape = 'u8[131072]{0}', space=vmem, size = 0x20000, scoped, tag = 'input window, operand 7, single buffered']
    #allocation9 [shape = 's32[1]{0}', space=sflag, size = 0x4, scoped, tag = 'scoped memory for decoder_layer.3']
    #allocation10 [shape = 'u8[131072]{0}', space=vmem, size = 0x20000, scoped, tag = 'input window, operand 9, single buffered']
    %18 = vsyncpa [#allocation7], 0
    %19 = vsyncpa [#allocation9], 0
    loop: start=0, step=1, limit=4
    $region2: #{decoder_layer.3} parent=1 // loop_pre_header
      _
    $region3: #{decoder_layer.3} parent=1 // loop_header
      %s21 = sphi 0, %s25
      %p22 = scmp.ge.s32.totalorder %s21, 4
      %s28 = sphi 0, %s47
      %s29 = sphi 0, %s43
      %s30 = sphi 0, %s39
      %s31 = sphi 0, %s28
      %s32 = sphi 0, %s29
      %s33 = sphi 0, %s30
      %s34 = sphi 0, %s31
      %s35 = sphi 0, %s32
      %s36 = sphi 0, %s33
      %s52 = sphi 0, %s54
      %s55 = sphi 0, %s52
      %s56 = sphi 0, %s55
      %s72 = sphi 0, %s56
      %s80 = sphi 0, %s82
      %s83 = sphi 0, %s80
      %s84 = sphi 0, %s83
      %s100 = sphi 0, %s84
      %s110 = sphi 0, %s112
      %s113 = sphi 0, %s110
      %s114 = sphi 0, %s113
      %s130 = sphi 0, %s114
      %s134 = sphi 0, %s134
      %s136 = sphi 0, %s134
      %s137 = sphi 0, %s136
      %s151 = sphi 0, %s137
      %s155 = sphi 0, %s155
      %s157 = sphi 0, %s155
      %s158 = sphi 0, %s157
      %s172 = sphi 0, %s158
      %s176 = sphi 0, %s176
      %s178 = sphi 0, %s176
      %s179 = sphi 0, %s178
      %s193 = sphi 0, %s179
      %s197 = sphi 0, %s197
      %s199 = sphi 0, %s197
      %s200 = sphi 0, %s199
      %s214 = sphi 0, %s200
      %s218 = sphi 0, %s218
      %s220 = sphi 0, %s218
      %s221 = sphi 0, %s220
      %s235 = sphi 0, %s221
      %s239 = sphi 0, %s239
      %s241 = sphi 0, %s239
      %s242 = sphi 0, %s241
      %s256 = sphi 0, %s242
      %s260 = sphi 0, %s260
      %s262 = sphi 0, %s260
      %s263 = sphi 0, %s262
      %s277 = sphi 0, %s263
      %s281 = sphi 0, %s281
      %s283 = sphi 0, %s281
      %s284 = sphi 0, %s283
      %s298 = sphi 0, %s284
      %s302 = sphi 0, %s302
      %s304 = sphi 0, %s302
      %s305 = sphi 0, %s304
      %s319 = sphi 0, %s305
      %s323 = sphi 0, %s323
      %s325 = sphi 0, %s323
      %s326 = sphi 0, %s325
      %s340 = sphi 0, %s326
      %s348 = sphi 0, %s350
      %s351 = sphi 0, %s348
      %s352 = sphi 0, %s351
      %s368 = sphi 0, %s352
    $region4: #{decoder_layer.3} parent=1 // loop_header_branch
      %24 = sbr.rel (%p22) target = $region8
    $region5: #{decoder_layer.3} parent=1 // loop_body
      %s26 = ssub.s32 %s21, 1
      %s27 = ssub.s32 %s21, 2
      %s37 = sadd.s32 1, %s30
      %p38 = scmp.ge.s32.totalorder %s37, 1
      %s39 = scalar_select %p38, 0, %s37
      %s40 = sadd.s32 1, %s29
      %s41 = scalar_select %p38, %s40, %s29
      %p42 = scmp.ge.s32.totalorder %s41, 1
      %s43 = scalar_select %p42, 0, %s41
      %s44 = sadd.s32 1, %s28
      %s45 = scalar_select %p42, %s44, %s28
      %p46 = scmp.ge.s32.totalorder %s45, 2
      %s47 = scalar_select %p46, 0, %s45
      %s48 = ssub.s32 %s28, %s47
      %s49 = ssub.s32 %s29, %s43
      %s50 = sor.u32 %s48, %s49
      %p51 = scmp.eq.s32.totalorder %s50, 0
      %s53 = sadd.s32 %s52, 1
      %s54 = scalar_select %p51, %s52, %s53
      %p57 = pneg %p51
      %p58 = scmp.eq.s32.totalorder %s21, 1
      %p59 = por %p57, %p58
      %p60 = scmp.ne.s32.totalorder %s52, %s55
      %p61 = scmp.eq.s32.totalorder %s21, 0
      %p62 = por %p60, %p61
      %p63 = scmp.ne.s32.totalorder %s52, %s55
      %p64 = scmp.eq.s32.totalorder %s26, 1
      %p65 = por %p63, %p64
      %p66 = scmp.ne.s32.totalorder %s55, %s56
      %p67 = scmp.eq.s32.totalorder %s26, 0
      %p68 = por %p66, %p67
      %p69 = scmp.ne.s32.totalorder %s55, %s56
      %p70 = scmp.eq.s32.totalorder %s27, 1
      %p71 = por %p69, %p70
      %p73 = scmp.ne.s32.totalorder %s56, %s72
      %p74 = scmp.eq.s32.totalorder %s27, 0
      %p75 = por %p73, %p74
      %s76 = ssub.s32 %s28, %s47
      %s77 = ssub.s32 %s30, %s39
      %s78 = sor.u32 %s76, %s77
      %p79 = scmp.eq.s32.totalorder %s78, 0
      %s81 = sadd.s32 %s80, 1
      %s82 = scalar_select %p79, %s80, %s81
      %p85 = pneg %p79
      %p86 = scmp.eq.s32.totalorder %s21, 1
      %p87 = por %p85, %p86
      %p88 = scmp.ne.s32.totalorder %s80, %s83
      %p89 = scmp.eq.s32.totalorder %s21, 0
      %p90 = por %p88, %p89
      %p91 = scmp.ne.s32.totalorder %s80, %s83
      %p92 = scmp.eq.s32.totalorder %s26, 1
      %p93 = por %p91, %p92
      %p94 = scmp.ne.s32.totalorder %s83, %s84
      %p95 = scmp.eq.s32.totalorder %s26, 0
      %p96 = por %p94, %p95
      %p97 = scmp.ne.s32.totalorder %s83, %s84
      %p98 = scmp.eq.s32.totalorder %s27, 1
      %p99 = por %p97, %p98
      %p101 = scmp.ne.s32.totalorder %s84, %s100
      %p102 = scmp.eq.s32.totalorder %s27, 0
      %p103 = por %p101, %p102
      %s104 = ssub.s32 %s28, %s47
      %s105 = ssub.s32 %s29, %s43
      %s106 = sor.u32 %s104, %s105
      %s107 = ssub.s32 %s30, %s39
      %s108 = sor.u32 %s106, %s107
      %p109 = scmp.eq.s32.totalorder %s108, 0
      %s111 = sadd.s32 %s110, 1
      %s112 = scalar_select %p109, %s110, %s111
      %p115 = pneg %p109
      %p116 = scmp.eq.s32.totalorder %s21, 1
      %p117 = por %p115, %p116
      %p118 = scmp.ne.s32.totalorder %s110, %s113
      %p119 = scmp.eq.s32.totalorder %s21, 0
      %p120 = por %p118, %p119
      %p121 = scmp.ne.s32.totalorder %s110, %s113
      %p122 = scmp.eq.s32.totalorder %s26, 1
      %p123 = por %p121, %p122
      %p124 = scmp.ne.s32.totalorder %s113, %s114
      %p125 = scmp.eq.s32.totalorder %s26, 0
      %p126 = por %p124, %p125
      %p127 = scmp.ne.s32.totalorder %s113, %s114
      %p128 = scmp.eq.s32.totalorder %s27, 1
      %p129 = por %p127, %p128
      %p131 = scmp.ne.s32.totalorder %s114, %s130
      %p132 = scmp.eq.s32.totalorder %s27, 0
      %p133 = por %p131, %p132
      %s135 = sadd.s32 %s134, 1
      %p138 = scmp.eq.s32.totalorder %s21, 1
      %p139 = scmp.ne.s32.totalorder %s134, %s136
      %p140 = scmp.eq.s32.totalorder %s21, 0
      %p141 = por %p139, %p140
      %p142 = scmp.ne.s32.totalorder %s134, %s136
      %p143 = scmp.eq.s32.totalorder %s26, 1
      %p144 = por %p142, %p143
      %p145 = scmp.ne.s32.totalorder %s136, %s137
      %p146 = scmp.eq.s32.totalorder %s26, 0
      %p147 = por %p145, %p146
      %p148 = scmp.ne.s32.totalorder %s136, %s137
      %p149 = scmp.eq.s32.totalorder %s27, 1
      %p150 = por %p148, %p149
      %p152 = scmp.ne.s32.totalorder %s137, %s151
      %p153 = scmp.eq.s32.totalorder %s27, 0
      %p154 = por %p152, %p153
      %s156 = sadd.s32 %s155, 1
      %p159 = scmp.eq.s32.totalorder %s21, 1
      %p160 = scmp.ne.s32.totalorder %s155, %s157
      %p161 = scmp.eq.s32.totalorder %s21, 0
      %p162 = por %p160, %p161
      %p163 = scmp.ne.s32.totalorder %s155, %s157
      %p164 = scmp.eq.s32.totalorder %s26, 1
      %p165 = por %p163, %p164
      %p166 = scmp.ne.s32.totalorder %s157, %s158
      %p167 = scmp.eq.s32.totalorder %s26, 0
      %p168 = por %p166, %p167
      %p169 = scmp.ne.s32.totalorder %s157, %s158
      %p170 = scmp.eq.s32.totalorder %s27, 1
      %p171 = por %p169, %p170
      %p173 = scmp.ne.s32.totalorder %s158, %s172
      %p174 = scmp.eq.s32.totalorder %s27, 0
      %p175 = por %p173, %p174
      %s177 = sadd.s32 %s176, 1
      %p180 = scmp.eq.s32.totalorder %s21, 1
      %p181 = scmp.ne.s32.totalorder %s176, %s178
      %p182 = scmp.eq.s32.totalorder %s21, 0
      %p183 = por %p181, %p182
      %p184 = scmp.ne.s32.totalorder %s176, %s178
      %p185 = scmp.eq.s32.totalorder %s26, 1
      %p186 = por %p184, %p185
      %p187 = scmp.ne.s32.totalorder %s178, %s179
      %p188 = scmp.eq.s32.totalorder %s26, 0
      %p189 = por %p187, %p188
      %p190 = scmp.ne.s32.totalorder %s178, %s179
      %p191 = scmp.eq.s32.totalorder %s27, 1
      %p192 = por %p190, %p191
      %p194 = scmp.ne.s32.totalorder %s179, %s193
      %p195 = scmp.eq.s32.totalorder %s27, 0
      %p196 = por %p194, %p195
      %s198 = sadd.s32 %s197, 1
      %p201 = scmp.eq.s32.totalorder %s21, 1
      %p202 = scmp.ne.s32.totalorder %s197, %s199
      %p203 = scmp.eq.s32.totalorder %s21, 0
      %p204 = por %p202, %p203
      %p205 = scmp.ne.s32.totalorder %s197, %s199
      %p206 = scmp.eq.s32.totalorder %s26, 1
      %p207 = por %p205, %p206
      %p208 = scmp.ne.s32.totalorder %s199, %s200
      %p209 = scmp.eq.s32.totalorder %s26, 0
      %p210 = por %p208, %p209
      %p211 = scmp.ne.s32.totalorder %s199, %s200
      %p212 = scmp.eq.s32.totalorder %s27, 1
      %p213 = por %p211, %p212
      %p215 = scmp.ne.s32.totalorder %s200, %s214
      %p216 = scmp.eq.s32.totalorder %s27, 0
      %p217 = por %p215, %p216
      %s219 = sadd.s32 %s218, 1
      %p222 = scmp.eq.s32.totalorder %s21, 1
      %p223 = scmp.ne.s32.totalorder %s218, %s220
      %p224 = scmp.eq.s32.totalorder %s21, 0
      %p225 = por %p223, %p224
      %p226 = scmp.ne.s32.totalorder %s218, %s220
      %p227 = scmp.eq.s32.totalorder %s26, 1
      %p228 = por %p226, %p227
      %p229 = scmp.ne.s32.totalorder %s220, %s221
      %p230 = scmp.eq.s32.totalorder %s26, 0
      %p231 = por %p229, %p230
      %p232 = scmp.ne.s32.totalorder %s220, %s221
      %p233 = scmp.eq.s32.totalorder %s27, 1
      %p234 = por %p232, %p233
      %p236 = scmp.ne.s32.totalorder %s221, %s235
      %p237 = scmp.eq.s32.totalorder %s27, 0
      %p238 = por %p236, %p237
      %s240 = sadd.s32 %s239, 1
      %p243 = scmp.eq.s32.totalorder %s21, 1
      %p244 = scmp.ne.s32.totalorder %s239, %s241
      %p245 = scmp.eq.s32.totalorder %s21, 0
      %p246 = por %p244, %p245
      %p247 = scmp.ne.s32.totalorder %s239, %s241
      %p248 = scmp.eq.s32.totalorder %s26, 1
      %p249 = por %p247, %p248
      %p250 = scmp.ne.s32.totalorder %s241, %s242
      %p251 = scmp.eq.s32.totalorder %s26, 0
      %p252 = por %p250, %p251
      %p253 = scmp.ne.s32.totalorder %s241, %s242
      %p254 = scmp.eq.s32.totalorder %s27, 1
      %p255 = por %p253, %p254
      %p257 = scmp.ne.s32.totalorder %s242, %s256
      %p258 = scmp.eq.s32.totalorder %s27, 0
      %p259 = por %p257, %p258
      %s261 = sadd.s32 %s260, 1
      %p264 = scmp.eq.s32.totalorder %s21, 1
      %p265 = scmp.ne.s32.totalorder %s260, %s262
      %p266 = scmp.eq.s32.totalorder %s21, 0
      %p267 = por %p265, %p266
      %p268 = scmp.ne.s32.totalorder %s260, %s262
      %p269 = scmp.eq.s32.totalorder %s26, 1
      %p270 = por %p268, %p269
      %p271 = scmp.ne.s32.totalorder %s262, %s263
      %p272 = scmp.eq.s32.totalorder %s26, 0
      %p273 = por %p271, %p272
      %p274 = scmp.ne.s32.totalorder %s262, %s263
      %p275 = scmp.eq.s32.totalorder %s27, 1
      %p276 = por %p274, %p275
      %p278 = scmp.ne.s32.totalorder %s263, %s277
      %p279 = scmp.eq.s32.totalorder %s27, 0
      %p280 = por %p278, %p279
      %s282 = sadd.s32 %s281, 1
      %p285 = scmp.eq.s32.totalorder %s21, 1
      %p286 = scmp.ne.s32.totalorder %s281, %s283
      %p287 = scmp.eq.s32.totalorder %s21, 0
      %p288 = por %p286, %p287
      %p289 = scmp.ne.s32.totalorder %s281, %s283
      %p290 = scmp.eq.s32.totalorder %s26, 1
      %p291 = por %p289, %p290
      %p292 = scmp.ne.s32.totalorder %s283, %s284
      %p293 = scmp.eq.s32.totalorder %s26, 0
      %p294 = por %p292, %p293
      %p295 = scmp.ne.s32.totalorder %s283, %s284
      %p296 = scmp.eq.s32.totalorder %s27, 1
      %p297 = por %p295, %p296
      %p299 = scmp.ne.s32.totalorder %s284, %s298
      %p300 = scmp.eq.s32.totalorder %s27, 0
      %p301 = por %p299, %p300
      %s303 = sadd.s32 %s302, 1
      %p306 = scmp.eq.s32.totalorder %s21, 1
      %p307 = scmp.ne.s32.totalorder %s302, %s304
      %p308 = scmp.eq.s32.totalorder %s21, 0
      %p309 = por %p307, %p308
      %p310 = scmp.ne.s32.totalorder %s302, %s304
      %p311 = scmp.eq.s32.totalorder %s26, 1
      %p312 = por %p310, %p311
      %p313 = scmp.ne.s32.totalorder %s304, %s305
      %p314 = scmp.eq.s32.totalorder %s26, 0
      %p315 = por %p313, %p314
      %p316 = scmp.ne.s32.totalorder %s304, %s305
      %p317 = scmp.eq.s32.totalorder %s27, 1
      %p318 = por %p316, %p317
      %p320 = scmp.ne.s32.totalorder %s305, %s319
      %p321 = scmp.eq.s32.totalorder %s27, 0
      %p322 = por %p320, %p321
      %s324 = sadd.s32 %s323, 1
      %p327 = scmp.eq.s32.totalorder %s21, 1
      %p328 = scmp.ne.s32.totalorder %s323, %s325
      %p329 = scmp.eq.s32.totalorder %s21, 0
      %p330 = por %p328, %p329
      %p331 = scmp.ne.s32.totalorder %s323, %s325
      %p332 = scmp.eq.s32.totalorder %s26, 1
      %p333 = por %p331, %p332
      %p334 = scmp.ne.s32.totalorder %s325, %s326
      %p335 = scmp.eq.s32.totalorder %s26, 0
      %p336 = por %p334, %p335
      %p337 = scmp.ne.s32.totalorder %s325, %s326
      %p338 = scmp.eq.s32.totalorder %s27, 1
      %p339 = por %p337, %p338
      %p341 = scmp.ne.s32.totalorder %s326, %s340
      %p342 = scmp.eq.s32.totalorder %s27, 0
      %p343 = por %p341, %p342
      %s344 = ssub.s32 %s28, %s47
      %s345 = ssub.s32 %s29, %s43
      %s346 = sor.u32 %s344, %s345
      %p347 = scmp.eq.s32.totalorder %s346, 0
      %s349 = sadd.s32 %s348, 1
      %s350 = scalar_select %p347, %s348, %s349
      %p353 = pneg %p347
      %p354 = scmp.eq.s32.totalorder %s21, 1
      %p355 = por %p353, %p354
      %p356 = scmp.ne.s32.totalorder %s348, %s351
      %p357 = scmp.eq.s32.totalorder %s21, 0
      %p358 = por %p356, %p357
      %p359 = scmp.ne.s32.totalorder %s348, %s351
      %p360 = scmp.eq.s32.totalorder %s26, 1
      %p361 = por %p359, %p360
      %p362 = scmp.ne.s32.totalorder %s351, %s352
      %p363 = scmp.eq.s32.totalorder %s26, 0
      %p364 = por %p362, %p363
      %p365 = scmp.ne.s32.totalorder %s351, %s352
      %p366 = scmp.eq.s32.totalorder %s27, 1
      %p367 = por %p365, %p366
      %p369 = scmp.ne.s32.totalorder %s352, %s368
      %p370 = scmp.eq.s32.totalorder %s27, 0
      %p371 = por %p369, %p370
      %p372 = scmp.le.s32.totalorder 1, %s21
      %p373 = scmp.lt.s32.totalorder %s21, 3
      %p374 = pnand %p372, %p373
      %p375 = pneg %p374
      // Predicated region
      $region9: #{decoder_layer.3} parent=5 // pred_check
        _
      $region10: #{decoder_layer.3} parent=5 // pred_check_branch
        %377 = sbr.rel (%p374) target = $region12
      $region11: #{decoder_layer.3} parent=5 // pred_region
        %s378 = ssub.s32 %s21, 1
        // Predicated region
        $region13: #{decoder_layer.3} parent=11 // pred_check
          %p379 = pneg %p147
        $region14: #{decoder_layer.3} parent=11 // pred_check_branch
          %381 = sbr.rel (%p379) target = $region16
        $region15: #{decoder_layer.3} parent=11 // pred_region
          _
        $region16: #{decoder_layer.3} parent=11 // pred_fallthru
          _
        // Predicated region
        $region17: #{decoder_layer.3} parent=11 // pred_check
          %p382 = pneg %p168
        $region18: #{decoder_layer.3} parent=11 // pred_check_branch
          %384 = sbr.rel (%p382) target = $region20
        $region19: #{decoder_layer.3} parent=11 // pred_region
          _
        $region20: #{decoder_layer.3} parent=11 // pred_fallthru
          _
        // Predicated region
        $region21: #{decoder_layer.3} parent=11 // pred_check
          %p385 = pneg %p189
        $region22: #{decoder_layer.3} parent=11 // pred_check_branch
          %387 = sbr.rel (%p385) target = $region24
        $region23: #{decoder_layer.3} parent=11 // pred_region
          %s389 = ssub.s32 4096, 4096
          %390 = vsyncadd [#allocation7], %s389
          %s391 = sshll.u32 [#allocation6], 4
          %s392 = int_to_ptr.vmem [resolvable:$true] %s391
          %397 = dma.hbm_to_vmem [thread:$0]  %s5, 4096, %s392, [#allocation7], 64, 64, 4
        $region24: #{decoder_layer.3} parent=11 // pred_fallthru
          _
        // Predicated region
        $region25: #{decoder_layer.3} parent=11 // pred_check
          %p398 = pneg %p210
        $region26: #{decoder_layer.3} parent=11 // pred_check_branch
          %400 = sbr.rel (%p398) target = $region28
        $region27: #{decoder_layer.3} parent=11 // pred_region
          _
        $region28: #{decoder_layer.3} parent=11 // pred_fallthru
          _
        // Predicated region
        $region29: #{decoder_layer.3} parent=11 // pred_check
          %p401 = pneg %p231
        $region30: #{decoder_layer.3} parent=11 // pred_check_branch
          %403 = sbr.rel (%p401) target = $region32
        $region31: #{decoder_layer.3} parent=11 // pred_region
          %s405 = ssub.s32 4096, 4096
          %406 = vsyncadd [#allocation9], %s405
          %s407 = sshll.u32 [#allocation8], 4
          %s408 = int_to_ptr.vmem [resolvable:$true] %s407
          %413 = dma.hbm_to_vmem [thread:$0]  %s7, 4096, %s408, [#allocation9], 64, 64, 4
        $region32: #{decoder_layer.3} parent=11 // pred_fallthru
          _
        // Predicated region
        $region33: #{decoder_layer.3} parent=11 // pred_check
          %p414 = pneg %p252
        $region34: #{decoder_layer.3} parent=11 // pred_check_branch
          %416 = sbr.rel (%p414) target = $region36
        $region35: #{decoder_layer.3} parent=11 // pred_region
          _
        $region36: #{decoder_layer.3} parent=11 // pred_fallthru
          _
        // Predicated region
        $region37: #{decoder_layer.3} parent=11 // pred_check
          %p417 = pneg %p273
        $region38: #{decoder_layer.3} parent=11 // pred_check_branch
          %419 = sbr.rel (%p417) target = $region40
        $region39: #{decoder_layer.3} parent=11 // pred_region
          %s421 = ssub.s32 4096, 4096
          %422 = vsyncadd [#allocation9], %s421
          %s423 = sshll.u32 [#allocation10], 4
          %s424 = int_to_ptr.vmem [resolvable:$true] %s423
          %429 = dma.hbm_to_vmem [thread:$0]  %s9, 4096, %s424, [#allocation9], 128, 128, 8
        $region40: #{decoder_layer.3} parent=11 // pred_fallthru
          _
        // Predicated region
        $region41: #{decoder_layer.3} parent=11 // pred_check
          %p430 = pneg %p294
        $region42: #{decoder_layer.3} parent=11 // pred_check_branch
          %432 = sbr.rel (%p430) target = $region44
        $region43: #{decoder_layer.3} parent=11 // pred_region
          _
        $region44: #{decoder_layer.3} parent=11 // pred_fallthru
          _
        // Predicated region
        $region45: #{decoder_layer.3} parent=11 // pred_check
          %p433 = pneg %p315
        $region46: #{decoder_layer.3} parent=11 // pred_check_branch
          %435 = sbr.rel (%p433) target = $region48
        $region47: #{decoder_layer.3} parent=11 // pred_region
          _
        $region48: #{decoder_layer.3} parent=11 // pred_fallthru
          _
        // Predicated region
        $region49: #{decoder_layer.3} parent=11 // pred_check
          %p436 = pneg %p336
        $region50: #{decoder_layer.3} parent=11 // pred_check_branch
          %438 = sbr.rel (%p436) target = $region52
        $region51: #{decoder_layer.3} parent=11 // pred_region
          _
        $region52: #{decoder_layer.3} parent=11 // pred_fallthru
          _
      $region12: #{decoder_layer.3} parent=5 // pred_fallthru
        _
      %p439 = scmp.lt.s32.totalorder %s21, 2
      // Predicated region
      $region53: #{decoder_layer.3} parent=5 // pred_check
        %p440 = pneg %p439
      $region54: #{decoder_layer.3} parent=5 // pred_check_branch
        %442 = sbr.rel (%p440) target = $region56
      $region55: #{decoder_layer.3} parent=5 // pred_region
        // Predicated region
        $region57: #{decoder_layer.3} parent=55 // pred_check
          %p443 = pneg %p62
        $region58: #{decoder_layer.3} parent=55 // pred_check_branch
          %445 = sbr.rel (%p443) target = $region60
        $region59: #{decoder_layer.3} parent=55 // pred_region
          %s446 = smul.u32 16, %s29
          %p447 = scmp.lt.s32.totalorder %s28, 1
          %s448 = scalar_select %p447, %s28, 1
          %p449 = scmp.lt.s32.totalorder %s446, 15
          %s450 = scalar_select %p449, %s446, 15
          %s451 = smul.addr %s450, 2
          %s452 = smul.addr %s448, 32
          %s453 = sadd.s32 %s451, %s452
          %s454 = smul.addr %s453, 8
          %s455 = scalar_lea.vmem %s0, %s454
          %s456 = smul.u32 16, %s29
        $region60: #{decoder_layer.3} parent=55 // pred_fallthru
          _
        // Predicated region
        $region61: #{decoder_layer.3} parent=55 // pred_check
          %p457 = pneg %p90
        $region62: #{decoder_layer.3} parent=55 // pred_check_branch
          %459 = sbr.rel (%p457) target = $region64
        $region63: #{decoder_layer.3} parent=55 // pred_region
          %s460 = smul.u32 16, %s30
          %p461 = scmp.lt.s32.totalorder %s28, 1
          %s462 = scalar_select %p461, %s28, 1
          %p463 = scmp.lt.s32.totalorder %s460, 15
          %s464 = scalar_select %p463, %s460, 15
          %s465 = smul.addr %s464, 2
          %s466 = smul.addr %s462, 32
          %s467 = sadd.s32 %s465, %s466
          %s468 = smul.addr %s467, 8
          %s469 = scalar_lea.vmem %s1, %s468
          %s470 = smul.u32 16, %s30
        $region64: #{decoder_layer.3} parent=55 // pred_fallthru
          _
        // Predicated region
        $region65: #{decoder_layer.3} parent=55 // pred_check
          %p471 = pneg %p120
        $region66: #{decoder_layer.3} parent=55 // pred_check_branch
          %473 = sbr.rel (%p471) target = $region68
        $region67: #{decoder_layer.3} parent=55 // pred_region
          %s474 = smul.u32 4, %s29
          %p475 = scmp.lt.s32.totalorder %s28, 1
          %s476 = scalar_select %p475, %s28, 1
          %p477 = scmp.lt.s32.totalorder %s474, 3
          %s478 = scalar_select %p477, %s474, 3
          %p479 = scmp.lt.s32.totalorder %s30, 0
          %s480 = scalar_select %p479, %s30, 0
          %s481 = sadd.s32 %s480, %s478
          %s482 = smul.addr %s476, 4
          %s483 = sadd.s32 %s481, %s482
          %s484 = smul.addr %s483, 8
          %s485 = scalar_lea.vmem %s2, %s484
          %s486 = smul.u32 4, %s29
        $region68: #{decoder_layer.3} parent=55 // pred_fallthru
          _
      $region56: #{decoder_layer.3} parent=5 // pred_fallthru
        _
      %p487 = scmp.le.s32.totalorder 1, %s21
      %p488 = scmp.lt.s32.totalorder %s21, 3
      %p489 = pnand %p487, %p488
      %p490 = pneg %p489
      // Predicated region
      $region69: #{decoder_layer.3} parent=5 // pred_check
        _
      $region70: #{decoder_layer.3} parent=5 // pred_check_branch
        %492 = sbr.rel (%p489) target = $region72
      $region71: #{decoder_layer.3} parent=5 // pred_region
        %s493 = ssub.s32 %s21, 1
        // Predicated region
        $region73: #{decoder_layer.3} parent=71 // pred_check
          %p494 = pneg %p189
        $region74: #{decoder_layer.3} parent=71 // pred_check_branch
          %496 = sbr.rel (%p494) target = $region76
        $region75: #{decoder_layer.3} parent=71 // pred_region
          %497 = dma.done [#allocation7], 4096
        $region76: #{decoder_layer.3} parent=71 // pred_fallthru
          _
        // Predicated region
        $region77: #{decoder_layer.3} parent=71 // pred_check
          %p498 = pneg %p231
        $region78: #{decoder_layer.3} parent=71 // pred_check_branch
          %500 = sbr.rel (%p498) target = $region80
        $region79: #{decoder_layer.3} parent=71 // pred_region
          %501 = dma.done [#allocation9], 4096
        $region80: #{decoder_layer.3} parent=71 // pred_fallthru
          _
        // Predicated region
        $region81: #{decoder_layer.3} parent=71 // pred_check
          %p502 = pneg %p273
        $region82: #{decoder_layer.3} parent=71 // pred_check_branch
          %504 = sbr.rel (%p502) target = $region84
        $region83: #{decoder_layer.3} parent=71 // pred_region
          %505 = dma.done [#allocation9], 4096
        $region84: #{decoder_layer.3} parent=71 // pred_fallthru
          _
        %s506 = smul.u32 16, %s32
        %p507 = scmp.lt.s32.totalorder %s31, 1
        %s508 = scalar_select %p507, %s31, 1
        %p509 = scmp.lt.s32.totalorder %s506, 15
        %s510 = scalar_select %p509, %s506, 15
        %s511 = smul.addr %s510, 2
        %s512 = smul.addr %s508, 32
        %s513 = sadd.s32 %s511, %s512
        %s514 = smul.addr %s513, 8
        %s515 = scalar_lea.vmem %s0, %s514
        %p516 = pneg %p68
        %p517 = pneg %p65
        %s518 = smul.u32 16, %s33
        %p519 = scmp.lt.s32.totalorder %s31, 1
        %s520 = scalar_select %p519, %s31, 1
        %p521 = scmp.lt.s32.totalorder %s518, 15
        %s522 = scalar_select %p521, %s518, 15
        %s523 = smul.addr %s522, 2
        %s524 = smul.addr %s520, 32
        %s525 = sadd.s32 %s523, %s524
        %s526 = smul.addr %s525, 8
        %s527 = scalar_lea.vmem %s1, %s526
        %p528 = pneg %p96
        %p529 = pneg %p93
        %s530 = smul.u32 4, %s32
        %p531 = scmp.lt.s32.totalorder %s31, 1
        %s532 = scalar_select %p531, %s31, 1
        %p533 = scmp.lt.s32.totalorder %s530, 3
        %s534 = scalar_select %p533, %s530, 3
        %p535 = scmp.lt.s32.totalorder %s33, 0
        %s536 = scalar_select %p535, %s33, 0
        %s537 = sadd.s32 %s536, %s534
        %s538 = smul.addr %s532, 4
        %s539 = sadd.s32 %s537, %s538
        %s540 = smul.addr %s539, 8
        %s541 = scalar_lea.vmem %s2, %s540
        %p542 = pneg %p126
        %p543 = pneg %p123
        %p544 = pneg %p147
        %p545 = pneg %p144
        %p546 = pneg %p168
        %p547 = pneg %p165
        %p548 = pneg %p189
        %p549 = pneg %p186
        %p550 = pneg %p210
        %p551 = pneg %p207
        %p552 = pneg %p231
        %p553 = pneg %p228
        %p554 = pneg %p252
        %p555 = pneg %p249
        %p556 = pneg %p273
        %p557 = pneg %p270
        %p558 = pneg %p294
        %p559 = pneg %p291
        %p560 = pneg %p315
        %p561 = pneg %p312
        %p562 = pneg %p336
        %p563 = pneg %p333
        %p564 = pneg %p364
        %p565 = pneg %p361
        %s566 = smul.u32 16, %s32
        %p567 = scmp.lt.s32.totalorder %s31, 1
        %s568 = scalar_select %p567, %s31, 1
        %p569 = scmp.lt.s32.totalorder %s566, 15
        %s570 = scalar_select %p569, %s566, 15
        %s571 = smul.addr %s570, 2
        %s572 = smul.addr %s568, 32
        %s573 = sadd.s32 %s571, %s572
        %s574 = smul.addr %s573, 8
        %s575 = scalar_lea.vmem %s13, %s574
        %s576 = smul.u32 16, %s32
        %p577 = scmp.lt.s32.totalorder %s31, 1
        %s578 = scalar_select %p577, %s31, 1
        %p579 = scmp.lt.s32.totalorder %s576, 15
        %s580 = scalar_select %p579, %s576, 15
        %s581 = smul.addr %s580, 2
        %s582 = smul.addr %s578, 32
        %s583 = sadd.s32 %s581, %s582
        %s584 = smul.addr %s583, 8
        %s585 = scalar_lea.vmem %s0, %s584
        %s586 = smul.u32 16, %s32
        %s587 = smul.u32 16, %s33
        %p588 = scmp.lt.s32.totalorder %s31, 1
        %s589 = scalar_select %p588, %s31, 1
        %p590 = scmp.lt.s32.totalorder %s587, 15
        %s591 = scalar_select %p590, %s587, 15
        %s592 = smul.addr %s591, 2
        %s593 = smul.addr %s589, 32
        %s594 = sadd.s32 %s592, %s593
        %s595 = smul.addr %s594, 8
        %s596 = scalar_lea.vmem %s1, %s595
        %s597 = smul.u32 16, %s33
        %s598 = smul.u32 4, %s32
        %p599 = scmp.lt.s32.totalorder %s31, 1
        %s600 = scalar_select %p599, %s31, 1
        %p601 = scmp.lt.s32.totalorder %s598, 3
        %s602 = scalar_select %p601, %s598, 3
        %p603 = scmp.lt.s32.totalorder %s33, 0
        %s604 = scalar_select %p603, %s33, 0
        %s605 = sadd.s32 %s604, %s602
        %s606 = smul.addr %s600, 4
        %s607 = sadd.s32 %s605, %s606
        %s608 = smul.addr %s607, 8
        %s609 = scalar_lea.vmem %s2, %s608
        %s610 = smul.u32 4, %s32
        %s611 = smul.u32 16, %s32
        %p612 = scmp.lt.s32.totalorder %s31, 1
        %s613 = scalar_select %p612, %s31, 1
        %p614 = scmp.lt.s32.totalorder %s611, 15
        %s615 = scalar_select %p614, %s611, 15
        %s616 = smul.addr %s615, 2
        %s617 = smul.addr %s613, 32
        %s618 = sadd.s32 %s616, %s617
        %s619 = smul.addr %s618, 8
        %s620 = scalar_lea.vmem %s13, %s619
        %s621 = smul.u32 16, %s32
        %p625 = scmp.eq.s32.totalorder %s33, 0
        // Predicated region
        $region85: #{decoder_layer.3} parent=71 // pred_check
          %p626 = pneg %p625
        $region86: #{decoder_layer.3} parent=71 // pred_check_branch
          %628 = sbr.rel (%p626) target = $region88
        $region87: #{decoder_layer.3} parent=71 // pred_region
          %v629 = vld [vmem:[%s585] sm:$0xff]
          %v630 = vld [vmem:[%s585 + $0x8] sm:$0xff]
          %v631 = vld [vmem:[%s585 + $0x10] sm:$0xff]
          %v632 = vld [vmem:[%s585 + $0x18] sm:$0xff]
          %v633 = vld [vmem:[%s585 + $0x20] sm:$0xff]
          %v634 = vld [vmem:[%s585 + $0x28] sm:$0xff]
          %v635 = vld [vmem:[%s585 + $0x30] sm:$0xff]
          %v636 = vld [vmem:[%s585 + $0x38] sm:$0xff]
          %v637 = vld [vmem:[%s585 + $0x40] sm:$0xff]
          %v638 = vld [vmem:[%s585 + $0x48] sm:$0xff]
          %v639 = vld [vmem:[%s585 + $0x50] sm:$0xff]
          %v640 = vld [vmem:[%s585 + $0x58] sm:$0xff]
          %v641 = vld [vmem:[%s585 + $0x60] sm:$0xff]
          %v642 = vld [vmem:[%s585 + $0x68] sm:$0xff]
          %v643 = vld [vmem:[%s585 + $0x70] sm:$0xff]
          %v644 = vld [vmem:[%s585 + $0x78] sm:$0xff]
          %v645 = vld [vmem:[%s585 + $0x80] sm:$0xff]
          %v646 = vld [vmem:[%s585 + $0x88] sm:$0xff]
          %v647 = vld [vmem:[%s585 + $0x90] sm:$0xff]
          %v648 = vld [vmem:[%s585 + $0x98] sm:$0xff]
          %v649 = vld [vmem:[%s585 + $0xa0] sm:$0xff]
          %v650 = vld [vmem:[%s585 + $0xa8] sm:$0xff]
          %v651 = vld [vmem:[%s585 + $0xb0] sm:$0xff]
          %v652 = vld [vmem:[%s585 + $0xb8] sm:$0xff]
          %v653 = vld [vmem:[%s585 + $0xc0] sm:$0xff]
          %v654 = vld [vmem:[%s585 + $0xc8] sm:$0xff]
          %v655 = vld [vmem:[%s585 + $0xd0] sm:$0xff]
          %v656 = vld [vmem:[%s585 + $0xd8] sm:$0xff]
          %v657 = vld [vmem:[%s585 + $0xe0] sm:$0xff]
          %v658 = vld [vmem:[%s585 + $0xe8] sm:$0xff]
          %v659 = vld [vmem:[%s585 + $0xf0] sm:$0xff]
          %v660 = vld [vmem:[%s585 + $0xf8] sm:$0xff]
          %v661 = vpack.c.bf16 %v631, %v629
          %v662 = vpack.c.bf16 %v632, %v630
          %v663 = vpack.c.bf16 %v635, %v633
          %v664 = vpack.c.bf16 %v636, %v634
          %v665 = vpack.c.bf16 %v639, %v637
          %v666 = vpack.c.bf16 %v640, %v638
          %v667 = vpack.c.bf16 %v643, %v641
          %v668 = vpack.c.bf16 %v644, %v642
          %v669 = vpack.c.bf16 %v647, %v645
          %v670 = vpack.c.bf16 %v648, %v646
          %v671 = vpack.c.bf16 %v651, %v649
          %v672 = vpack.c.bf16 %v652, %v650
          %v673 = vpack.c.bf16 %v655, %v653
          %v674 = vpack.c.bf16 %v656, %v654
          %v675 = vpack.c.bf16 %v659, %v657
          %v676 = vpack.c.bf16 %v660, %v658
          loop: start=0, step=1, limit=2
          $region89: #{decoder_layer.3} parent=87 // loop_pre_header
            _
          $region90: #{decoder_layer.3} parent=87 // loop_header
            %s678 = sphi 0, %s682
            %p679 = scmp.ge.s32.totalorder %s678, 2
          $region91: #{decoder_layer.3} parent=87 // loop_header_branch
            %681 = sbr.rel (%p679) target = $region95
          $region92: #{decoder_layer.3} parent=87 // loop_body
            %s683 = smul.u32 %s678, 32
            %s684 = smul.addr %s683, 4
            %s685 = scalar_lea.vmem %s3, %s684
            %v686 = vld [vmem:[%s685] sm:$0xf]
            %v687 = vld [vmem:[%s685 + $0x4] sm:$0xf]
            %v688 = vld [vmem:[%s685 + $0x8] sm:$0xf]
            %v689 = vld [vmem:[%s685 + $0xc] sm:$0xf]
            %v690 = vld [vmem:[%s685 + $0x10] sm:$0xf]
            %v691 = vld [vmem:[%s685 + $0x14] sm:$0xf]
            %v692 = vld [vmem:[%s685 + $0x18] sm:$0xf]
            %v693 = vld [vmem:[%s685 + $0x1c] sm:$0xf]
            %v694 = vld [vmem:[%s685 + $0x20] sm:$0xf]
            %v695 = vld [vmem:[%s685 + $0x24] sm:$0xf]
            %v696 = vld [vmem:[%s685 + $0x28] sm:$0xf]
            %v697 = vld [vmem:[%s685 + $0x2c] sm:$0xf]
            %v698 = vld [vmem:[%s685 + $0x30] sm:$0xf]
            %v699 = vld [vmem:[%s685 + $0x34] sm:$0xf]
            %v700 = vld [vmem:[%s685 + $0x38] sm:$0xf]
            %v701 = vld [vmem:[%s685 + $0x3c] sm:$0xf]
            %v702 = vld [vmem:[%s685 + $0x40] sm:$0xf]
            %v703 = vld [vmem:[%s685 + $0x44] sm:$0xf]
            %v704 = vld [vmem:[%s685 + $0x48] sm:$0xf]
            %v705 = vld [vmem:[%s685 + $0x4c] sm:$0xf]
            %v706 = vld [vmem:[%s685 + $0x50] sm:$0xf]
            %v707 = vld [vmem:[%s685 + $0x54] sm:$0xf]
            %v708 = vld [vmem:[%s685 + $0x58] sm:$0xf]
            %v709 = vld [vmem:[%s685 + $0x5c] sm:$0xf]
            %v710 = vld [vmem:[%s685 + $0x60] sm:$0xf]
            %v711 = vld [vmem:[%s685 + $0x64] sm:$0xf]
            %v712 = vld [vmem:[%s685 + $0x68] sm:$0xf]
            %v713 = vld [vmem:[%s685 + $0x6c] sm:$0xf]
            %v714 = vld [vmem:[%s685 + $0x70] sm:$0xf]
            %v715 = vld [vmem:[%s685 + $0x74] sm:$0xf]
            %v716 = vld [vmem:[%s685 + $0x78] sm:$0xf]
            %v717 = vld [vmem:[%s685 + $0x7c] sm:$0xf]
            %s718 = scalar_lea.vmem %s4, %s678
            %v719 = vld [vmem:[%s718] sm:$0x1]
            %v721 = vlaneseq
            %v722 = vshrl.u32 %v721, 7
            %v723 = vsub.s32 0, %v722
            %v724 = vrot.slane %v719, %v723
            %v758 = vunpack.c.l.b16 %v686
            %v759 = vunpack.c.l.b16 %v687
            %v760 = vunpack.c.l.b16 %v688
            %v761 = vunpack.c.l.b16 %v689
            %v762 = vunpack.c.l.b16 %v690
            %v763 = vunpack.c.l.b16 %v691
            %v764 = vunpack.c.l.b16 %v692
            %v765 = vunpack.c.l.b16 %v693
            %v766 = vunpack.c.l.b16 %v694
            %v767 = vunpack.c.l.b16 %v695
            %v768 = vunpack.c.l.b16 %v696
            %v769 = vunpack.c.l.b16 %v697
            %v770 = vunpack.c.l.b16 %v698
            %v771 = vunpack.c.l.b16 %v699
            %v772 = vunpack.c.l.b16 %v700
            %v773 = vunpack.c.l.b16 %v701
            %v774 = vunpack.c.l.b16 %v702
            %v775 = vunpack.c.l.b16 %v703
            %v776 = vunpack.c.l.b16 %v704
            %v777 = vunpack.c.l.b16 %v705
            %v778 = vunpack.c.l.b16 %v706
            %v779 = vunpack.c.l.b16 %v707
            %v780 = vunpack.c.l.b16 %v708
            %v781 = vunpack.c.l.b16 %v709
            %v782 = vunpack.c.l.b16 %v710
            %v783 = vunpack.c.l.b16 %v711
            %v784 = vunpack.c.l.b16 %v712
            %v785 = vunpack.c.l.b16 %v713
            %v786 = vunpack.c.l.b16 %v714
            %v787 = vunpack.c.l.b16 %v715
            %v788 = vunpack.c.l.b16 %v716
            %v789 = vunpack.c.l.b16 %v717
            %v790 = vpack.c.b16 %v759, %v758
            %v791 = vpack.c.b16 %v761, %v760
            %v792 = vpack.c.b16 %v763, %v762
            %v793 = vpack.c.b16 %v765, %v764
            %v794 = vpack.c.b16 %v767, %v766
            %v795 = vpack.c.b16 %v769, %v768
            %v796 = vpack.c.b16 %v771, %v770
            %v797 = vpack.c.b16 %v773, %v772
            %v798 = vpack.c.b16 %v775, %v774
            %v799 = vpack.c.b16 %v777, %v776
            %v800 = vpack.c.b16 %v779, %v778
            %v801 = vpack.c.b16 %v781, %v780
            %v802 = vpack.c.b16 %v783, %v782
            %v803 = vpack.c.b16 %v785, %v784
            %v804 = vpack.c.b16 %v787, %v786
            %v805 = vpack.c.b16 %v789, %v788
            %822 = vmatprep.subr.bf16.mxu0 0
            %823 = vmatpush1.bf16.msra.mxu0 %v797
            %824 = vmatprep.subr.bf16.mxu0 0
            %825 = vmatpush1.bf16.msra.mxu0 %v796
            %826 = vmatprep.subr.bf16.mxu0 0
            %827 = vmatpush1.bf16.msra.mxu0 %v795
            %828 = vmatprep.subr.bf16.mxu0 0
            %829 = vmatpush1.bf16.msra.mxu0 %v794
            %830 = vmatprep.subr.bf16.mxu0 0
            %831 = vmatpush1.bf16.msra.mxu0 %v793
            %832 = vmatprep.subr.bf16.mxu0 0
            %833 = vmatpush1.bf16.msra.mxu0 %v792
            %834 = vmatprep.subr.bf16.mxu0 0
            %835 = vmatpush1.bf16.msra.mxu0 %v791
            %836 = vmatprep.subr.bf16.mxu0 0
            %837 = vmatpush1.bf16.msra.mxu0 %v790
            %838 = vmatprep.subr.bf16.mxu0 0
            %839 = vmatpush2.bf16.msra.mxu0 %v805
            %840 = vmatprep.subr.bf16.mxu0 0
            %841 = vmatpush2.bf16.msra.mxu0 %v804
            %842 = vmatprep.subr.bf16.mxu0 0
            %843 = vmatpush2.bf16.msra.mxu0 %v803
            %844 = vmatprep.subr.bf16.mxu0 0
            %845 = vmatpush2.bf16.msra.mxu0 %v802
            %846 = vmatprep.subr.bf16.mxu0 0
            %847 = vmatpush2.bf16.msra.mxu0 %v801
            %848 = vmatprep.subr.bf16.mxu0 0
            %849 = vmatpush2.bf16.msra.mxu0 %v800
            %850 = vmatprep.subr.bf16.mxu0 0
            %851 = vmatpush2.bf16.msra.mxu0 %v799
            %852 = vmatprep.subr.bf16.mxu0 0
            %853 = vmatpush2.bf16.msra.mxu0 %v798
            %854 = vmatprep.mubr.bf16.mxu0 %v662
            %855 = vmatmul.mubr.bf16.gmra.mxu0 %v661
            %v856 = vpop.f32.mrf.mxu0
            %v857 = vadd.f32 %v724, %v856
            %v858 = vpop.f32.mrf.mxu0
            %v859 = vpop.f32.mrf.mxu0
            %v860 = vadd.f32 %v724, %v859
            %v861 = vpop.f32.mrf.mxu0
            %862 = vmatprep.mubr.bf16.mxu0 %v664
            %863 = vmatmul.mubr.bf16.gmra.mxu0 %v663
            %v864 = vpop.f32.mrf.mxu0
            %v865 = vadd.f32 %v724, %v864
            %v866 = vpop.f32.mrf.mxu0
            %v867 = vpop.f32.mrf.mxu0
            %v868 = vadd.f32 %v724, %v867
            %v869 = vpop.f32.mrf.mxu0
            %870 = vmatprep.mubr.bf16.mxu0 %v666
            %871 = vmatmul.mubr.bf16.gmra.mxu0 %v665
            %v872 = vpop.f32.mrf.mxu0
            %v873 = vadd.f32 %v724, %v872
            %v874 = vpop.f32.mrf.mxu0
            %v875 = vpop.f32.mrf.mxu0
            %v876 = vadd.f32 %v724, %v875
            %v877 = vpop.f32.mrf.mxu0
            %878 = vmatprep.mubr.bf16.mxu0 %v668
            %879 = vmatmul.mubr.bf16.gmra.mxu0 %v667
            %v880 = vpop.f32.mrf.mxu0
            %v881 = vadd.f32 %v724, %v880
            %v882 = vpop.f32.mrf.mxu0
            %v883 = vpop.f32.mrf.mxu0
            %v884 = vadd.f32 %v724, %v883
            %v885 = vpop.f32.mrf.mxu0
            %886 = vmatprep.mubr.bf16.mxu0 %v670
            %887 = vmatmul.mubr.bf16.gmra.mxu0 %v669
            %v888 = vpop.f32.mrf.mxu0
            %v889 = vadd.f32 %v724, %v888
            %v890 = vpop.f32.mrf.mxu0
            %v891 = vpop.f32.mrf.mxu0
            %v892 = vadd.f32 %v724, %v891
            %v893 = vpop.f32.mrf.mxu0
            %894 = vmatprep.mubr.bf16.mxu0 %v672
            %895 = vmatmul.mubr.bf16.gmra.mxu0 %v671
            %v896 = vpop.f32.mrf.mxu0
            %v897 = vadd.f32 %v724, %v896
            %v898 = vpop.f32.mrf.mxu0
            %v899 = vpop.f32.mrf.mxu0
            %v900 = vadd.f32 %v724, %v899
            %v901 = vpop.f32.mrf.mxu0
            %902 = vmatprep.mubr.bf16.mxu0 %v674
            %903 = vmatmul.mubr.bf16.gmra.mxu0 %v673
            %v904 = vpop.f32.mrf.mxu0
            %v905 = vadd.f32 %v724, %v904
            %v906 = vpop.f32.mrf.mxu0
            %v907 = vpop.f32.mrf.mxu0
            %v908 = vadd.f32 %v724, %v907
            %v909 = vpop.f32.mrf.mxu0
            %910 = vmatprep.mubr.bf16.mxu0 %v676
            %911 = vmatmul.mubr.bf16.gmra.mxu0 %v675
            %v912 = vpop.f32.mrf.mxu0
            %v913 = vadd.f32 %v724, %v912
            %v914 = vpop.f32.mrf.mxu0
            %v915 = vpop.f32.mrf.mxu0
            %v916 = vadd.f32 %v724, %v915
            %v917 = vpop.f32.mrf.mxu0
            %918 = vdwg.mxu0
            %v919 = vpack.c.bf16 %v860, %v857
            %v920 = vpack.c.bf16 %v868, %v865
            %v921 = vpack.c.bf16 %v876, %v873
            %v922 = vpack.c.bf16 %v884, %v881
            %v923 = vpack.c.bf16 %v892, %v889
            %v924 = vpack.c.bf16 %v900, %v897
            %v925 = vpack.c.bf16 %v908, %v905
            %v926 = vpack.c.bf16 %v916, %v913
            %v935 = vunpack.c.l.b16 %v919
            %v936 = vunpack.c.h.b16 %v919
            %v937 = vunpack.c.l.b16 %v920
            %v938 = vunpack.c.h.b16 %v920
            %v939 = vunpack.c.l.b16 %v921
            %v940 = vunpack.c.h.b16 %v921
            %v941 = vunpack.c.l.b16 %v922
            %v942 = vunpack.c.h.b16 %v922
            %v943 = vunpack.c.l.b16 %v923
            %v944 = vunpack.c.h.b16 %v923
            %v945 = vunpack.c.l.b16 %v924
            %v946 = vunpack.c.h.b16 %v924
            %v947 = vunpack.c.l.b16 %v925
            %v948 = vunpack.c.h.b16 %v925
            %v949 = vunpack.c.l.b16 %v926
            %v950 = vunpack.c.h.b16 %v926
            %v951 = vpack.c.b16 %v935, %v935
            %v952 = vpack.c.b16 %v936, %v936
            %v953 = vpack.c.b16 %v937, %v937
            %v954 = vpack.c.b16 %v938, %v938
            %v955 = vpack.c.b16 %v939, %v939
            %v956 = vpack.c.b16 %v940, %v940
            %v957 = vpack.c.b16 %v941, %v941
            %v958 = vpack.c.b16 %v942, %v942
            %v959 = vpack.c.b16 %v943, %v943
            %v960 = vpack.c.b16 %v944, %v944
            %v961 = vpack.c.b16 %v945, %v945
            %v962 = vpack.c.b16 %v946, %v946
            %v963 = vpack.c.b16 %v947, %v947
            %v964 = vpack.c.b16 %v948, %v948
            %v965 = vpack.c.b16 %v949, %v949
            %v966 = vpack.c.b16 %v950, %v950
            %s983 = smul.u32 %s678, 16
            %s984 = smul.addr %s983, 4
            %s985 = scalar_lea.vmem [#allocation2], %s984
            %986 = vst [vmem:[%s985] sm:$0xf] %v951
            %987 = vst [vmem:[%s985 + $0x4] sm:$0xf] %v952
            %988 = vst [vmem:[%s985 + $0x8] sm:$0xf] %v953
            %989 = vst [vmem:[%s985 + $0xc] sm:$0xf] %v954
            %990 = vst [vmem:[%s985 + $0x10] sm:$0xf] %v955
            %991 = vst [vmem:[%s985 + $0x14] sm:$0xf] %v956
            %992 = vst [vmem:[%s985 + $0x18] sm:$0xf] %v957
            %993 = vst [vmem:[%s985 + $0x1c] sm:$0xf] %v958
            %994 = vst [vmem:[%s985 + $0x20] sm:$0xf] %v959
            %995 = vst [vmem:[%s985 + $0x24] sm:$0xf] %v960
            %996 = vst [vmem:[%s985 + $0x28] sm:$0xf] %v961
            %997 = vst [vmem:[%s985 + $0x2c] sm:$0xf] %v962
            %998 = vst [vmem:[%s985 + $0x30] sm:$0xf] %v963
            %999 = vst [vmem:[%s985 + $0x34] sm:$0xf] %v964
            %1000 = vst [vmem:[%s985 + $0x38] sm:$0xf] %v965
            %1001 = vst [vmem:[%s985 + $0x3c] sm:$0xf] %v966
          $region93: #{decoder_layer.3} parent=87 // loop_footer
            %s682 = sadd.s32 1, %s678
          $region94: #{decoder_layer.3} parent=87 // loop_footer_branch
            %677 = sbr.rel target = $region90
          $region95: #{decoder_layer.3} parent=87 // loop_exit
            _
          %vm1002 = vcmask 7168
          %1003 = vst.msk [vmem:[#allocation4] sm:$0xff] %vm1002, -1e+30
          %1004 = vst.msk [vmem:[#allocation4 + $0x8] sm:$0xff] %vm1002, -1e+30
          %1005 = vst.msk [vmem:[#allocation4 + $0x10] sm:$0xff] %vm1002, -1e+30
          %1006 = vst.msk [vmem:[#allocation4 + $0x18] sm:$0xff] %vm1002, -1e+30
          %1007 = vst.msk [vmem:[#allocation4 + $0x20] sm:$0xff] %vm1002, -1e+30
          %1008 = vst.msk [vmem:[#allocation4 + $0x28] sm:$0xff] %vm1002, -1e+30
          %1009 = vst.msk [vmem:[#allocation4 + $0x30] sm:$0xff] %vm1002, -1e+30
          %1010 = vst.msk [vmem:[#allocation4 + $0x38] sm:$0xff] %vm1002, -1e+30
          %1011 = vst.msk [vmem:[#allocation4 + $0x40] sm:$0xff] %vm1002, -1e+30
          %1012 = vst.msk [vmem:[#allocation4 + $0x48] sm:$0xff] %vm1002, -1e+30
          %1013 = vst.msk [vmem:[#allocation4 + $0x50] sm:$0xff] %vm1002, -1e+30
          %1014 = vst.msk [vmem:[#allocation4 + $0x58] sm:$0xff] %vm1002, -1e+30
          %1015 = vst.msk [vmem:[#allocation4 + $0x60] sm:$0xff] %vm1002, -1e+30
          %1016 = vst.msk [vmem:[#allocation4 + $0x68] sm:$0xff] %vm1002, -1e+30
          %1017 = vst.msk [vmem:[#allocation4 + $0x70] sm:$0xff] %vm1002, -1e+30
          %1018 = vst.msk [vmem:[#allocation4 + $0x78] sm:$0xff] %vm1002, -1e+30
          %1019 = vst.msk [vmem:[#allocation4 + $0x80] sm:$0xff] %vm1002, -1e+30
          %1020 = vst.msk [vmem:[#allocation4 + $0x88] sm:$0xff] %vm1002, -1e+30
          %1021 = vst.msk [vmem:[#allocation4 + $0x90] sm:$0xff] %vm1002, -1e+30
          %1022 = vst.msk [vmem:[#allocation4 + $0x98] sm:$0xff] %vm1002, -1e+30
          %1023 = vst.msk [vmem:[#allocation4 + $0xa0] sm:$0xff] %vm1002, -1e+30
          %1024 = vst.msk [vmem:[#allocation4 + $0xa8] sm:$0xff] %vm1002, -1e+30
          %1025 = vst.msk [vmem:[#allocation4 + $0xb0] sm:$0xff] %vm1002, -1e+30
          %1026 = vst.msk [vmem:[#allocation4 + $0xb8] sm:$0xff] %vm1002, -1e+30
          %1027 = vst.msk [vmem:[#allocation4 + $0xc0] sm:$0xff] %vm1002, -1e+30
          %1028 = vst.msk [vmem:[#allocation4 + $0xc8] sm:$0xff] %vm1002, -1e+30
          %1029 = vst.msk [vmem:[#allocation4 + $0xd0] sm:$0xff] %vm1002, -1e+30
          %1030 = vst.msk [vmem:[#allocation4 + $0xd8] sm:$0xff] %vm1002, -1e+30
          %1031 = vst.msk [vmem:[#allocation4 + $0xe0] sm:$0xff] %vm1002, -1e+30
          %1032 = vst.msk [vmem:[#allocation4 + $0xe8] sm:$0xff] %vm1002, -1e+30
          %1033 = vst.msk [vmem:[#allocation4 + $0xf0] sm:$0xff] %vm1002, -1e+30
          %1034 = vst.msk [vmem:[#allocation4 + $0xf8] sm:$0xff] %vm1002, -1e+30
          %1035 = vst.msk [vmem:[#allocation5] sm:$0xff] %vm1002, 0.0
          %1036 = vst.msk [vmem:[#allocation5 + $0x8] sm:$0xff] %vm1002, 0.0
          %1037 = vst.msk [vmem:[#allocation5 + $0x10] sm:$0xff] %vm1002, 0.0
          %1038 = vst.msk [vmem:[#allocation5 + $0x18] sm:$0xff] %vm1002, 0.0
          %1039 = vst.msk [vmem:[#allocation5 + $0x20] sm:$0xff] %vm1002, 0.0
          %1040 = vst.msk [vmem:[#allocation5 + $0x28] sm:$0xff] %vm1002, 0.0
          %1041 = vst.msk [vmem:[#allocation5 + $0x30] sm:$0xff] %vm1002, 0.0
          %1042 = vst.msk [vmem:[#allocation5 + $0x38] sm:$0xff] %vm1002, 0.0
          %1043 = vst.msk [vmem:[#allocation5 + $0x40] sm:$0xff] %vm1002, 0.0
          %1044 = vst.msk [vmem:[#allocation5 + $0x48] sm:$0xff] %vm1002, 0.0
          %1045 = vst.msk [vmem:[#allocation5 + $0x50] sm:$0xff] %vm1002, 0.0
          %1046 = vst.msk [vmem:[#allocation5 + $0x58] sm:$0xff] %vm1002, 0.0
          %1047 = vst.msk [vmem:[#allocation5 + $0x60] sm:$0xff] %vm1002, 0.0
          %1048 = vst.msk [vmem:[#allocation5 + $0x68] sm:$0xff] %vm1002, 0.0
          %1049 = vst.msk [vmem:[#allocation5 + $0x70] sm:$0xff] %vm1002, 0.0
          %1050 = vst.msk [vmem:[#allocation5 + $0x78] sm:$0xff] %vm1002, 0.0
          %1051 = vst.msk [vmem:[#allocation5 + $0x80] sm:$0xff] %vm1002, 0.0
          %1052 = vst.msk [vmem:[#allocation5 + $0x88] sm:$0xff] %vm1002, 0.0
          %1053 = vst.msk [vmem:[#allocation5 + $0x90] sm:$0xff] %vm1002, 0.0
          %1054 = vst.msk [vmem:[#allocation5 + $0x98] sm:$0xff] %vm1002, 0.0
          %1055 = vst.msk [vmem:[#allocation5 + $0xa0] sm:$0xff] %vm1002, 0.0
          %1056 = vst.msk [vmem:[#allocation5 + $0xa8] sm:$0xff] %vm1002, 0.0
          %1057 = vst.msk [vmem:[#allocation5 + $0xb0] sm:$0xff] %vm1002, 0.0
          %1058 = vst.msk [vmem:[#allocation5 + $0xb8] sm:$0xff] %vm1002, 0.0
          %1059 = vst.msk [vmem:[#allocation5 + $0xc0] sm:$0xff] %vm1002, 0.0
          %1060 = vst.msk [vmem:[#allocation5 + $0xc8] sm:$0xff] %vm1002, 0.0
          %1061 = vst.msk [vmem:[#allocation5 + $0xd0] sm:$0xff] %vm1002, 0.0
          %1062 = vst.msk [vmem:[#allocation5 + $0xd8] sm:$0xff] %vm1002, 0.0
          %1063 = vst.msk [vmem:[#allocation5 + $0xe0] sm:$0xff] %vm1002, 0.0
          %1064 = vst.msk [vmem:[#allocation5 + $0xe8] sm:$0xff] %vm1002, 0.0
          %1065 = vst.msk [vmem:[#allocation5 + $0xf0] sm:$0xff] %vm1002, 0.0
          %1066 = vst.msk [vmem:[#allocation5 + $0xf8] sm:$0xff] %vm1002, 0.0
          %1067 = vst [vmem:[#allocation3] sm:$0xff] 0.0
          %1068 = vst [vmem:[#allocation3 + $0x8] sm:$0xff] 0.0
          %1069 = vst [vmem:[#allocation3 + $0x10] sm:$0xff] 0.0
          %1070 = vst [vmem:[#allocation3 + $0x18] sm:$0xff] 0.0
          %1071 = vst [vmem:[#allocation3 + $0x20] sm:$0xff] 0.0
          %1072 = vst [vmem:[#allocation3 + $0x28] sm:$0xff] 0.0
          %1073 = vst [vmem:[#allocation3 + $0x30] sm:$0xff] 0.0
          %1074 = vst [vmem:[#allocation3 + $0x38] sm:$0xff] 0.0
          %1075 = vst [vmem:[#allocation3 + $0x40] sm:$0xff] 0.0
          %1076 = vst [vmem:[#allocation3 + $0x48] sm:$0xff] 0.0
          %1077 = vst [vmem:[#allocation3 + $0x50] sm:$0xff] 0.0
          %1078 = vst [vmem:[#allocation3 + $0x58] sm:$0xff] 0.0
          %1079 = vst [vmem:[#allocation3 + $0x60] sm:$0xff] 0.0
          %1080 = vst [vmem:[#allocation3 + $0x68] sm:$0xff] 0.0
          %1081 = vst [vmem:[#allocation3 + $0x70] sm:$0xff] 0.0
          %1082 = vst [vmem:[#allocation3 + $0x78] sm:$0xff] 0.0
          %1083 = vst [vmem:[#allocation3 + $0x80] sm:$0xff] 0.0
          %1084 = vst [vmem:[#allocation3 + $0x88] sm:$0xff] 0.0
          %1085 = vst [vmem:[#allocation3 + $0x90] sm:$0xff] 0.0
          %1086 = vst [vmem:[#allocation3 + $0x98] sm:$0xff] 0.0
          %1087 = vst [vmem:[#allocation3 + $0xa0] sm:$0xff] 0.0
          %1088 = vst [vmem:[#allocation3 + $0xa8] sm:$0xff] 0.0
          %1089 = vst [vmem:[#allocation3 + $0xb0] sm:$0xff] 0.0
          %1090 = vst [vmem:[#allocation3 + $0xb8] sm:$0xff] 0.0
          %1091 = vst [vmem:[#allocation3 + $0xc0] sm:$0xff] 0.0
          %1092 = vst [vmem:[#allocation3 + $0xc8] sm:$0xff] 0.0
          %1093 = vst [vmem:[#allocation3 + $0xd0] sm:$0xff] 0.0
          %1094 = vst [vmem:[#allocation3 + $0xd8] sm:$0xff] 0.0
          %1095 = vst [vmem:[#allocation3 + $0xe0] sm:$0xff] 0.0
          %1096 = vst [vmem:[#allocation3 + $0xe8] sm:$0xff] 0.0
          %1097 = vst [vmem:[#allocation3 + $0xf0] sm:$0xff] 0.0
          %1098 = vst [vmem:[#allocation3 + $0xf8] sm:$0xff] 0.0
        $region88: #{decoder_layer.3} parent=71 // pred_fallthru
          _
        %v1099 = vld [vmem:[%s596] sm:$0xff]
        %v1100 = vld [vmem:[%s596 + $0x8] sm:$0xff]
        %v1101 = vld [vmem:[%s596 + $0x10] sm:$0xff]
        %v1102 = vld [vmem:[%s596 + $0x18] sm:$0xff]
        %v1103 = vld [vmem:[%s596 + $0x20] sm:$0xff]
        %v1104 = vld [vmem:[%s596 + $0x28] sm:$0xff]
        %v1105 = vld [vmem:[%s596 + $0x30] sm:$0xff]
        %v1106 = vld [vmem:[%s596 + $0x38] sm:$0xff]
        %v1107 = vld [vmem:[%s596 + $0x40] sm:$0xff]
        %v1108 = vld [vmem:[%s596 + $0x48] sm:$0xff]
        %v1109 = vld [vmem:[%s596 + $0x50] sm:$0xff]
        %v1110 = vld [vmem:[%s596 + $0x58] sm:$0xff]
        %v1111 = vld [vmem:[%s596 + $0x60] sm:$0xff]
        %v1112 = vld [vmem:[%s596 + $0x68] sm:$0xff]
        %v1113 = vld [vmem:[%s596 + $0x70] sm:$0xff]
        %v1114 = vld [vmem:[%s596 + $0x78] sm:$0xff]
        %v1115 = vld [vmem:[%s596 + $0x80] sm:$0xff]
        %v1116 = vld [vmem:[%s596 + $0x88] sm:$0xff]
        %v1117 = vld [vmem:[%s596 + $0x90] sm:$0xff]
        %v1118 = vld [vmem:[%s596 + $0x98] sm:$0xff]
        %v1119 = vld [vmem:[%s596 + $0xa0] sm:$0xff]
        %v1120 = vld [vmem:[%s596 + $0xa8] sm:$0xff]
        %v1121 = vld [vmem:[%s596 + $0xb0] sm:$0xff]
        %v1122 = vld [vmem:[%s596 + $0xb8] sm:$0xff]
        %v1123 = vld [vmem:[%s596 + $0xc0] sm:$0xff]
        %v1124 = vld [vmem:[%s596 + $0xc8] sm:$0xff]
        %v1125 = vld [vmem:[%s596 + $0xd0] sm:$0xff]
        %v1126 = vld [vmem:[%s596 + $0xd8] sm:$0xff]
        %v1127 = vld [vmem:[%s596 + $0xe0] sm:$0xff]
        %v1128 = vld [vmem:[%s596 + $0xe8] sm:$0xff]
        %v1129 = vld [vmem:[%s596 + $0xf0] sm:$0xff]
        %v1130 = vld [vmem:[%s596 + $0xf8] sm:$0xff]
        %v1131 = vpack.c.bf16 %v1101, %v1099
        %v1132 = vpack.c.bf16 %v1102, %v1100
        %v1133 = vpack.c.bf16 %v1105, %v1103
        %v1134 = vpack.c.bf16 %v1106, %v1104
        %v1135 = vpack.c.bf16 %v1109, %v1107
        %v1136 = vpack.c.bf16 %v1110, %v1108
        %v1137 = vpack.c.bf16 %v1113, %v1111
        %v1138 = vpack.c.bf16 %v1114, %v1112
        %v1139 = vpack.c.bf16 %v1117, %v1115
        %v1140 = vpack.c.bf16 %v1118, %v1116
        %v1141 = vpack.c.bf16 %v1121, %v1119
        %v1142 = vpack.c.bf16 %v1122, %v1120
        %v1143 = vpack.c.bf16 %v1125, %v1123
        %v1144 = vpack.c.bf16 %v1126, %v1124
        %v1145 = vpack.c.bf16 %v1129, %v1127
        %v1146 = vpack.c.bf16 %v1130, %v1128
        %v1147 = vld [vmem:[%s609] sm:$0xff]
        %v1148 = vld [vmem:[%s609 + $0x8] sm:$0xff]
        %v1149 = vld [vmem:[%s609 + $0x10] sm:$0xff]
        %v1150 = vld [vmem:[%s609 + $0x18] sm:$0xff]
        %vm1151 = vnez %v1147
        %vm1152 = vnez %v1148
        %vm1153 = vnez %v1149
        %vm1154 = vnez %v1150
        loop: start=0, step=1, limit=2
        $region96: #{decoder_layer.3} parent=71 // loop_pre_header
          _
        $region97: #{decoder_layer.3} parent=71 // loop_header
          %s1156 = sphi 0, %s1160
          %p1157 = scmp.ge.s32.totalorder %s1156, 2
        $region98: #{decoder_layer.3} parent=71 // loop_header_branch
          %1159 = sbr.rel (%p1157) target = $region102
        $region99: #{decoder_layer.3} parent=71 // loop_body
          %s1161 = smul.u32 %s1156, 32
          %s1162 = smul.addr %s1161, 4
          %s1163 = scalar_lea.vmem [#allocation6], %s1162
          %v1164 = vld [vmem:[%s1163] sm:$0xf]
          %v1165 = vld [vmem:[%s1163 + $0x4] sm:$0xf]
          %v1166 = vld [vmem:[%s1163 + $0x8] sm:$0xf]
          %v1167 = vld [vmem:[%s1163 + $0xc] sm:$0xf]
          %v1168 = vld [vmem:[%s1163 + $0x10] sm:$0xf]
          %v1169 = vld [vmem:[%s1163 + $0x14] sm:$0xf]
          %v1170 = vld [vmem:[%s1163 + $0x18] sm:$0xf]
          %v1171 = vld [vmem:[%s1163 + $0x1c] sm:$0xf]
          %v1172 = vld [vmem:[%s1163 + $0x20] sm:$0xf]
          %v1173 = vld [vmem:[%s1163 + $0x24] sm:$0xf]
          %v1174 = vld [vmem:[%s1163 + $0x28] sm:$0xf]
          %v1175 = vld [vmem:[%s1163 + $0x2c] sm:$0xf]
          %v1176 = vld [vmem:[%s1163 + $0x30] sm:$0xf]
          %v1177 = vld [vmem:[%s1163 + $0x34] sm:$0xf]
          %v1178 = vld [vmem:[%s1163 + $0x38] sm:$0xf]
          %v1179 = vld [vmem:[%s1163 + $0x3c] sm:$0xf]
          %v1180 = vld [vmem:[%s1163 + $0x40] sm:$0xf]
          %v1181 = vld [vmem:[%s1163 + $0x44] sm:$0xf]
          %v1182 = vld [vmem:[%s1163 + $0x48] sm:$0xf]
          %v1183 = vld [vmem:[%s1163 + $0x4c] sm:$0xf]
          %v1184 = vld [vmem:[%s1163 + $0x50] sm:$0xf]
          %v1185 = vld [vmem:[%s1163 + $0x54] sm:$0xf]
          %v1186 = vld [vmem:[%s1163 + $0x58] sm:$0xf]
          %v1187 = vld [vmem:[%s1163 + $0x5c] sm:$0xf]
          %v1188 = vld [vmem:[%s1163 + $0x60] sm:$0xf]
          %v1189 = vld [vmem:[%s1163 + $0x64] sm:$0xf]
          %v1190 = vld [vmem:[%s1163 + $0x68] sm:$0xf]
          %v1191 = vld [vmem:[%s1163 + $0x6c] sm:$0xf]
          %v1192 = vld [vmem:[%s1163 + $0x70] sm:$0xf]
          %v1193 = vld [vmem:[%s1163 + $0x74] sm:$0xf]
          %v1194 = vld [vmem:[%s1163 + $0x78] sm:$0xf]
          %v1195 = vld [vmem:[%s1163 + $0x7c] sm:$0xf]
          %s1196 = scalar_lea.vmem %s6, %s1156
          %v1197 = vld [vmem:[%s1196] sm:$0x1]
          %v1199 = vlaneseq
          %v1200 = vshrl.u32 %v1199, 7
          %v1201 = vsub.s32 0, %v1200
          %v1202 = vrot.slane %v1197, %v1201
          %v1236 = vunpack.c.l.b16 %v1164
          %v1237 = vunpack.c.l.b16 %v1165
          %v1238 = vunpack.c.l.b16 %v1166
          %v1239 = vunpack.c.l.b16 %v1167
          %v1240 = vunpack.c.l.b16 %v1168
          %v1241 = vunpack.c.l.b16 %v1169
          %v1242 = vunpack.c.l.b16 %v1170
          %v1243 = vunpack.c.l.b16 %v1171
          %v1244 = vunpack.c.l.b16 %v1172
          %v1245 = vunpack.c.l.b16 %v1173
          %v1246 = vunpack.c.l.b16 %v1174
          %v1247 = vunpack.c.l.b16 %v1175
          %v1248 = vunpack.c.l.b16 %v1176
          %v1249 = vunpack.c.l.b16 %v1177
          %v1250 = vunpack.c.l.b16 %v1178
          %v1251 = vunpack.c.l.b16 %v1179
          %v1252 = vunpack.c.l.b16 %v1180
          %v1253 = vunpack.c.l.b16 %v1181
          %v1254 = vunpack.c.l.b16 %v1182
          %v1255 = vunpack.c.l.b16 %v1183
          %v1256 = vunpack.c.l.b16 %v1184
          %v1257 = vunpack.c.l.b16 %v1185
          %v1258 = vunpack.c.l.b16 %v1186
          %v1259 = vunpack.c.l.b16 %v1187
          %v1260 = vunpack.c.l.b16 %v1188
          %v1261 = vunpack.c.l.b16 %v1189
          %v1262 = vunpack.c.l.b16 %v1190
          %v1263 = vunpack.c.l.b16 %v1191
          %v1264 = vunpack.c.l.b16 %v1192
          %v1265 = vunpack.c.l.b16 %v1193
          %v1266 = vunpack.c.l.b16 %v1194
          %v1267 = vunpack.c.l.b16 %v1195
          %v1268 = vpack.c.b16 %v1237, %v1236
          %v1269 = vpack.c.b16 %v1239, %v1238
          %v1270 = vpack.c.b16 %v1241, %v1240
          %v1271 = vpack.c.b16 %v1243, %v1242
          %v1272 = vpack.c.b16 %v1245, %v1244
          %v1273 = vpack.c.b16 %v1247, %v1246
          %v1274 = vpack.c.b16 %v1249, %v1248
          %v1275 = vpack.c.b16 %v1251, %v1250
          %v1276 = vpack.c.b16 %v1253, %v1252
          %v1277 = vpack.c.b16 %v1255, %v1254
          %v1278 = vpack.c.b16 %v1257, %v1256
          %v1279 = vpack.c.b16 %v1259, %v1258
          %v1280 = vpack.c.b16 %v1261, %v1260
          %v1281 = vpack.c.b16 %v1263, %v1262
          %v1282 = vpack.c.b16 %v1265, %v1264
          %v1283 = vpack.c.b16 %v1267, %v1266
          %1300 = vmatprep.subr.bf16.mxu0 0
          %1301 = vmatpush1.bf16.msra.mxu0 %v1275
          %1302 = vmatprep.subr.bf16.mxu0 0
          %1303 = vmatpush1.bf16.msra.mxu0 %v1274
          %1304 = vmatprep.subr.bf16.mxu0 0
          %1305 = vmatpush1.bf16.msra.mxu0 %v1273
          %1306 = vmatprep.subr.bf16.mxu0 0
          %1307 = vmatpush1.bf16.msra.mxu0 %v1272
          %1308 = vmatprep.subr.bf16.mxu0 0
          %1309 = vmatpush1.bf16.msra.mxu0 %v1271
          %1310 = vmatprep.subr.bf16.mxu0 0
          %1311 = vmatpush1.bf16.msra.mxu0 %v1270
          %1312 = vmatprep.subr.bf16.mxu0 0
          %1313 = vmatpush1.bf16.msra.mxu0 %v1269
          %1314 = vmatprep.subr.bf16.mxu0 0
          %1315 = vmatpush1.bf16.msra.mxu0 %v1268
          %1316 = vmatprep.subr.bf16.mxu0 0
          %1317 = vmatpush2.bf16.msra.mxu0 %v1283
          %1318 = vmatprep.subr.bf16.mxu0 0
          %1319 = vmatpush2.bf16.msra.mxu0 %v1282
          %1320 = vmatprep.subr.bf16.mxu0 0
          %1321 = vmatpush2.bf16.msra.mxu0 %v1281
          %1322 = vmatprep.subr.bf16.mxu0 0
          %1323 = vmatpush2.bf16.msra.mxu0 %v1280
          %1324 = vmatprep.subr.bf16.mxu0 0
          %1325 = vmatpush2.bf16.msra.mxu0 %v1279
          %1326 = vmatprep.subr.bf16.mxu0 0
          %1327 = vmatpush2.bf16.msra.mxu0 %v1278
          %1328 = vmatprep.subr.bf16.mxu0 0
          %1329 = vmatpush2.bf16.msra.mxu0 %v1277
          %1330 = vmatprep.subr.bf16.mxu0 0
          %1331 = vmatpush2.bf16.msra.mxu0 %v1276
          %1332 = vmatprep.mubr.bf16.mxu0 %v1132
          %1333 = vmatmul.mubr.bf16.gmra.mxu0 %v1131
          %v1334 = vpop.f32.mrf.mxu0
          %v1335 = vadd.f32 %v1202, %v1334
          %v1336 = vpop.f32.mrf.mxu0
          %v1337 = vpop.f32.mrf.mxu0
          %v1338 = vadd.f32 %v1202, %v1337
          %v1339 = vpop.f32.mrf.mxu0
          %1340 = vmatprep.mubr.bf16.mxu0 %v1134
          %1341 = vmatmul.mubr.bf16.gmra.mxu0 %v1133
          %v1342 = vpop.f32.mrf.mxu0
          %v1343 = vadd.f32 %v1202, %v1342
          %v1344 = vpop.f32.mrf.mxu0
          %v1345 = vpop.f32.mrf.mxu0
          %v1346 = vadd.f32 %v1202, %v1345
          %v1347 = vpop.f32.mrf.mxu0
          %1348 = vmatprep.mubr.bf16.mxu0 %v1136
          %1349 = vmatmul.mubr.bf16.gmra.mxu0 %v1135
          %v1350 = vpop.f32.mrf.mxu0
          %v1351 = vadd.f32 %v1202, %v1350
          %v1352 = vpop.f32.mrf.mxu0
          %v1353 = vpop.f32.mrf.mxu0
          %v1354 = vadd.f32 %v1202, %v1353
          %v1355 = vpop.f32.mrf.mxu0
          %1356 = vmatprep.mubr.bf16.mxu0 %v1138
          %1357 = vmatmul.mubr.bf16.gmra.mxu0 %v1137
          %v1358 = vpop.f32.mrf.mxu0
          %v1359 = vadd.f32 %v1202, %v1358
          %v1360 = vpop.f32.mrf.mxu0
          %v1361 = vpop.f32.mrf.mxu0
          %v1362 = vadd.f32 %v1202, %v1361
          %v1363 = vpop.f32.mrf.mxu0
          %1364 = vmatprep.mubr.bf16.mxu0 %v1140
          %1365 = vmatmul.mubr.bf16.gmra.mxu0 %v1139
          %v1366 = vpop.f32.mrf.mxu0
          %v1367 = vadd.f32 %v1202, %v1366
          %v1368 = vpop.f32.mrf.mxu0
          %v1369 = vpop.f32.mrf.mxu0
          %v1370 = vadd.f32 %v1202, %v1369
          %v1371 = vpop.f32.mrf.mxu0
          %1372 = vmatprep.mubr.bf16.mxu0 %v1142
          %1373 = vmatmul.mubr.bf16.gmra.mxu0 %v1141
          %v1374 = vpop.f32.mrf.mxu0
          %v1375 = vadd.f32 %v1202, %v1374
          %v1376 = vpop.f32.mrf.mxu0
          %v1377 = vpop.f32.mrf.mxu0
          %v1378 = vadd.f32 %v1202, %v1377
          %v1379 = vpop.f32.mrf.mxu0
          %1380 = vmatprep.mubr.bf16.mxu0 %v1144
          %1381 = vmatmul.mubr.bf16.gmra.mxu0 %v1143
          %v1382 = vpop.f32.mrf.mxu0
          %v1383 = vadd.f32 %v1202, %v1382
          %v1384 = vpop.f32.mrf.mxu0
          %v1385 = vpop.f32.mrf.mxu0
          %v1386 = vadd.f32 %v1202, %v1385
          %v1387 = vpop.f32.mrf.mxu0
          %1388 = vmatprep.mubr.bf16.mxu0 %v1146
          %1389 = vmatmul.mubr.bf16.gmra.mxu0 %v1145
          %v1390 = vpop.f32.mrf.mxu0
          %v1391 = vadd.f32 %v1202, %v1390
          %v1392 = vpop.f32.mrf.mxu0
          %v1393 = vpop.f32.mrf.mxu0
          %v1394 = vadd.f32 %v1202, %v1393
          %v1395 = vpop.f32.mrf.mxu0
          %1396 = vdwg.mxu0
          %v1397 = vpack.c.bf16 %v1338, %v1335
          %v1398 = vpack.c.bf16 %v1346, %v1343
          %v1399 = vpack.c.bf16 %v1354, %v1351
          %v1400 = vpack.c.bf16 %v1362, %v1359
          %v1401 = vpack.c.bf16 %v1370, %v1367
          %v1402 = vpack.c.bf16 %v1378, %v1375
          %v1403 = vpack.c.bf16 %v1386, %v1383
          %v1404 = vpack.c.bf16 %v1394, %v1391
          %s1405 = smul.addr %s1161, 4
          %s1406 = scalar_lea.vmem [#allocation8], %s1405
          %v1407 = vld [vmem:[%s1406] sm:$0xf]
          %v1408 = vld [vmem:[%s1406 + $0x4] sm:$0xf]
          %v1409 = vld [vmem:[%s1406 + $0x8] sm:$0xf]
          %v1410 = vld [vmem:[%s1406 + $0xc] sm:$0xf]
          %v1411 = vld [vmem:[%s1406 + $0x10] sm:$0xf]
          %v1412 = vld [vmem:[%s1406 + $0x14] sm:$0xf]
          %v1413 = vld [vmem:[%s1406 + $0x18] sm:$0xf]
          %v1414 = vld [vmem:[%s1406 + $0x1c] sm:$0xf]
          %v1415 = vld [vmem:[%s1406 + $0x20] sm:$0xf]
          %v1416 = vld [vmem:[%s1406 + $0x24] sm:$0xf]
          %v1417 = vld [vmem:[%s1406 + $0x28] sm:$0xf]
          %v1418 = vld [vmem:[%s1406 + $0x2c] sm:$0xf]
          %v1419 = vld [vmem:[%s1406 + $0x30] sm:$0xf]
          %v1420 = vld [vmem:[%s1406 + $0x34] sm:$0xf]
          %v1421 = vld [vmem:[%s1406 + $0x38] sm:$0xf]
          %v1422 = vld [vmem:[%s1406 + $0x3c] sm:$0xf]
          %v1423 = vld [vmem:[%s1406 + $0x40] sm:$0xf]
          %v1424 = vld [vmem:[%s1406 + $0x44] sm:$0xf]
          %v1425 = vld [vmem:[%s1406 + $0x48] sm:$0xf]
          %v1426 = vld [vmem:[%s1406 + $0x4c] sm:$0xf]
          %v1427 = vld [vmem:[%s1406 + $0x50] sm:$0xf]
          %v1428 = vld [vmem:[%s1406 + $0x54] sm:$0xf]
          %v1429 = vld [vmem:[%s1406 + $0x58] sm:$0xf]
          %v1430 = vld [vmem:[%s1406 + $0x5c] sm:$0xf]
          %v1431 = vld [vmem:[%s1406 + $0x60] sm:$0xf]
          %v1432 = vld [vmem:[%s1406 + $0x64] sm:$0xf]
          %v1433 = vld [vmem:[%s1406 + $0x68] sm:$0xf]
          %v1434 = vld [vmem:[%s1406 + $0x6c] sm:$0xf]
          %v1435 = vld [vmem:[%s1406 + $0x70] sm:$0xf]
          %v1436 = vld [vmem:[%s1406 + $0x74] sm:$0xf]
          %v1437 = vld [vmem:[%s1406 + $0x78] sm:$0xf]
          %v1438 = vld [vmem:[%s1406 + $0x7c] sm:$0xf]
          %s1439 = scalar_lea.vmem %s8, %s1156
          %v1440 = vld [vmem:[%s1439] sm:$0x1]
          %v1442 = vlaneseq
          %v1443 = vshrl.u32 %v1442, 7
          %v1444 = vsub.s32 0, %v1443
          %v1445 = vrot.slane %v1440, %v1444
          %v1479 = vunpack.c.l.b16 %v1407
          %v1480 = vunpack.c.l.b16 %v1408
          %v1481 = vunpack.c.l.b16 %v1409
          %v1482 = vunpack.c.l.b16 %v1410
          %v1483 = vunpack.c.l.b16 %v1411
          %v1484 = vunpack.c.l.b16 %v1412
          %v1485 = vunpack.c.l.b16 %v1413
          %v1486 = vunpack.c.l.b16 %v1414
          %v1487 = vunpack.c.l.b16 %v1415
          %v1488 = vunpack.c.l.b16 %v1416
          %v1489 = vunpack.c.l.b16 %v1417
          %v1490 = vunpack.c.l.b16 %v1418
          %v1491 = vunpack.c.l.b16 %v1419
          %v1492 = vunpack.c.l.b16 %v1420
          %v1493 = vunpack.c.l.b16 %v1421
          %v1494 = vunpack.c.l.b16 %v1422
          %v1495 = vunpack.c.l.b16 %v1423
          %v1496 = vunpack.c.l.b16 %v1424
          %v1497 = vunpack.c.l.b16 %v1425
          %v1498 = vunpack.c.l.b16 %v1426
          %v1499 = vunpack.c.l.b16 %v1427
          %v1500 = vunpack.c.l.b16 %v1428
          %v1501 = vunpack.c.l.b16 %v1429
          %v1502 = vunpack.c.l.b16 %v1430
          %v1503 = vunpack.c.l.b16 %v1431
          %v1504 = vunpack.c.l.b16 %v1432
          %v1505 = vunpack.c.l.b16 %v1433
          %v1506 = vunpack.c.l.b16 %v1434
          %v1507 = vunpack.c.l.b16 %v1435
          %v1508 = vunpack.c.l.b16 %v1436
          %v1509 = vunpack.c.l.b16 %v1437
          %v1510 = vunpack.c.l.b16 %v1438
          %v1511 = vpack.c.b16 %v1480, %v1479
          %v1512 = vpack.c.b16 %v1482, %v1481
          %v1513 = vpack.c.b16 %v1484, %v1483
          %v1514 = vpack.c.b16 %v1486, %v1485
          %v1515 = vpack.c.b16 %v1488, %v1487
          %v1516 = vpack.c.b16 %v1490, %v1489
          %v1517 = vpack.c.b16 %v1492, %v1491
          %v1518 = vpack.c.b16 %v1494, %v1493
          %v1519 = vpack.c.b16 %v1496, %v1495
          %v1520 = vpack.c.b16 %v1498, %v1497
          %v1521 = vpack.c.b16 %v1500, %v1499
          %v1522 = vpack.c.b16 %v1502, %v1501
          %v1523 = vpack.c.b16 %v1504, %v1503
          %v1524 = vpack.c.b16 %v1506, %v1505
          %v1525 = vpack.c.b16 %v1508, %v1507
          %v1526 = vpack.c.b16 %v1510, %v1509
          %1543 = vmatprep.subr.bf16.mxu0 0
          %1544 = vmatpush1.bf16.msra.mxu0 %v1518
          %1545 = vmatprep.subr.bf16.mxu0 0
          %1546 = vmatpush1.bf16.msra.mxu0 %v1517
          %1547 = vmatprep.subr.bf16.mxu0 0
          %1548 = vmatpush1.bf16.msra.mxu0 %v1516
          %1549 = vmatprep.subr.bf16.mxu0 0
          %1550 = vmatpush1.bf16.msra.mxu0 %v1515
          %1551 = vmatprep.subr.bf16.mxu0 0
          %1552 = vmatpush1.bf16.msra.mxu0 %v1514
          %1553 = vmatprep.subr.bf16.mxu0 0
          %1554 = vmatpush1.bf16.msra.mxu0 %v1513
          %1555 = vmatprep.subr.bf16.mxu0 0
          %1556 = vmatpush1.bf16.msra.mxu0 %v1512
          %1557 = vmatprep.subr.bf16.mxu0 0
          %1558 = vmatpush1.bf16.msra.mxu0 %v1511
          %1559 = vmatprep.subr.bf16.mxu0 0
          %1560 = vmatpush2.bf16.msra.mxu0 %v1526
          %1561 = vmatprep.subr.bf16.mxu0 0
          %1562 = vmatpush2.bf16.msra.mxu0 %v1525
          %1563 = vmatprep.subr.bf16.mxu0 0
          %1564 = vmatpush2.bf16.msra.mxu0 %v1524
          %1565 = vmatprep.subr.bf16.mxu0 0
          %1566 = vmatpush2.bf16.msra.mxu0 %v1523
          %1567 = vmatprep.subr.bf16.mxu0 0
          %1568 = vmatpush2.bf16.msra.mxu0 %v1522
          %1569 = vmatprep.subr.bf16.mxu0 0
          %1570 = vmatpush2.bf16.msra.mxu0 %v1521
          %1571 = vmatprep.subr.bf16.mxu0 0
          %1572 = vmatpush2.bf16.msra.mxu0 %v1520
          %1573 = vmatprep.subr.bf16.mxu0 0
          %1574 = vmatpush2.bf16.msra.mxu0 %v1519
          %1575 = vmatprep.mubr.bf16.mxu0 %v1132
          %1576 = vmatmul.mubr.bf16.gmra.mxu0 %v1131
          %v1577 = vpop.f32.mrf.mxu0
          %v1578 = vadd.f32 %v1445, %v1577
          %v1579 = vpop.f32.mrf.mxu0
          %v1580 = vpop.f32.mrf.mxu0
          %v1581 = vadd.f32 %v1445, %v1580
          %v1582 = vpop.f32.mrf.mxu0
          %1583 = vmatprep.mubr.bf16.mxu0 %v1134
          %1584 = vmatmul.mubr.bf16.gmra.mxu0 %v1133
          %v1585 = vpop.f32.mrf.mxu0
          %v1586 = vadd.f32 %v1445, %v1585
          %v1587 = vpop.f32.mrf.mxu0
          %v1588 = vpop.f32.mrf.mxu0
          %v1589 = vadd.f32 %v1445, %v1588
          %v1590 = vpop.f32.mrf.mxu0
          %1591 = vmatprep.mubr.bf16.mxu0 %v1136
          %1592 = vmatmul.mubr.bf16.gmra.mxu0 %v1135
          %v1593 = vpop.f32.mrf.mxu0
          %v1594 = vadd.f32 %v1445, %v1593
          %v1595 = vpop.f32.mrf.mxu0
          %v1596 = vpop.f32.mrf.mxu0
          %v1597 = vadd.f32 %v1445, %v1596
          %v1598 = vpop.f32.mrf.mxu0
          %1599 = vmatprep.mubr.bf16.mxu0 %v1138
          %1600 = vmatmul.mubr.bf16.gmra.mxu0 %v1137
          %v1601 = vpop.f32.mrf.mxu0
          %v1602 = vadd.f32 %v1445, %v1601
          %v1603 = vpop.f32.mrf.mxu0
          %v1604 = vpop.f32.mrf.mxu0
          %v1605 = vadd.f32 %v1445, %v1604
          %v1606 = vpop.f32.mrf.mxu0
          %1607 = vmatprep.mubr.bf16.mxu0 %v1140
          %1608 = vmatmul.mubr.bf16.gmra.mxu0 %v1139
          %v1609 = vpop.f32.mrf.mxu0
          %v1610 = vadd.f32 %v1445, %v1609
          %v1611 = vpop.f32.mrf.mxu0
          %v1612 = vpop.f32.mrf.mxu0
          %v1613 = vadd.f32 %v1445, %v1612
          %v1614 = vpop.f32.mrf.mxu0
          %1615 = vmatprep.mubr.bf16.mxu0 %v1142
          %1616 = vmatmul.mubr.bf16.gmra.mxu0 %v1141
          %v1617 = vpop.f32.mrf.mxu0
          %v1618 = vadd.f32 %v1445, %v1617
          %v1619 = vpop.f32.mrf.mxu0
          %v1620 = vpop.f32.mrf.mxu0
          %v1621 = vadd.f32 %v1445, %v1620
          %v1622 = vpop.f32.mrf.mxu0
          %1623 = vmatprep.mubr.bf16.mxu0 %v1144
          %1624 = vmatmul.mubr.bf16.gmra.mxu0 %v1143
          %v1625 = vpop.f32.mrf.mxu0
          %v1626 = vadd.f32 %v1445, %v1625
          %v1627 = vpop.f32.mrf.mxu0
          %v1628 = vpop.f32.mrf.mxu0
          %v1629 = vadd.f32 %v1445, %v1628
          %v1630 = vpop.f32.mrf.mxu0
          %1631 = vmatprep.mubr.bf16.mxu0 %v1146
          %1632 = vmatmul.mubr.bf16.gmra.mxu0 %v1145
          %v1633 = vpop.f32.mrf.mxu0
          %v1634 = vadd.f32 %v1445, %v1633
          %v1635 = vpop.f32.mrf.mxu0
          %v1636 = vpop.f32.mrf.mxu0
          %v1637 = vadd.f32 %v1445, %v1636
          %v1638 = vpop.f32.mrf.mxu0
          %1639 = vdwg.mxu0
          %v1640 = vpack.c.bf16 %v1581, %v1578
          %v1641 = vpack.c.bf16 %v1589, %v1586
          %v1642 = vpack.c.bf16 %v1597, %v1594
          %v1643 = vpack.c.bf16 %v1605, %v1602
          %v1644 = vpack.c.bf16 %v1613, %v1610
          %v1645 = vpack.c.bf16 %v1621, %v1618
          %v1646 = vpack.c.bf16 %v1629, %v1626
          %v1647 = vpack.c.bf16 %v1637, %v1634
          %s1648 = smul.u32 %s1156, 16
          %s1649 = smul.addr %s1648, 4
          %s1650 = scalar_lea.vmem [#allocation2], %s1649
          %v1651 = vld [vmem:[%s1650] sm:$0xf]
          %v1652 = vld [vmem:[%s1650 + $0x4] sm:$0xf]
          %v1653 = vld [vmem:[%s1650 + $0x8] sm:$0xf]
          %v1654 = vld [vmem:[%s1650 + $0xc] sm:$0xf]
          %v1655 = vld [vmem:[%s1650 + $0x10] sm:$0xf]
          %v1656 = vld [vmem:[%s1650 + $0x14] sm:$0xf]
          %v1657 = vld [vmem:[%s1650 + $0x18] sm:$0xf]
          %v1658 = vld [vmem:[%s1650 + $0x1c] sm:$0xf]
          %v1659 = vld [vmem:[%s1650 + $0x20] sm:$0xf]
          %v1660 = vld [vmem:[%s1650 + $0x24] sm:$0xf]
          %v1661 = vld [vmem:[%s1650 + $0x28] sm:$0xf]
          %v1662 = vld [vmem:[%s1650 + $0x2c] sm:$0xf]
          %v1663 = vld [vmem:[%s1650 + $0x30] sm:$0xf]
          %v1664 = vld [vmem:[%s1650 + $0x34] sm:$0xf]
          %v1665 = vld [vmem:[%s1650 + $0x38] sm:$0xf]
          %v1666 = vld [vmem:[%s1650 + $0x3c] sm:$0xf]
          %v1683 = vunpack.c.l.b16 %v1651
          %v1684 = vunpack.c.l.b16 %v1652
          %v1685 = vunpack.c.l.b16 %v1653
          %v1686 = vunpack.c.l.b16 %v1654
          %v1687 = vunpack.c.l.b16 %v1655
          %v1688 = vunpack.c.l.b16 %v1656
          %v1689 = vunpack.c.l.b16 %v1657
          %v1690 = vunpack.c.l.b16 %v1658
          %v1691 = vunpack.c.l.b16 %v1659
          %v1692 = vunpack.c.l.b16 %v1660
          %v1693 = vunpack.c.l.b16 %v1661
          %v1694 = vunpack.c.l.b16 %v1662
          %v1695 = vunpack.c.l.b16 %v1663
          %v1696 = vunpack.c.l.b16 %v1664
          %v1697 = vunpack.c.l.b16 %v1665
          %v1698 = vunpack.c.l.b16 %v1666
          %v1699 = vpack.c.b16 %v1684, %v1683
          %v1700 = vpack.c.b16 %v1686, %v1685
          %v1701 = vpack.c.b16 %v1688, %v1687
          %v1702 = vpack.c.b16 %v1690, %v1689
          %v1703 = vpack.c.b16 %v1692, %v1691
          %v1704 = vpack.c.b16 %v1694, %v1693
          %v1705 = vpack.c.b16 %v1696, %v1695
          %v1706 = vpack.c.b16 %v1698, %v1697
          %1715 = vmatprep.subr.bf16.mxu0 0
          %1716 = vmatpush1.bf16.xpose.msra.mxu0 %v1404
          %1717 = vmatprep.subr.bf16.mxu0 0
          %1718 = vmatpush1.bf16.xpose.msra.mxu0 %v1403
          %1719 = vmatprep.subr.bf16.mxu0 0
          %1720 = vmatpush1.bf16.xpose.msra.mxu0 %v1402
          %1721 = vmatprep.subr.bf16.mxu0 0
          %1722 = vmatpush1.bf16.xpose.msra.mxu0 %v1401
          %1723 = vmatprep.subr.bf16.mxu0 0
          %1724 = vmatpush1.bf16.xpose.msra.mxu0 %v1400
          %1725 = vmatprep.subr.bf16.mxu0 0
          %1726 = vmatpush1.bf16.xpose.msra.mxu0 %v1399
          %1727 = vmatprep.subr.bf16.mxu0 0
          %1728 = vmatpush1.bf16.xpose.msra.mxu0 %v1398
          %1729 = vmatprep.subr.bf16.mxu0 0
          %1730 = vmatpush1.bf16.xpose.msra.mxu0 %v1397
          %1731 = vmatprep.subr.bf16.mxu0 0
          %1732 = vmatpush2.bf16.xpose.msra.mxu0 0
          %1733 = vmatprep.subr.bf16.mxu0 0
          %1734 = vmatpush2.bf16.xpose.msra.mxu0 0
          %1735 = vmatprep.subr.bf16.mxu0 0
          %1736 = vmatpush2.bf16.xpose.msra.mxu0 0
          %1737 = vmatprep.subr.bf16.mxu0 0
          %1738 = vmatpush2.bf16.xpose.msra.mxu0 0
          %1739 = vmatprep.subr.bf16.mxu0 0
          %1740 = vmatpush2.bf16.xpose.msra.mxu0 0
          %1741 = vmatprep.subr.bf16.mxu0 0
          %1742 = vmatpush2.bf16.xpose.msra.mxu0 0
          %1743 = vmatprep.subr.bf16.mxu0 0
          %1744 = vmatpush2.bf16.xpose.msra.mxu0 0
          %1745 = vmatprep.subr.bf16.mxu0 0
          %1746 = vmatpush2.bf16.xpose.msra.mxu0 0
          %1747 = vmatprep.mubr.bf16.mxu0 0
          %1748 = vmatmul.mubr.bf16.gmra.mxu0 %v1699
          %v1749 = vpop.f32.mrf.mxu0
          %v1750 = vadd.f32 0.0, %v1749
          %v1751 = vpop.f32.mrf.mxu0
          %v1752 = vpop.f32.mrf.mxu0
          %v1753 = vadd.f32 0.0, %v1752
          %v1754 = vpop.f32.mrf.mxu0
          %1755 = vmatprep.mubr.bf16.mxu0 0
          %1756 = vmatmul.mubr.bf16.gmra.mxu0 %v1700
          %v1757 = vpop.f32.mrf.mxu0
          %v1758 = vadd.f32 0.0, %v1757
          %v1759 = vpop.f32.mrf.mxu0
          %v1760 = vpop.f32.mrf.mxu0
          %v1761 = vadd.f32 0.0, %v1760
          %v1762 = vpop.f32.mrf.mxu0
          %1763 = vmatprep.mubr.bf16.mxu0 0
          %1764 = vmatmul.mubr.bf16.gmra.mxu0 %v1701
          %v1765 = vpop.f32.mrf.mxu0
          %v1766 = vadd.f32 0.0, %v1765
          %v1767 = vpop.f32.mrf.mxu0
          %v1768 = vpop.f32.mrf.mxu0
          %v1769 = vadd.f32 0.0, %v1768
          %v1770 = vpop.f32.mrf.mxu0
          %1771 = vmatprep.mubr.bf16.mxu0 0
          %1772 = vmatmul.mubr.bf16.gmra.mxu0 %v1702
          %v1773 = vpop.f32.mrf.mxu0
          %v1774 = vadd.f32 0.0, %v1773
          %v1775 = vpop.f32.mrf.mxu0
          %v1776 = vpop.f32.mrf.mxu0
          %v1777 = vadd.f32 0.0, %v1776
          %v1778 = vpop.f32.mrf.mxu0
          %1779 = vmatprep.mubr.bf16.mxu0 0
          %1780 = vmatmul.mubr.bf16.gmra.mxu0 %v1703
          %v1781 = vpop.f32.mrf.mxu0
          %v1782 = vadd.f32 0.0, %v1781
          %v1783 = vpop.f32.mrf.mxu0
          %v1784 = vpop.f32.mrf.mxu0
          %v1785 = vadd.f32 0.0, %v1784
          %v1786 = vpop.f32.mrf.mxu0
          %1787 = vmatprep.mubr.bf16.mxu0 0
          %1788 = vmatmul.mubr.bf16.gmra.mxu0 %v1704
          %v1789 = vpop.f32.mrf.mxu0
          %v1790 = vadd.f32 0.0, %v1789
          %v1791 = vpop.f32.mrf.mxu0
          %v1792 = vpop.f32.mrf.mxu0
          %v1793 = vadd.f32 0.0, %v1792
          %v1794 = vpop.f32.mrf.mxu0
          %1795 = vmatprep.mubr.bf16.mxu0 0
          %1796 = vmatmul.mubr.bf16.gmra.mxu0 %v1705
          %v1797 = vpop.f32.mrf.mxu0
          %v1798 = vadd.f32 0.0, %v1797
          %v1799 = vpop.f32.mrf.mxu0
          %v1800 = vpop.f32.mrf.mxu0
          %v1801 = vadd.f32 0.0, %v1800
          %v1802 = vpop.f32.mrf.mxu0
          %1803 = vmatprep.mubr.bf16.mxu0 0
          %1804 = vmatmul.mubr.bf16.gmra.mxu0 %v1706
          %v1805 = vpop.f32.mrf.mxu0
          %v1806 = vadd.f32 0.0, %v1805
          %v1807 = vpop.f32.mrf.mxu0
          %v1808 = vpop.f32.mrf.mxu0
          %v1809 = vadd.f32 0.0, %v1808
          %v1810 = vpop.f32.mrf.mxu0
          %1811 = vdwg.mxu0
          %v1812 = vmul.f32 %v1750, 0.088388346
          %v1813 = vmul.f32 %v1753, 0.088388346
          %v1814 = vmul.f32 %v1758, 0.088388346
          %v1815 = vmul.f32 %v1761, 0.088388346
          %v1816 = vmul.f32 %v1766, 0.088388346
          %v1817 = vmul.f32 %v1769, 0.088388346
          %v1818 = vmul.f32 %v1774, 0.088388346
          %v1819 = vmul.f32 %v1777, 0.088388346
          %v1820 = vmul.f32 %v1782, 0.088388346
          %v1821 = vmul.f32 %v1785, 0.088388346
          %v1822 = vmul.f32 %v1790, 0.088388346
          %v1823 = vmul.f32 %v1793, 0.088388346
          %v1824 = vmul.f32 %v1798, 0.088388346
          %v1825 = vmul.f32 %v1801, 0.088388346
          %v1826 = vmul.f32 %v1806, 0.088388346
          %v1827 = vmul.f32 %v1809, 0.088388346
          %v1828 = vsel %vm1151, 16843009, 0
          %v1829 = vsel %vm1152, 16843009, 0
          %v1830 = vsel %vm1153, 16843009, 0
          %v1831 = vsel %vm1154, 16843009, 0
          %v1832 = vunpack.c.0.s8 %v1828
          %v1833 = vunpack.c.1.s8 %v1828
          %v1834 = vunpack.c.2.s8 %v1828
          %v1835 = vunpack.c.3.s8 %v1828
          %v1836 = vunpack.c.0.s8 %v1829
          %v1837 = vunpack.c.1.s8 %v1829
          %v1838 = vunpack.c.2.s8 %v1829
          %v1839 = vunpack.c.3.s8 %v1829
          %v1840 = vunpack.c.0.s8 %v1830
          %v1841 = vunpack.c.1.s8 %v1830
          %v1842 = vunpack.c.2.s8 %v1830
          %v1843 = vunpack.c.3.s8 %v1830
          %v1844 = vunpack.c.0.s8 %v1831
          %v1845 = vunpack.c.1.s8 %v1831
          %v1846 = vunpack.c.2.s8 %v1831
          %v1847 = vunpack.c.3.s8 %v1831
          %v1848 = vpack.c.b16 %v1832, %v1832
          %v1849 = vpack.c.b8 %v1848, %v1848
          %v1850 = vpack.c.b16 %v1833, %v1833
          %v1851 = vpack.c.b8 %v1850, %v1850
          %v1852 = vpack.c.b16 %v1834, %v1834
          %v1853 = vpack.c.b8 %v1852, %v1852
          %v1854 = vpack.c.b16 %v1835, %v1835
          %v1855 = vpack.c.b8 %v1854, %v1854
          %v1856 = vpack.c.b16 %v1836, %v1836
          %v1857 = vpack.c.b8 %v1856, %v1856
          %v1858 = vpack.c.b16 %v1837, %v1837
          %v1859 = vpack.c.b8 %v1858, %v1858
          %v1860 = vpack.c.b16 %v1838, %v1838
          %v1861 = vpack.c.b8 %v1860, %v1860
          %v1862 = vpack.c.b16 %v1839, %v1839
          %v1863 = vpack.c.b8 %v1862, %v1862
          %v1864 = vpack.c.b16 %v1840, %v1840
          %v1865 = vpack.c.b8 %v1864, %v1864
          %v1866 = vpack.c.b16 %v1841, %v1841
          %v1867 = vpack.c.b8 %v1866, %v1866
          %v1868 = vpack.c.b16 %v1842, %v1842
          %v1869 = vpack.c.b8 %v1868, %v1868
          %v1870 = vpack.c.b16 %v1843, %v1843
          %v1871 = vpack.c.b8 %v1870, %v1870
          %v1872 = vpack.c.b16 %v1844, %v1844
          %v1873 = vpack.c.b8 %v1872, %v1872
          %v1874 = vpack.c.b16 %v1845, %v1845
          %v1875 = vpack.c.b8 %v1874, %v1874
          %v1876 = vpack.c.b16 %v1846, %v1846
          %v1877 = vpack.c.b8 %v1876, %v1876
          %v1878 = vpack.c.b16 %v1847, %v1847
          %v1879 = vpack.c.b8 %v1878, %v1878
          %vm1880 = vnez %v1849
          %vm1881 = vnez %v1851
          %vm1882 = vnez %v1853
          %vm1883 = vnez %v1855
          %vm1884 = vnez %v1857
          %vm1885 = vnez %v1859
          %vm1886 = vnez %v1861
          %vm1887 = vnez %v1863
          %vm1888 = vnez %v1865
          %vm1889 = vnez %v1867
          %vm1890 = vnez %v1869
          %vm1891 = vnez %v1871
          %vm1892 = vnez %v1873
          %vm1893 = vnez %v1875
          %vm1894 = vnez %v1877
          %vm1895 = vnez %v1879
          %v1896 = vsel %vm1880, 16843009, 0
          %v1897 = vsel %vm1881, 16843009, 0
          %v1898 = vsel %vm1882, 16843009, 0
          %v1899 = vsel %vm1883, 16843009, 0
          %v1900 = vsel %vm1884, 16843009, 0
          %v1901 = vsel %vm1885, 16843009, 0
          %v1902 = vsel %vm1886, 16843009, 0
          %v1903 = vsel %vm1887, 16843009, 0
          %v1904 = vsel %vm1888, 16843009, 0
          %v1905 = vsel %vm1889, 16843009, 0
          %v1906 = vsel %vm1890, 16843009, 0
          %v1907 = vsel %vm1891, 16843009, 0
          %v1908 = vsel %vm1892, 16843009, 0
          %v1909 = vsel %vm1893, 16843009, 0
          %v1910 = vsel %vm1894, 16843009, 0
          %v1911 = vsel %vm1895, 16843009, 0
          %v1912 = vunpack.c.0.s8 %v1896
          %v1913 = vunpack.c.0.s8 %v1897
          %v1914 = vunpack.c.0.s8 %v1898
          %v1915 = vunpack.c.0.s8 %v1899
          %v1916 = vunpack.c.0.s8 %v1900
          %v1917 = vunpack.c.0.s8 %v1901
          %v1918 = vunpack.c.0.s8 %v1902
          %v1919 = vunpack.c.0.s8 %v1903
          %v1920 = vunpack.c.0.s8 %v1904
          %v1921 = vunpack.c.0.s8 %v1905
          %v1922 = vunpack.c.0.s8 %v1906
          %v1923 = vunpack.c.0.s8 %v1907
          %v1924 = vunpack.c.0.s8 %v1908
          %v1925 = vunpack.c.0.s8 %v1909
          %v1926 = vunpack.c.0.s8 %v1910
          %v1927 = vunpack.c.0.s8 %v1911
          %vm1928 = vcmp.ne.s32.totalorder %v1912, 0
          %vm1929 = vcmp.ne.s32.totalorder %v1913, 0
          %vm1930 = vcmp.ne.s32.totalorder %v1914, 0
          %vm1931 = vcmp.ne.s32.totalorder %v1915, 0
          %vm1932 = vcmp.ne.s32.totalorder %v1916, 0
          %vm1933 = vcmp.ne.s32.totalorder %v1917, 0
          %vm1934 = vcmp.ne.s32.totalorder %v1918, 0
          %vm1935 = vcmp.ne.s32.totalorder %v1919, 0
          %vm1936 = vcmp.ne.s32.totalorder %v1920, 0
          %vm1937 = vcmp.ne.s32.totalorder %v1921, 0
          %vm1938 = vcmp.ne.s32.totalorder %v1922, 0
          %vm1939 = vcmp.ne.s32.totalorder %v1923, 0
          %vm1940 = vcmp.ne.s32.totalorder %v1924, 0
          %vm1941 = vcmp.ne.s32.totalorder %v1925, 0
          %vm1942 = vcmp.ne.s32.totalorder %v1926, 0
          %vm1943 = vcmp.ne.s32.totalorder %v1927, 0
          %v1944 = vsel %vm1928, %v1812, -1e+09
          %v1945 = vsel %vm1929, %v1813, -1e+09
          %v1946 = vsel %vm1930, %v1814, -1e+09
          %v1947 = vsel %vm1931, %v1815, -1e+09
          %v1948 = vsel %vm1932, %v1816, -1e+09
          %v1949 = vsel %vm1933, %v1817, -1e+09
          %v1950 = vsel %vm1934, %v1818, -1e+09
          %v1951 = vsel %vm1935, %v1819, -1e+09
          %v1952 = vsel %vm1936, %v1820, -1e+09
          %v1953 = vsel %vm1937, %v1821, -1e+09
          %v1954 = vsel %vm1938, %v1822, -1e+09
          %v1955 = vsel %vm1939, %v1823, -1e+09
          %v1956 = vsel %vm1940, %v1824, -1e+09
          %v1957 = vsel %vm1941, %v1825, -1e+09
          %v1958 = vsel %vm1942, %v1826, -1e+09
          %v1959 = vsel %vm1943, %v1827, -1e+09
          %s1960 = smul.u32 %s1156, 128
          %s1961 = scalar_lea.vmem [#allocation4], %s1960
          %v1962 = vld [vmem:[%s1961] sm:$0xff]
          %v1963 = vld [vmem:[%s1961 + $0x8] sm:$0xff]
          %v1964 = vld [vmem:[%s1961 + $0x10] sm:$0xff]
          %v1965 = vld [vmem:[%s1961 + $0x18] sm:$0xff]
          %v1966 = vld [vmem:[%s1961 + $0x20] sm:$0xff]
          %v1967 = vld [vmem:[%s1961 + $0x28] sm:$0xff]
          %v1968 = vld [vmem:[%s1961 + $0x30] sm:$0xff]
          %v1969 = vld [vmem:[%s1961 + $0x38] sm:$0xff]
          %v1970 = vld [vmem:[%s1961 + $0x40] sm:$0xff]
          %v1971 = vld [vmem:[%s1961 + $0x48] sm:$0xff]
          %v1972 = vld [vmem:[%s1961 + $0x50] sm:$0xff]
          %v1973 = vld [vmem:[%s1961 + $0x58] sm:$0xff]
          %v1974 = vld [vmem:[%s1961 + $0x60] sm:$0xff]
          %v1975 = vld [vmem:[%s1961 + $0x68] sm:$0xff]
          %v1976 = vld [vmem:[%s1961 + $0x70] sm:$0xff]
          %v1977 = vld [vmem:[%s1961 + $0x78] sm:$0xff]
          %1978 = vmax.xlane.f32.xlu0 %v1944
          %v1979 = vpop.xlane.xlu0 %1978
          %1980 = vmax.xlane.f32.xlu0 %v1945
          %v1981 = vpop.xlane.xlu0 %1980
          %1982 = vmax.xlane.f32.xlu0 %v1946
          %v1983 = vpop.xlane.xlu0 %1982
          %1984 = vmax.xlane.f32.xlu0 %v1947
          %v1985 = vpop.xlane.xlu0 %1984
          %1986 = vmax.xlane.f32.xlu0 %v1948
          %v1987 = vpop.xlane.xlu0 %1986
          %1988 = vmax.xlane.f32.xlu0 %v1949
          %v1989 = vpop.xlane.xlu0 %1988
          %1990 = vmax.xlane.f32.xlu0 %v1950
          %v1991 = vpop.xlane.xlu0 %1990
          %1992 = vmax.xlane.f32.xlu0 %v1951
          %v1993 = vpop.xlane.xlu0 %1992
          %1994 = vmax.xlane.f32.xlu0 %v1952
          %v1995 = vpop.xlane.xlu0 %1994
          %1996 = vmax.xlane.f32.xlu0 %v1953
          %v1997 = vpop.xlane.xlu0 %1996
          %1998 = vmax.xlane.f32.xlu0 %v1954
          %v1999 = vpop.xlane.xlu0 %1998
          %2000 = vmax.xlane.f32.xlu0 %v1955
          %v2001 = vpop.xlane.xlu0 %2000
          %2002 = vmax.xlane.f32.xlu0 %v1956
          %v2003 = vpop.xlane.xlu0 %2002
          %2004 = vmax.xlane.f32.xlu0 %v1957
          %v2005 = vpop.xlane.xlu0 %2004
          %2006 = vmax.xlane.f32.xlu0 %v1958
          %v2007 = vpop.xlane.xlu0 %2006
          %2008 = vmax.xlane.f32.xlu0 %v1959
          %v2009 = vpop.xlane.xlu0 %2008
          %v2010 = vmax.f32 %v1962, %v1979
          %v2011 = vmax.f32 %v1963, %v1981
          %v2012 = vmax.f32 %v1964, %v1983
          %v2013 = vmax.f32 %v1965, %v1985
          %v2014 = vmax.f32 %v1966, %v1987
          %v2015 = vmax.f32 %v1967, %v1989
          %v2016 = vmax.f32 %v1968, %v1991
          %v2017 = vmax.f32 %v1969, %v1993
          %v2018 = vmax.f32 %v1970, %v1995
          %v2019 = vmax.f32 %v1971, %v1997
          %v2020 = vmax.f32 %v1972, %v1999
          %v2021 = vmax.f32 %v1973, %v2001
          %v2022 = vmax.f32 %v1974, %v2003
          %v2023 = vmax.f32 %v1975, %v2005
          %v2024 = vmax.f32 %v1976, %v2007
          %v2025 = vmax.f32 %v1977, %v2009
          %v2026 = vsub.f32 %v1962, %v2010
          %v2027 = vsub.f32 %v1963, %v2011
          %v2028 = vsub.f32 %v1964, %v2012
          %v2029 = vsub.f32 %v1965, %v2013
          %v2030 = vsub.f32 %v1966, %v2014
          %v2031 = vsub.f32 %v1967, %v2015
          %v2032 = vsub.f32 %v1968, %v2016
          %v2033 = vsub.f32 %v1969, %v2017
          %v2034 = vsub.f32 %v1970, %v2018
          %v2035 = vsub.f32 %v1971, %v2019
          %v2036 = vsub.f32 %v1972, %v2020
          %v2037 = vsub.f32 %v1973, %v2021
          %v2038 = vsub.f32 %v1974, %v2022
          %v2039 = vsub.f32 %v1975, %v2023
          %v2040 = vsub.f32 %v1976, %v2024
          %v2041 = vsub.f32 %v1977, %v2025
          %v2042 = vmul.f32 %v2026, 1.442695
          %v2043 = vpow.pop %v2042
          %v2044 = vmul.f32 %v2027, 1.442695
          %v2045 = vpow.pop %v2044
          %v2046 = vmul.f32 %v2028, 1.442695
          %v2047 = vpow.pop %v2046
          %v2048 = vmul.f32 %v2029, 1.442695
          %v2049 = vpow.pop %v2048
          %v2050 = vmul.f32 %v2030, 1.442695
          %v2051 = vpow.pop %v2050
          %v2052 = vmul.f32 %v2031, 1.442695
          %v2053 = vpow.pop %v2052
          %v2054 = vmul.f32 %v2032, 1.442695
          %v2055 = vpow.pop %v2054
          %v2056 = vmul.f32 %v2033, 1.442695
          %v2057 = vpow.pop %v2056
          %v2058 = vmul.f32 %v2034, 1.442695
          %v2059 = vpow.pop %v2058
          %v2060 = vmul.f32 %v2035, 1.442695
          %v2061 = vpow.pop %v2060
          %v2062 = vmul.f32 %v2036, 1.442695
          %v2063 = vpow.pop %v2062
          %v2064 = vmul.f32 %v2037, 1.442695
          %v2065 = vpow.pop %v2064
          %v2066 = vmul.f32 %v2038, 1.442695
          %v2067 = vpow.pop %v2066
          %v2068 = vmul.f32 %v2039, 1.442695
          %v2069 = vpow.pop %v2068
          %v2070 = vmul.f32 %v2040, 1.442695
          %v2071 = vpow.pop %v2070
          %v2072 = vmul.f32 %v2041, 1.442695
          %v2073 = vpow.pop %v2072
          %2075 = vset.pattern.permute.xlu0 0
          %2076 = vperm.xlu0 %2075, %v2010
          %v2077 = vpop.permute.xlu0 %2076
          %2080 = vset.pattern.permute.xlu0 0
          %2081 = vperm.xlu0 %2080, %v2011
          %v2082 = vpop.permute.xlu0 %2081
          %2085 = vset.pattern.permute.xlu0 0
          %2086 = vperm.xlu0 %2085, %v2012
          %v2087 = vpop.permute.xlu0 %2086
          %2090 = vset.pattern.permute.xlu0 0
          %2091 = vperm.xlu0 %2090, %v2013
          %v2092 = vpop.permute.xlu0 %2091
          %2095 = vset.pattern.permute.xlu0 0
          %2096 = vperm.xlu0 %2095, %v2014
          %v2097 = vpop.permute.xlu0 %2096
          %2100 = vset.pattern.permute.xlu0 0
          %2101 = vperm.xlu0 %2100, %v2015
          %v2102 = vpop.permute.xlu0 %2101
          %2105 = vset.pattern.permute.xlu0 0
          %2106 = vperm.xlu0 %2105, %v2016
          %v2107 = vpop.permute.xlu0 %2106
          %2110 = vset.pattern.permute.xlu0 0
          %2111 = vperm.xlu0 %2110, %v2017
          %v2112 = vpop.permute.xlu0 %2111
          %2115 = vset.pattern.permute.xlu0 0
          %2116 = vperm.xlu0 %2115, %v2018
          %v2117 = vpop.permute.xlu0 %2116
          %2120 = vset.pattern.permute.xlu0 0
          %2121 = vperm.xlu0 %2120, %v2019
          %v2122 = vpop.permute.xlu0 %2121
          %2125 = vset.pattern.permute.xlu0 0
          %2126 = vperm.xlu0 %2125, %v2020
          %v2127 = vpop.permute.xlu0 %2126
          %2130 = vset.pattern.permute.xlu0 0
          %2131 = vperm.xlu0 %2130, %v2021
          %v2132 = vpop.permute.xlu0 %2131
          %2135 = vset.pattern.permute.xlu0 0
          %2136 = vperm.xlu0 %2135, %v2022
          %v2137 = vpop.permute.xlu0 %2136
          %2140 = vset.pattern.permute.xlu0 0
          %2141 = vperm.xlu0 %2140, %v2023
          %v2142 = vpop.permute.xlu0 %2141
          %2145 = vset.pattern.permute.xlu0 0
          %2146 = vperm.xlu0 %2145, %v2024
          %v2147 = vpop.permute.xlu0 %2146
          %2150 = vset.pattern.permute.xlu0 0
          %2151 = vperm.xlu0 %2150, %v2025
          %v2152 = vpop.permute.xlu0 %2151
          %v2154 = vsub.f32 %v1944, %v2077
          %v2155 = vsub.f32 %v1945, %v2082
          %v2156 = vsub.f32 %v1946, %v2087
          %v2157 = vsub.f32 %v1947, %v2092
          %v2158 = vsub.f32 %v1948, %v2097
          %v2159 = vsub.f32 %v1949, %v2102
          %v2160 = vsub.f32 %v1950, %v2107
          %v2161 = vsub.f32 %v1951, %v2112
          %v2162 = vsub.f32 %v1952, %v2117
          %v2163 = vsub.f32 %v1953, %v2122
          %v2164 = vsub.f32 %v1954, %v2127
          %v2165 = vsub.f32 %v1955, %v2132
          %v2166 = vsub.f32 %v1956, %v2137
          %v2167 = vsub.f32 %v1957, %v2142
          %v2168 = vsub.f32 %v1958, %v2147
          %v2169 = vsub.f32 %v1959, %v2152
          %v2170 = vmul.f32 %v2154, 1.442695
          %v2171 = vpow.pop %v2170
          %v2172 = vmul.f32 %v2155, 1.442695
          %v2173 = vpow.pop %v2172
          %v2174 = vmul.f32 %v2156, 1.442695
          %v2175 = vpow.pop %v2174
          %v2176 = vmul.f32 %v2157, 1.442695
          %v2177 = vpow.pop %v2176
          %v2178 = vmul.f32 %v2158, 1.442695
          %v2179 = vpow.pop %v2178
          %v2180 = vmul.f32 %v2159, 1.442695
          %v2181 = vpow.pop %v2180
          %v2182 = vmul.f32 %v2160, 1.442695
          %v2183 = vpow.pop %v2182
          %v2184 = vmul.f32 %v2161, 1.442695
          %v2185 = vpow.pop %v2184
          %v2186 = vmul.f32 %v2162, 1.442695
          %v2187 = vpow.pop %v2186
          %v2188 = vmul.f32 %v2163, 1.442695
          %v2189 = vpow.pop %v2188
          %v2190 = vmul.f32 %v2164, 1.442695
          %v2191 = vpow.pop %v2190
          %v2192 = vmul.f32 %v2165, 1.442695
          %v2193 = vpow.pop %v2192
          %v2194 = vmul.f32 %v2166, 1.442695
          %v2195 = vpow.pop %v2194
          %v2196 = vmul.f32 %v2167, 1.442695
          %v2197 = vpow.pop %v2196
          %v2198 = vmul.f32 %v2168, 1.442695
          %v2199 = vpow.pop %v2198
          %v2200 = vmul.f32 %v2169, 1.442695
          %v2201 = vpow.pop %v2200
          %s2202 = scalar_lea.vmem [#allocation5], %s1960
          %v2203 = vld [vmem:[%s2202] sm:$0xff]
          %v2204 = vld [vmem:[%s2202 + $0x8] sm:$0xff]
          %v2205 = vld [vmem:[%s2202 + $0x10] sm:$0xff]
          %v2206 = vld [vmem:[%s2202 + $0x18] sm:$0xff]
          %v2207 = vld [vmem:[%s2202 + $0x20] sm:$0xff]
          %v2208 = vld [vmem:[%s2202 + $0x28] sm:$0xff]
          %v2209 = vld [vmem:[%s2202 + $0x30] sm:$0xff]
          %v2210 = vld [vmem:[%s2202 + $0x38] sm:$0xff]
          %v2211 = vld [vmem:[%s2202 + $0x40] sm:$0xff]
          %v2212 = vld [vmem:[%s2202 + $0x48] sm:$0xff]
          %v2213 = vld [vmem:[%s2202 + $0x50] sm:$0xff]
          %v2214 = vld [vmem:[%s2202 + $0x58] sm:$0xff]
          %v2215 = vld [vmem:[%s2202 + $0x60] sm:$0xff]
          %v2216 = vld [vmem:[%s2202 + $0x68] sm:$0xff]
          %v2217 = vld [vmem:[%s2202 + $0x70] sm:$0xff]
          %v2218 = vld [vmem:[%s2202 + $0x78] sm:$0xff]
          %v2219 = vmul.f32 %v2043, %v2203
          %v2220 = vmul.f32 %v2045, %v2204
          %v2221 = vmul.f32 %v2047, %v2205
          %v2222 = vmul.f32 %v2049, %v2206
          %v2223 = vmul.f32 %v2051, %v2207
          %v2224 = vmul.f32 %v2053, %v2208
          %v2225 = vmul.f32 %v2055, %v2209
          %v2226 = vmul.f32 %v2057, %v2210
          %v2227 = vmul.f32 %v2059, %v2211
          %v2228 = vmul.f32 %v2061, %v2212
          %v2229 = vmul.f32 %v2063, %v2213
          %v2230 = vmul.f32 %v2065, %v2214
          %v2231 = vmul.f32 %v2067, %v2215
          %v2232 = vmul.f32 %v2069, %v2216
          %v2233 = vmul.f32 %v2071, %v2217
          %v2234 = vmul.f32 %v2073, %v2218
          %2235 = vadd.xlane.f32.xlu0 %v2171
          %v2236 = vpop.xlane.xlu0 %2235
          %2237 = vadd.xlane.f32.xlu0 %v2173
          %v2238 = vpop.xlane.xlu0 %2237
          %2239 = vadd.xlane.f32.xlu0 %v2175
          %v2240 = vpop.xlane.xlu0 %2239
          %2241 = vadd.xlane.f32.xlu0 %v2177
          %v2242 = vpop.xlane.xlu0 %2241
          %2243 = vadd.xlane.f32.xlu0 %v2179
          %v2244 = vpop.xlane.xlu0 %2243
          %2245 = vadd.xlane.f32.xlu0 %v2181
          %v2246 = vpop.xlane.xlu0 %2245
          %2247 = vadd.xlane.f32.xlu0 %v2183
          %v2248 = vpop.xlane.xlu0 %2247
          %2249 = vadd.xlane.f32.xlu0 %v2185
          %v2250 = vpop.xlane.xlu0 %2249
          %2251 = vadd.xlane.f32.xlu0 %v2187
          %v2252 = vpop.xlane.xlu0 %2251
          %2253 = vadd.xlane.f32.xlu0 %v2189
          %v2254 = vpop.xlane.xlu0 %2253
          %2255 = vadd.xlane.f32.xlu0 %v2191
          %v2256 = vpop.xlane.xlu0 %2255
          %2257 = vadd.xlane.f32.xlu0 %v2193
          %v2258 = vpop.xlane.xlu0 %2257
          %2259 = vadd.xlane.f32.xlu0 %v2195
          %v2260 = vpop.xlane.xlu0 %2259
          %2261 = vadd.xlane.f32.xlu0 %v2197
          %v2262 = vpop.xlane.xlu0 %2261
          %2263 = vadd.xlane.f32.xlu0 %v2199
          %v2264 = vpop.xlane.xlu0 %2263
          %2265 = vadd.xlane.f32.xlu0 %v2201
          %v2266 = vpop.xlane.xlu0 %2265
          %v2267 = vadd.f32 %v2219, %v2236
          %v2268 = vadd.f32 %v2220, %v2238
          %v2269 = vadd.f32 %v2221, %v2240
          %v2270 = vadd.f32 %v2222, %v2242
          %v2271 = vadd.f32 %v2223, %v2244
          %v2272 = vadd.f32 %v2224, %v2246
          %v2273 = vadd.f32 %v2225, %v2248
          %v2274 = vadd.f32 %v2226, %v2250
          %v2275 = vadd.f32 %v2227, %v2252
          %v2276 = vadd.f32 %v2228, %v2254
          %v2277 = vadd.f32 %v2229, %v2256
          %v2278 = vadd.f32 %v2230, %v2258
          %v2279 = vadd.f32 %v2231, %v2260
          %v2280 = vadd.f32 %v2232, %v2262
          %v2281 = vadd.f32 %v2233, %v2264
          %v2282 = vadd.f32 %v2234, %v2266
          %vm2283 = vcmask 7168
          %2284 = vst.msk [vmem:[%s2202] sm:$0xff] %vm2283, %v2267
          %2285 = vst.msk [vmem:[%s2202 + $0x8] sm:$0xff] %vm2283, %v2268
          %2286 = vst.msk [vmem:[%s2202 + $0x10] sm:$0xff] %vm2283, %v2269
          %2287 = vst.msk [vmem:[%s2202 + $0x18] sm:$0xff] %vm2283, %v2270
          %2288 = vst.msk [vmem:[%s2202 + $0x20] sm:$0xff] %vm2283, %v2271
          %2289 = vst.msk [vmem:[%s2202 + $0x28] sm:$0xff] %vm2283, %v2272
          %2290 = vst.msk [vmem:[%s2202 + $0x30] sm:$0xff] %vm2283, %v2273
          %2291 = vst.msk [vmem:[%s2202 + $0x38] sm:$0xff] %vm2283, %v2274
          %2292 = vst.msk [vmem:[%s2202 + $0x40] sm:$0xff] %vm2283, %v2275
          %2293 = vst.msk [vmem:[%s2202 + $0x48] sm:$0xff] %vm2283, %v2276
          %2294 = vst.msk [vmem:[%s2202 + $0x50] sm:$0xff] %vm2283, %v2277
          %2295 = vst.msk [vmem:[%s2202 + $0x58] sm:$0xff] %vm2283, %v2278
          %2296 = vst.msk [vmem:[%s2202 + $0x60] sm:$0xff] %vm2283, %v2279
          %2297 = vst.msk [vmem:[%s2202 + $0x68] sm:$0xff] %vm2283, %v2280
          %2298 = vst.msk [vmem:[%s2202 + $0x70] sm:$0xff] %vm2283, %v2281
          %2299 = vst.msk [vmem:[%s2202 + $0x78] sm:$0xff] %vm2283, %v2282
          %s2300 = scalar_lea.vmem [#allocation3], %s1960
          %v2301 = vld [vmem:[%s2300] sm:$0xff]
          %v2302 = vld [vmem:[%s2300 + $0x8] sm:$0xff]
          %v2303 = vld [vmem:[%s2300 + $0x10] sm:$0xff]
          %v2304 = vld [vmem:[%s2300 + $0x18] sm:$0xff]
          %v2305 = vld [vmem:[%s2300 + $0x20] sm:$0xff]
          %v2306 = vld [vmem:[%s2300 + $0x28] sm:$0xff]
          %v2307 = vld [vmem:[%s2300 + $0x30] sm:$0xff]
          %v2308 = vld [vmem:[%s2300 + $0x38] sm:$0xff]
          %v2309 = vld [vmem:[%s2300 + $0x40] sm:$0xff]
          %v2310 = vld [vmem:[%s2300 + $0x48] sm:$0xff]
          %v2311 = vld [vmem:[%s2300 + $0x50] sm:$0xff]
          %v2312 = vld [vmem:[%s2300 + $0x58] sm:$0xff]
          %v2313 = vld [vmem:[%s2300 + $0x60] sm:$0xff]
          %v2314 = vld [vmem:[%s2300 + $0x68] sm:$0xff]
          %v2315 = vld [vmem:[%s2300 + $0x70] sm:$0xff]
          %v2316 = vld [vmem:[%s2300 + $0x78] sm:$0xff]
          %2318 = vset.pattern.permute.xlu0 0
          %2319 = vperm.xlu0 %2318, %v2043
          %v2320 = vpop.permute.xlu0 %2319
          %2323 = vset.pattern.permute.xlu0 0
          %2324 = vperm.xlu0 %2323, %v2045
          %v2325 = vpop.permute.xlu0 %2324
          %2328 = vset.pattern.permute.xlu0 0
          %2329 = vperm.xlu0 %2328, %v2047
          %v2330 = vpop.permute.xlu0 %2329
          %2333 = vset.pattern.permute.xlu0 0
          %2334 = vperm.xlu0 %2333, %v2049
          %v2335 = vpop.permute.xlu0 %2334
          %2338 = vset.pattern.permute.xlu0 0
          %2339 = vperm.xlu0 %2338, %v2051
          %v2340 = vpop.permute.xlu0 %2339
          %2343 = vset.pattern.permute.xlu0 0
          %2344 = vperm.xlu0 %2343, %v2053
          %v2345 = vpop.permute.xlu0 %2344
          %2348 = vset.pattern.permute.xlu0 0
          %2349 = vperm.xlu0 %2348, %v2055
          %v2350 = vpop.permute.xlu0 %2349
          %2353 = vset.pattern.permute.xlu0 0
          %2354 = vperm.xlu0 %2353, %v2057
          %v2355 = vpop.permute.xlu0 %2354
          %2358 = vset.pattern.permute.xlu0 0
          %2359 = vperm.xlu0 %2358, %v2059
          %v2360 = vpop.permute.xlu0 %2359
          %2363 = vset.pattern.permute.xlu0 0
          %2364 = vperm.xlu0 %2363, %v2061
          %v2365 = vpop.permute.xlu0 %2364
          %2368 = vset.pattern.permute.xlu0 0
          %2369 = vperm.xlu0 %2368, %v2063
          %v2370 = vpop.permute.xlu0 %2369
          %2373 = vset.pattern.permute.xlu0 0
          %2374 = vperm.xlu0 %2373, %v2065
          %v2375 = vpop.permute.xlu0 %2374
          %2378 = vset.pattern.permute.xlu0 0
          %2379 = vperm.xlu0 %2378, %v2067
          %v2380 = vpop.permute.xlu0 %2379
          %2383 = vset.pattern.permute.xlu0 0
          %2384 = vperm.xlu0 %2383, %v2069
          %v2385 = vpop.permute.xlu0 %2384
          %2388 = vset.pattern.permute.xlu0 0
          %2389 = vperm.xlu0 %2388, %v2071
          %v2390 = vpop.permute.xlu0 %2389
          %2393 = vset.pattern.permute.xlu0 0
          %2394 = vperm.xlu0 %2393, %v2073
          %v2395 = vpop.permute.xlu0 %2394
          %v2397 = vmul.f32 %v2320, %v2301
          %v2398 = vmul.f32 %v2325, %v2302
          %v2399 = vmul.f32 %v2330, %v2303
          %v2400 = vmul.f32 %v2335, %v2304
          %v2401 = vmul.f32 %v2340, %v2305
          %v2402 = vmul.f32 %v2345, %v2306
          %v2403 = vmul.f32 %v2350, %v2307
          %v2404 = vmul.f32 %v2355, %v2308
          %v2405 = vmul.f32 %v2360, %v2309
          %v2406 = vmul.f32 %v2365, %v2310
          %v2407 = vmul.f32 %v2370, %v2311
          %v2408 = vmul.f32 %v2375, %v2312
          %v2409 = vmul.f32 %v2380, %v2313
          %v2410 = vmul.f32 %v2385, %v2314
          %v2411 = vmul.f32 %v2390, %v2315
          %v2412 = vmul.f32 %v2395, %v2316
          %v2413 = vpack.c.bf16 %v2173, %v2171
          %v2414 = vpack.c.bf16 %v2177, %v2175
          %v2415 = vpack.c.bf16 %v2181, %v2179
          %v2416 = vpack.c.bf16 %v2185, %v2183
          %v2417 = vpack.c.bf16 %v2189, %v2187
          %v2418 = vpack.c.bf16 %v2193, %v2191
          %v2419 = vpack.c.bf16 %v2197, %v2195
          %v2420 = vpack.c.bf16 %v2201, %v2199
          %2421 = vmatprep.subr.bf16.mxu0 0
          %2422 = vmatpush1.bf16.msra.mxu0 %v1647
          %2423 = vmatprep.subr.bf16.mxu0 0
          %2424 = vmatpush1.bf16.msra.mxu0 %v1646
          %2425 = vmatprep.subr.bf16.mxu0 0
          %2426 = vmatpush1.bf16.msra.mxu0 %v1645
          %2427 = vmatprep.subr.bf16.mxu0 0
          %2428 = vmatpush1.bf16.msra.mxu0 %v1644
          %2429 = vmatprep.subr.bf16.mxu0 0
          %2430 = vmatpush1.bf16.msra.mxu0 %v1643
          %2431 = vmatprep.subr.bf16.mxu0 0
          %2432 = vmatpush1.bf16.msra.mxu0 %v1642
          %2433 = vmatprep.subr.bf16.mxu0 0
          %2434 = vmatpush1.bf16.msra.mxu0 %v1641
          %2435 = vmatprep.subr.bf16.mxu0 0
          %2436 = vmatpush1.bf16.msra.mxu0 %v1640
          %2437 = vmatprep.subr.bf16.mxu0 0
          %2438 = vmatpush2.bf16.msra.mxu0 0
          %2439 = vmatprep.subr.bf16.mxu0 0
          %2440 = vmatpush2.bf16.msra.mxu0 0
          %2441 = vmatprep.subr.bf16.mxu0 0
          %2442 = vmatpush2.bf16.msra.mxu0 0
          %2443 = vmatprep.subr.bf16.mxu0 0
          %2444 = vmatpush2.bf16.msra.mxu0 0
          %2445 = vmatprep.subr.bf16.mxu0 0
          %2446 = vmatpush2.bf16.msra.mxu0 0
          %2447 = vmatprep.subr.bf16.mxu0 0
          %2448 = vmatpush2.bf16.msra.mxu0 0
          %2449 = vmatprep.subr.bf16.mxu0 0
          %2450 = vmatpush2.bf16.msra.mxu0 0
          %2451 = vmatprep.subr.bf16.mxu0 0
          %2452 = vmatpush2.bf16.msra.mxu0 0
          %2453 = vmatprep.mubr.bf16.mxu0 0
          %2454 = vmatmul.mubr.bf16.gmra.mxu0 %v2413
          %v2455 = vpop.f32.mrf.mxu0
          %v2456 = vadd.f32 0.0, %v2455
          %v2457 = vpop.f32.mrf.mxu0
          %v2458 = vpop.f32.mrf.mxu0
          %v2459 = vadd.f32 0.0, %v2458
          %v2460 = vpop.f32.mrf.mxu0
          %2461 = vmatprep.mubr.bf16.mxu0 0
          %2462 = vmatmul.mubr.bf16.gmra.mxu0 %v2414
          %v2463 = vpop.f32.mrf.mxu0
          %v2464 = vadd.f32 0.0, %v2463
          %v2465 = vpop.f32.mrf.mxu0
          %v2466 = vpop.f32.mrf.mxu0
          %v2467 = vadd.f32 0.0, %v2466
          %v2468 = vpop.f32.mrf.mxu0
          %2469 = vmatprep.mubr.bf16.mxu0 0
          %2470 = vmatmul.mubr.bf16.gmra.mxu0 %v2415
          %v2471 = vpop.f32.mrf.mxu0
          %v2472 = vadd.f32 0.0, %v2471
          %v2473 = vpop.f32.mrf.mxu0
          %v2474 = vpop.f32.mrf.mxu0
          %v2475 = vadd.f32 0.0, %v2474
          %v2476 = vpop.f32.mrf.mxu0
          %2477 = vmatprep.mubr.bf16.mxu0 0
          %2478 = vmatmul.mubr.bf16.gmra.mxu0 %v2416
          %v2479 = vpop.f32.mrf.mxu0
          %v2480 = vadd.f32 0.0, %v2479
          %v2481 = vpop.f32.mrf.mxu0
          %v2482 = vpop.f32.mrf.mxu0
          %v2483 = vadd.f32 0.0, %v2482
          %v2484 = vpop.f32.mrf.mxu0
          %2485 = vmatprep.mubr.bf16.mxu0 0
          %2486 = vmatmul.mubr.bf16.gmra.mxu0 %v2417
          %v2487 = vpop.f32.mrf.mxu0
          %v2488 = vadd.f32 0.0, %v2487
          %v2489 = vpop.f32.mrf.mxu0
          %v2490 = vpop.f32.mrf.mxu0
          %v2491 = vadd.f32 0.0, %v2490
          %v2492 = vpop.f32.mrf.mxu0
          %2493 = vmatprep.mubr.bf16.mxu0 0
          %2494 = vmatmul.mubr.bf16.gmra.mxu0 %v2418
          %v2495 = vpop.f32.mrf.mxu0
          %v2496 = vadd.f32 0.0, %v2495
          %v2497 = vpop.f32.mrf.mxu0
          %v2498 = vpop.f32.mrf.mxu0
          %v2499 = vadd.f32 0.0, %v2498
          %v2500 = vpop.f32.mrf.mxu0
          %2501 = vmatprep.mubr.bf16.mxu0 0
          %2502 = vmatmul.mubr.bf16.gmra.mxu0 %v2419
          %v2503 = vpop.f32.mrf.mxu0
          %v2504 = vadd.f32 0.0, %v2503
          %v2505 = vpop.f32.mrf.mxu0
          %v2506 = vpop.f32.mrf.mxu0
          %v2507 = vadd.f32 0.0, %v2506
          %v2508 = vpop.f32.mrf.mxu0
          %2509 = vmatprep.mubr.bf16.mxu0 0
          %2510 = vmatmul.mubr.bf16.gmra.mxu0 %v2420
          %v2511 = vpop.f32.mrf.mxu0
          %v2512 = vadd.f32 0.0, %v2511
          %v2513 = vpop.f32.mrf.mxu0
          %v2514 = vpop.f32.mrf.mxu0
          %v2515 = vadd.f32 0.0, %v2514
          %v2516 = vpop.f32.mrf.mxu0
          %2517 = vdwg.mxu0
          %v2518 = vadd.f32 %v2397, %v2456
          %v2519 = vadd.f32 %v2398, %v2459
          %v2520 = vadd.f32 %v2399, %v2464
          %v2521 = vadd.f32 %v2400, %v2467
          %v2522 = vadd.f32 %v2401, %v2472
          %v2523 = vadd.f32 %v2402, %v2475
          %v2524 = vadd.f32 %v2403, %v2480
          %v2525 = vadd.f32 %v2404, %v2483
          %v2526 = vadd.f32 %v2405, %v2488
          %v2527 = vadd.f32 %v2406, %v2491
          %v2528 = vadd.f32 %v2407, %v2496
          %v2529 = vadd.f32 %v2408, %v2499
          %v2530 = vadd.f32 %v2409, %v2504
          %v2531 = vadd.f32 %v2410, %v2507
          %v2532 = vadd.f32 %v2411, %v2512
          %v2533 = vadd.f32 %v2412, %v2515
          %2534 = vst [vmem:[%s2300] sm:$0xff] %v2518
          %2535 = vst [vmem:[%s2300 + $0x8] sm:$0xff] %v2519
          %2536 = vst [vmem:[%s2300 + $0x10] sm:$0xff] %v2520
          %2537 = vst [vmem:[%s2300 + $0x18] sm:$0xff] %v2521
          %2538 = vst [vmem:[%s2300 + $0x20] sm:$0xff] %v2522
          %2539 = vst [vmem:[%s2300 + $0x28] sm:$0xff] %v2523
          %2540 = vst [vmem:[%s2300 + $0x30] sm:$0xff] %v2524
          %2541 = vst [vmem:[%s2300 + $0x38] sm:$0xff] %v2525
          %2542 = vst [vmem:[%s2300 + $0x40] sm:$0xff] %v2526
          %2543 = vst [vmem:[%s2300 + $0x48] sm:$0xff] %v2527
          %2544 = vst [vmem:[%s2300 + $0x50] sm:$0xff] %v2528
          %2545 = vst [vmem:[%s2300 + $0x58] sm:$0xff] %v2529
          %2546 = vst [vmem:[%s2300 + $0x60] sm:$0xff] %v2530
          %2547 = vst [vmem:[%s2300 + $0x68] sm:$0xff] %v2531
          %2548 = vst [vmem:[%s2300 + $0x70] sm:$0xff] %v2532
          %2549 = vst [vmem:[%s2300 + $0x78] sm:$0xff] %v2533
          %2550 = vst.msk [vmem:[%s1961] sm:$0xff] %vm2283, %v2010
          %2551 = vst.msk [vmem:[%s1961 + $0x8] sm:$0xff] %vm2283, %v2011
          %2552 = vst.msk [vmem:[%s1961 + $0x10] sm:$0xff] %vm2283, %v2012
          %2553 = vst.msk [vmem:[%s1961 + $0x18] sm:$0xff] %vm2283, %v2013
          %2554 = vst.msk [vmem:[%s1961 + $0x20] sm:$0xff] %vm2283, %v2014
          %2555 = vst.msk [vmem:[%s1961 + $0x28] sm:$0xff] %vm2283, %v2015
          %2556 = vst.msk [vmem:[%s1961 + $0x30] sm:$0xff] %vm2283, %v2016
          %2557 = vst.msk [vmem:[%s1961 + $0x38] sm:$0xff] %vm2283, %v2017
          %2558 = vst.msk [vmem:[%s1961 + $0x40] sm:$0xff] %vm2283, %v2018
          %2559 = vst.msk [vmem:[%s1961 + $0x48] sm:$0xff] %vm2283, %v2019
          %2560 = vst.msk [vmem:[%s1961 + $0x50] sm:$0xff] %vm2283, %v2020
          %2561 = vst.msk [vmem:[%s1961 + $0x58] sm:$0xff] %vm2283, %v2021
          %2562 = vst.msk [vmem:[%s1961 + $0x60] sm:$0xff] %vm2283, %v2022
          %2563 = vst.msk [vmem:[%s1961 + $0x68] sm:$0xff] %vm2283, %v2023
          %2564 = vst.msk [vmem:[%s1961 + $0x70] sm:$0xff] %vm2283, %v2024
          %2565 = vst.msk [vmem:[%s1961 + $0x78] sm:$0xff] %vm2283, %v2025
        $region100: #{decoder_layer.3} parent=71 // loop_footer
          %s1160 = sadd.s32 1, %s1156
        $region101: #{decoder_layer.3} parent=71 // loop_footer_branch
          %1155 = sbr.rel target = $region97
        $region102: #{decoder_layer.3} parent=71 // loop_exit
          _
        // Predicated region
        $region103: #{decoder_layer.3} parent=71 // pred_check
          %p2566 = pneg %p625
        $region104: #{decoder_layer.3} parent=71 // pred_check_branch
          %2568 = sbr.rel (%p2566) target = $region106
        $region105: #{decoder_layer.3} parent=71 // pred_region
          loop: start=0, step=1, limit=2
          $region107: #{decoder_layer.3} parent=105 // loop_pre_header
            _
          $region108: #{decoder_layer.3} parent=105 // loop_header
            %s2570 = sphi 0, %s2574
            %p2571 = scmp.ge.s32.totalorder %s2570, 2
            %v2575 = vphi 0.0, %v2974
            %v2576 = vphi 0.0, %v2975
            %v2577 = vphi 0.0, %v2976
            %v2578 = vphi 0.0, %v2977
            %v2579 = vphi 0.0, %v2978
            %v2580 = vphi 0.0, %v2979
            %v2581 = vphi 0.0, %v2980
            %v2582 = vphi 0.0, %v2981
            %v2583 = vphi 0.0, %v2982
            %v2584 = vphi 0.0, %v2983
            %v2585 = vphi 0.0, %v2984
            %v2586 = vphi 0.0, %v2985
            %v2587 = vphi 0.0, %v2986
            %v2588 = vphi 0.0, %v2987
            %v2589 = vphi 0.0, %v2988
            %v2590 = vphi 0.0, %v2989
            %v2591 = vphi 0.0, %v2990
            %v2592 = vphi 0.0, %v2991
            %v2593 = vphi 0.0, %v2992
            %v2594 = vphi 0.0, %v2993
            %v2595 = vphi 0.0, %v2994
            %v2596 = vphi 0.0, %v2995
            %v2597 = vphi 0.0, %v2996
            %v2598 = vphi 0.0, %v2997
            %v2599 = vphi 0.0, %v2998
            %v2600 = vphi 0.0, %v2999
            %v2601 = vphi 0.0, %v3000
            %v2602 = vphi 0.0, %v3001
            %v2603 = vphi 0.0, %v3002
            %v2604 = vphi 0.0, %v3003
            %v2605 = vphi 0.0, %v3004
            %v2606 = vphi 0.0, %v3005
          $region109: #{decoder_layer.3} parent=105 // loop_header_branch
            %2573 = sbr.rel (%p2571) target = $region113
          $region110: #{decoder_layer.3} parent=105 // loop_body
            %s2607 = smul.u32 %s2570, 128
            %s2608 = scalar_lea.vmem [#allocation3], %s2607
            %v2609 = vld [vmem:[%s2608] sm:$0xff]
            %v2610 = vld [vmem:[%s2608 + $0x8] sm:$0xff]
            %v2611 = vld [vmem:[%s2608 + $0x10] sm:$0xff]
            %v2612 = vld [vmem:[%s2608 + $0x18] sm:$0xff]
            %v2613 = vld [vmem:[%s2608 + $0x20] sm:$0xff]
            %v2614 = vld [vmem:[%s2608 + $0x28] sm:$0xff]
            %v2615 = vld [vmem:[%s2608 + $0x30] sm:$0xff]
            %v2616 = vld [vmem:[%s2608 + $0x38] sm:$0xff]
            %v2617 = vld [vmem:[%s2608 + $0x40] sm:$0xff]
            %v2618 = vld [vmem:[%s2608 + $0x48] sm:$0xff]
            %v2619 = vld [vmem:[%s2608 + $0x50] sm:$0xff]
            %v2620 = vld [vmem:[%s2608 + $0x58] sm:$0xff]
            %v2621 = vld [vmem:[%s2608 + $0x60] sm:$0xff]
            %v2622 = vld [vmem:[%s2608 + $0x68] sm:$0xff]
            %v2623 = vld [vmem:[%s2608 + $0x70] sm:$0xff]
            %v2624 = vld [vmem:[%s2608 + $0x78] sm:$0xff]
            %s2625 = scalar_lea.vmem [#allocation5], %s2607
            %v2626 = vld [vmem:[%s2625] sm:$0xff]
            %v2627 = vld [vmem:[%s2625 + $0x8] sm:$0xff]
            %v2628 = vld [vmem:[%s2625 + $0x10] sm:$0xff]
            %v2629 = vld [vmem:[%s2625 + $0x18] sm:$0xff]
            %v2630 = vld [vmem:[%s2625 + $0x20] sm:$0xff]
            %v2631 = vld [vmem:[%s2625 + $0x28] sm:$0xff]
            %v2632 = vld [vmem:[%s2625 + $0x30] sm:$0xff]
            %v2633 = vld [vmem:[%s2625 + $0x38] sm:$0xff]
            %v2634 = vld [vmem:[%s2625 + $0x40] sm:$0xff]
            %v2635 = vld [vmem:[%s2625 + $0x48] sm:$0xff]
            %v2636 = vld [vmem:[%s2625 + $0x50] sm:$0xff]
            %v2637 = vld [vmem:[%s2625 + $0x58] sm:$0xff]
            %v2638 = vld [vmem:[%s2625 + $0x60] sm:$0xff]
            %v2639 = vld [vmem:[%s2625 + $0x68] sm:$0xff]
            %v2640 = vld [vmem:[%s2625 + $0x70] sm:$0xff]
            %v2641 = vld [vmem:[%s2625 + $0x78] sm:$0xff]
            %v2642 = vrcp.pop %v2626
            %v2643 = vrcp.pop %v2627
            %v2644 = vrcp.pop %v2628
            %v2645 = vrcp.pop %v2629
            %v2646 = vrcp.pop %v2630
            %v2647 = vrcp.pop %v2631
            %v2648 = vrcp.pop %v2632
            %v2649 = vrcp.pop %v2633
            %v2650 = vrcp.pop %v2634
            %v2651 = vrcp.pop %v2635
            %v2652 = vrcp.pop %v2636
            %v2653 = vrcp.pop %v2637
            %v2654 = vrcp.pop %v2638
            %v2655 = vrcp.pop %v2639
            %v2656 = vrcp.pop %v2640
            %v2657 = vrcp.pop %v2641
            %2659 = vset.pattern.permute.xlu0 0
            %2660 = vperm.xlu0 %2659, %v2642
            %v2661 = vpop.permute.xlu0 %2660
            %2664 = vset.pattern.permute.xlu0 0
            %2665 = vperm.xlu0 %2664, %v2643
            %v2666 = vpop.permute.xlu0 %2665
            %2669 = vset.pattern.permute.xlu0 0
            %2670 = vperm.xlu0 %2669, %v2644
            %v2671 = vpop.permute.xlu0 %2670
            %2674 = vset.pattern.permute.xlu0 0
            %2675 = vperm.xlu0 %2674, %v2645
            %v2676 = vpop.permute.xlu0 %2675
            %2679 = vset.pattern.permute.xlu0 0
            %2680 = vperm.xlu0 %2679, %v2646
            %v2681 = vpop.permute.xlu0 %2680
            %2684 = vset.pattern.permute.xlu0 0
            %2685 = vperm.xlu0 %2684, %v2647
            %v2686 = vpop.permute.xlu0 %2685
            %2689 = vset.pattern.permute.xlu0 0
            %2690 = vperm.xlu0 %2689, %v2648
            %v2691 = vpop.permute.xlu0 %2690
            %2694 = vset.pattern.permute.xlu0 0
            %2695 = vperm.xlu0 %2694, %v2649
            %v2696 = vpop.permute.xlu0 %2695
            %2699 = vset.pattern.permute.xlu0 0
            %2700 = vperm.xlu0 %2699, %v2650
            %v2701 = vpop.permute.xlu0 %2700
            %2704 = vset.pattern.permute.xlu0 0
            %2705 = vperm.xlu0 %2704, %v2651
            %v2706 = vpop.permute.xlu0 %2705
            %2709 = vset.pattern.permute.xlu0 0
            %2710 = vperm.xlu0 %2709, %v2652
            %v2711 = vpop.permute.xlu0 %2710
            %2714 = vset.pattern.permute.xlu0 0
            %2715 = vperm.xlu0 %2714, %v2653
            %v2716 = vpop.permute.xlu0 %2715
            %2719 = vset.pattern.permute.xlu0 0
            %2720 = vperm.xlu0 %2719, %v2654
            %v2721 = vpop.permute.xlu0 %2720
            %2724 = vset.pattern.permute.xlu0 0
            %2725 = vperm.xlu0 %2724, %v2655
            %v2726 = vpop.permute.xlu0 %2725
            %2729 = vset.pattern.permute.xlu0 0
            %2730 = vperm.xlu0 %2729, %v2656
            %v2731 = vpop.permute.xlu0 %2730
            %2734 = vset.pattern.permute.xlu0 0
            %2735 = vperm.xlu0 %2734, %v2657
            %v2736 = vpop.permute.xlu0 %2735
            %v2738 = vmul.f32 %v2609, %v2661
            %v2739 = vmul.f32 %v2610, %v2666
            %v2740 = vmul.f32 %v2611, %v2671
            %v2741 = vmul.f32 %v2612, %v2676
            %v2742 = vmul.f32 %v2613, %v2681
            %v2743 = vmul.f32 %v2614, %v2686
            %v2744 = vmul.f32 %v2615, %v2691
            %v2745 = vmul.f32 %v2616, %v2696
            %v2746 = vmul.f32 %v2617, %v2701
            %v2747 = vmul.f32 %v2618, %v2706
            %v2748 = vmul.f32 %v2619, %v2711
            %v2749 = vmul.f32 %v2620, %v2716
            %v2750 = vmul.f32 %v2621, %v2721
            %v2751 = vmul.f32 %v2622, %v2726
            %v2752 = vmul.f32 %v2623, %v2731
            %v2753 = vmul.f32 %v2624, %v2736
            %v2754 = vpack.c.bf16 %v2739, %v2738
            %v2755 = vpack.c.bf16 %v2741, %v2740
            %v2756 = vpack.c.bf16 %v2743, %v2742
            %v2757 = vpack.c.bf16 %v2745, %v2744
            %v2758 = vpack.c.bf16 %v2747, %v2746
            %v2759 = vpack.c.bf16 %v2749, %v2748
            %v2760 = vpack.c.bf16 %v2751, %v2750
            %v2761 = vpack.c.bf16 %v2753, %v2752
            %s2762 = smul.u32 %s2570, 32
            %s2763 = smul.addr %s2762, 4
            %s2764 = scalar_lea.vmem [#allocation10], %s2763
            %v2765 = vld [vmem:[%s2764] sm:$0xff]
            %v2766 = vld [vmem:[%s2764 + $0x8] sm:$0xff]
            %v2767 = vld [vmem:[%s2764 + $0x10] sm:$0xff]
            %v2768 = vld [vmem:[%s2764 + $0x18] sm:$0xff]
            %v2769 = vld [vmem:[%s2764 + $0x20] sm:$0xff]
            %v2770 = vld [vmem:[%s2764 + $0x28] sm:$0xff]
            %v2771 = vld [vmem:[%s2764 + $0x30] sm:$0xff]
            %v2772 = vld [vmem:[%s2764 + $0x38] sm:$0xff]
            %v2773 = vld [vmem:[%s2764 + $0x40] sm:$0xff]
            %v2774 = vld [vmem:[%s2764 + $0x48] sm:$0xff]
            %v2775 = vld [vmem:[%s2764 + $0x50] sm:$0xff]
            %v2776 = vld [vmem:[%s2764 + $0x58] sm:$0xff]
            %v2777 = vld [vmem:[%s2764 + $0x60] sm:$0xff]
            %v2778 = vld [vmem:[%s2764 + $0x68] sm:$0xff]
            %v2779 = vld [vmem:[%s2764 + $0x70] sm:$0xff]
            %v2780 = vld [vmem:[%s2764 + $0x78] sm:$0xff]
            %v2797 = vunpack.c.l.b16 %v2765
            %v2798 = vunpack.c.h.b16 %v2765
            %v2799 = vunpack.c.l.b16 %v2766
            %v2800 = vunpack.c.h.b16 %v2766
            %v2801 = vunpack.c.l.b16 %v2767
            %v2802 = vunpack.c.h.b16 %v2767
            %v2803 = vunpack.c.l.b16 %v2768
            %v2804 = vunpack.c.h.b16 %v2768
            %v2805 = vunpack.c.l.b16 %v2769
            %v2806 = vunpack.c.h.b16 %v2769
            %v2807 = vunpack.c.l.b16 %v2770
            %v2808 = vunpack.c.h.b16 %v2770
            %v2809 = vunpack.c.l.b16 %v2771
            %v2810 = vunpack.c.h.b16 %v2771
            %v2811 = vunpack.c.l.b16 %v2772
            %v2812 = vunpack.c.h.b16 %v2772
            %v2813 = vunpack.c.l.b16 %v2773
            %v2814 = vunpack.c.h.b16 %v2773
            %v2815 = vunpack.c.l.b16 %v2774
            %v2816 = vunpack.c.h.b16 %v2774
            %v2817 = vunpack.c.l.b16 %v2775
            %v2818 = vunpack.c.h.b16 %v2775
            %v2819 = vunpack.c.l.b16 %v2776
            %v2820 = vunpack.c.h.b16 %v2776
            %v2821 = vunpack.c.l.b16 %v2777
            %v2822 = vunpack.c.h.b16 %v2777
            %v2823 = vunpack.c.l.b16 %v2778
            %v2824 = vunpack.c.h.b16 %v2778
            %v2825 = vunpack.c.l.b16 %v2779
            %v2826 = vunpack.c.h.b16 %v2779
            %v2827 = vunpack.c.l.b16 %v2780
            %v2828 = vunpack.c.h.b16 %v2780
            %v2829 = vpack.c.b16 %v2799, %v2797
            %v2830 = vpack.c.b16 %v2800, %v2798
            %v2831 = vpack.c.b16 %v2803, %v2801
            %v2832 = vpack.c.b16 %v2804, %v2802
            %v2833 = vpack.c.b16 %v2807, %v2805
            %v2834 = vpack.c.b16 %v2808, %v2806
            %v2835 = vpack.c.b16 %v2811, %v2809
            %v2836 = vpack.c.b16 %v2812, %v2810
            %v2837 = vpack.c.b16 %v2815, %v2813
            %v2838 = vpack.c.b16 %v2816, %v2814
            %v2839 = vpack.c.b16 %v2819, %v2817
            %v2840 = vpack.c.b16 %v2820, %v2818
            %v2841 = vpack.c.b16 %v2823, %v2821
            %v2842 = vpack.c.b16 %v2824, %v2822
            %v2843 = vpack.c.b16 %v2827, %v2825
            %v2844 = vpack.c.b16 %v2828, %v2826
            %2861 = vmatprep.subr.bf16.mxu0 %v2844
            %2862 = vmatpush1.bf16.msra.mxu0 %v2843
            %2863 = vmatprep.subr.bf16.mxu0 %v2842
            %2864 = vmatpush1.bf16.msra.mxu0 %v2841
            %2865 = vmatprep.subr.bf16.mxu0 %v2840
            %2866 = vmatpush1.bf16.msra.mxu0 %v2839
            %2867 = vmatprep.subr.bf16.mxu0 %v2838
            %2868 = vmatpush1.bf16.msra.mxu0 %v2837
            %2869 = vmatprep.subr.bf16.mxu0 %v2836
            %2870 = vmatpush1.bf16.msra.mxu0 %v2835
            %2871 = vmatprep.subr.bf16.mxu0 %v2834
            %2872 = vmatpush1.bf16.msra.mxu0 %v2833
            %2873 = vmatprep.subr.bf16.mxu0 %v2832
            %2874 = vmatpush1.bf16.msra.mxu0 %v2831
            %2875 = vmatprep.subr.bf16.mxu0 %v2830
            %2876 = vmatpush1.bf16.msra.mxu0 %v2829
            %2877 = vmatprep.subr.bf16.mxu0 0
            %2878 = vmatpush2.bf16.msra.mxu0 0
            %2879 = vmatprep.subr.bf16.mxu0 0
            %2880 = vmatpush2.bf16.msra.mxu0 0
            %2881 = vmatprep.subr.bf16.mxu0 0
            %2882 = vmatpush2.bf16.msra.mxu0 0
            %2883 = vmatprep.subr.bf16.mxu0 0
            %2884 = vmatpush2.bf16.msra.mxu0 0
            %2885 = vmatprep.subr.bf16.mxu0 0
            %2886 = vmatpush2.bf16.msra.mxu0 0
            %2887 = vmatprep.subr.bf16.mxu0 0
            %2888 = vmatpush2.bf16.msra.mxu0 0
            %2889 = vmatprep.subr.bf16.mxu0 0
            %2890 = vmatpush2.bf16.msra.mxu0 0
            %2891 = vmatprep.subr.bf16.mxu0 0
            %2892 = vmatpush2.bf16.msra.mxu0 0
            %2893 = vmatprep.mubr.bf16.mxu0 0
            %2894 = vmatmul.mubr.bf16.gmra.mxu0 %v2754
            %v2895 = vpop.f32.mrf.mxu0
            %v2896 = vadd.f32 0.0, %v2895
            %v2897 = vpop.f32.mrf.mxu0
            %v2898 = vadd.f32 0.0, %v2897
            %v2899 = vpop.f32.mrf.mxu0
            %v2900 = vadd.f32 0.0, %v2899
            %v2901 = vpop.f32.mrf.mxu0
            %v2902 = vadd.f32 0.0, %v2901
            %2903 = vmatprep.mubr.bf16.mxu0 0
            %2904 = vmatmul.mubr.bf16.gmra.mxu0 %v2755
            %v2905 = vpop.f32.mrf.mxu0
            %v2906 = vadd.f32 0.0, %v2905
            %v2907 = vpop.f32.mrf.mxu0
            %v2908 = vadd.f32 0.0, %v2907
            %v2909 = vpop.f32.mrf.mxu0
            %v2910 = vadd.f32 0.0, %v2909
            %v2911 = vpop.f32.mrf.mxu0
            %v2912 = vadd.f32 0.0, %v2911
            %2913 = vmatprep.mubr.bf16.mxu0 0
            %2914 = vmatmul.mubr.bf16.gmra.mxu0 %v2756
            %v2915 = vpop.f32.mrf.mxu0
            %v2916 = vadd.f32 0.0, %v2915
            %v2917 = vpop.f32.mrf.mxu0
            %v2918 = vadd.f32 0.0, %v2917
            %v2919 = vpop.f32.mrf.mxu0
            %v2920 = vadd.f32 0.0, %v2919
            %v2921 = vpop.f32.mrf.mxu0
            %v2922 = vadd.f32 0.0, %v2921
            %2923 = vmatprep.mubr.bf16.mxu0 0
            %2924 = vmatmul.mubr.bf16.gmra.mxu0 %v2757
            %v2925 = vpop.f32.mrf.mxu0
            %v2926 = vadd.f32 0.0, %v2925
            %v2927 = vpop.f32.mrf.mxu0
            %v2928 = vadd.f32 0.0, %v2927
            %v2929 = vpop.f32.mrf.mxu0
            %v2930 = vadd.f32 0.0, %v2929
            %v2931 = vpop.f32.mrf.mxu0
            %v2932 = vadd.f32 0.0, %v2931
            %2933 = vmatprep.mubr.bf16.mxu0 0
            %2934 = vmatmul.mubr.bf16.gmra.mxu0 %v2758
            %v2935 = vpop.f32.mrf.mxu0
            %v2936 = vadd.f32 0.0, %v2935
            %v2937 = vpop.f32.mrf.mxu0
            %v2938 = vadd.f32 0.0, %v2937
            %v2939 = vpop.f32.mrf.mxu0
            %v2940 = vadd.f32 0.0, %v2939
            %v2941 = vpop.f32.mrf.mxu0
            %v2942 = vadd.f32 0.0, %v2941
            %2943 = vmatprep.mubr.bf16.mxu0 0
            %2944 = vmatmul.mubr.bf16.gmra.mxu0 %v2759
            %v2945 = vpop.f32.mrf.mxu0
            %v2946 = vadd.f32 0.0, %v2945
            %v2947 = vpop.f32.mrf.mxu0
            %v2948 = vadd.f32 0.0, %v2947
            %v2949 = vpop.f32.mrf.mxu0
            %v2950 = vadd.f32 0.0, %v2949
            %v2951 = vpop.f32.mrf.mxu0
            %v2952 = vadd.f32 0.0, %v2951
            %2953 = vmatprep.mubr.bf16.mxu0 0
            %2954 = vmatmul.mubr.bf16.gmra.mxu0 %v2760
            %v2955 = vpop.f32.mrf.mxu0
            %v2956 = vadd.f32 0.0, %v2955
            %v2957 = vpop.f32.mrf.mxu0
            %v2958 = vadd.f32 0.0, %v2957
            %v2959 = vpop.f32.mrf.mxu0
            %v2960 = vadd.f32 0.0, %v2959
            %v2961 = vpop.f32.mrf.mxu0
            %v2962 = vadd.f32 0.0, %v2961
            %2963 = vmatprep.mubr.bf16.mxu0 0
            %2964 = vmatmul.mubr.bf16.gmra.mxu0 %v2761
            %v2965 = vpop.f32.mrf.mxu0
            %v2966 = vadd.f32 0.0, %v2965
            %v2967 = vpop.f32.mrf.mxu0
            %v2968 = vadd.f32 0.0, %v2967
            %v2969 = vpop.f32.mrf.mxu0
            %v2970 = vadd.f32 0.0, %v2969
            %v2971 = vpop.f32.mrf.mxu0
            %v2972 = vadd.f32 0.0, %v2971
            %2973 = vdwg.mxu0
            %v2974 = vadd.f32 %v2575, %v2896
            %v2975 = vadd.f32 %v2576, %v2898
            %v2976 = vadd.f32 %v2577, %v2900
            %v2977 = vadd.f32 %v2578, %v2902
            %v2978 = vadd.f32 %v2579, %v2906
            %v2979 = vadd.f32 %v2580, %v2908
            %v2980 = vadd.f32 %v2581, %v2910
            %v2981 = vadd.f32 %v2582, %v2912
            %v2982 = vadd.f32 %v2583, %v2916
            %v2983 = vadd.f32 %v2584, %v2918
            %v2984 = vadd.f32 %v2585, %v2920
            %v2985 = vadd.f32 %v2586, %v2922
            %v2986 = vadd.f32 %v2587, %v2926
            %v2987 = vadd.f32 %v2588, %v2928
            %v2988 = vadd.f32 %v2589, %v2930
            %v2989 = vadd.f32 %v2590, %v2932
            %v2990 = vadd.f32 %v2591, %v2936
            %v2991 = vadd.f32 %v2592, %v2938
            %v2992 = vadd.f32 %v2593, %v2940
            %v2993 = vadd.f32 %v2594, %v2942
            %v2994 = vadd.f32 %v2595, %v2946
            %v2995 = vadd.f32 %v2596, %v2948
            %v2996 = vadd.f32 %v2597, %v2950
            %v2997 = vadd.f32 %v2598, %v2952
            %v2998 = vadd.f32 %v2599, %v2956
            %v2999 = vadd.f32 %v2600, %v2958
            %v3000 = vadd.f32 %v2601, %v2960
            %v3001 = vadd.f32 %v2602, %v2962
            %v3002 = vadd.f32 %v2603, %v2966
            %v3003 = vadd.f32 %v2604, %v2968
            %v3004 = vadd.f32 %v2605, %v2970
            %v3005 = vadd.f32 %v2606, %v2972
          $region111: #{decoder_layer.3} parent=105 // loop_footer
            %s2574 = sadd.s32 1, %s2570
          $region112: #{decoder_layer.3} parent=105 // loop_footer_branch
            %2569 = sbr.rel target = $region108
          $region113: #{decoder_layer.3} parent=105 // loop_exit
            _
          %v3006 = vld [vmem:[%s10] sm:$0x3]
          %v3008 = vlaneseq
          %v3009 = vshrl.u32 %v3008, 7
          %v3010 = vsub.s32 0, %v3009
          %v3011 = vrot.slane %v3006, %v3010
          %v3012 = vlaneseq
          %v3013 = vshrl.u32 %v3012, 7
          %v3014 = vsub.s32 1, %v3013
          %v3015 = vrot.slane %v3006, %v3014
          %v3018 = vadd.f32 %v2575, %v3011
          %v3019 = vadd.f32 %v2576, %v3015
          %v3020 = vadd.f32 %v2577, %v3011
          %v3021 = vadd.f32 %v2578, %v3015
          %v3022 = vadd.f32 %v2579, %v3011
          %v3023 = vadd.f32 %v2580, %v3015
          %v3024 = vadd.f32 %v2581, %v3011
          %v3025 = vadd.f32 %v2582, %v3015
          %v3026 = vadd.f32 %v2583, %v3011
          %v3027 = vadd.f32 %v2584, %v3015
          %v3028 = vadd.f32 %v2585, %v3011
          %v3029 = vadd.f32 %v2586, %v3015
          %v3030 = vadd.f32 %v2587, %v3011
          %v3031 = vadd.f32 %v2588, %v3015
          %v3032 = vadd.f32 %v2589, %v3011
          %v3033 = vadd.f32 %v2590, %v3015
          %v3034 = vadd.f32 %v2591, %v3011
          %v3035 = vadd.f32 %v2592, %v3015
          %v3036 = vadd.f32 %v2593, %v3011
          %v3037 = vadd.f32 %v2594, %v3015
          %v3038 = vadd.f32 %v2595, %v3011
          %v3039 = vadd.f32 %v2596, %v3015
          %v3040 = vadd.f32 %v2597, %v3011
          %v3041 = vadd.f32 %v2598, %v3015
          %v3042 = vadd.f32 %v2599, %v3011
          %v3043 = vadd.f32 %v2600, %v3015
          %v3044 = vadd.f32 %v2601, %v3011
          %v3045 = vadd.f32 %v2602, %v3015
          %v3046 = vadd.f32 %v2603, %v3011
          %v3047 = vadd.f32 %v2604, %v3015
          %v3048 = vadd.f32 %v2605, %v3011
          %v3049 = vadd.f32 %v2606, %v3015
          %v3050 = vld [vmem:[%s585] sm:$0xff]
          %v3051 = vld [vmem:[%s585 + $0x8] sm:$0xff]
          %v3052 = vld [vmem:[%s585 + $0x10] sm:$0xff]
          %v3053 = vld [vmem:[%s585 + $0x18] sm:$0xff]
          %v3054 = vld [vmem:[%s585 + $0x20] sm:$0xff]
          %v3055 = vld [vmem:[%s585 + $0x28] sm:$0xff]
          %v3056 = vld [vmem:[%s585 + $0x30] sm:$0xff]
          %v3057 = vld [vmem:[%s585 + $0x38] sm:$0xff]
          %v3058 = vld [vmem:[%s585 + $0x40] sm:$0xff]
          %v3059 = vld [vmem:[%s585 + $0x48] sm:$0xff]
          %v3060 = vld [vmem:[%s585 + $0x50] sm:$0xff]
          %v3061 = vld [vmem:[%s585 + $0x58] sm:$0xff]
          %v3062 = vld [vmem:[%s585 + $0x60] sm:$0xff]
          %v3063 = vld [vmem:[%s585 + $0x68] sm:$0xff]
          %v3064 = vld [vmem:[%s585 + $0x70] sm:$0xff]
          %v3065 = vld [vmem:[%s585 + $0x78] sm:$0xff]
          %v3066 = vld [vmem:[%s585 + $0x80] sm:$0xff]
          %v3067 = vld [vmem:[%s585 + $0x88] sm:$0xff]
          %v3068 = vld [vmem:[%s585 + $0x90] sm:$0xff]
          %v3069 = vld [vmem:[%s585 + $0x98] sm:$0xff]
          %v3070 = vld [vmem:[%s585 + $0xa0] sm:$0xff]
          %v3071 = vld [vmem:[%s585 + $0xa8] sm:$0xff]
          %v3072 = vld [vmem:[%s585 + $0xb0] sm:$0xff]
          %v3073 = vld [vmem:[%s585 + $0xb8] sm:$0xff]
          %v3074 = vld [vmem:[%s585 + $0xc0] sm:$0xff]
          %v3075 = vld [vmem:[%s585 + $0xc8] sm:$0xff]
          %v3076 = vld [vmem:[%s585 + $0xd0] sm:$0xff]
          %v3077 = vld [vmem:[%s585 + $0xd8] sm:$0xff]
          %v3078 = vld [vmem:[%s585 + $0xe0] sm:$0xff]
          %v3079 = vld [vmem:[%s585 + $0xe8] sm:$0xff]
          %v3080 = vld [vmem:[%s585 + $0xf0] sm:$0xff]
          %v3081 = vld [vmem:[%s585 + $0xf8] sm:$0xff]
          %v3082 = vld [vmem:[%s11] sm:$0x3]
          %v3083 = vld [vmem:[%s12] sm:$0x3]
          %v3084 = vadd.f32 %v3050, %v3018
          %v3085 = vadd.f32 %v3051, %v3019
          %v3086 = vadd.f32 %v3052, %v3020
          %v3087 = vadd.f32 %v3053, %v3021
          %v3088 = vadd.f32 %v3054, %v3022
          %v3089 = vadd.f32 %v3055, %v3023
          %v3090 = vadd.f32 %v3056, %v3024
          %v3091 = vadd.f32 %v3057, %v3025
          %v3092 = vadd.f32 %v3058, %v3026
          %v3093 = vadd.f32 %v3059, %v3027
          %v3094 = vadd.f32 %v3060, %v3028
          %v3095 = vadd.f32 %v3061, %v3029
          %v3096 = vadd.f32 %v3062, %v3030
          %v3097 = vadd.f32 %v3063, %v3031
          %v3098 = vadd.f32 %v3064, %v3032
          %v3099 = vadd.f32 %v3065, %v3033
          %v3100 = vadd.f32 %v3066, %v3034
          %v3101 = vadd.f32 %v3067, %v3035
          %v3102 = vadd.f32 %v3068, %v3036
          %v3103 = vadd.f32 %v3069, %v3037
          %v3104 = vadd.f32 %v3070, %v3038
          %v3105 = vadd.f32 %v3071, %v3039
          %v3106 = vadd.f32 %v3072, %v3040
          %v3107 = vadd.f32 %v3073, %v3041
          %v3108 = vadd.f32 %v3074, %v3042
          %v3109 = vadd.f32 %v3075, %v3043
          %v3110 = vadd.f32 %v3076, %v3044
          %v3111 = vadd.f32 %v3077, %v3045
          %v3112 = vadd.f32 %v3078, %v3046
          %v3113 = vadd.f32 %v3079, %v3047
          %v3114 = vadd.f32 %v3080, %v3048
          %v3115 = vadd.f32 %v3081, %v3049
          %v3116 = vadd.f32 %v3084, %v3085
          %3117 = vadd.xlane.f32.xlu0 %v3116
          %v3118 = vpop.xlane.xlu0 %3117
          %v3119 = vadd.f32 %v3086, %v3087
          %3120 = vadd.xlane.f32.xlu0 %v3119
          %v3121 = vpop.xlane.xlu0 %3120
          %v3122 = vadd.f32 %v3088, %v3089
          %3123 = vadd.xlane.f32.xlu0 %v3122
          %v3124 = vpop.xlane.xlu0 %3123
          %v3125 = vadd.f32 %v3090, %v3091
          %3126 = vadd.xlane.f32.xlu0 %v3125
          %v3127 = vpop.xlane.xlu0 %3126
          %v3128 = vadd.f32 %v3092, %v3093
          %3129 = vadd.xlane.f32.xlu0 %v3128
          %v3130 = vpop.xlane.xlu0 %3129
          %v3131 = vadd.f32 %v3094, %v3095
          %3132 = vadd.xlane.f32.xlu0 %v3131
          %v3133 = vpop.xlane.xlu0 %3132
          %v3134 = vadd.f32 %v3096, %v3097
          %3135 = vadd.xlane.f32.xlu0 %v3134
          %v3136 = vpop.xlane.xlu0 %3135
          %v3137 = vadd.f32 %v3098, %v3099
          %3138 = vadd.xlane.f32.xlu0 %v3137
          %v3139 = vpop.xlane.xlu0 %3138
          %v3140 = vadd.f32 %v3100, %v3101
          %3141 = vadd.xlane.f32.xlu0 %v3140
          %v3142 = vpop.xlane.xlu0 %3141
          %v3143 = vadd.f32 %v3102, %v3103
          %3144 = vadd.xlane.f32.xlu0 %v3143
          %v3145 = vpop.xlane.xlu0 %3144
          %v3146 = vadd.f32 %v3104, %v3105
          %3147 = vadd.xlane.f32.xlu0 %v3146
          %v3148 = vpop.xlane.xlu0 %3147
          %v3149 = vadd.f32 %v3106, %v3107
          %3150 = vadd.xlane.f32.xlu0 %v3149
          %v3151 = vpop.xlane.xlu0 %3150
          %v3152 = vadd.f32 %v3108, %v3109
          %3153 = vadd.xlane.f32.xlu0 %v3152
          %v3154 = vpop.xlane.xlu0 %3153
          %v3155 = vadd.f32 %v3110, %v3111
          %3156 = vadd.xlane.f32.xlu0 %v3155
          %v3157 = vpop.xlane.xlu0 %3156
          %v3158 = vadd.f32 %v3112, %v3113
          %3159 = vadd.xlane.f32.xlu0 %v3158
          %v3160 = vpop.xlane.xlu0 %3159
          %v3161 = vadd.f32 %v3114, %v3115
          %3162 = vadd.xlane.f32.xlu0 %v3161
          %v3163 = vpop.xlane.xlu0 %3162
          %v3164 = vrcp.pop 256.0
          %v3165 = vmul.f32 %v3118, %v3164
          %v3166 = vmul.f32 %v3121, %v3164
          %v3167 = vmul.f32 %v3124, %v3164
          %v3168 = vmul.f32 %v3127, %v3164
          %v3169 = vmul.f32 %v3130, %v3164
          %v3170 = vmul.f32 %v3133, %v3164
          %v3171 = vmul.f32 %v3136, %v3164
          %v3172 = vmul.f32 %v3139, %v3164
          %v3173 = vmul.f32 %v3142, %v3164
          %v3174 = vmul.f32 %v3145, %v3164
          %v3175 = vmul.f32 %v3148, %v3164
          %v3176 = vmul.f32 %v3151, %v3164
          %v3177 = vmul.f32 %v3154, %v3164
          %v3178 = vmul.f32 %v3157, %v3164
          %v3179 = vmul.f32 %v3160, %v3164
          %v3180 = vmul.f32 %v3163, %v3164
          %v3181 = vsub.f32 %v3084, %v3165
          %v3182 = vsub.f32 %v3085, %v3165
          %v3183 = vsub.f32 %v3086, %v3166
          %v3184 = vsub.f32 %v3087, %v3166
          %v3185 = vsub.f32 %v3088, %v3167
          %v3186 = vsub.f32 %v3089, %v3167
          %v3187 = vsub.f32 %v3090, %v3168
          %v3188 = vsub.f32 %v3091, %v3168
          %v3189 = vsub.f32 %v3092, %v3169
          %v3190 = vsub.f32 %v3093, %v3169
          %v3191 = vsub.f32 %v3094, %v3170
          %v3192 = vsub.f32 %v3095, %v3170
          %v3193 = vsub.f32 %v3096, %v3171
          %v3194 = vsub.f32 %v3097, %v3171
          %v3195 = vsub.f32 %v3098, %v3172
          %v3196 = vsub.f32 %v3099, %v3172
          %v3197 = vsub.f32 %v3100, %v3173
          %v3198 = vsub.f32 %v3101, %v3173
          %v3199 = vsub.f32 %v3102, %v3174
          %v3200 = vsub.f32 %v3103, %v3174
          %v3201 = vsub.f32 %v3104, %v3175
          %v3202 = vsub.f32 %v3105, %v3175
          %v3203 = vsub.f32 %v3106, %v3176
          %v3204 = vsub.f32 %v3107, %v3176
          %v3205 = vsub.f32 %v3108, %v3177
          %v3206 = vsub.f32 %v3109, %v3177
          %v3207 = vsub.f32 %v3110, %v3178
          %v3208 = vsub.f32 %v3111, %v3178
          %v3209 = vsub.f32 %v3112, %v3179
          %v3210 = vsub.f32 %v3113, %v3179
          %v3211 = vsub.f32 %v3114, %v3180
          %v3212 = vsub.f32 %v3115, %v3180
          %v3213 = vmul.f32 %v3181, %v3181
          %v3214 = vmul.f32 %v3182, %v3182
          %v3215 = vmul.f32 %v3183, %v3183
          %v3216 = vmul.f32 %v3184, %v3184
          %v3217 = vmul.f32 %v3185, %v3185
          %v3218 = vmul.f32 %v3186, %v3186
          %v3219 = vmul.f32 %v3187, %v3187
          %v3220 = vmul.f32 %v3188, %v3188
          %v3221 = vmul.f32 %v3189, %v3189
          %v3222 = vmul.f32 %v3190, %v3190
          %v3223 = vmul.f32 %v3191, %v3191
          %v3224 = vmul.f32 %v3192, %v3192
          %v3225 = vmul.f32 %v3193, %v3193
          %v3226 = vmul.f32 %v3194, %v3194
          %v3227 = vmul.f32 %v3195, %v3195
          %v3228 = vmul.f32 %v3196, %v3196
          %v3229 = vmul.f32 %v3197, %v3197
          %v3230 = vmul.f32 %v3198, %v3198
          %v3231 = vmul.f32 %v3199, %v3199
          %v3232 = vmul.f32 %v3200, %v3200
          %v3233 = vmul.f32 %v3201, %v3201
          %v3234 = vmul.f32 %v3202, %v3202
          %v3235 = vmul.f32 %v3203, %v3203
          %v3236 = vmul.f32 %v3204, %v3204
          %v3237 = vmul.f32 %v3205, %v3205
          %v3238 = vmul.f32 %v3206, %v3206
          %v3239 = vmul.f32 %v3207, %v3207
          %v3240 = vmul.f32 %v3208, %v3208
          %v3241 = vmul.f32 %v3209, %v3209
          %v3242 = vmul.f32 %v3210, %v3210
          %v3243 = vmul.f32 %v3211, %v3211
          %v3244 = vmul.f32 %v3212, %v3212
          %v3245 = vadd.f32 %v3213, %v3214
          %3246 = vadd.xlane.f32.xlu0 %v3245
          %v3247 = vpop.xlane.xlu0 %3246
          %v3248 = vadd.f32 %v3215, %v3216
          %3249 = vadd.xlane.f32.xlu0 %v3248
          %v3250 = vpop.xlane.xlu0 %3249
          %v3251 = vadd.f32 %v3217, %v3218
          %3252 = vadd.xlane.f32.xlu0 %v3251
          %v3253 = vpop.xlane.xlu0 %3252
          %v3254 = vadd.f32 %v3219, %v3220
          %3255 = vadd.xlane.f32.xlu0 %v3254
          %v3256 = vpop.xlane.xlu0 %3255
          %v3257 = vadd.f32 %v3221, %v3222
          %3258 = vadd.xlane.f32.xlu0 %v3257
          %v3259 = vpop.xlane.xlu0 %3258
          %v3260 = vadd.f32 %v3223, %v3224
          %3261 = vadd.xlane.f32.xlu0 %v3260
          %v3262 = vpop.xlane.xlu0 %3261
          %v3263 = vadd.f32 %v3225, %v3226
          %3264 = vadd.xlane.f32.xlu0 %v3263
          %v3265 = vpop.xlane.xlu0 %3264
          %v3266 = vadd.f32 %v3227, %v3228
          %3267 = vadd.xlane.f32.xlu0 %v3266
          %v3268 = vpop.xlane.xlu0 %3267
          %v3269 = vadd.f32 %v3229, %v3230
          %3270 = vadd.xlane.f32.xlu0 %v3269
          %v3271 = vpop.xlane.xlu0 %3270
          %v3272 = vadd.f32 %v3231, %v3232
          %3273 = vadd.xlane.f32.xlu0 %v3272
          %v3274 = vpop.xlane.xlu0 %3273
          %v3275 = vadd.f32 %v3233, %v3234
          %3276 = vadd.xlane.f32.xlu0 %v3275
          %v3277 = vpop.xlane.xlu0 %3276
          %v3278 = vadd.f32 %v3235, %v3236
          %3279 = vadd.xlane.f32.xlu0 %v3278
          %v3280 = vpop.xlane.xlu0 %3279
          %v3281 = vadd.f32 %v3237, %v3238
          %3282 = vadd.xlane.f32.xlu0 %v3281
          %v3283 = vpop.xlane.xlu0 %3282
          %v3284 = vadd.f32 %v3239, %v3240
          %3285 = vadd.xlane.f32.xlu0 %v3284
          %v3286 = vpop.xlane.xlu0 %3285
          %v3287 = vadd.f32 %v3241, %v3242
          %3288 = vadd.xlane.f32.xlu0 %v3287
          %v3289 = vpop.xlane.xlu0 %3288
          %v3290 = vadd.f32 %v3243, %v3244
          %3291 = vadd.xlane.f32.xlu0 %v3290
          %v3292 = vpop.xlane.xlu0 %3291
          %v3293 = vmul.f32 %v3247, %v3164
          %v3294 = vmul.f32 %v3250, %v3164
          %v3295 = vmul.f32 %v3253, %v3164
          %v3296 = vmul.f32 %v3256, %v3164
          %v3297 = vmul.f32 %v3259, %v3164
          %v3298 = vmul.f32 %v3262, %v3164
          %v3299 = vmul.f32 %v3265, %v3164
          %v3300 = vmul.f32 %v3268, %v3164
          %v3301 = vmul.f32 %v3271, %v3164
          %v3302 = vmul.f32 %v3274, %v3164
          %v3303 = vmul.f32 %v3277, %v3164
          %v3304 = vmul.f32 %v3280, %v3164
          %v3305 = vmul.f32 %v3283, %v3164
          %v3306 = vmul.f32 %v3286, %v3164
          %v3307 = vmul.f32 %v3289, %v3164
          %v3308 = vmul.f32 %v3292, %v3164
          %v3309 = vadd.f32 %v3293, 1e-05
          %v3310 = vadd.f32 %v3294, 1e-05
          %v3311 = vadd.f32 %v3295, 1e-05
          %v3312 = vadd.f32 %v3296, 1e-05
          %v3313 = vadd.f32 %v3297, 1e-05
          %v3314 = vadd.f32 %v3298, 1e-05
          %v3315 = vadd.f32 %v3299, 1e-05
          %v3316 = vadd.f32 %v3300, 1e-05
          %v3317 = vadd.f32 %v3301, 1e-05
          %v3318 = vadd.f32 %v3302, 1e-05
          %v3319 = vadd.f32 %v3303, 1e-05
          %v3320 = vadd.f32 %v3304, 1e-05
          %v3321 = vadd.f32 %v3305, 1e-05
          %v3322 = vadd.f32 %v3306, 1e-05
          %v3323 = vadd.f32 %v3307, 1e-05
          %v3324 = vadd.f32 %v3308, 1e-05
          %v3325 = vrsqrt.pop %v3309
          %v3326 = vrsqrt.pop %v3310
          %v3327 = vrsqrt.pop %v3311
          %v3328 = vrsqrt.pop %v3312
          %v3329 = vrsqrt.pop %v3313
          %v3330 = vrsqrt.pop %v3314
          %v3331 = vrsqrt.pop %v3315
          %v3332 = vrsqrt.pop %v3316
          %v3333 = vrsqrt.pop %v3317
          %v3334 = vrsqrt.pop %v3318
          %v3335 = vrsqrt.pop %v3319
          %v3336 = vrsqrt.pop %v3320
          %v3337 = vrsqrt.pop %v3321
          %v3338 = vrsqrt.pop %v3322
          %v3339 = vrsqrt.pop %v3323
          %v3340 = vrsqrt.pop %v3324
          %v3341 = vmul.f32 %v3181, %v3325
          %v3342 = vmul.f32 %v3182, %v3325
          %v3343 = vmul.f32 %v3183, %v3326
          %v3344 = vmul.f32 %v3184, %v3326
          %v3345 = vmul.f32 %v3185, %v3327
          %v3346 = vmul.f32 %v3186, %v3327
          %v3347 = vmul.f32 %v3187, %v3328
          %v3348 = vmul.f32 %v3188, %v3328
          %v3349 = vmul.f32 %v3189, %v3329
          %v3350 = vmul.f32 %v3190, %v3329
          %v3351 = vmul.f32 %v3191, %v3330
          %v3352 = vmul.f32 %v3192, %v3330
          %v3353 = vmul.f32 %v3193, %v3331
          %v3354 = vmul.f32 %v3194, %v3331
          %v3355 = vmul.f32 %v3195, %v3332
          %v3356 = vmul.f32 %v3196, %v3332
          %v3357 = vmul.f32 %v3197, %v3333
          %v3358 = vmul.f32 %v3198, %v3333
          %v3359 = vmul.f32 %v3199, %v3334
          %v3360 = vmul.f32 %v3200, %v3334
          %v3361 = vmul.f32 %v3201, %v3335
          %v3362 = vmul.f32 %v3202, %v3335
          %v3363 = vmul.f32 %v3203, %v3336
          %v3364 = vmul.f32 %v3204, %v3336
          %v3365 = vmul.f32 %v3205, %v3337
          %v3366 = vmul.f32 %v3206, %v3337
          %v3367 = vmul.f32 %v3207, %v3338
          %v3368 = vmul.f32 %v3208, %v3338
          %v3369 = vmul.f32 %v3209, %v3339
          %v3370 = vmul.f32 %v3210, %v3339
          %v3371 = vmul.f32 %v3211, %v3340
          %v3372 = vmul.f32 %v3212, %v3340
          %v3374 = vlaneseq
          %v3375 = vshrl.u32 %v3374, 7
          %v3376 = vsub.s32 0, %v3375
          %v3377 = vrot.slane %v3082, %v3376
          %v3378 = vlaneseq
          %v3379 = vshrl.u32 %v3378, 7
          %v3380 = vsub.s32 1, %v3379
          %v3381 = vrot.slane %v3082, %v3380
          %v3384 = vmul.f32 %v3341, %v3377
          %v3385 = vmul.f32 %v3342, %v3381
          %v3386 = vmul.f32 %v3343, %v3377
          %v3387 = vmul.f32 %v3344, %v3381
          %v3388 = vmul.f32 %v3345, %v3377
          %v3389 = vmul.f32 %v3346, %v3381
          %v3390 = vmul.f32 %v3347, %v3377
          %v3391 = vmul.f32 %v3348, %v3381
          %v3392 = vmul.f32 %v3349, %v3377
          %v3393 = vmul.f32 %v3350, %v3381
          %v3394 = vmul.f32 %v3351, %v3377
          %v3395 = vmul.f32 %v3352, %v3381
          %v3396 = vmul.f32 %v3353, %v3377
          %v3397 = vmul.f32 %v3354, %v3381
          %v3398 = vmul.f32 %v3355, %v3377
          %v3399 = vmul.f32 %v3356, %v3381
          %v3400 = vmul.f32 %v3357, %v3377
          %v3401 = vmul.f32 %v3358, %v3381
          %v3402 = vmul.f32 %v3359, %v3377
          %v3403 = vmul.f32 %v3360, %v3381
          %v3404 = vmul.f32 %v3361, %v3377
          %v3405 = vmul.f32 %v3362, %v3381
          %v3406 = vmul.f32 %v3363, %v3377
          %v3407 = vmul.f32 %v3364, %v3381
          %v3408 = vmul.f32 %v3365, %v3377
          %v3409 = vmul.f32 %v3366, %v3381
          %v3410 = vmul.f32 %v3367, %v3377
          %v3411 = vmul.f32 %v3368, %v3381
          %v3412 = vmul.f32 %v3369, %v3377
          %v3413 = vmul.f32 %v3370, %v3381
          %v3414 = vmul.f32 %v3371, %v3377
          %v3415 = vmul.f32 %v3372, %v3381
          %v3417 = vlaneseq
          %v3418 = vshrl.u32 %v3417, 7
          %v3419 = vsub.s32 0, %v3418
          %v3420 = vrot.slane %v3083, %v3419
          %v3421 = vlaneseq
          %v3422 = vshrl.u32 %v3421, 7
          %v3423 = vsub.s32 1, %v3422
          %v3424 = vrot.slane %v3083, %v3423
          %v3427 = vadd.f32 %v3384, %v3420
          %v3428 = vadd.f32 %v3385, %v3424
          %v3429 = vadd.f32 %v3386, %v3420
          %v3430 = vadd.f32 %v3387, %v3424
          %v3431 = vadd.f32 %v3388, %v3420
          %v3432 = vadd.f32 %v3389, %v3424
          %v3433 = vadd.f32 %v3390, %v3420
          %v3434 = vadd.f32 %v3391, %v3424
          %v3435 = vadd.f32 %v3392, %v3420
          %v3436 = vadd.f32 %v3393, %v3424
          %v3437 = vadd.f32 %v3394, %v3420
          %v3438 = vadd.f32 %v3395, %v3424
          %v3439 = vadd.f32 %v3396, %v3420
          %v3440 = vadd.f32 %v3397, %v3424
          %v3441 = vadd.f32 %v3398, %v3420
          %v3442 = vadd.f32 %v3399, %v3424
          %v3443 = vadd.f32 %v3400, %v3420
          %v3444 = vadd.f32 %v3401, %v3424
          %v3445 = vadd.f32 %v3402, %v3420
          %v3446 = vadd.f32 %v3403, %v3424
          %v3447 = vadd.f32 %v3404, %v3420
          %v3448 = vadd.f32 %v3405, %v3424
          %v3449 = vadd.f32 %v3406, %v3420
          %v3450 = vadd.f32 %v3407, %v3424
          %v3451 = vadd.f32 %v3408, %v3420
          %v3452 = vadd.f32 %v3409, %v3424
          %v3453 = vadd.f32 %v3410, %v3420
          %v3454 = vadd.f32 %v3411, %v3424
          %v3455 = vadd.f32 %v3412, %v3420
          %v3456 = vadd.f32 %v3413, %v3424
          %v3457 = vadd.f32 %v3414, %v3420
          %v3458 = vadd.f32 %v3415, %v3424
          %3459 = vst [vmem:[%s620] sm:$0xff] %v3427
          %3460 = vst [vmem:[%s620 + $0x8] sm:$0xff] %v3428
          %3461 = vst [vmem:[%s620 + $0x10] sm:$0xff] %v3429
          %3462 = vst [vmem:[%s620 + $0x18] sm:$0xff] %v3430
          %3463 = vst [vmem:[%s620 + $0x20] sm:$0xff] %v3431
          %3464 = vst [vmem:[%s620 + $0x28] sm:$0xff] %v3432
          %3465 = vst [vmem:[%s620 + $0x30] sm:$0xff] %v3433
          %3466 = vst [vmem:[%s620 + $0x38] sm:$0xff] %v3434
          %3467 = vst [vmem:[%s620 + $0x40] sm:$0xff] %v3435
          %3468 = vst [vmem:[%s620 + $0x48] sm:$0xff] %v3436
          %3469 = vst [vmem:[%s620 + $0x50] sm:$0xff] %v3437
          %3470 = vst [vmem:[%s620 + $0x58] sm:$0xff] %v3438
          %3471 = vst [vmem:[%s620 + $0x60] sm:$0xff] %v3439
          %3472 = vst [vmem:[%s620 + $0x68] sm:$0xff] %v3440
          %3473 = vst [vmem:[%s620 + $0x70] sm:$0xff] %v3441
          %3474 = vst [vmem:[%s620 + $0x78] sm:$0xff] %v3442
          %3475 = vst [vmem:[%s620 + $0x80] sm:$0xff] %v3443
          %3476 = vst [vmem:[%s620 + $0x88] sm:$0xff] %v3444
          %3477 = vst [vmem:[%s620 + $0x90] sm:$0xff] %v3445
          %3478 = vst [vmem:[%s620 + $0x98] sm:$0xff] %v3446
          %3479 = vst [vmem:[%s620 + $0xa0] sm:$0xff] %v3447
          %3480 = vst [vmem:[%s620 + $0xa8] sm:$0xff] %v3448
          %3481 = vst [vmem:[%s620 + $0xb0] sm:$0xff] %v3449
          %3482 = vst [vmem:[%s620 + $0xb8] sm:$0xff] %v3450
          %3483 = vst [vmem:[%s620 + $0xc0] sm:$0xff] %v3451
          %3484 = vst [vmem:[%s620 + $0xc8] sm:$0xff] %v3452
          %3485 = vst [vmem:[%s620 + $0xd0] sm:$0xff] %v3453
          %3486 = vst [vmem:[%s620 + $0xd8] sm:$0xff] %v3454
          %3487 = vst [vmem:[%s620 + $0xe0] sm:$0xff] %v3455
          %3488 = vst [vmem:[%s620 + $0xe8] sm:$0xff] %v3456
          %3489 = vst [vmem:[%s620 + $0xf0] sm:$0xff] %v3457
          %3490 = vst [vmem:[%s620 + $0xf8] sm:$0xff] %v3458
        $region106: #{decoder_layer.3} parent=71 // pred_fallthru
          _
        %s3491 = smul.u32 16, %s32
        %p3492 = scmp.lt.s32.totalorder %s31, 1
        %s3493 = scalar_select %p3492, %s31, 1
        %p3494 = scmp.lt.s32.totalorder %s3491, 15
        %s3495 = scalar_select %p3494, %s3491, 15
        %s3496 = smul.addr %s3495, 2
        %s3497 = smul.addr %s3493, 32
        %s3498 = sadd.s32 %s3496, %s3497
        %s3499 = smul.addr %s3498, 8
        %s3500 = scalar_lea.vmem %s13, %s3499
        // Predicated region
        $region114: #{decoder_layer.3} parent=71 // pred_check
          %p3501 = pneg %p361
        $region115: #{decoder_layer.3} parent=71 // pred_check_branch
          %3503 = sbr.rel (%p3501) target = $region117
        $region116: #{decoder_layer.3} parent=71 // pred_region
          %s3504 = smul.u32 16, %s32
        $region117: #{decoder_layer.3} parent=71 // pred_fallthru
          _
      $region72: #{decoder_layer.3} parent=5 // pred_fallthru
        _
      %p3505 = scmp.le.s32.totalorder 2, %s21
      // Predicated region
      $region118: #{decoder_layer.3} parent=5 // pred_check
        %p3506 = pneg %p3505
      $region119: #{decoder_layer.3} parent=5 // pred_check_branch
        %3508 = sbr.rel (%p3506) target = $region121
      $region120: #{decoder_layer.3} parent=5 // pred_region
        %s3509 = ssub.s32 %s21, 2
        // Predicated region
        $region122: #{decoder_layer.3} parent=120 // pred_check
          %p3510 = pneg %p367
        $region123: #{decoder_layer.3} parent=120 // pred_check_branch
          %3512 = sbr.rel (%p3510) target = $region125
        $region124: #{decoder_layer.3} parent=120 // pred_region
          %s3513 = smul.u32 16, %s35
          %p3514 = scmp.lt.s32.totalorder %s34, 1
          %s3515 = scalar_select %p3514, %s34, 1
          %p3516 = scmp.lt.s32.totalorder %s3513, 15
          %s3517 = scalar_select %p3516, %s3513, 15
          %s3518 = smul.addr %s3517, 2
          %s3519 = smul.addr %s3515, 32
          %s3520 = sadd.s32 %s3518, %s3519
          %s3521 = smul.addr %s3520, 8
          %s3522 = scalar_lea.vmem %s13, %s3521
        $region125: #{decoder_layer.3} parent=120 // pred_fallthru
          _
      $region121: #{decoder_layer.3} parent=5 // pred_fallthru
        _
    $region6: #{decoder_layer.3} parent=1 // loop_footer
      %s25 = sadd.s32 1, %s21
    $region7: #{decoder_layer.3} parent=1 // loop_footer_branch
      %20 = sbr.rel target = $region3
    $region8: #{decoder_layer.3} parent=1 // loop_exit
      _
    %3523 = vsyncpa [#allocation7], 1
    %s3524 = scalar_lea.sflag [#allocation7], 1
    %3525 = vsyncpa %s3524, 1
    %3526 = vsyncpa [#allocation9], 1

// kernel: decoder_layer.4
$region0: #{decoder_layer.4}
  #allocation0 [shape = 'u32[]', space=smem, size = 0x4, offset = 0x4, fixed_abs, tag = 'smem constant byte address 0x4 - core index']
  #allocation1 [shape = 'u32[144,128]{1,0:T(1,128)}', space=vmem, size = 0x12000, scoped, tag = 'internal scratch']
  #allocation2 [shape = 'bf16[2,128,128]{2,1,0:T(8,128)(2,1)}', space=vmem, size = 0x10000, scoped, tag = 'scratch operand']
  #allocation3 [shape = 'f32[2,128,128]{2,1,0:T(8,128)}', space=vmem, size = 0x20000, scoped, tag = 'scratch operand']
  #allocation4 [shape = 'f32[2,128,1]{2,1,0:T(8,128)}', space=vmem, size = 0x20000, scoped, tag = 'scratch operand']
  #allocation5 [shape = 'f32[2,128,1]{2,1,0:T(8,128)}', space=vmem, size = 0x20000, scoped, tag = 'scratch operand']
  %s0 = inlined_call_operand.vmem [shape: f32[2,128,256], index: 0, kind: input, shape index: {}]
  %s1 = inlined_call_operand.vmem [shape: f32[2,256,256], index: 1, kind: input, shape index: {}]
  %s2 = inlined_call_operand.vmem [shape: s8[2,128,256], index: 2, kind: input, shape index: {}]
  %s3 = inlined_call_operand.vmem [shape: bf16[2,256,128], index: 3, kind: input, shape index: {}]
  %s4 = inlined_call_operand.vmem [shape: f32[2,1,128], index: 4, kind: input, shape index: {}]
  %s5 = inlined_call_operand.vmem [shape: bf16[2,256,128], index: 5, kind: input, shape index: {}]
  %s6 = inlined_call_operand.vmem [shape: f32[2,1,128], index: 6, kind: input, shape index: {}]
  %s7 = inlined_call_operand.vmem [shape: bf16[2,256,128], index: 7, kind: input, shape index: {}]
  %s8 = inlined_call_operand.vmem [shape: f32[2,1,128], index: 8, kind: input, shape index: {}]
  %s9 = inlined_call_operand.vmem [shape: bf16[2,128,256], index: 9, kind: input, shape index: {}]
  %s10 = inlined_call_operand.vmem [shape: f32[1,256], index: 10, kind: input, shape index: {}]
  %s11 = inlined_call_operand.vmem [shape: f32[1,256], index: 11, kind: input, shape index: {}]
  %s12 = inlined_call_operand.vmem [shape: f32[1,256], index: 12, kind: input, shape index: {}]
  %s13 = inlined_call_operand.vmem [shape: f32[2,128,256], index: 13, kind: output, shape index: {}]
  %s14 = sld [smem:[#allocation0]]
  $region152: #{decoder_layer.4} parent=0
    _
  %s16 = ssub.s32 1, %s14
  %s17 = scalar_select 0, %s16, %s14
  $region1: #{decoder_layer.4} parent=0
    #allocation6 [shape = 'u8[32768]{0}', space=vmem, size = 0x8000, scoped, tag = 'input window, operand 2']
    loop: start=0, step=1, limit=6
    $region2: #{decoder_layer.4} parent=1 // loop_pre_header
      _
    $region3: #{decoder_layer.4} parent=1 // loop_header
      %s19 = sphi 0, %s23
      %p20 = scmp.ge.s32.totalorder %s19, 6
      %s26 = sphi 0, %s45
      %s27 = sphi 0, %s41
      %s28 = sphi 0, %s37
      %s29 = sphi 0, %s26
      %s30 = sphi 0, %s27
      %s31 = sphi 0, %s28
      %s32 = sphi 0, %s29
      %s33 = sphi 0, %s30
      %s34 = sphi 0, %s31
      %s50 = sphi 0, %s52
      %s53 = sphi 0, %s50
      %s54 = sphi 0, %s53
      %s70 = sphi 0, %s54
      %s78 = sphi 0, %s80
      %s81 = sphi 0, %s78
      %s82 = sphi 0, %s81
      %s98 = sphi 0, %s82
      %s108 = sphi 0, %s110
      %s111 = sphi 0, %s108
      %s112 = sphi 0, %s111
      %s128 = sphi 0, %s112
      %s132 = sphi 0, %s132
      %s134 = sphi 0, %s132
      %s135 = sphi 0, %s134
      %s149 = sphi 0, %s135
      %s153 = sphi 0, %s153
      %s155 = sphi 0, %s153
      %s156 = sphi 0, %s155
      %s170 = sphi 0, %s156
      %s174 = sphi 0, %s174
      %s176 = sphi 0, %s174
      %s177 = sphi 0, %s176
      %s191 = sphi 0, %s177
      %s195 = sphi 0, %s195
      %s197 = sphi 0, %s195
      %s198 = sphi 0, %s197
      %s212 = sphi 0, %s198
      %s216 = sphi 0, %s216
      %s218 = sphi 0, %s216
      %s219 = sphi 0, %s218
      %s233 = sphi 0, %s219
      %s237 = sphi 0, %s237
      %s239 = sphi 0, %s237
      %s240 = sphi 0, %s239
      %s254 = sphi 0, %s240
      %s258 = sphi 0, %s258
      %s260 = sphi 0, %s258
      %s261 = sphi 0, %s260
      %s275 = sphi 0, %s261
      %s279 = sphi 0, %s279
      %s281 = sphi 0, %s279
      %s282 = sphi 0, %s281
      %s296 = sphi 0, %s282
      %s300 = sphi 0, %s300
      %s302 = sphi 0, %s300
      %s303 = sphi 0, %s302
      %s317 = sphi 0, %s303
      %s321 = sphi 0, %s321
      %s323 = sphi 0, %s321
      %s324 = sphi 0, %s323
      %s338 = sphi 0, %s324
      %s346 = sphi 0, %s348
      %s349 = sphi 0, %s346
      %s350 = sphi 0, %s349
      %s366 = sphi 0, %s350
    $region4: #{decoder_layer.4} parent=1 // loop_header_branch
      %22 = sbr.rel (%p20) target = $region8
    $region5: #{decoder_layer.4} parent=1 // loop_body
      %s24 = ssub.s32 %s19, 1
      %s25 = ssub.s32 %s19, 2
      %s35 = sadd.s32 1, %s28
      %p36 = scmp.ge.s32.totalorder %s35, 2
      %s37 = scalar_select %p36, 0, %s35
      %s38 = sadd.s32 1, %s27
      %s39 = scalar_select %p36, %s38, %s27
      %p40 = scmp.ge.s32.totalorder %s39, 1
      %s41 = scalar_select %p40, 0, %s39
      %s42 = sadd.s32 1, %s26
      %s43 = scalar_select %p40, %s42, %s26
      %p44 = scmp.ge.s32.totalorder %s43, 2
      %s45 = scalar_select %p44, 0, %s43
      %s46 = ssub.s32 %s26, %s45
      %s47 = ssub.s32 %s27, %s41
      %s48 = sor.u32 %s46, %s47
      %p49 = scmp.eq.s32.totalorder %s48, 0
      %s51 = sadd.s32 %s50, 1
      %s52 = scalar_select %p49, %s50, %s51
      %p55 = pneg %p49
      %p56 = scmp.eq.s32.totalorder %s19, 3
      %p57 = por %p55, %p56
      %p58 = scmp.ne.s32.totalorder %s50, %s53
      %p59 = scmp.eq.s32.totalorder %s19, 0
      %p60 = por %p58, %p59
      %p61 = scmp.ne.s32.totalorder %s50, %s53
      %p62 = scmp.eq.s32.totalorder %s24, 3
      %p63 = por %p61, %p62
      %p64 = scmp.ne.s32.totalorder %s53, %s54
      %p65 = scmp.eq.s32.totalorder %s24, 0
      %p66 = por %p64, %p65
      %p67 = scmp.ne.s32.totalorder %s53, %s54
      %p68 = scmp.eq.s32.totalorder %s25, 3
      %p69 = por %p67, %p68
      %p71 = scmp.ne.s32.totalorder %s54, %s70
      %p72 = scmp.eq.s32.totalorder %s25, 0
      %p73 = por %p71, %p72
      %s74 = ssub.s32 %s26, %s45
      %s75 = ssub.s32 %s28, %s37
      %s76 = sor.u32 %s74, %s75
      %p77 = scmp.eq.s32.totalorder %s76, 0
      %s79 = sadd.s32 %s78, 1
      %s80 = scalar_select %p77, %s78, %s79
      %p83 = pneg %p77
      %p84 = scmp.eq.s32.totalorder %s19, 3
      %p85 = por %p83, %p84
      %p86 = scmp.ne.s32.totalorder %s78, %s81
      %p87 = scmp.eq.s32.totalorder %s19, 0
      %p88 = por %p86, %p87
      %p89 = scmp.ne.s32.totalorder %s78, %s81
      %p90 = scmp.eq.s32.totalorder %s24, 3
      %p91 = por %p89, %p90
      %p92 = scmp.ne.s32.totalorder %s81, %s82
      %p93 = scmp.eq.s32.totalorder %s24, 0
      %p94 = por %p92, %p93
      %p95 = scmp.ne.s32.totalorder %s81, %s82
      %p96 = scmp.eq.s32.totalorder %s25, 3
      %p97 = por %p95, %p96
      %p99 = scmp.ne.s32.totalorder %s82, %s98
      %p100 = scmp.eq.s32.totalorder %s25, 0
      %p101 = por %p99, %p100
      %s102 = ssub.s32 %s26, %s45
      %s103 = ssub.s32 %s27, %s41
      %s104 = sor.u32 %s102, %s103
      %s105 = ssub.s32 %s28, %s37
      %s106 = sor.u32 %s104, %s105
      %p107 = scmp.eq.s32.totalorder %s106, 0
      %s109 = sadd.s32 %s108, 1
      %s110 = scalar_select %p107, %s108, %s109
      %p113 = pneg %p107
      %p114 = scmp.eq.s32.totalorder %s19, 3
      %p115 = por %p113, %p114
      %p116 = scmp.ne.s32.totalorder %s108, %s111
      %p117 = scmp.eq.s32.totalorder %s19, 0
      %p118 = por %p116, %p117
      %p119 = scmp.ne.s32.totalorder %s108, %s111
      %p120 = scmp.eq.s32.totalorder %s24, 3
      %p121 = por %p119, %p120
      %p122 = scmp.ne.s32.totalorder %s111, %s112
      %p123 = scmp.eq.s32.totalorder %s24, 0
      %p124 = por %p122, %p123
      %p125 = scmp.ne.s32.totalorder %s111, %s112
      %p126 = scmp.eq.s32.totalorder %s25, 3
      %p127 = por %p125, %p126
      %p129 = scmp.ne.s32.totalorder %s112, %s128
      %p130 = scmp.eq.s32.totalorder %s25, 0
      %p131 = por %p129, %p130
      %s133 = sadd.s32 %s132, 1
      %p136 = scmp.eq.s32.totalorder %s19, 3
      %p137 = scmp.ne.s32.totalorder %s132, %s134
      %p138 = scmp.eq.s32.totalorder %s19, 0
      %p139 = por %p137, %p138
      %p140 = scmp.ne.s32.totalorder %s132, %s134
      %p141 = scmp.eq.s32.totalorder %s24, 3
      %p142 = por %p140, %p141
      %p143 = scmp.ne.s32.totalorder %s134, %s135
      %p144 = scmp.eq.s32.totalorder %s24, 0
      %p145 = por %p143, %p144
      %p146 = scmp.ne.s32.totalorder %s134, %s135
      %p147 = scmp.eq.s32.totalorder %s25, 3
      %p148 = por %p146, %p147
      %p150 = scmp.ne.s32.totalorder %s135, %s149
      %p151 = scmp.eq.s32.totalorder %s25, 0
      %p152 = por %p150, %p151
      %s154 = sadd.s32 %s153, 1
      %p157 = scmp.eq.s32.totalorder %s19, 3
      %p158 = scmp.ne.s32.totalorder %s153, %s155
      %p159 = scmp.eq.s32.totalorder %s19, 0
      %p160 = por %p158, %p159
      %p161 = scmp.ne.s32.totalorder %s153, %s155
      %p162 = scmp.eq.s32.totalorder %s24, 3
      %p163 = por %p161, %p162
      %p164 = scmp.ne.s32.totalorder %s155, %s156
      %p165 = scmp.eq.s32.totalorder %s24, 0
      %p166 = por %p164, %p165
      %p167 = scmp.ne.s32.totalorder %s155, %s156
      %p168 = scmp.eq.s32.totalorder %s25, 3
      %p169 = por %p167, %p168
      %p171 = scmp.ne.s32.totalorder %s156, %s170
      %p172 = scmp.eq.s32.totalorder %s25, 0
      %p173 = por %p171, %p172
      %s175 = sadd.s32 %s174, 1
      %p178 = scmp.eq.s32.totalorder %s19, 3
      %p179 = scmp.ne.s32.totalorder %s174, %s176
      %p180 = scmp.eq.s32.totalorder %s19, 0
      %p181 = por %p179, %p180
      %p182 = scmp.ne.s32.totalorder %s174, %s176
      %p183 = scmp.eq.s32.totalorder %s24, 3
      %p184 = por %p182, %p183
      %p185 = scmp.ne.s32.totalorder %s176, %s177
      %p186 = scmp.eq.s32.totalorder %s24, 0
      %p187 = por %p185, %p186
      %p188 = scmp.ne.s32.totalorder %s176, %s177
      %p189 = scmp.eq.s32.totalorder %s25, 3
      %p190 = por %p188, %p189
      %p192 = scmp.ne.s32.totalorder %s177, %s191
      %p193 = scmp.eq.s32.totalorder %s25, 0
      %p194 = por %p192, %p193
      %s196 = sadd.s32 %s195, 1
      %p199 = scmp.eq.s32.totalorder %s19, 3
      %p200 = scmp.ne.s32.totalorder %s195, %s197
      %p201 = scmp.eq.s32.totalorder %s19, 0
      %p202 = por %p200, %p201
      %p203 = scmp.ne.s32.totalorder %s195, %s197
      %p204 = scmp.eq.s32.totalorder %s24, 3
      %p205 = por %p203, %p204
      %p206 = scmp.ne.s32.totalorder %s197, %s198
      %p207 = scmp.eq.s32.totalorder %s24, 0
      %p208 = por %p206, %p207
      %p209 = scmp.ne.s32.totalorder %s197, %s198
      %p210 = scmp.eq.s32.totalorder %s25, 3
      %p211 = por %p209, %p210
      %p213 = scmp.ne.s32.totalorder %s198, %s212
      %p214 = scmp.eq.s32.totalorder %s25, 0
      %p215 = por %p213, %p214
      %s217 = sadd.s32 %s216, 1
      %p220 = scmp.eq.s32.totalorder %s19, 3
      %p221 = scmp.ne.s32.totalorder %s216, %s218
      %p222 = scmp.eq.s32.totalorder %s19, 0
      %p223 = por %p221, %p222
      %p224 = scmp.ne.s32.totalorder %s216, %s218
      %p225 = scmp.eq.s32.totalorder %s24, 3
      %p226 = por %p224, %p225
      %p227 = scmp.ne.s32.totalorder %s218, %s219
      %p228 = scmp.eq.s32.totalorder %s24, 0
      %p229 = por %p227, %p228
      %p230 = scmp.ne.s32.totalorder %s218, %s219
      %p231 = scmp.eq.s32.totalorder %s25, 3
      %p232 = por %p230, %p231
      %p234 = scmp.ne.s32.totalorder %s219, %s233
      %p235 = scmp.eq.s32.totalorder %s25, 0
      %p236 = por %p234, %p235
      %s238 = sadd.s32 %s237, 1
      %p241 = scmp.eq.s32.totalorder %s19, 3
      %p242 = scmp.ne.s32.totalorder %s237, %s239
      %p243 = scmp.eq.s32.totalorder %s19, 0
      %p244 = por %p242, %p243
      %p245 = scmp.ne.s32.totalorder %s237, %s239
      %p246 = scmp.eq.s32.totalorder %s24, 3
      %p247 = por %p245, %p246
      %p248 = scmp.ne.s32.totalorder %s239, %s240
      %p249 = scmp.eq.s32.totalorder %s24, 0
      %p250 = por %p248, %p249
      %p251 = scmp.ne.s32.totalorder %s239, %s240
      %p252 = scmp.eq.s32.totalorder %s25, 3
      %p253 = por %p251, %p252
      %p255 = scmp.ne.s32.totalorder %s240, %s254
      %p256 = scmp.eq.s32.totalorder %s25, 0
      %p257 = por %p255, %p256
      %s259 = sadd.s32 %s258, 1
      %p262 = scmp.eq.s32.totalorder %s19, 3
      %p263 = scmp.ne.s32.totalorder %s258, %s260
      %p264 = scmp.eq.s32.totalorder %s19, 0
      %p265 = por %p263, %p264
      %p266 = scmp.ne.s32.totalorder %s258, %s260
      %p267 = scmp.eq.s32.totalorder %s24, 3
      %p268 = por %p266, %p267
      %p269 = scmp.ne.s32.totalorder %s260, %s261
      %p270 = scmp.eq.s32.totalorder %s24, 0
      %p271 = por %p269, %p270
      %p272 = scmp.ne.s32.totalorder %s260, %s261
      %p273 = scmp.eq.s32.totalorder %s25, 3
      %p274 = por %p272, %p273
      %p276 = scmp.ne.s32.totalorder %s261, %s275
      %p277 = scmp.eq.s32.totalorder %s25, 0
      %p278 = por %p276, %p277
      %s280 = sadd.s32 %s279, 1
      %p283 = scmp.eq.s32.totalorder %s19, 3
      %p284 = scmp.ne.s32.totalorder %s279, %s281
      %p285 = scmp.eq.s32.totalorder %s19, 0
      %p286 = por %p284, %p285
      %p287 = scmp.ne.s32.totalorder %s279, %s281
      %p288 = scmp.eq.s32.totalorder %s24, 3
      %p289 = por %p287, %p288
      %p290 = scmp.ne.s32.totalorder %s281, %s282
      %p291 = scmp.eq.s32.totalorder %s24, 0
      %p292 = por %p290, %p291
      %p293 = scmp.ne.s32.totalorder %s281, %s282
      %p294 = scmp.eq.s32.totalorder %s25, 3
      %p295 = por %p293, %p294
      %p297 = scmp.ne.s32.totalorder %s282, %s296
      %p298 = scmp.eq.s32.totalorder %s25, 0
      %p299 = por %p297, %p298
      %s301 = sadd.s32 %s300, 1
      %p304 = scmp.eq.s32.totalorder %s19, 3
      %p305 = scmp.ne.s32.totalorder %s300, %s302
      %p306 = scmp.eq.s32.totalorder %s19, 0
      %p307 = por %p305, %p306
      %p308 = scmp.ne.s32.totalorder %s300, %s302
      %p309 = scmp.eq.s32.totalorder %s24, 3
      %p310 = por %p308, %p309
      %p311 = scmp.ne.s32.totalorder %s302, %s303
      %p312 = scmp.eq.s32.totalorder %s24, 0
      %p313 = por %p311, %p312
      %p314 = scmp.ne.s32.totalorder %s302, %s303
      %p315 = scmp.eq.s32.totalorder %s25, 3
      %p316 = por %p314, %p315
      %p318 = scmp.ne.s32.totalorder %s303, %s317
      %p319 = scmp.eq.s32.totalorder %s25, 0
      %p320 = por %p318, %p319
      %s322 = sadd.s32 %s321, 1
      %p325 = scmp.eq.s32.totalorder %s19, 3
      %p326 = scmp.ne.s32.totalorder %s321, %s323
      %p327 = scmp.eq.s32.totalorder %s19, 0
      %p328 = por %p326, %p327
      %p329 = scmp.ne.s32.totalorder %s321, %s323
      %p330 = scmp.eq.s32.totalorder %s24, 3
      %p331 = por %p329, %p330
      %p332 = scmp.ne.s32.totalorder %s323, %s324
      %p333 = scmp.eq.s32.totalorder %s24, 0
      %p334 = por %p332, %p333
      %p335 = scmp.ne.s32.totalorder %s323, %s324
      %p336 = scmp.eq.s32.totalorder %s25, 3
      %p337 = por %p335, %p336
      %p339 = scmp.ne.s32.totalorder %s324, %s338
      %p340 = scmp.eq.s32.totalorder %s25, 0
      %p341 = por %p339, %p340
      %s342 = ssub.s32 %s26, %s45
      %s343 = ssub.s32 %s27, %s41
      %s344 = sor.u32 %s342, %s343
      %p345 = scmp.eq.s32.totalorder %s344, 0
      %s347 = sadd.s32 %s346, 1
      %s348 = scalar_select %p345, %s346, %s347
      %p351 = pneg %p345
      %p352 = scmp.eq.s32.totalorder %s19, 3
      %p353 = por %p351, %p352
      %p354 = scmp.ne.s32.totalorder %s346, %s349
      %p355 = scmp.eq.s32.totalorder %s19, 0
      %p356 = por %p354, %p355
      %p357 = scmp.ne.s32.totalorder %s346, %s349
      %p358 = scmp.eq.s32.totalorder %s24, 3
      %p359 = por %p357, %p358
      %p360 = scmp.ne.s32.totalorder %s349, %s350
      %p361 = scmp.eq.s32.totalorder %s24, 0
      %p362 = por %p360, %p361
      %p363 = scmp.ne.s32.totalorder %s349, %s350
      %p364 = scmp.eq.s32.totalorder %s25, 3
      %p365 = por %p363, %p364
      %p367 = scmp.ne.s32.totalorder %s350, %s366
      %p368 = scmp.eq.s32.totalorder %s25, 0
      %p369 = por %p367, %p368
      %p370 = scmp.le.s32.totalorder 1, %s19
      %p371 = scmp.lt.s32.totalorder %s19, 5
      %p372 = pnand %p370, %p371
      %p373 = pneg %p372
      // Predicated region
      $region9: #{decoder_layer.4} parent=5 // pred_check
        _
      $region10: #{decoder_layer.4} parent=5 // pred_check_branch
        %375 = sbr.rel (%p372) target = $region12
      $region11: #{decoder_layer.4} parent=5 // pred_region
        %s376 = ssub.s32 %s19, 1
        // Predicated region
        $region13: #{decoder_layer.4} parent=11 // pred_check
          %p377 = pneg %p145
        $region14: #{decoder_layer.4} parent=11 // pred_check_branch
          %379 = sbr.rel (%p377) target = $region16
        $region15: #{decoder_layer.4} parent=11 // pred_region
          _
        $region16: #{decoder_layer.4} parent=11 // pred_fallthru
          _
        // Predicated region
        $region17: #{decoder_layer.4} parent=11 // pred_check
          %p380 = pneg %p166
        $region18: #{decoder_layer.4} parent=11 // pred_check_branch
          %382 = sbr.rel (%p380) target = $region20
        $region19: #{decoder_layer.4} parent=11 // pred_region
          _
        $region20: #{decoder_layer.4} parent=11 // pred_fallthru
          _
        // Predicated region
        $region21: #{decoder_layer.4} parent=11 // pred_check
          %p383 = pneg %p187
        $region22: #{decoder_layer.4} parent=11 // pred_check_branch
          %385 = sbr.rel (%p383) target = $region24
        $region23: #{decoder_layer.4} parent=11 // pred_region
          _
        $region24: #{decoder_layer.4} parent=11 // pred_fallthru
          _
        // Predicated region
        $region25: #{decoder_layer.4} parent=11 // pred_check
          %p386 = pneg %p208
        $region26: #{decoder_layer.4} parent=11 // pred_check_branch
          %388 = sbr.rel (%p386) target = $region28
        $region27: #{decoder_layer.4} parent=11 // pred_region
          _
        $region28: #{decoder_layer.4} parent=11 // pred_fallthru
          _
        // Predicated region
        $region29: #{decoder_layer.4} parent=11 // pred_check
          %p389 = pneg %p229
        $region30: #{decoder_layer.4} parent=11 // pred_check_branch
          %391 = sbr.rel (%p389) target = $region32
        $region31: #{decoder_layer.4} parent=11 // pred_region
          _
        $region32: #{decoder_layer.4} parent=11 // pred_fallthru
          _
        // Predicated region
        $region33: #{decoder_layer.4} parent=11 // pred_check
          %p392 = pneg %p250
        $region34: #{decoder_layer.4} parent=11 // pred_check_branch
          %394 = sbr.rel (%p392) target = $region36
        $region35: #{decoder_layer.4} parent=11 // pred_region
          _
        $region36: #{decoder_layer.4} parent=11 // pred_fallthru
          _
        // Predicated region
        $region37: #{decoder_layer.4} parent=11 // pred_check
          %p395 = pneg %p271
        $region38: #{decoder_layer.4} parent=11 // pred_check_branch
          %397 = sbr.rel (%p395) target = $region40
        $region39: #{decoder_layer.4} parent=11 // pred_region
          _
        $region40: #{decoder_layer.4} parent=11 // pred_fallthru
          _
        // Predicated region
        $region41: #{decoder_layer.4} parent=11 // pred_check
          %p398 = pneg %p292
        $region42: #{decoder_layer.4} parent=11 // pred_check_branch
          %400 = sbr.rel (%p398) target = $region44
        $region43: #{decoder_layer.4} parent=11 // pred_region
          _
        $region44: #{decoder_layer.4} parent=11 // pred_fallthru
          _
        // Predicated region
        $region45: #{decoder_layer.4} parent=11 // pred_check
          %p401 = pneg %p313
        $region46: #{decoder_layer.4} parent=11 // pred_check_branch
          %403 = sbr.rel (%p401) target = $region48
        $region47: #{decoder_layer.4} parent=11 // pred_region
          _
        $region48: #{decoder_layer.4} parent=11 // pred_fallthru
          _
        // Predicated region
        $region49: #{decoder_layer.4} parent=11 // pred_check
          %p404 = pneg %p334
        $region50: #{decoder_layer.4} parent=11 // pred_check_branch
          %406 = sbr.rel (%p404) target = $region52
        $region51: #{decoder_layer.4} parent=11 // pred_region
          _
        $region52: #{decoder_layer.4} parent=11 // pred_fallthru
          _
      $region12: #{decoder_layer.4} parent=5 // pred_fallthru
        _
      %p407 = scmp.lt.s32.totalorder %s19, 4
      // Predicated region
      $region53: #{decoder_layer.4} parent=5 // pred_check
        %p408 = pneg %p407
      $region54: #{decoder_layer.4} parent=5 // pred_check_branch
        %410 = sbr.rel (%p408) target = $region56
      $region55: #{decoder_layer.4} parent=5 // pred_region
        // Predicated region
        $region57: #{decoder_layer.4} parent=55 // pred_check
          %p411 = pneg %p60
        $region58: #{decoder_layer.4} parent=55 // pred_check_branch
          %413 = sbr.rel (%p411) target = $region60
        $region59: #{decoder_layer.4} parent=55 // pred_region
          %s414 = smul.u32 16, %s27
          %p415 = scmp.lt.s32.totalorder %s26, 1
          %s416 = scalar_select %p415, %s26, 1
          %p417 = scmp.lt.s32.totalorder %s414, 15
          %s418 = scalar_select %p417, %s414, 15
          %s419 = smul.addr %s418, 2
          %s420 = smul.addr %s416, 32
          %s421 = sadd.s32 %s419, %s420
          %s422 = smul.addr %s421, 8
          %s423 = scalar_lea.vmem %s0, %s422
          %s424 = smul.u32 16, %s27
        $region60: #{decoder_layer.4} parent=55 // pred_fallthru
          _
        // Predicated region
        $region61: #{decoder_layer.4} parent=55 // pred_check
          %p425 = pneg %p88
        $region62: #{decoder_layer.4} parent=55 // pred_check_branch
          %427 = sbr.rel (%p425) target = $region64
        $region63: #{decoder_layer.4} parent=55 // pred_region
          %s428 = smul.u32 16, %s28
          %p429 = scmp.lt.s32.totalorder %s26, 1
          %s430 = scalar_select %p429, %s26, 1
          %p431 = scmp.lt.s32.totalorder %s428, 31
          %s432 = scalar_select %p431, %s428, 31
          %s433 = smul.addr %s432, 2
          %s434 = smul.addr %s430, 64
          %s435 = sadd.s32 %s433, %s434
          %s436 = smul.addr %s435, 8
          %s437 = scalar_lea.vmem %s1, %s436
          %s438 = smul.u32 16, %s28
        $region64: #{decoder_layer.4} parent=55 // pred_fallthru
          _
        // Predicated region
        $region65: #{decoder_layer.4} parent=55 // pred_check
          %p439 = pneg %p118
        $region66: #{decoder_layer.4} parent=55 // pred_check_branch
          %441 = sbr.rel (%p439) target = $region68
        $region67: #{decoder_layer.4} parent=55 // pred_region
          %s442 = sand.u32 %s108, 1
          %s443 = sand.u32 %s108, 1
          %s444 = smul.addr %s443, 32
          %s445 = scalar_lea.vmem [#allocation6], %s444
          %s446 = smul.u32 4, %s27
          %s447 = smul.addr %s446, 2
          %s448 = sadd.s32 %s28, %s447
          %s449 = smul.addr %s26, 8
          %s450 = sadd.s32 %s448, %s449
          %s451 = smul.addr %s450, 8
          %s452 = scalar_lea.vmem %s2, %s451
          // Predicated region
          $region69: #{decoder_layer.4} parent=67 // pred_check
            _
          $region70: #{decoder_layer.4} parent=67 // pred_check_branch
            %454 = sbr.rel (0) target = $region72
          $region71: #{decoder_layer.4} parent=67 // pred_region
            // Predicated region
            $region73: #{decoder_layer.4} parent=71 // pred_check
              _
            $region74: #{decoder_layer.4} parent=71 // pred_check_branch
              %456 = sbr.rel (0) target = $region76
            $region75: #{decoder_layer.4} parent=71 // pred_region
              // Predicated region
              $region88: #{decoder_layer.4} parent=75 // pred_check
                _
              $region89: #{decoder_layer.4} parent=75 // pred_check_branch
                %478 = sbr.rel (0) target = $region91
              $region90: #{decoder_layer.4} parent=75 // pred_region
                loop: start=0, step=1, limit=1
                $region92: #{decoder_layer.4} parent=90 // loop_pre_header
                  _
                $region93: #{decoder_layer.4} parent=90 // loop_header
                  %s480 = sphi 0, %s484
                  %p481 = scmp.ge.s32.totalorder %s480, 1
                  %s485 = sphi %s452, %s452
                  %s486 = sphi %s445, %s445
                $region94: #{decoder_layer.4} parent=90 // loop_header_branch
                  %483 = sbr.rel (%p481) target = $region98
                $region95: #{decoder_layer.4} parent=90 // loop_body
                  %v487 = vld [vmem:[%s485] sm:$0xff]
                  %488 = vst [vmem:[%s486] sm:$0xff] %v487
                  %v489 = vld [vmem:[%s485 + $0x10] sm:$0xff]
                  %490 = vst [vmem:[%s486 + $0x8] sm:$0xff] %v489
                  %v491 = vld [vmem:[%s485 + $0x20] sm:$0xff]
                  %492 = vst [vmem:[%s486 + $0x10] sm:$0xff] %v491
                  %v493 = vld [vmem:[%s485 + $0x30] sm:$0xff]
                  %494 = vst [vmem:[%s486 + $0x18] sm:$0xff] %v493
                $region96: #{decoder_layer.4} parent=90 // loop_footer
                  %s484 = sadd.s32 1, %s480
                $region97: #{decoder_layer.4} parent=90 // loop_footer_branch
                  %479 = sbr.rel target = $region93
                $region98: #{decoder_layer.4} parent=90 // loop_exit
                  _
              $region91: #{decoder_layer.4} parent=75 // pred_fallthru
                _
              // Predicated region
              $region99: #{decoder_layer.4} parent=75 // pred_check
                _
              $region100: #{decoder_layer.4} parent=75 // pred_check_branch
                %496 = sbr.rel target = $region102
              $region101: #{decoder_layer.4} parent=75 // pred_region
                _
              $region102: #{decoder_layer.4} parent=75 // pred_fallthru
                _
            $region76: #{decoder_layer.4} parent=71 // pred_fallthru
              _
            // Predicated region
            $region77: #{decoder_layer.4} parent=71 // pred_check
              _
            $region78: #{decoder_layer.4} parent=71 // pred_check_branch
              %458 = sbr.rel target = $region80
            $region79: #{decoder_layer.4} parent=71 // pred_region
              %s460 = ssub.s32 256, 1
              loop: start=0, step=1, limit=1
              $region81: #{decoder_layer.4} parent=79 // loop_pre_header
                _
              $region82: #{decoder_layer.4} parent=79 // loop_header
                %s462 = sphi 0, %s466
                %p463 = scmp.ge.s32.totalorder %s462, 1
                %s467 = sphi %s452, %s452
                %s468 = sphi %s445, %s445
              $region83: #{decoder_layer.4} parent=79 // loop_header_branch
                %465 = sbr.rel (%p463) target = $region87
              $region84: #{decoder_layer.4} parent=79 // loop_body
                %v469 = vld [vmem:[%s467] sm:%s460]
                %470 = vst [vmem:[%s468] sm:%s460] %v469
                %v471 = vld [vmem:[%s467 + $0x10] sm:%s460]
                %472 = vst [vmem:[%s468 + $0x8] sm:%s460] %v471
                %v473 = vld [vmem:[%s467 + $0x20] sm:%s460]
                %474 = vst [vmem:[%s468 + $0x10] sm:%s460] %v473
                %v475 = vld [vmem:[%s467 + $0x30] sm:%s460]
                %476 = vst [vmem:[%s468 + $0x18] sm:%s460] %v475
              $region85: #{decoder_layer.4} parent=79 // loop_footer
                %s466 = sadd.s32 1, %s462
              $region86: #{decoder_layer.4} parent=79 // loop_footer_branch
                %461 = sbr.rel target = $region82
              $region87: #{decoder_layer.4} parent=79 // loop_exit
                _
            $region80: #{decoder_layer.4} parent=71 // pred_fallthru
              _
          $region72: #{decoder_layer.4} parent=67 // pred_fallthru
            _
          %497 = vnop
        $region68: #{decoder_layer.4} parent=55 // pred_fallthru
          _
      $region56: #{decoder_layer.4} parent=5 // pred_fallthru
        _
      %p498 = scmp.le.s32.totalorder 1, %s19
      %p499 = scmp.lt.s32.totalorder %s19, 5
      %p500 = pnand %p498, %p499
      %p501 = pneg %p500
      // Predicated region
      $region103: #{decoder_layer.4} parent=5 // pred_check
        _
      $region104: #{decoder_layer.4} parent=5 // pred_check_branch
        %503 = sbr.rel (%p500) target = $region106
      $region105: #{decoder_layer.4} parent=5 // pred_region
        %s504 = ssub.s32 %s19, 1
        %s505 = sand.u32 %s111, 1
        %s506 = sand.u32 %s111, 1
        %s507 = smul.addr %s506, 32
        %s508 = scalar_lea.vmem [#allocation6], %s507
        // Predicated region
        $region107: #{decoder_layer.4} parent=105 // pred_check
          %p509 = pneg %p124
        $region108: #{decoder_layer.4} parent=105 // pred_check_branch
          %511 = sbr.rel (%p509) target = $region110
        $region109: #{decoder_layer.4} parent=105 // pred_region
          _
        $region110: #{decoder_layer.4} parent=105 // pred_fallthru
          _
        %s512 = smul.u32 16, %s30
        %p513 = scmp.lt.s32.totalorder %s29, 1
        %s514 = scalar_select %p513, %s29, 1
        %p515 = scmp.lt.s32.totalorder %s512, 15
        %s516 = scalar_select %p515, %s512, 15
        %s517 = smul.addr %s516, 2
        %s518 = smul.addr %s514, 32
        %s519 = sadd.s32 %s517, %s518
        %s520 = smul.addr %s519, 8
        %s521 = scalar_lea.vmem %s0, %s520
        %p522 = pneg %p66
        %p523 = pneg %p63
        %s524 = smul.u32 16, %s31
        %p525 = scmp.lt.s32.totalorder %s29, 1
        %s526 = scalar_select %p525, %s29, 1
        %p527 = scmp.lt.s32.totalorder %s524, 31
        %s528 = scalar_select %p527, %s524, 31
        %s529 = smul.addr %s528, 2
        %s530 = smul.addr %s526, 64
        %s531 = sadd.s32 %s529, %s530
        %s532 = smul.addr %s531, 8
        %s533 = scalar_lea.vmem %s1, %s532
        %p534 = pneg %p94
        %p535 = pneg %p91
        %s536 = sand.u32 %s111, 1
        %s537 = sand.u32 %s111, 1
        %s538 = smul.addr %s537, 32
        %s539 = scalar_lea.vmem [#allocation6], %s538
        %p540 = pneg %p124
        %p541 = pneg %p121
        %p542 = pneg %p145
        %p543 = pneg %p142
        %p544 = pneg %p166
        %p545 = pneg %p163
        %p546 = pneg %p187
        %p547 = pneg %p184
        %p548 = pneg %p208
        %p549 = pneg %p205
        %p550 = pneg %p229
        %p551 = pneg %p226
        %p552 = pneg %p250
        %p553 = pneg %p247
        %p554 = pneg %p271
        %p555 = pneg %p268
        %p556 = pneg %p292
        %p557 = pneg %p289
        %p558 = pneg %p313
        %p559 = pneg %p310
        %p560 = pneg %p334
        %p561 = pneg %p331
        %p562 = pneg %p362
        %p563 = pneg %p359
        %s564 = smul.u32 16, %s30
        %p565 = scmp.lt.s32.totalorder %s29, 1
        %s566 = scalar_select %p565, %s29, 1
        %p567 = scmp.lt.s32.totalorder %s564, 15
        %s568 = scalar_select %p567, %s564, 15
        %s569 = smul.addr %s568, 2
        %s570 = smul.addr %s566, 32
        %s571 = sadd.s32 %s569, %s570
        %s572 = smul.addr %s571, 8
        %s573 = scalar_lea.vmem %s13, %s572
        %s574 = smul.u32 16, %s30
        %p575 = scmp.lt.s32.totalorder %s29, 1
        %s576 = scalar_select %p575, %s29, 1
        %p577 = scmp.lt.s32.totalorder %s574, 15
        %s578 = scalar_select %p577, %s574, 15
        %s579 = smul.addr %s578, 2
        %s580 = smul.addr %s576, 32
        %s581 = sadd.s32 %s579, %s580
        %s582 = smul.addr %s581, 8
        %s583 = scalar_lea.vmem %s0, %s582
        %s584 = smul.u32 16, %s30
        %s585 = smul.u32 16, %s31
        %p586 = scmp.lt.s32.totalorder %s29, 1
        %s587 = scalar_select %p586, %s29, 1
        %p588 = scmp.lt.s32.totalorder %s585, 31
        %s589 = scalar_select %p588, %s585, 31
        %s590 = smul.addr %s589, 2
        %s591 = smul.addr %s587, 64
        %s592 = sadd.s32 %s590, %s591
        %s593 = smul.addr %s592, 8
        %s594 = scalar_lea.vmem %s1, %s593
        %s595 = smul.u32 16, %s31
        %s596 = smul.u32 4, %s30
        %s597 = smul.u32 16, %s30
        %p598 = scmp.lt.s32.totalorder %s29, 1
        %s599 = scalar_select %p598, %s29, 1
        %p600 = scmp.lt.s32.totalorder %s597, 15
        %s601 = scalar_select %p600, %s597, 15
        %s602 = smul.addr %s601, 2
        %s603 = smul.addr %s599, 32
        %s604 = sadd.s32 %s602, %s603
        %s605 = smul.addr %s604, 8
        %s606 = scalar_lea.vmem %s13, %s605
        %s607 = smul.u32 16, %s30
        %p611 = scmp.eq.s32.totalorder %s31, 0
        // Predicated region
        $region111: #{decoder_layer.4} parent=105 // pred_check
          %p612 = pneg %p611
        $region112: #{decoder_layer.4} parent=105 // pred_check_branch
          %614 = sbr.rel (%p612) target = $region114
        $region113: #{decoder_layer.4} parent=105 // pred_region
          %v615 = vld [vmem:[%s583] sm:$0xff]
          %v616 = vld [vmem:[%s583 + $0x8] sm:$0xff]
          %v617 = vld [vmem:[%s583 + $0x10] sm:$0xff]
          %v618 = vld [vmem:[%s583 + $0x18] sm:$0xff]
          %v619 = vld [vmem:[%s583 + $0x20] sm:$0xff]
          %v620 = vld [vmem:[%s583 + $0x28] sm:$0xff]
          %v621 = vld [vmem:[%s583 + $0x30] sm:$0xff]
          %v622 = vld [vmem:[%s583 + $0x38] sm:$0xff]
          %v623 = vld [vmem:[%s583 + $0x40] sm:$0xff]
          %v624 = vld [vmem:[%s583 + $0x48] sm:$0xff]
          %v625 = vld [vmem:[%s583 + $0x50] sm:$0xff]
          %v626 = vld [vmem:[%s583 + $0x58] sm:$0xff]
          %v627 = vld [vmem:[%s583 + $0x60] sm:$0xff]
          %v628 = vld [vmem:[%s583 + $0x68] sm:$0xff]
          %v629 = vld [vmem:[%s583 + $0x70] sm:$0xff]
          %v630 = vld [vmem:[%s583 + $0x78] sm:$0xff]
          %v631 = vld [vmem:[%s583 + $0x80] sm:$0xff]
          %v632 = vld [vmem:[%s583 + $0x88] sm:$0xff]
          %v633 = vld [vmem:[%s583 + $0x90] sm:$0xff]
          %v634 = vld [vmem:[%s583 + $0x98] sm:$0xff]
          %v635 = vld [vmem:[%s583 + $0xa0] sm:$0xff]
          %v636 = vld [vmem:[%s583 + $0xa8] sm:$0xff]
          %v637 = vld [vmem:[%s583 + $0xb0] sm:$0xff]
          %v638 = vld [vmem:[%s583 + $0xb8] sm:$0xff]
          %v639 = vld [vmem:[%s583 + $0xc0] sm:$0xff]
          %v640 = vld [vmem:[%s583 + $0xc8] sm:$0xff]
          %v641 = vld [vmem:[%s583 + $0xd0] sm:$0xff]
          %v642 = vld [vmem:[%s583 + $0xd8] sm:$0xff]
          %v643 = vld [vmem:[%s583 + $0xe0] sm:$0xff]
          %v644 = vld [vmem:[%s583 + $0xe8] sm:$0xff]
          %v645 = vld [vmem:[%s583 + $0xf0] sm:$0xff]
          %v646 = vld [vmem:[%s583 + $0xf8] sm:$0xff]
          %v647 = vpack.c.bf16 %v617, %v615
          %v648 = vpack.c.bf16 %v618, %v616
          %v649 = vpack.c.bf16 %v621, %v619
          %v650 = vpack.c.bf16 %v622, %v620
          %v651 = vpack.c.bf16 %v625, %v623
          %v652 = vpack.c.bf16 %v626, %v624
          %v653 = vpack.c.bf16 %v629, %v627
          %v654 = vpack.c.bf16 %v630, %v628
          %v655 = vpack.c.bf16 %v633, %v631
          %v656 = vpack.c.bf16 %v634, %v632
          %v657 = vpack.c.bf16 %v637, %v635
          %v658 = vpack.c.bf16 %v638, %v636
          %v659 = vpack.c.bf16 %v641, %v639
          %v660 = vpack.c.bf16 %v642, %v640
          %v661 = vpack.c.bf16 %v645, %v643
          %v662 = vpack.c.bf16 %v646, %v644
          loop: start=0, step=1, limit=2
          $region115: #{decoder_layer.4} parent=113 // loop_pre_header
            _
          $region116: #{decoder_layer.4} parent=113 // loop_header
            %s664 = sphi 0, %s668
            %p665 = scmp.ge.s32.totalorder %s664, 2
          $region117: #{decoder_layer.4} parent=113 // loop_header_branch
            %667 = sbr.rel (%p665) target = $region121
          $region118: #{decoder_layer.4} parent=113 // loop_body
            %s669 = smul.u32 %s664, 32
            %s670 = smul.addr %s669, 4
            %s671 = scalar_lea.vmem %s3, %s670
            %v672 = vld [vmem:[%s671] sm:$0xf]
            %v673 = vld [vmem:[%s671 + $0x4] sm:$0xf]
            %v674 = vld [vmem:[%s671 + $0x8] sm:$0xf]
            %v675 = vld [vmem:[%s671 + $0xc] sm:$0xf]
            %v676 = vld [vmem:[%s671 + $0x10] sm:$0xf]
            %v677 = vld [vmem:[%s671 + $0x14] sm:$0xf]
            %v678 = vld [vmem:[%s671 + $0x18] sm:$0xf]
            %v679 = vld [vmem:[%s671 + $0x1c] sm:$0xf]
            %v680 = vld [vmem:[%s671 + $0x20] sm:$0xf]
            %v681 = vld [vmem:[%s671 + $0x24] sm:$0xf]
            %v682 = vld [vmem:[%s671 + $0x28] sm:$0xf]
            %v683 = vld [vmem:[%s671 + $0x2c] sm:$0xf]
            %v684 = vld [vmem:[%s671 + $0x30] sm:$0xf]
            %v685 = vld [vmem:[%s671 + $0x34] sm:$0xf]
            %v686 = vld [vmem:[%s671 + $0x38] sm:$0xf]
            %v687 = vld [vmem:[%s671 + $0x3c] sm:$0xf]
            %v688 = vld [vmem:[%s671 + $0x40] sm:$0xf]
            %v689 = vld [vmem:[%s671 + $0x44] sm:$0xf]
            %v690 = vld [vmem:[%s671 + $0x48] sm:$0xf]
            %v691 = vld [vmem:[%s671 + $0x4c] sm:$0xf]
            %v692 = vld [vmem:[%s671 + $0x50] sm:$0xf]
            %v693 = vld [vmem:[%s671 + $0x54] sm:$0xf]
            %v694 = vld [vmem:[%s671 + $0x58] sm:$0xf]
            %v695 = vld [vmem:[%s671 + $0x5c] sm:$0xf]
            %v696 = vld [vmem:[%s671 + $0x60] sm:$0xf]
            %v697 = vld [vmem:[%s671 + $0x64] sm:$0xf]
            %v698 = vld [vmem:[%s671 + $0x68] sm:$0xf]
            %v699 = vld [vmem:[%s671 + $0x6c] sm:$0xf]
            %v700 = vld [vmem:[%s671 + $0x70] sm:$0xf]
            %v701 = vld [vmem:[%s671 + $0x74] sm:$0xf]
            %v702 = vld [vmem:[%s671 + $0x78] sm:$0xf]
            %v703 = vld [vmem:[%s671 + $0x7c] sm:$0xf]
            %s704 = scalar_lea.vmem %s4, %s664
            %v705 = vld [vmem:[%s704] sm:$0x1]
            %v707 = vlaneseq
            %v708 = vshrl.u32 %v707, 7
            %v709 = vsub.s32 0, %v708
            %v710 = vrot.slane %v705, %v709
            %v744 = vunpack.c.l.b16 %v672
            %v745 = vunpack.c.l.b16 %v673
            %v746 = vunpack.c.l.b16 %v674
            %v747 = vunpack.c.l.b16 %v675
            %v748 = vunpack.c.l.b16 %v676
            %v749 = vunpack.c.l.b16 %v677
            %v750 = vunpack.c.l.b16 %v678
            %v751 = vunpack.c.l.b16 %v679
            %v752 = vunpack.c.l.b16 %v680
            %v753 = vunpack.c.l.b16 %v681
            %v754 = vunpack.c.l.b16 %v682
            %v755 = vunpack.c.l.b16 %v683
            %v756 = vunpack.c.l.b16 %v684
            %v757 = vunpack.c.l.b16 %v685
            %v758 = vunpack.c.l.b16 %v686
            %v759 = vunpack.c.l.b16 %v687
            %v760 = vunpack.c.l.b16 %v688
            %v761 = vunpack.c.l.b16 %v689
            %v762 = vunpack.c.l.b16 %v690
            %v763 = vunpack.c.l.b16 %v691
            %v764 = vunpack.c.l.b16 %v692
            %v765 = vunpack.c.l.b16 %v693
            %v766 = vunpack.c.l.b16 %v694
            %v767 = vunpack.c.l.b16 %v695
            %v768 = vunpack.c.l.b16 %v696
            %v769 = vunpack.c.l.b16 %v697
            %v770 = vunpack.c.l.b16 %v698
            %v771 = vunpack.c.l.b16 %v699
            %v772 = vunpack.c.l.b16 %v700
            %v773 = vunpack.c.l.b16 %v701
            %v774 = vunpack.c.l.b16 %v702
            %v775 = vunpack.c.l.b16 %v703
            %v776 = vpack.c.b16 %v745, %v744
            %v777 = vpack.c.b16 %v747, %v746
            %v778 = vpack.c.b16 %v749, %v748
            %v779 = vpack.c.b16 %v751, %v750
            %v780 = vpack.c.b16 %v753, %v752
            %v781 = vpack.c.b16 %v755, %v754
            %v782 = vpack.c.b16 %v757, %v756
            %v783 = vpack.c.b16 %v759, %v758
            %v784 = vpack.c.b16 %v761, %v760
            %v785 = vpack.c.b16 %v763, %v762
            %v786 = vpack.c.b16 %v765, %v764
            %v787 = vpack.c.b16 %v767, %v766
            %v788 = vpack.c.b16 %v769, %v768
            %v789 = vpack.c.b16 %v771, %v770
            %v790 = vpack.c.b16 %v773, %v772
            %v791 = vpack.c.b16 %v775, %v774
            %808 = vmatprep.subr.bf16.mxu0 0
            %809 = vmatpush1.bf16.msra.mxu0 %v783
            %810 = vmatprep.subr.bf16.mxu0 0
            %811 = vmatpush1.bf16.msra.mxu0 %v782
            %812 = vmatprep.subr.bf16.mxu0 0
            %813 = vmatpush1.bf16.msra.mxu0 %v781
            %814 = vmatprep.subr.bf16.mxu0 0
            %815 = vmatpush1.bf16.msra.mxu0 %v780
            %816 = vmatprep.subr.bf16.mxu0 0
            %817 = vmatpush1.bf16.msra.mxu0 %v779
            %818 = vmatprep.subr.bf16.mxu0 0
            %819 = vmatpush1.bf16.msra.mxu0 %v778
            %820 = vmatprep.subr.bf16.mxu0 0
            %821 = vmatpush1.bf16.msra.mxu0 %v777
            %822 = vmatprep.subr.bf16.mxu0 0
            %823 = vmatpush1.bf16.msra.mxu0 %v776
            %824 = vmatprep.subr.bf16.mxu0 0
            %825 = vmatpush2.bf16.msra.mxu0 %v791
            %826 = vmatprep.subr.bf16.mxu0 0
            %827 = vmatpush2.bf16.msra.mxu0 %v790
            %828 = vmatprep.subr.bf16.mxu0 0
            %829 = vmatpush2.bf16.msra.mxu0 %v789
            %830 = vmatprep.subr.bf16.mxu0 0
            %831 = vmatpush2.bf16.msra.mxu0 %v788
            %832 = vmatprep.subr.bf16.mxu0 0
            %833 = vmatpush2.bf16.msra.mxu0 %v787
            %834 = vmatprep.subr.bf16.mxu0 0
            %835 = vmatpush2.bf16.msra.mxu0 %v786
            %836 = vmatprep.subr.bf16.mxu0 0
            %837 = vmatpush2.bf16.msra.mxu0 %v785
            %838 = vmatprep.subr.bf16.mxu0 0
            %839 = vmatpush2.bf16.msra.mxu0 %v784
            %840 = vmatprep.mubr.bf16.mxu0 %v648
            %841 = vmatmul.mubr.bf16.gmra.mxu0 %v647
            %v842 = vpop.f32.mrf.mxu0
            %v843 = vadd.f32 %v710, %v842
            %v844 = vpop.f32.mrf.mxu0
            %v845 = vpop.f32.mrf.mxu0
            %v846 = vadd.f32 %v710, %v845
            %v847 = vpop.f32.mrf.mxu0
            %848 = vmatprep.mubr.bf16.mxu0 %v650
            %849 = vmatmul.mubr.bf16.gmra.mxu0 %v649
            %v850 = vpop.f32.mrf.mxu0
            %v851 = vadd.f32 %v710, %v850
            %v852 = vpop.f32.mrf.mxu0
            %v853 = vpop.f32.mrf.mxu0
            %v854 = vadd.f32 %v710, %v853
            %v855 = vpop.f32.mrf.mxu0
            %856 = vmatprep.mubr.bf16.mxu0 %v652
            %857 = vmatmul.mubr.bf16.gmra.mxu0 %v651
            %v858 = vpop.f32.mrf.mxu0
            %v859 = vadd.f32 %v710, %v858
            %v860 = vpop.f32.mrf.mxu0
            %v861 = vpop.f32.mrf.mxu0
            %v862 = vadd.f32 %v710, %v861
            %v863 = vpop.f32.mrf.mxu0
            %864 = vmatprep.mubr.bf16.mxu0 %v654
            %865 = vmatmul.mubr.bf16.gmra.mxu0 %v653
            %v866 = vpop.f32.mrf.mxu0
            %v867 = vadd.f32 %v710, %v866
            %v868 = vpop.f32.mrf.mxu0
            %v869 = vpop.f32.mrf.mxu0
            %v870 = vadd.f32 %v710, %v869
            %v871 = vpop.f32.mrf.mxu0
            %872 = vmatprep.mubr.bf16.mxu0 %v656
            %873 = vmatmul.mubr.bf16.gmra.mxu0 %v655
            %v874 = vpop.f32.mrf.mxu0
            %v875 = vadd.f32 %v710, %v874
            %v876 = vpop.f32.mrf.mxu0
            %v877 = vpop.f32.mrf.mxu0
            %v878 = vadd.f32 %v710, %v877
            %v879 = vpop.f32.mrf.mxu0
            %880 = vmatprep.mubr.bf16.mxu0 %v658
            %881 = vmatmul.mubr.bf16.gmra.mxu0 %v657
            %v882 = vpop.f32.mrf.mxu0
            %v883 = vadd.f32 %v710, %v882
            %v884 = vpop.f32.mrf.mxu0
            %v885 = vpop.f32.mrf.mxu0
            %v886 = vadd.f32 %v710, %v885
            %v887 = vpop.f32.mrf.mxu0
            %888 = vmatprep.mubr.bf16.mxu0 %v660
            %889 = vmatmul.mubr.bf16.gmra.mxu0 %v659
            %v890 = vpop.f32.mrf.mxu0
            %v891 = vadd.f32 %v710, %v890
            %v892 = vpop.f32.mrf.mxu0
            %v893 = vpop.f32.mrf.mxu0
            %v894 = vadd.f32 %v710, %v893
            %v895 = vpop.f32.mrf.mxu0
            %896 = vmatprep.mubr.bf16.mxu0 %v662
            %897 = vmatmul.mubr.bf16.gmra.mxu0 %v661
            %v898 = vpop.f32.mrf.mxu0
            %v899 = vadd.f32 %v710, %v898
            %v900 = vpop.f32.mrf.mxu0
            %v901 = vpop.f32.mrf.mxu0
            %v902 = vadd.f32 %v710, %v901
            %v903 = vpop.f32.mrf.mxu0
            %904 = vdwg.mxu0
            %v905 = vpack.c.bf16 %v846, %v843
            %v906 = vpack.c.bf16 %v854, %v851
            %v907 = vpack.c.bf16 %v862, %v859
            %v908 = vpack.c.bf16 %v870, %v867
            %v909 = vpack.c.bf16 %v878, %v875
            %v910 = vpack.c.bf16 %v886, %v883
            %v911 = vpack.c.bf16 %v894, %v891
            %v912 = vpack.c.bf16 %v902, %v899
            %v921 = vunpack.c.l.b16 %v905
            %v922 = vunpack.c.h.b16 %v905
            %v923 = vunpack.c.l.b16 %v906
            %v924 = vunpack.c.h.b16 %v906
            %v925 = vunpack.c.l.b16 %v907
            %v926 = vunpack.c.h.b16 %v907
            %v927 = vunpack.c.l.b16 %v908
            %v928 = vunpack.c.h.b16 %v908
            %v929 = vunpack.c.l.b16 %v909
            %v930 = vunpack.c.h.b16 %v909
            %v931 = vunpack.c.l.b16 %v910
            %v932 = vunpack.c.h.b16 %v910
            %v933 = vunpack.c.l.b16 %v911
            %v934 = vunpack.c.h.b16 %v911
            %v935 = vunpack.c.l.b16 %v912
            %v936 = vunpack.c.h.b16 %v912
            %v937 = vpack.c.b16 %v921, %v921
            %v938 = vpack.c.b16 %v922, %v922
            %v939 = vpack.c.b16 %v923, %v923
            %v940 = vpack.c.b16 %v924, %v924
            %v941 = vpack.c.b16 %v925, %v925
            %v942 = vpack.c.b16 %v926, %v926
            %v943 = vpack.c.b16 %v927, %v927
            %v944 = vpack.c.b16 %v928, %v928
            %v945 = vpack.c.b16 %v929, %v929
            %v946 = vpack.c.b16 %v930, %v930
            %v947 = vpack.c.b16 %v931, %v931
            %v948 = vpack.c.b16 %v932, %v932
            %v949 = vpack.c.b16 %v933, %v933
            %v950 = vpack.c.b16 %v934, %v934
            %v951 = vpack.c.b16 %v935, %v935
            %v952 = vpack.c.b16 %v936, %v936
            %s969 = smul.u32 %s664, 16
            %s970 = smul.addr %s969, 4
            %s971 = scalar_lea.vmem [#allocation2], %s970
            %972 = vst [vmem:[%s971] sm:$0xf] %v937
            %973 = vst [vmem:[%s971 + $0x4] sm:$0xf] %v938
            %974 = vst [vmem:[%s971 + $0x8] sm:$0xf] %v939
            %975 = vst [vmem:[%s971 + $0xc] sm:$0xf] %v940
            %976 = vst [vmem:[%s971 + $0x10] sm:$0xf] %v941
            %977 = vst [vmem:[%s971 + $0x14] sm:$0xf] %v942
            %978 = vst [vmem:[%s971 + $0x18] sm:$0xf] %v943
            %979 = vst [vmem:[%s971 + $0x1c] sm:$0xf] %v944
            %980 = vst [vmem:[%s971 + $0x20] sm:$0xf] %v945
            %981 = vst [vmem:[%s971 + $0x24] sm:$0xf] %v946
            %982 = vst [vmem:[%s971 + $0x28] sm:$0xf] %v947
            %983 = vst [vmem:[%s971 + $0x2c] sm:$0xf] %v948
            %984 = vst [vmem:[%s971 + $0x30] sm:$0xf] %v949
            %985 = vst [vmem:[%s971 + $0x34] sm:$0xf] %v950
            %986 = vst [vmem:[%s971 + $0x38] sm:$0xf] %v951
            %987 = vst [vmem:[%s971 + $0x3c] sm:$0xf] %v952
          $region119: #{decoder_layer.4} parent=113 // loop_footer
            %s668 = sadd.s32 1, %s664
          $region120: #{decoder_layer.4} parent=113 // loop_footer_branch
            %663 = sbr.rel target = $region116
          $region121: #{decoder_layer.4} parent=113 // loop_exit
            _
          %vm988 = vcmask 7168
          %989 = vst.msk [vmem:[#allocation4] sm:$0xff] %vm988, -1e+30
          %990 = vst.msk [vmem:[#allocation4 + $0x8] sm:$0xff] %vm988, -1e+30
          %991 = vst.msk [vmem:[#allocation4 + $0x10] sm:$0xff] %vm988, -1e+30
          %992 = vst.msk [vmem:[#allocation4 + $0x18] sm:$0xff] %vm988, -1e+30
          %993 = vst.msk [vmem:[#allocation4 + $0x20] sm:$0xff] %vm988, -1e+30
          %994 = vst.msk [vmem:[#allocation4 + $0x28] sm:$0xff] %vm988, -1e+30
          %995 = vst.msk [vmem:[#allocation4 + $0x30] sm:$0xff] %vm988, -1e+30
          %996 = vst.msk [vmem:[#allocation4 + $0x38] sm:$0xff] %vm988, -1e+30
          %997 = vst.msk [vmem:[#allocation4 + $0x40] sm:$0xff] %vm988, -1e+30
          %998 = vst.msk [vmem:[#allocation4 + $0x48] sm:$0xff] %vm988, -1e+30
          %999 = vst.msk [vmem:[#allocation4 + $0x50] sm:$0xff] %vm988, -1e+30
          %1000 = vst.msk [vmem:[#allocation4 + $0x58] sm:$0xff] %vm988, -1e+30
          %1001 = vst.msk [vmem:[#allocation4 + $0x60] sm:$0xff] %vm988, -1e+30
          %1002 = vst.msk [vmem:[#allocation4 + $0x68] sm:$0xff] %vm988, -1e+30
          %1003 = vst.msk [vmem:[#allocation4 + $0x70] sm:$0xff] %vm988, -1e+30
          %1004 = vst.msk [vmem:[#allocation4 + $0x78] sm:$0xff] %vm988, -1e+30
          %1005 = vst.msk [vmem:[#allocation4 + $0x80] sm:$0xff] %vm988, -1e+30
          %1006 = vst.msk [vmem:[#allocation4 + $0x88] sm:$0xff] %vm988, -1e+30
          %1007 = vst.msk [vmem:[#allocation4 + $0x90] sm:$0xff] %vm988, -1e+30
          %1008 = vst.msk [vmem:[#allocation4 + $0x98] sm:$0xff] %vm988, -1e+30
          %1009 = vst.msk [vmem:[#allocation4 + $0xa0] sm:$0xff] %vm988, -1e+30
          %1010 = vst.msk [vmem:[#allocation4 + $0xa8] sm:$0xff] %vm988, -1e+30
          %1011 = vst.msk [vmem:[#allocation4 + $0xb0] sm:$0xff] %vm988, -1e+30
          %1012 = vst.msk [vmem:[#allocation4 + $0xb8] sm:$0xff] %vm988, -1e+30
          %1013 = vst.msk [vmem:[#allocation4 + $0xc0] sm:$0xff] %vm988, -1e+30
          %1014 = vst.msk [vmem:[#allocation4 + $0xc8] sm:$0xff] %vm988, -1e+30
          %1015 = vst.msk [vmem:[#allocation4 + $0xd0] sm:$0xff] %vm988, -1e+30
          %1016 = vst.msk [vmem:[#allocation4 + $0xd8] sm:$0xff] %vm988, -1e+30
          %1017 = vst.msk [vmem:[#allocation4 + $0xe0] sm:$0xff] %vm988, -1e+30
          %1018 = vst.msk [vmem:[#allocation4 + $0xe8] sm:$0xff] %vm988, -1e+30
          %1019 = vst.msk [vmem:[#allocation4 + $0xf0] sm:$0xff] %vm988, -1e+30
          %1020 = vst.msk [vmem:[#allocation4 + $0xf8] sm:$0xff] %vm988, -1e+30
          %1021 = vst.msk [vmem:[#allocation5] sm:$0xff] %vm988, 0.0
          %1022 = vst.msk [vmem:[#allocation5 + $0x8] sm:$0xff] %vm988, 0.0
          %1023 = vst.msk [vmem:[#allocation5 + $0x10] sm:$0xff] %vm988, 0.0
          %1024 = vst.msk [vmem:[#allocation5 + $0x18] sm:$0xff] %vm988, 0.0
          %1025 = vst.msk [vmem:[#allocation5 + $0x20] sm:$0xff] %vm988, 0.0
          %1026 = vst.msk [vmem:[#allocation5 + $0x28] sm:$0xff] %vm988, 0.0
          %1027 = vst.msk [vmem:[#allocation5 + $0x30] sm:$0xff] %vm988, 0.0
          %1028 = vst.msk [vmem:[#allocation5 + $0x38] sm:$0xff] %vm988, 0.0
          %1029 = vst.msk [vmem:[#allocation5 + $0x40] sm:$0xff] %vm988, 0.0
          %1030 = vst.msk [vmem:[#allocation5 + $0x48] sm:$0xff] %vm988, 0.0
          %1031 = vst.msk [vmem:[#allocation5 + $0x50] sm:$0xff] %vm988, 0.0
          %1032 = vst.msk [vmem:[#allocation5 + $0x58] sm:$0xff] %vm988, 0.0
          %1033 = vst.msk [vmem:[#allocation5 + $0x60] sm:$0xff] %vm988, 0.0
          %1034 = vst.msk [vmem:[#allocation5 + $0x68] sm:$0xff] %vm988, 0.0
          %1035 = vst.msk [vmem:[#allocation5 + $0x70] sm:$0xff] %vm988, 0.0
          %1036 = vst.msk [vmem:[#allocation5 + $0x78] sm:$0xff] %vm988, 0.0
          %1037 = vst.msk [vmem:[#allocation5 + $0x80] sm:$0xff] %vm988, 0.0
          %1038 = vst.msk [vmem:[#allocation5 + $0x88] sm:$0xff] %vm988, 0.0
          %1039 = vst.msk [vmem:[#allocation5 + $0x90] sm:$0xff] %vm988, 0.0
          %1040 = vst.msk [vmem:[#allocation5 + $0x98] sm:$0xff] %vm988, 0.0
          %1041 = vst.msk [vmem:[#allocation5 + $0xa0] sm:$0xff] %vm988, 0.0
          %1042 = vst.msk [vmem:[#allocation5 + $0xa8] sm:$0xff] %vm988, 0.0
          %1043 = vst.msk [vmem:[#allocation5 + $0xb0] sm:$0xff] %vm988, 0.0
          %1044 = vst.msk [vmem:[#allocation5 + $0xb8] sm:$0xff] %vm988, 0.0
          %1045 = vst.msk [vmem:[#allocation5 + $0xc0] sm:$0xff] %vm988, 0.0
          %1046 = vst.msk [vmem:[#allocation5 + $0xc8] sm:$0xff] %vm988, 0.0
          %1047 = vst.msk [vmem:[#allocation5 + $0xd0] sm:$0xff] %vm988, 0.0
          %1048 = vst.msk [vmem:[#allocation5 + $0xd8] sm:$0xff] %vm988, 0.0
          %1049 = vst.msk [vmem:[#allocation5 + $0xe0] sm:$0xff] %vm988, 0.0
          %1050 = vst.msk [vmem:[#allocation5 + $0xe8] sm:$0xff] %vm988, 0.0
          %1051 = vst.msk [vmem:[#allocation5 + $0xf0] sm:$0xff] %vm988, 0.0
          %1052 = vst.msk [vmem:[#allocation5 + $0xf8] sm:$0xff] %vm988, 0.0
          %1053 = vst [vmem:[#allocation3] sm:$0xff] 0.0
          %1054 = vst [vmem:[#allocation3 + $0x8] sm:$0xff] 0.0
          %1055 = vst [vmem:[#allocation3 + $0x10] sm:$0xff] 0.0
          %1056 = vst [vmem:[#allocation3 + $0x18] sm:$0xff] 0.0
          %1057 = vst [vmem:[#allocation3 + $0x20] sm:$0xff] 0.0
          %1058 = vst [vmem:[#allocation3 + $0x28] sm:$0xff] 0.0
          %1059 = vst [vmem:[#allocation3 + $0x30] sm:$0xff] 0.0
          %1060 = vst [vmem:[#allocation3 + $0x38] sm:$0xff] 0.0
          %1061 = vst [vmem:[#allocation3 + $0x40] sm:$0xff] 0.0
          %1062 = vst [vmem:[#allocation3 + $0x48] sm:$0xff] 0.0
          %1063 = vst [vmem:[#allocation3 + $0x50] sm:$0xff] 0.0
          %1064 = vst [vmem:[#allocation3 + $0x58] sm:$0xff] 0.0
          %1065 = vst [vmem:[#allocation3 + $0x60] sm:$0xff] 0.0
          %1066 = vst [vmem:[#allocation3 + $0x68] sm:$0xff] 0.0
          %1067 = vst [vmem:[#allocation3 + $0x70] sm:$0xff] 0.0
          %1068 = vst [vmem:[#allocation3 + $0x78] sm:$0xff] 0.0
          %1069 = vst [vmem:[#allocation3 + $0x80] sm:$0xff] 0.0
          %1070 = vst [vmem:[#allocation3 + $0x88] sm:$0xff] 0.0
          %1071 = vst [vmem:[#allocation3 + $0x90] sm:$0xff] 0.0
          %1072 = vst [vmem:[#allocation3 + $0x98] sm:$0xff] 0.0
          %1073 = vst [vmem:[#allocation3 + $0xa0] sm:$0xff] 0.0
          %1074 = vst [vmem:[#allocation3 + $0xa8] sm:$0xff] 0.0
          %1075 = vst [vmem:[#allocation3 + $0xb0] sm:$0xff] 0.0
          %1076 = vst [vmem:[#allocation3 + $0xb8] sm:$0xff] 0.0
          %1077 = vst [vmem:[#allocation3 + $0xc0] sm:$0xff] 0.0
          %1078 = vst [vmem:[#allocation3 + $0xc8] sm:$0xff] 0.0
          %1079 = vst [vmem:[#allocation3 + $0xd0] sm:$0xff] 0.0
          %1080 = vst [vmem:[#allocation3 + $0xd8] sm:$0xff] 0.0
          %1081 = vst [vmem:[#allocation3 + $0xe0] sm:$0xff] 0.0
          %1082 = vst [vmem:[#allocation3 + $0xe8] sm:$0xff] 0.0
          %1083 = vst [vmem:[#allocation3 + $0xf0] sm:$0xff] 0.0
          %1084 = vst [vmem:[#allocation3 + $0xf8] sm:$0xff] 0.0
        $region114: #{decoder_layer.4} parent=105 // pred_fallthru
          _
        %v1085 = vld [vmem:[%s594] sm:$0xff]
        %v1086 = vld [vmem:[%s594 + $0x8] sm:$0xff]
        %v1087 = vld [vmem:[%s594 + $0x10] sm:$0xff]
        %v1088 = vld [vmem:[%s594 + $0x18] sm:$0xff]
        %v1089 = vld [vmem:[%s594 + $0x20] sm:$0xff]
        %v1090 = vld [vmem:[%s594 + $0x28] sm:$0xff]
        %v1091 = vld [vmem:[%s594 + $0x30] sm:$0xff]
        %v1092 = vld [vmem:[%s594 + $0x38] sm:$0xff]
        %v1093 = vld [vmem:[%s594 + $0x40] sm:$0xff]
        %v1094 = vld [vmem:[%s594 + $0x48] sm:$0xff]
        %v1095 = vld [vmem:[%s594 + $0x50] sm:$0xff]
        %v1096 = vld [vmem:[%s594 + $0x58] sm:$0xff]
        %v1097 = vld [vmem:[%s594 + $0x60] sm:$0xff]
        %v1098 = vld [vmem:[%s594 + $0x68] sm:$0xff]
        %v1099 = vld [vmem:[%s594 + $0x70] sm:$0xff]
        %v1100 = vld [vmem:[%s594 + $0x78] sm:$0xff]
        %v1101 = vld [vmem:[%s594 + $0x80] sm:$0xff]
        %v1102 = vld [vmem:[%s594 + $0x88] sm:$0xff]
        %v1103 = vld [vmem:[%s594 + $0x90] sm:$0xff]
        %v1104 = vld [vmem:[%s594 + $0x98] sm:$0xff]
        %v1105 = vld [vmem:[%s594 + $0xa0] sm:$0xff]
        %v1106 = vld [vmem:[%s594 + $0xa8] sm:$0xff]
        %v1107 = vld [vmem:[%s594 + $0xb0] sm:$0xff]
        %v1108 = vld [vmem:[%s594 + $0xb8] sm:$0xff]
        %v1109 = vld [vmem:[%s594 + $0xc0] sm:$0xff]
        %v1110 = vld [vmem:[%s594 + $0xc8] sm:$0xff]
        %v1111 = vld [vmem:[%s594 + $0xd0] sm:$0xff]
        %v1112 = vld [vmem:[%s594 + $0xd8] sm:$0xff]
        %v1113 = vld [vmem:[%s594 + $0xe0] sm:$0xff]
        %v1114 = vld [vmem:[%s594 + $0xe8] sm:$0xff]
        %v1115 = vld [vmem:[%s594 + $0xf0] sm:$0xff]
        %v1116 = vld [vmem:[%s594 + $0xf8] sm:$0xff]
        %v1117 = vpack.c.bf16 %v1087, %v1085
        %v1118 = vpack.c.bf16 %v1088, %v1086
        %v1119 = vpack.c.bf16 %v1091, %v1089
        %v1120 = vpack.c.bf16 %v1092, %v1090
        %v1121 = vpack.c.bf16 %v1095, %v1093
        %v1122 = vpack.c.bf16 %v1096, %v1094
        %v1123 = vpack.c.bf16 %v1099, %v1097
        %v1124 = vpack.c.bf16 %v1100, %v1098
        %v1125 = vpack.c.bf16 %v1103, %v1101
        %v1126 = vpack.c.bf16 %v1104, %v1102
        %v1127 = vpack.c.bf16 %v1107, %v1105
        %v1128 = vpack.c.bf16 %v1108, %v1106
        %v1129 = vpack.c.bf16 %v1111, %v1109
        %v1130 = vpack.c.bf16 %v1112, %v1110
        %v1131 = vpack.c.bf16 %v1115, %v1113
        %v1132 = vpack.c.bf16 %v1116, %v1114
        %v1133 = vld [vmem:[%s508] sm:$0xff]
        %v1134 = vld [vmem:[%s508 + $0x8] sm:$0xff]
        %v1135 = vld [vmem:[%s508 + $0x10] sm:$0xff]
        %v1136 = vld [vmem:[%s508 + $0x18] sm:$0xff]
        %vm1137 = vnez %v1133
        %vm1138 = vnez %v1134
        %vm1139 = vnez %v1135
        %vm1140 = vnez %v1136
        loop: start=0, step=1, limit=2
        $region122: #{decoder_layer.4} parent=105 // loop_pre_header
          _
        $region123: #{decoder_layer.4} parent=105 // loop_header
          %s1142 = sphi 0, %s1146
          %p1143 = scmp.ge.s32.totalorder %s1142, 2
        $region124: #{decoder_layer.4} parent=105 // loop_header_branch
          %1145 = sbr.rel (%p1143) target = $region128
        $region125: #{decoder_layer.4} parent=105 // loop_body
          %s1147 = smul.u32 %s1142, 32
          %s1148 = smul.addr %s1147, 4
          %s1149 = scalar_lea.vmem %s5, %s1148
          %v1150 = vld [vmem:[%s1149] sm:$0xf]
          %v1151 = vld [vmem:[%s1149 + $0x4] sm:$0xf]
          %v1152 = vld [vmem:[%s1149 + $0x8] sm:$0xf]
          %v1153 = vld [vmem:[%s1149 + $0xc] sm:$0xf]
          %v1154 = vld [vmem:[%s1149 + $0x10] sm:$0xf]
          %v1155 = vld [vmem:[%s1149 + $0x14] sm:$0xf]
          %v1156 = vld [vmem:[%s1149 + $0x18] sm:$0xf]
          %v1157 = vld [vmem:[%s1149 + $0x1c] sm:$0xf]
          %v1158 = vld [vmem:[%s1149 + $0x20] sm:$0xf]
          %v1159 = vld [vmem:[%s1149 + $0x24] sm:$0xf]
          %v1160 = vld [vmem:[%s1149 + $0x28] sm:$0xf]
          %v1161 = vld [vmem:[%s1149 + $0x2c] sm:$0xf]
          %v1162 = vld [vmem:[%s1149 + $0x30] sm:$0xf]
          %v1163 = vld [vmem:[%s1149 + $0x34] sm:$0xf]
          %v1164 = vld [vmem:[%s1149 + $0x38] sm:$0xf]
          %v1165 = vld [vmem:[%s1149 + $0x3c] sm:$0xf]
          %v1166 = vld [vmem:[%s1149 + $0x40] sm:$0xf]
          %v1167 = vld [vmem:[%s1149 + $0x44] sm:$0xf]
          %v1168 = vld [vmem:[%s1149 + $0x48] sm:$0xf]
          %v1169 = vld [vmem:[%s1149 + $0x4c] sm:$0xf]
          %v1170 = vld [vmem:[%s1149 + $0x50] sm:$0xf]
          %v1171 = vld [vmem:[%s1149 + $0x54] sm:$0xf]
          %v1172 = vld [vmem:[%s1149 + $0x58] sm:$0xf]
          %v1173 = vld [vmem:[%s1149 + $0x5c] sm:$0xf]
          %v1174 = vld [vmem:[%s1149 + $0x60] sm:$0xf]
          %v1175 = vld [vmem:[%s1149 + $0x64] sm:$0xf]
          %v1176 = vld [vmem:[%s1149 + $0x68] sm:$0xf]
          %v1177 = vld [vmem:[%s1149 + $0x6c] sm:$0xf]
          %v1178 = vld [vmem:[%s1149 + $0x70] sm:$0xf]
          %v1179 = vld [vmem:[%s1149 + $0x74] sm:$0xf]
          %v1180 = vld [vmem:[%s1149 + $0x78] sm:$0xf]
          %v1181 = vld [vmem:[%s1149 + $0x7c] sm:$0xf]
          %s1182 = scalar_lea.vmem %s6, %s1142
          %v1183 = vld [vmem:[%s1182] sm:$0x1]
          %v1185 = vlaneseq
          %v1186 = vshrl.u32 %v1185, 7
          %v1187 = vsub.s32 0, %v1186
          %v1188 = vrot.slane %v1183, %v1187
          %v1222 = vunpack.c.l.b16 %v1150
          %v1223 = vunpack.c.l.b16 %v1151
          %v1224 = vunpack.c.l.b16 %v1152
          %v1225 = vunpack.c.l.b16 %v1153
          %v1226 = vunpack.c.l.b16 %v1154
          %v1227 = vunpack.c.l.b16 %v1155
          %v1228 = vunpack.c.l.b16 %v1156
          %v1229 = vunpack.c.l.b16 %v1157
          %v1230 = vunpack.c.l.b16 %v1158
          %v1231 = vunpack.c.l.b16 %v1159
          %v1232 = vunpack.c.l.b16 %v1160
          %v1233 = vunpack.c.l.b16 %v1161
          %v1234 = vunpack.c.l.b16 %v1162
          %v1235 = vunpack.c.l.b16 %v1163
          %v1236 = vunpack.c.l.b16 %v1164
          %v1237 = vunpack.c.l.b16 %v1165
          %v1238 = vunpack.c.l.b16 %v1166
          %v1239 = vunpack.c.l.b16 %v1167
          %v1240 = vunpack.c.l.b16 %v1168
          %v1241 = vunpack.c.l.b16 %v1169
          %v1242 = vunpack.c.l.b16 %v1170
          %v1243 = vunpack.c.l.b16 %v1171
          %v1244 = vunpack.c.l.b16 %v1172
          %v1245 = vunpack.c.l.b16 %v1173
          %v1246 = vunpack.c.l.b16 %v1174
          %v1247 = vunpack.c.l.b16 %v1175
          %v1248 = vunpack.c.l.b16 %v1176
          %v1249 = vunpack.c.l.b16 %v1177
          %v1250 = vunpack.c.l.b16 %v1178
          %v1251 = vunpack.c.l.b16 %v1179
          %v1252 = vunpack.c.l.b16 %v1180
          %v1253 = vunpack.c.l.b16 %v1181
          %v1254 = vpack.c.b16 %v1223, %v1222
          %v1255 = vpack.c.b16 %v1225, %v1224
          %v1256 = vpack.c.b16 %v1227, %v1226
          %v1257 = vpack.c.b16 %v1229, %v1228
          %v1258 = vpack.c.b16 %v1231, %v1230
          %v1259 = vpack.c.b16 %v1233, %v1232
          %v1260 = vpack.c.b16 %v1235, %v1234
          %v1261 = vpack.c.b16 %v1237, %v1236
          %v1262 = vpack.c.b16 %v1239, %v1238
          %v1263 = vpack.c.b16 %v1241, %v1240
          %v1264 = vpack.c.b16 %v1243, %v1242
          %v1265 = vpack.c.b16 %v1245, %v1244
          %v1266 = vpack.c.b16 %v1247, %v1246
          %v1267 = vpack.c.b16 %v1249, %v1248
          %v1268 = vpack.c.b16 %v1251, %v1250
          %v1269 = vpack.c.b16 %v1253, %v1252
          %1286 = vmatprep.subr.bf16.mxu0 0
          %1287 = vmatpush1.bf16.msra.mxu0 %v1261
          %1288 = vmatprep.subr.bf16.mxu0 0
          %1289 = vmatpush1.bf16.msra.mxu0 %v1260
          %1290 = vmatprep.subr.bf16.mxu0 0
          %1291 = vmatpush1.bf16.msra.mxu0 %v1259
          %1292 = vmatprep.subr.bf16.mxu0 0
          %1293 = vmatpush1.bf16.msra.mxu0 %v1258
          %1294 = vmatprep.subr.bf16.mxu0 0
          %1295 = vmatpush1.bf16.msra.mxu0 %v1257
          %1296 = vmatprep.subr.bf16.mxu0 0
          %1297 = vmatpush1.bf16.msra.mxu0 %v1256
          %1298 = vmatprep.subr.bf16.mxu0 0
          %1299 = vmatpush1.bf16.msra.mxu0 %v1255
          %1300 = vmatprep.subr.bf16.mxu0 0
          %1301 = vmatpush1.bf16.msra.mxu0 %v1254
          %1302 = vmatprep.subr.bf16.mxu0 0
          %1303 = vmatpush2.bf16.msra.mxu0 %v1269
          %1304 = vmatprep.subr.bf16.mxu0 0
          %1305 = vmatpush2.bf16.msra.mxu0 %v1268
          %1306 = vmatprep.subr.bf16.mxu0 0
          %1307 = vmatpush2.bf16.msra.mxu0 %v1267
          %1308 = vmatprep.subr.bf16.mxu0 0
          %1309 = vmatpush2.bf16.msra.mxu0 %v1266
          %1310 = vmatprep.subr.bf16.mxu0 0
          %1311 = vmatpush2.bf16.msra.mxu0 %v1265
          %1312 = vmatprep.subr.bf16.mxu0 0
          %1313 = vmatpush2.bf16.msra.mxu0 %v1264
          %1314 = vmatprep.subr.bf16.mxu0 0
          %1315 = vmatpush2.bf16.msra.mxu0 %v1263
          %1316 = vmatprep.subr.bf16.mxu0 0
          %1317 = vmatpush2.bf16.msra.mxu0 %v1262
          %1318 = vmatprep.mubr.bf16.mxu0 %v1118
          %1319 = vmatmul.mubr.bf16.gmra.mxu0 %v1117
          %v1320 = vpop.f32.mrf.mxu0
          %v1321 = vadd.f32 %v1188, %v1320
          %v1322 = vpop.f32.mrf.mxu0
          %v1323 = vpop.f32.mrf.mxu0
          %v1324 = vadd.f32 %v1188, %v1323
          %v1325 = vpop.f32.mrf.mxu0
          %1326 = vmatprep.mubr.bf16.mxu0 %v1120
          %1327 = vmatmul.mubr.bf16.gmra.mxu0 %v1119
          %v1328 = vpop.f32.mrf.mxu0
          %v1329 = vadd.f32 %v1188, %v1328
          %v1330 = vpop.f32.mrf.mxu0
          %v1331 = vpop.f32.mrf.mxu0
          %v1332 = vadd.f32 %v1188, %v1331
          %v1333 = vpop.f32.mrf.mxu0
          %1334 = vmatprep.mubr.bf16.mxu0 %v1122
          %1335 = vmatmul.mubr.bf16.gmra.mxu0 %v1121
          %v1336 = vpop.f32.mrf.mxu0
          %v1337 = vadd.f32 %v1188, %v1336
          %v1338 = vpop.f32.mrf.mxu0
          %v1339 = vpop.f32.mrf.mxu0
          %v1340 = vadd.f32 %v1188, %v1339
          %v1341 = vpop.f32.mrf.mxu0
          %1342 = vmatprep.mubr.bf16.mxu0 %v1124
          %1343 = vmatmul.mubr.bf16.gmra.mxu0 %v1123
          %v1344 = vpop.f32.mrf.mxu0
          %v1345 = vadd.f32 %v1188, %v1344
          %v1346 = vpop.f32.mrf.mxu0
          %v1347 = vpop.f32.mrf.mxu0
          %v1348 = vadd.f32 %v1188, %v1347
          %v1349 = vpop.f32.mrf.mxu0
          %1350 = vmatprep.mubr.bf16.mxu0 %v1126
          %1351 = vmatmul.mubr.bf16.gmra.mxu0 %v1125
          %v1352 = vpop.f32.mrf.mxu0
          %v1353 = vadd.f32 %v1188, %v1352
          %v1354 = vpop.f32.mrf.mxu0
          %v1355 = vpop.f32.mrf.mxu0
          %v1356 = vadd.f32 %v1188, %v1355
          %v1357 = vpop.f32.mrf.mxu0
          %1358 = vmatprep.mubr.bf16.mxu0 %v1128
          %1359 = vmatmul.mubr.bf16.gmra.mxu0 %v1127
          %v1360 = vpop.f32.mrf.mxu0
          %v1361 = vadd.f32 %v1188, %v1360
          %v1362 = vpop.f32.mrf.mxu0
          %v1363 = vpop.f32.mrf.mxu0
          %v1364 = vadd.f32 %v1188, %v1363
          %v1365 = vpop.f32.mrf.mxu0
          %1366 = vmatprep.mubr.bf16.mxu0 %v1130
          %1367 = vmatmul.mubr.bf16.gmra.mxu0 %v1129
          %v1368 = vpop.f32.mrf.mxu0
          %v1369 = vadd.f32 %v1188, %v1368
          %v1370 = vpop.f32.mrf.mxu0
          %v1371 = vpop.f32.mrf.mxu0
          %v1372 = vadd.f32 %v1188, %v1371
          %v1373 = vpop.f32.mrf.mxu0
          %1374 = vmatprep.mubr.bf16.mxu0 %v1132
          %1375 = vmatmul.mubr.bf16.gmra.mxu0 %v1131
          %v1376 = vpop.f32.mrf.mxu0
          %v1377 = vadd.f32 %v1188, %v1376
          %v1378 = vpop.f32.mrf.mxu0
          %v1379 = vpop.f32.mrf.mxu0
          %v1380 = vadd.f32 %v1188, %v1379
          %v1381 = vpop.f32.mrf.mxu0
          %1382 = vdwg.mxu0
          %v1383 = vpack.c.bf16 %v1324, %v1321
          %v1384 = vpack.c.bf16 %v1332, %v1329
          %v1385 = vpack.c.bf16 %v1340, %v1337
          %v1386 = vpack.c.bf16 %v1348, %v1345
          %v1387 = vpack.c.bf16 %v1356, %v1353
          %v1388 = vpack.c.bf16 %v1364, %v1361
          %v1389 = vpack.c.bf16 %v1372, %v1369
          %v1390 = vpack.c.bf16 %v1380, %v1377
          %s1391 = smul.addr %s1147, 4
          %s1392 = scalar_lea.vmem %s7, %s1391
          %v1393 = vld [vmem:[%s1392] sm:$0xf]
          %v1394 = vld [vmem:[%s1392 + $0x4] sm:$0xf]
          %v1395 = vld [vmem:[%s1392 + $0x8] sm:$0xf]
          %v1396 = vld [vmem:[%s1392 + $0xc] sm:$0xf]
          %v1397 = vld [vmem:[%s1392 + $0x10] sm:$0xf]
          %v1398 = vld [vmem:[%s1392 + $0x14] sm:$0xf]
          %v1399 = vld [vmem:[%s1392 + $0x18] sm:$0xf]
          %v1400 = vld [vmem:[%s1392 + $0x1c] sm:$0xf]
          %v1401 = vld [vmem:[%s1392 + $0x20] sm:$0xf]
          %v1402 = vld [vmem:[%s1392 + $0x24] sm:$0xf]
          %v1403 = vld [vmem:[%s1392 + $0x28] sm:$0xf]
          %v1404 = vld [vmem:[%s1392 + $0x2c] sm:$0xf]
          %v1405 = vld [vmem:[%s1392 + $0x30] sm:$0xf]
          %v1406 = vld [vmem:[%s1392 + $0x34] sm:$0xf]
          %v1407 = vld [vmem:[%s1392 + $0x38] sm:$0xf]
          %v1408 = vld [vmem:[%s1392 + $0x3c] sm:$0xf]
          %v1409 = vld [vmem:[%s1392 + $0x40] sm:$0xf]
          %v1410 = vld [vmem:[%s1392 + $0x44] sm:$0xf]
          %v1411 = vld [vmem:[%s1392 + $0x48] sm:$0xf]
          %v1412 = vld [vmem:[%s1392 + $0x4c] sm:$0xf]
          %v1413 = vld [vmem:[%s1392 + $0x50] sm:$0xf]
          %v1414 = vld [vmem:[%s1392 + $0x54] sm:$0xf]
          %v1415 = vld [vmem:[%s1392 + $0x58] sm:$0xf]
          %v1416 = vld [vmem:[%s1392 + $0x5c] sm:$0xf]
          %v1417 = vld [vmem:[%s1392 + $0x60] sm:$0xf]
          %v1418 = vld [vmem:[%s1392 + $0x64] sm:$0xf]
          %v1419 = vld [vmem:[%s1392 + $0x68] sm:$0xf]
          %v1420 = vld [vmem:[%s1392 + $0x6c] sm:$0xf]
          %v1421 = vld [vmem:[%s1392 + $0x70] sm:$0xf]
          %v1422 = vld [vmem:[%s1392 + $0x74] sm:$0xf]
          %v1423 = vld [vmem:[%s1392 + $0x78] sm:$0xf]
          %v1424 = vld [vmem:[%s1392 + $0x7c] sm:$0xf]
          %s1425 = scalar_lea.vmem %s8, %s1142
          %v1426 = vld [vmem:[%s1425] sm:$0x1]
          %v1428 = vlaneseq
          %v1429 = vshrl.u32 %v1428, 7
          %v1430 = vsub.s32 0, %v1429
          %v1431 = vrot.slane %v1426, %v1430
          %v1465 = vunpack.c.l.b16 %v1393
          %v1466 = vunpack.c.l.b16 %v1394
          %v1467 = vunpack.c.l.b16 %v1395
          %v1468 = vunpack.c.l.b16 %v1396
          %v1469 = vunpack.c.l.b16 %v1397
          %v1470 = vunpack.c.l.b16 %v1398
          %v1471 = vunpack.c.l.b16 %v1399
          %v1472 = vunpack.c.l.b16 %v1400
          %v1473 = vunpack.c.l.b16 %v1401
          %v1474 = vunpack.c.l.b16 %v1402
          %v1475 = vunpack.c.l.b16 %v1403
          %v1476 = vunpack.c.l.b16 %v1404
          %v1477 = vunpack.c.l.b16 %v1405
          %v1478 = vunpack.c.l.b16 %v1406
          %v1479 = vunpack.c.l.b16 %v1407
          %v1480 = vunpack.c.l.b16 %v1408
          %v1481 = vunpack.c.l.b16 %v1409
          %v1482 = vunpack.c.l.b16 %v1410
          %v1483 = vunpack.c.l.b16 %v1411
          %v1484 = vunpack.c.l.b16 %v1412
          %v1485 = vunpack.c.l.b16 %v1413
          %v1486 = vunpack.c.l.b16 %v1414
          %v1487 = vunpack.c.l.b16 %v1415
          %v1488 = vunpack.c.l.b16 %v1416
          %v1489 = vunpack.c.l.b16 %v1417
          %v1490 = vunpack.c.l.b16 %v1418
          %v1491 = vunpack.c.l.b16 %v1419
          %v1492 = vunpack.c.l.b16 %v1420
          %v1493 = vunpack.c.l.b16 %v1421
          %v1494 = vunpack.c.l.b16 %v1422
          %v1495 = vunpack.c.l.b16 %v1423
          %v1496 = vunpack.c.l.b16 %v1424
          %v1497 = vpack.c.b16 %v1466, %v1465
          %v1498 = vpack.c.b16 %v1468, %v1467
          %v1499 = vpack.c.b16 %v1470, %v1469
          %v1500 = vpack.c.b16 %v1472, %v1471
          %v1501 = vpack.c.b16 %v1474, %v1473
          %v1502 = vpack.c.b16 %v1476, %v1475
          %v1503 = vpack.c.b16 %v1478, %v1477
          %v1504 = vpack.c.b16 %v1480, %v1479
          %v1505 = vpack.c.b16 %v1482, %v1481
          %v1506 = vpack.c.b16 %v1484, %v1483
          %v1507 = vpack.c.b16 %v1486, %v1485
          %v1508 = vpack.c.b16 %v1488, %v1487
          %v1509 = vpack.c.b16 %v1490, %v1489
          %v1510 = vpack.c.b16 %v1492, %v1491
          %v1511 = vpack.c.b16 %v1494, %v1493
          %v1512 = vpack.c.b16 %v1496, %v1495
          %1529 = vmatprep.subr.bf16.mxu0 0
          %1530 = vmatpush1.bf16.msra.mxu0 %v1504
          %1531 = vmatprep.subr.bf16.mxu0 0
          %1532 = vmatpush1.bf16.msra.mxu0 %v1503
          %1533 = vmatprep.subr.bf16.mxu0 0
          %1534 = vmatpush1.bf16.msra.mxu0 %v1502
          %1535 = vmatprep.subr.bf16.mxu0 0
          %1536 = vmatpush1.bf16.msra.mxu0 %v1501
          %1537 = vmatprep.subr.bf16.mxu0 0
          %1538 = vmatpush1.bf16.msra.mxu0 %v1500
          %1539 = vmatprep.subr.bf16.mxu0 0
          %1540 = vmatpush1.bf16.msra.mxu0 %v1499
          %1541 = vmatprep.subr.bf16.mxu0 0
          %1542 = vmatpush1.bf16.msra.mxu0 %v1498
          %1543 = vmatprep.subr.bf16.mxu0 0
          %1544 = vmatpush1.bf16.msra.mxu0 %v1497
          %1545 = vmatprep.subr.bf16.mxu0 0
          %1546 = vmatpush2.bf16.msra.mxu0 %v1512
          %1547 = vmatprep.subr.bf16.mxu0 0
          %1548 = vmatpush2.bf16.msra.mxu0 %v1511
          %1549 = vmatprep.subr.bf16.mxu0 0
          %1550 = vmatpush2.bf16.msra.mxu0 %v1510
          %1551 = vmatprep.subr.bf16.mxu0 0
          %1552 = vmatpush2.bf16.msra.mxu0 %v1509
          %1553 = vmatprep.subr.bf16.mxu0 0
          %1554 = vmatpush2.bf16.msra.mxu0 %v1508
          %1555 = vmatprep.subr.bf16.mxu0 0
          %1556 = vmatpush2.bf16.msra.mxu0 %v1507
          %1557 = vmatprep.subr.bf16.mxu0 0
          %1558 = vmatpush2.bf16.msra.mxu0 %v1506
          %1559 = vmatprep.subr.bf16.mxu0 0
          %1560 = vmatpush2.bf16.msra.mxu0 %v1505
          %1561 = vmatprep.mubr.bf16.mxu0 %v1118
          %1562 = vmatmul.mubr.bf16.gmra.mxu0 %v1117
          %v1563 = vpop.f32.mrf.mxu0
          %v1564 = vadd.f32 %v1431, %v1563
          %v1565 = vpop.f32.mrf.mxu0
          %v1566 = vpop.f32.mrf.mxu0
          %v1567 = vadd.f32 %v1431, %v1566
          %v1568 = vpop.f32.mrf.mxu0
          %1569 = vmatprep.mubr.bf16.mxu0 %v1120
          %1570 = vmatmul.mubr.bf16.gmra.mxu0 %v1119
          %v1571 = vpop.f32.mrf.mxu0
          %v1572 = vadd.f32 %v1431, %v1571
          %v1573 = vpop.f32.mrf.mxu0
          %v1574 = vpop.f32.mrf.mxu0
          %v1575 = vadd.f32 %v1431, %v1574
          %v1576 = vpop.f32.mrf.mxu0
          %1577 = vmatprep.mubr.bf16.mxu0 %v1122
          %1578 = vmatmul.mubr.bf16.gmra.mxu0 %v1121
          %v1579 = vpop.f32.mrf.mxu0
          %v1580 = vadd.f32 %v1431, %v1579
          %v1581 = vpop.f32.mrf.mxu0
          %v1582 = vpop.f32.mrf.mxu0
          %v1583 = vadd.f32 %v1431, %v1582
          %v1584 = vpop.f32.mrf.mxu0
          %1585 = vmatprep.mubr.bf16.mxu0 %v1124
          %1586 = vmatmul.mubr.bf16.gmra.mxu0 %v1123
          %v1587 = vpop.f32.mrf.mxu0
          %v1588 = vadd.f32 %v1431, %v1587
          %v1589 = vpop.f32.mrf.mxu0
          %v1590 = vpop.f32.mrf.mxu0
          %v1591 = vadd.f32 %v1431, %v1590
          %v1592 = vpop.f32.mrf.mxu0
          %1593 = vmatprep.mubr.bf16.mxu0 %v1126
          %1594 = vmatmul.mubr.bf16.gmra.mxu0 %v1125
          %v1595 = vpop.f32.mrf.mxu0
          %v1596 = vadd.f32 %v1431, %v1595
          %v1597 = vpop.f32.mrf.mxu0
          %v1598 = vpop.f32.mrf.mxu0
          %v1599 = vadd.f32 %v1431, %v1598
          %v1600 = vpop.f32.mrf.mxu0
          %1601 = vmatprep.mubr.bf16.mxu0 %v1128
          %1602 = vmatmul.mubr.bf16.gmra.mxu0 %v1127
          %v1603 = vpop.f32.mrf.mxu0
          %v1604 = vadd.f32 %v1431, %v1603
          %v1605 = vpop.f32.mrf.mxu0
          %v1606 = vpop.f32.mrf.mxu0
          %v1607 = vadd.f32 %v1431, %v1606
          %v1608 = vpop.f32.mrf.mxu0
          %1609 = vmatprep.mubr.bf16.mxu0 %v1130
          %1610 = vmatmul.mubr.bf16.gmra.mxu0 %v1129
          %v1611 = vpop.f32.mrf.mxu0
          %v1612 = vadd.f32 %v1431, %v1611
          %v1613 = vpop.f32.mrf.mxu0
          %v1614 = vpop.f32.mrf.mxu0
          %v1615 = vadd.f32 %v1431, %v1614
          %v1616 = vpop.f32.mrf.mxu0
          %1617 = vmatprep.mubr.bf16.mxu0 %v1132
          %1618 = vmatmul.mubr.bf16.gmra.mxu0 %v1131
          %v1619 = vpop.f32.mrf.mxu0
          %v1620 = vadd.f32 %v1431, %v1619
          %v1621 = vpop.f32.mrf.mxu0
          %v1622 = vpop.f32.mrf.mxu0
          %v1623 = vadd.f32 %v1431, %v1622
          %v1624 = vpop.f32.mrf.mxu0
          %1625 = vdwg.mxu0
          %v1626 = vpack.c.bf16 %v1567, %v1564
          %v1627 = vpack.c.bf16 %v1575, %v1572
          %v1628 = vpack.c.bf16 %v1583, %v1580
          %v1629 = vpack.c.bf16 %v1591, %v1588
          %v1630 = vpack.c.bf16 %v1599, %v1596
          %v1631 = vpack.c.bf16 %v1607, %v1604
          %v1632 = vpack.c.bf16 %v1615, %v1612
          %v1633 = vpack.c.bf16 %v1623, %v1620
          %s1634 = smul.u32 %s1142, 16
          %s1635 = smul.addr %s1634, 4
          %s1636 = scalar_lea.vmem [#allocation2], %s1635
          %v1637 = vld [vmem:[%s1636] sm:$0xf]
          %v1638 = vld [vmem:[%s1636 + $0x4] sm:$0xf]
          %v1639 = vld [vmem:[%s1636 + $0x8] sm:$0xf]
          %v1640 = vld [vmem:[%s1636 + $0xc] sm:$0xf]
          %v1641 = vld [vmem:[%s1636 + $0x10] sm:$0xf]
          %v1642 = vld [vmem:[%s1636 + $0x14] sm:$0xf]
          %v1643 = vld [vmem:[%s1636 + $0x18] sm:$0xf]
          %v1644 = vld [vmem:[%s1636 + $0x1c] sm:$0xf]
          %v1645 = vld [vmem:[%s1636 + $0x20] sm:$0xf]
          %v1646 = vld [vmem:[%s1636 + $0x24] sm:$0xf]
          %v1647 = vld [vmem:[%s1636 + $0x28] sm:$0xf]
          %v1648 = vld [vmem:[%s1636 + $0x2c] sm:$0xf]
          %v1649 = vld [vmem:[%s1636 + $0x30] sm:$0xf]
          %v1650 = vld [vmem:[%s1636 + $0x34] sm:$0xf]
          %v1651 = vld [vmem:[%s1636 + $0x38] sm:$0xf]
          %v1652 = vld [vmem:[%s1636 + $0x3c] sm:$0xf]
          %v1669 = vunpack.c.l.b16 %v1637
          %v1670 = vunpack.c.l.b16 %v1638
          %v1671 = vunpack.c.l.b16 %v1639
          %v1672 = vunpack.c.l.b16 %v1640
          %v1673 = vunpack.c.l.b16 %v1641
          %v1674 = vunpack.c.l.b16 %v1642
          %v1675 = vunpack.c.l.b16 %v1643
          %v1676 = vunpack.c.l.b16 %v1644
          %v1677 = vunpack.c.l.b16 %v1645
          %v1678 = vunpack.c.l.b16 %v1646
          %v1679 = vunpack.c.l.b16 %v1647
          %v1680 = vunpack.c.l.b16 %v1648
          %v1681 = vunpack.c.l.b16 %v1649
          %v1682 = vunpack.c.l.b16 %v1650
          %v1683 = vunpack.c.l.b16 %v1651
          %v1684 = vunpack.c.l.b16 %v1652
          %v1685 = vpack.c.b16 %v1670, %v1669
          %v1686 = vpack.c.b16 %v1672, %v1671
          %v1687 = vpack.c.b16 %v1674, %v1673
          %v1688 = vpack.c.b16 %v1676, %v1675
          %v1689 = vpack.c.b16 %v1678, %v1677
          %v1690 = vpack.c.b16 %v1680, %v1679
          %v1691 = vpack.c.b16 %v1682, %v1681
          %v1692 = vpack.c.b16 %v1684, %v1683
          %1701 = vmatprep.subr.bf16.mxu0 0
          %1702 = vmatpush1.bf16.xpose.msra.mxu0 %v1390
          %1703 = vmatprep.subr.bf16.mxu0 0
          %1704 = vmatpush1.bf16.xpose.msra.mxu0 %v1389
          %1705 = vmatprep.subr.bf16.mxu0 0
          %1706 = vmatpush1.bf16.xpose.msra.mxu0 %v1388
          %1707 = vmatprep.subr.bf16.mxu0 0
          %1708 = vmatpush1.bf16.xpose.msra.mxu0 %v1387
          %1709 = vmatprep.subr.bf16.mxu0 0
          %1710 = vmatpush1.bf16.xpose.msra.mxu0 %v1386
          %1711 = vmatprep.subr.bf16.mxu0 0
          %1712 = vmatpush1.bf16.xpose.msra.mxu0 %v1385
          %1713 = vmatprep.subr.bf16.mxu0 0
          %1714 = vmatpush1.bf16.xpose.msra.mxu0 %v1384
          %1715 = vmatprep.subr.bf16.mxu0 0
          %1716 = vmatpush1.bf16.xpose.msra.mxu0 %v1383
          %1717 = vmatprep.subr.bf16.mxu0 0
          %1718 = vmatpush2.bf16.xpose.msra.mxu0 0
          %1719 = vmatprep.subr.bf16.mxu0 0
          %1720 = vmatpush2.bf16.xpose.msra.mxu0 0
          %1721 = vmatprep.subr.bf16.mxu0 0
          %1722 = vmatpush2.bf16.xpose.msra.mxu0 0
          %1723 = vmatprep.subr.bf16.mxu0 0
          %1724 = vmatpush2.bf16.xpose.msra.mxu0 0
          %1725 = vmatprep.subr.bf16.mxu0 0
          %1726 = vmatpush2.bf16.xpose.msra.mxu0 0
          %1727 = vmatprep.subr.bf16.mxu0 0
          %1728 = vmatpush2.bf16.xpose.msra.mxu0 0
          %1729 = vmatprep.subr.bf16.mxu0 0
          %1730 = vmatpush2.bf16.xpose.msra.mxu0 0
          %1731 = vmatprep.subr.bf16.mxu0 0
          %1732 = vmatpush2.bf16.xpose.msra.mxu0 0
          %1733 = vmatprep.mubr.bf16.mxu0 0
          %1734 = vmatmul.mubr.bf16.gmra.mxu0 %v1685
          %v1735 = vpop.f32.mrf.mxu0
          %v1736 = vadd.f32 0.0, %v1735
          %v1737 = vpop.f32.mrf.mxu0
          %v1738 = vpop.f32.mrf.mxu0
          %v1739 = vadd.f32 0.0, %v1738
          %v1740 = vpop.f32.mrf.mxu0
          %1741 = vmatprep.mubr.bf16.mxu0 0
          %1742 = vmatmul.mubr.bf16.gmra.mxu0 %v1686
          %v1743 = vpop.f32.mrf.mxu0
          %v1744 = vadd.f32 0.0, %v1743
          %v1745 = vpop.f32.mrf.mxu0
          %v1746 = vpop.f32.mrf.mxu0
          %v1747 = vadd.f32 0.0, %v1746
          %v1748 = vpop.f32.mrf.mxu0
          %1749 = vmatprep.mubr.bf16.mxu0 0
          %1750 = vmatmul.mubr.bf16.gmra.mxu0 %v1687
          %v1751 = vpop.f32.mrf.mxu0
          %v1752 = vadd.f32 0.0, %v1751
          %v1753 = vpop.f32.mrf.mxu0
          %v1754 = vpop.f32.mrf.mxu0
          %v1755 = vadd.f32 0.0, %v1754
          %v1756 = vpop.f32.mrf.mxu0
          %1757 = vmatprep.mubr.bf16.mxu0 0
          %1758 = vmatmul.mubr.bf16.gmra.mxu0 %v1688
          %v1759 = vpop.f32.mrf.mxu0
          %v1760 = vadd.f32 0.0, %v1759
          %v1761 = vpop.f32.mrf.mxu0
          %v1762 = vpop.f32.mrf.mxu0
          %v1763 = vadd.f32 0.0, %v1762
          %v1764 = vpop.f32.mrf.mxu0
          %1765 = vmatprep.mubr.bf16.mxu0 0
          %1766 = vmatmul.mubr.bf16.gmra.mxu0 %v1689
          %v1767 = vpop.f32.mrf.mxu0
          %v1768 = vadd.f32 0.0, %v1767
          %v1769 = vpop.f32.mrf.mxu0
          %v1770 = vpop.f32.mrf.mxu0
          %v1771 = vadd.f32 0.0, %v1770
          %v1772 = vpop.f32.mrf.mxu0
          %1773 = vmatprep.mubr.bf16.mxu0 0
          %1774 = vmatmul.mubr.bf16.gmra.mxu0 %v1690
          %v1775 = vpop.f32.mrf.mxu0
          %v1776 = vadd.f32 0.0, %v1775
          %v1777 = vpop.f32.mrf.mxu0
          %v1778 = vpop.f32.mrf.mxu0
          %v1779 = vadd.f32 0.0, %v1778
          %v1780 = vpop.f32.mrf.mxu0
          %1781 = vmatprep.mubr.bf16.mxu0 0
          %1782 = vmatmul.mubr.bf16.gmra.mxu0 %v1691
          %v1783 = vpop.f32.mrf.mxu0
          %v1784 = vadd.f32 0.0, %v1783
          %v1785 = vpop.f32.mrf.mxu0
          %v1786 = vpop.f32.mrf.mxu0
          %v1787 = vadd.f32 0.0, %v1786
          %v1788 = vpop.f32.mrf.mxu0
          %1789 = vmatprep.mubr.bf16.mxu0 0
          %1790 = vmatmul.mubr.bf16.gmra.mxu0 %v1692
          %v1791 = vpop.f32.mrf.mxu0
          %v1792 = vadd.f32 0.0, %v1791
          %v1793 = vpop.f32.mrf.mxu0
          %v1794 = vpop.f32.mrf.mxu0
          %v1795 = vadd.f32 0.0, %v1794
          %v1796 = vpop.f32.mrf.mxu0
          %1797 = vdwg.mxu0
          %v1798 = vmul.f32 %v1736, 0.088388346
          %v1799 = vmul.f32 %v1739, 0.088388346
          %v1800 = vmul.f32 %v1744, 0.088388346
          %v1801 = vmul.f32 %v1747, 0.088388346
          %v1802 = vmul.f32 %v1752, 0.088388346
          %v1803 = vmul.f32 %v1755, 0.088388346
          %v1804 = vmul.f32 %v1760, 0.088388346
          %v1805 = vmul.f32 %v1763, 0.088388346
          %v1806 = vmul.f32 %v1768, 0.088388346
          %v1807 = vmul.f32 %v1771, 0.088388346
          %v1808 = vmul.f32 %v1776, 0.088388346
          %v1809 = vmul.f32 %v1779, 0.088388346
          %v1810 = vmul.f32 %v1784, 0.088388346
          %v1811 = vmul.f32 %v1787, 0.088388346
          %v1812 = vmul.f32 %v1792, 0.088388346
          %v1813 = vmul.f32 %v1795, 0.088388346
          %v1814 = vsel %vm1137, 16843009, 0
          %v1815 = vsel %vm1138, 16843009, 0
          %v1816 = vsel %vm1139, 16843009, 0
          %v1817 = vsel %vm1140, 16843009, 0
          %v1818 = vunpack.c.0.s8 %v1814
          %v1819 = vunpack.c.1.s8 %v1814
          %v1820 = vunpack.c.2.s8 %v1814
          %v1821 = vunpack.c.3.s8 %v1814
          %v1822 = vunpack.c.0.s8 %v1815
          %v1823 = vunpack.c.1.s8 %v1815
          %v1824 = vunpack.c.2.s8 %v1815
          %v1825 = vunpack.c.3.s8 %v1815
          %v1826 = vunpack.c.0.s8 %v1816
          %v1827 = vunpack.c.1.s8 %v1816
          %v1828 = vunpack.c.2.s8 %v1816
          %v1829 = vunpack.c.3.s8 %v1816
          %v1830 = vunpack.c.0.s8 %v1817
          %v1831 = vunpack.c.1.s8 %v1817
          %v1832 = vunpack.c.2.s8 %v1817
          %v1833 = vunpack.c.3.s8 %v1817
          %v1834 = vpack.c.b16 %v1818, %v1818
          %v1835 = vpack.c.b8 %v1834, %v1834
          %v1836 = vpack.c.b16 %v1819, %v1819
          %v1837 = vpack.c.b8 %v1836, %v1836
          %v1838 = vpack.c.b16 %v1820, %v1820
          %v1839 = vpack.c.b8 %v1838, %v1838
          %v1840 = vpack.c.b16 %v1821, %v1821
          %v1841 = vpack.c.b8 %v1840, %v1840
          %v1842 = vpack.c.b16 %v1822, %v1822
          %v1843 = vpack.c.b8 %v1842, %v1842
          %v1844 = vpack.c.b16 %v1823, %v1823
          %v1845 = vpack.c.b8 %v1844, %v1844
          %v1846 = vpack.c.b16 %v1824, %v1824
          %v1847 = vpack.c.b8 %v1846, %v1846
          %v1848 = vpack.c.b16 %v1825, %v1825
          %v1849 = vpack.c.b8 %v1848, %v1848
          %v1850 = vpack.c.b16 %v1826, %v1826
          %v1851 = vpack.c.b8 %v1850, %v1850
          %v1852 = vpack.c.b16 %v1827, %v1827
          %v1853 = vpack.c.b8 %v1852, %v1852
          %v1854 = vpack.c.b16 %v1828, %v1828
          %v1855 = vpack.c.b8 %v1854, %v1854
          %v1856 = vpack.c.b16 %v1829, %v1829
          %v1857 = vpack.c.b8 %v1856, %v1856
          %v1858 = vpack.c.b16 %v1830, %v1830
          %v1859 = vpack.c.b8 %v1858, %v1858
          %v1860 = vpack.c.b16 %v1831, %v1831
          %v1861 = vpack.c.b8 %v1860, %v1860
          %v1862 = vpack.c.b16 %v1832, %v1832
          %v1863 = vpack.c.b8 %v1862, %v1862
          %v1864 = vpack.c.b16 %v1833, %v1833
          %v1865 = vpack.c.b8 %v1864, %v1864
          %vm1866 = vnez %v1835
          %vm1867 = vnez %v1837
          %vm1868 = vnez %v1839
          %vm1869 = vnez %v1841
          %vm1870 = vnez %v1843
          %vm1871 = vnez %v1845
          %vm1872 = vnez %v1847
          %vm1873 = vnez %v1849
          %vm1874 = vnez %v1851
          %vm1875 = vnez %v1853
          %vm1876 = vnez %v1855
          %vm1877 = vnez %v1857
          %vm1878 = vnez %v1859
          %vm1879 = vnez %v1861
          %vm1880 = vnez %v1863
          %vm1881 = vnez %v1865
          %v1882 = vsel %vm1866, 16843009, 0
          %v1883 = vsel %vm1867, 16843009, 0
          %v1884 = vsel %vm1868, 16843009, 0
          %v1885 = vsel %vm1869, 16843009, 0
          %v1886 = vsel %vm1870, 16843009, 0
          %v1887 = vsel %vm1871, 16843009, 0
          %v1888 = vsel %vm1872, 16843009, 0
          %v1889 = vsel %vm1873, 16843009, 0
          %v1890 = vsel %vm1874, 16843009, 0
          %v1891 = vsel %vm1875, 16843009, 0
          %v1892 = vsel %vm1876, 16843009, 0
          %v1893 = vsel %vm1877, 16843009, 0
          %v1894 = vsel %vm1878, 16843009, 0
          %v1895 = vsel %vm1879, 16843009, 0
          %v1896 = vsel %vm1880, 16843009, 0
          %v1897 = vsel %vm1881, 16843009, 0
          %v1898 = vunpack.c.0.s8 %v1882
          %v1899 = vunpack.c.0.s8 %v1883
          %v1900 = vunpack.c.0.s8 %v1884
          %v1901 = vunpack.c.0.s8 %v1885
          %v1902 = vunpack.c.0.s8 %v1886
          %v1903 = vunpack.c.0.s8 %v1887
          %v1904 = vunpack.c.0.s8 %v1888
          %v1905 = vunpack.c.0.s8 %v1889
          %v1906 = vunpack.c.0.s8 %v1890
          %v1907 = vunpack.c.0.s8 %v1891
          %v1908 = vunpack.c.0.s8 %v1892
          %v1909 = vunpack.c.0.s8 %v1893
          %v1910 = vunpack.c.0.s8 %v1894
          %v1911 = vunpack.c.0.s8 %v1895
          %v1912 = vunpack.c.0.s8 %v1896
          %v1913 = vunpack.c.0.s8 %v1897
          %vm1914 = vcmp.ne.s32.totalorder %v1898, 0
          %vm1915 = vcmp.ne.s32.totalorder %v1899, 0
          %vm1916 = vcmp.ne.s32.totalorder %v1900, 0
          %vm1917 = vcmp.ne.s32.totalorder %v1901, 0
          %vm1918 = vcmp.ne.s32.totalorder %v1902, 0
          %vm1919 = vcmp.ne.s32.totalorder %v1903, 0
          %vm1920 = vcmp.ne.s32.totalorder %v1904, 0
          %vm1921 = vcmp.ne.s32.totalorder %v1905, 0
          %vm1922 = vcmp.ne.s32.totalorder %v1906, 0
          %vm1923 = vcmp.ne.s32.totalorder %v1907, 0
          %vm1924 = vcmp.ne.s32.totalorder %v1908, 0
          %vm1925 = vcmp.ne.s32.totalorder %v1909, 0
          %vm1926 = vcmp.ne.s32.totalorder %v1910, 0
          %vm1927 = vcmp.ne.s32.totalorder %v1911, 0
          %vm1928 = vcmp.ne.s32.totalorder %v1912, 0
          %vm1929 = vcmp.ne.s32.totalorder %v1913, 0
          %v1930 = vsel %vm1914, %v1798, -1e+09
          %v1931 = vsel %vm1915, %v1799, -1e+09
          %v1932 = vsel %vm1916, %v1800, -1e+09
          %v1933 = vsel %vm1917, %v1801, -1e+09
          %v1934 = vsel %vm1918, %v1802, -1e+09
          %v1935 = vsel %vm1919, %v1803, -1e+09
          %v1936 = vsel %vm1920, %v1804, -1e+09
          %v1937 = vsel %vm1921, %v1805, -1e+09
          %v1938 = vsel %vm1922, %v1806, -1e+09
          %v1939 = vsel %vm1923, %v1807, -1e+09
          %v1940 = vsel %vm1924, %v1808, -1e+09
          %v1941 = vsel %vm1925, %v1809, -1e+09
          %v1942 = vsel %vm1926, %v1810, -1e+09
          %v1943 = vsel %vm1927, %v1811, -1e+09
          %v1944 = vsel %vm1928, %v1812, -1e+09
          %v1945 = vsel %vm1929, %v1813, -1e+09
          %s1946 = smul.u32 %s1142, 128
          %s1947 = scalar_lea.vmem [#allocation4], %s1946
          %v1948 = vld [vmem:[%s1947] sm:$0xff]
          %v1949 = vld [vmem:[%s1947 + $0x8] sm:$0xff]
          %v1950 = vld [vmem:[%s1947 + $0x10] sm:$0xff]
          %v1951 = vld [vmem:[%s1947 + $0x18] sm:$0xff]
          %v1952 = vld [vmem:[%s1947 + $0x20] sm:$0xff]
          %v1953 = vld [vmem:[%s1947 + $0x28] sm:$0xff]
          %v1954 = vld [vmem:[%s1947 + $0x30] sm:$0xff]
          %v1955 = vld [vmem:[%s1947 + $0x38] sm:$0xff]
          %v1956 = vld [vmem:[%s1947 + $0x40] sm:$0xff]
          %v1957 = vld [vmem:[%s1947 + $0x48] sm:$0xff]
          %v1958 = vld [vmem:[%s1947 + $0x50] sm:$0xff]
          %v1959 = vld [vmem:[%s1947 + $0x58] sm:$0xff]
          %v1960 = vld [vmem:[%s1947 + $0x60] sm:$0xff]
          %v1961 = vld [vmem:[%s1947 + $0x68] sm:$0xff]
          %v1962 = vld [vmem:[%s1947 + $0x70] sm:$0xff]
          %v1963 = vld [vmem:[%s1947 + $0x78] sm:$0xff]
          %1964 = vmax.xlane.f32.xlu0 %v1930
          %v1965 = vpop.xlane.xlu0 %1964
          %1966 = vmax.xlane.f32.xlu0 %v1931
          %v1967 = vpop.xlane.xlu0 %1966
          %1968 = vmax.xlane.f32.xlu0 %v1932
          %v1969 = vpop.xlane.xlu0 %1968
          %1970 = vmax.xlane.f32.xlu0 %v1933
          %v1971 = vpop.xlane.xlu0 %1970
          %1972 = vmax.xlane.f32.xlu0 %v1934
          %v1973 = vpop.xlane.xlu0 %1972
          %1974 = vmax.xlane.f32.xlu0 %v1935
          %v1975 = vpop.xlane.xlu0 %1974
          %1976 = vmax.xlane.f32.xlu0 %v1936
          %v1977 = vpop.xlane.xlu0 %1976
          %1978 = vmax.xlane.f32.xlu0 %v1937
          %v1979 = vpop.xlane.xlu0 %1978
          %1980 = vmax.xlane.f32.xlu0 %v1938
          %v1981 = vpop.xlane.xlu0 %1980
          %1982 = vmax.xlane.f32.xlu0 %v1939
          %v1983 = vpop.xlane.xlu0 %1982
          %1984 = vmax.xlane.f32.xlu0 %v1940
          %v1985 = vpop.xlane.xlu0 %1984
          %1986 = vmax.xlane.f32.xlu0 %v1941
          %v1987 = vpop.xlane.xlu0 %1986
          %1988 = vmax.xlane.f32.xlu0 %v1942
          %v1989 = vpop.xlane.xlu0 %1988
          %1990 = vmax.xlane.f32.xlu0 %v1943
          %v1991 = vpop.xlane.xlu0 %1990
          %1992 = vmax.xlane.f32.xlu0 %v1944
          %v1993 = vpop.xlane.xlu0 %1992
          %1994 = vmax.xlane.f32.xlu0 %v1945
          %v1995 = vpop.xlane.xlu0 %1994
          %v1996 = vmax.f32 %v1948, %v1965
          %v1997 = vmax.f32 %v1949, %v1967
          %v1998 = vmax.f32 %v1950, %v1969
          %v1999 = vmax.f32 %v1951, %v1971
          %v2000 = vmax.f32 %v1952, %v1973
          %v2001 = vmax.f32 %v1953, %v1975
          %v2002 = vmax.f32 %v1954, %v1977
          %v2003 = vmax.f32 %v1955, %v1979
          %v2004 = vmax.f32 %v1956, %v1981
          %v2005 = vmax.f32 %v1957, %v1983
          %v2006 = vmax.f32 %v1958, %v1985
          %v2007 = vmax.f32 %v1959, %v1987
          %v2008 = vmax.f32 %v1960, %v1989
          %v2009 = vmax.f32 %v1961, %v1991
          %v2010 = vmax.f32 %v1962, %v1993
          %v2011 = vmax.f32 %v1963, %v1995
          %v2012 = vsub.f32 %v1948, %v1996
          %v2013 = vsub.f32 %v1949, %v1997
          %v2014 = vsub.f32 %v1950, %v1998
          %v2015 = vsub.f32 %v1951, %v1999
          %v2016 = vsub.f32 %v1952, %v2000
          %v2017 = vsub.f32 %v1953, %v2001
          %v2018 = vsub.f32 %v1954, %v2002
          %v2019 = vsub.f32 %v1955, %v2003
          %v2020 = vsub.f32 %v1956, %v2004
          %v2021 = vsub.f32 %v1957, %v2005
          %v2022 = vsub.f32 %v1958, %v2006
          %v2023 = vsub.f32 %v1959, %v2007
          %v2024 = vsub.f32 %v1960, %v2008
          %v2025 = vsub.f32 %v1961, %v2009
          %v2026 = vsub.f32 %v1962, %v2010
          %v2027 = vsub.f32 %v1963, %v2011
          %v2028 = vmul.f32 %v2012, 1.442695
          %v2029 = vpow.pop %v2028
          %v2030 = vmul.f32 %v2013, 1.442695
          %v2031 = vpow.pop %v2030
          %v2032 = vmul.f32 %v2014, 1.442695
          %v2033 = vpow.pop %v2032
          %v2034 = vmul.f32 %v2015, 1.442695
          %v2035 = vpow.pop %v2034
          %v2036 = vmul.f32 %v2016, 1.442695
          %v2037 = vpow.pop %v2036
          %v2038 = vmul.f32 %v2017, 1.442695
          %v2039 = vpow.pop %v2038
          %v2040 = vmul.f32 %v2018, 1.442695
          %v2041 = vpow.pop %v2040
          %v2042 = vmul.f32 %v2019, 1.442695
          %v2043 = vpow.pop %v2042
          %v2044 = vmul.f32 %v2020, 1.442695
          %v2045 = vpow.pop %v2044
          %v2046 = vmul.f32 %v2021, 1.442695
          %v2047 = vpow.pop %v2046
          %v2048 = vmul.f32 %v2022, 1.442695
          %v2049 = vpow.pop %v2048
          %v2050 = vmul.f32 %v2023, 1.442695
          %v2051 = vpow.pop %v2050
          %v2052 = vmul.f32 %v2024, 1.442695
          %v2053 = vpow.pop %v2052
          %v2054 = vmul.f32 %v2025, 1.442695
          %v2055 = vpow.pop %v2054
          %v2056 = vmul.f32 %v2026, 1.442695
          %v2057 = vpow.pop %v2056
          %v2058 = vmul.f32 %v2027, 1.442695
          %v2059 = vpow.pop %v2058
          %2061 = vset.pattern.permute.xlu0 0
          %2062 = vperm.xlu0 %2061, %v1996
          %v2063 = vpop.permute.xlu0 %2062
          %2066 = vset.pattern.permute.xlu0 0
          %2067 = vperm.xlu0 %2066, %v1997
          %v2068 = vpop.permute.xlu0 %2067
          %2071 = vset.pattern.permute.xlu0 0
          %2072 = vperm.xlu0 %2071, %v1998
          %v2073 = vpop.permute.xlu0 %2072
          %2076 = vset.pattern.permute.xlu0 0
          %2077 = vperm.xlu0 %2076, %v1999
          %v2078 = vpop.permute.xlu0 %2077
          %2081 = vset.pattern.permute.xlu0 0
          %2082 = vperm.xlu0 %2081, %v2000
          %v2083 = vpop.permute.xlu0 %2082
          %2086 = vset.pattern.permute.xlu0 0
          %2087 = vperm.xlu0 %2086, %v2001
          %v2088 = vpop.permute.xlu0 %2087
          %2091 = vset.pattern.permute.xlu0 0
          %2092 = vperm.xlu0 %2091, %v2002
          %v2093 = vpop.permute.xlu0 %2092
          %2096 = vset.pattern.permute.xlu0 0
          %2097 = vperm.xlu0 %2096, %v2003
          %v2098 = vpop.permute.xlu0 %2097
          %2101 = vset.pattern.permute.xlu0 0
          %2102 = vperm.xlu0 %2101, %v2004
          %v2103 = vpop.permute.xlu0 %2102
          %2106 = vset.pattern.permute.xlu0 0
          %2107 = vperm.xlu0 %2106, %v2005
          %v2108 = vpop.permute.xlu0 %2107
          %2111 = vset.pattern.permute.xlu0 0
          %2112 = vperm.xlu0 %2111, %v2006
          %v2113 = vpop.permute.xlu0 %2112
          %2116 = vset.pattern.permute.xlu0 0
          %2117 = vperm.xlu0 %2116, %v2007
          %v2118 = vpop.permute.xlu0 %2117
          %2121 = vset.pattern.permute.xlu0 0
          %2122 = vperm.xlu0 %2121, %v2008
          %v2123 = vpop.permute.xlu0 %2122
          %2126 = vset.pattern.permute.xlu0 0
          %2127 = vperm.xlu0 %2126, %v2009
          %v2128 = vpop.permute.xlu0 %2127
          %2131 = vset.pattern.permute.xlu0 0
          %2132 = vperm.xlu0 %2131, %v2010
          %v2133 = vpop.permute.xlu0 %2132
          %2136 = vset.pattern.permute.xlu0 0
          %2137 = vperm.xlu0 %2136, %v2011
          %v2138 = vpop.permute.xlu0 %2137
          %v2140 = vsub.f32 %v1930, %v2063
          %v2141 = vsub.f32 %v1931, %v2068
          %v2142 = vsub.f32 %v1932, %v2073
          %v2143 = vsub.f32 %v1933, %v2078
          %v2144 = vsub.f32 %v1934, %v2083
          %v2145 = vsub.f32 %v1935, %v2088
          %v2146 = vsub.f32 %v1936, %v2093
          %v2147 = vsub.f32 %v1937, %v2098
          %v2148 = vsub.f32 %v1938, %v2103
          %v2149 = vsub.f32 %v1939, %v2108
          %v2150 = vsub.f32 %v1940, %v2113
          %v2151 = vsub.f32 %v1941, %v2118
          %v2152 = vsub.f32 %v1942, %v2123
          %v2153 = vsub.f32 %v1943, %v2128
          %v2154 = vsub.f32 %v1944, %v2133
          %v2155 = vsub.f32 %v1945, %v2138
          %v2156 = vmul.f32 %v2140, 1.442695
          %v2157 = vpow.pop %v2156
          %v2158 = vmul.f32 %v2141, 1.442695
          %v2159 = vpow.pop %v2158
          %v2160 = vmul.f32 %v2142, 1.442695
          %v2161 = vpow.pop %v2160
          %v2162 = vmul.f32 %v2143, 1.442695
          %v2163 = vpow.pop %v2162
          %v2164 = vmul.f32 %v2144, 1.442695
          %v2165 = vpow.pop %v2164
          %v2166 = vmul.f32 %v2145, 1.442695
          %v2167 = vpow.pop %v2166
          %v2168 = vmul.f32 %v2146, 1.442695
          %v2169 = vpow.pop %v2168
          %v2170 = vmul.f32 %v2147, 1.442695
          %v2171 = vpow.pop %v2170
          %v2172 = vmul.f32 %v2148, 1.442695
          %v2173 = vpow.pop %v2172
          %v2174 = vmul.f32 %v2149, 1.442695
          %v2175 = vpow.pop %v2174
          %v2176 = vmul.f32 %v2150, 1.442695
          %v2177 = vpow.pop %v2176
          %v2178 = vmul.f32 %v2151, 1.442695
          %v2179 = vpow.pop %v2178
          %v2180 = vmul.f32 %v2152, 1.442695
          %v2181 = vpow.pop %v2180
          %v2182 = vmul.f32 %v2153, 1.442695
          %v2183 = vpow.pop %v2182
          %v2184 = vmul.f32 %v2154, 1.442695
          %v2185 = vpow.pop %v2184
          %v2186 = vmul.f32 %v2155, 1.442695
          %v2187 = vpow.pop %v2186
          %s2188 = scalar_lea.vmem [#allocation5], %s1946
          %v2189 = vld [vmem:[%s2188] sm:$0xff]
          %v2190 = vld [vmem:[%s2188 + $0x8] sm:$0xff]
          %v2191 = vld [vmem:[%s2188 + $0x10] sm:$0xff]
          %v2192 = vld [vmem:[%s2188 + $0x18] sm:$0xff]
          %v2193 = vld [vmem:[%s2188 + $0x20] sm:$0xff]
          %v2194 = vld [vmem:[%s2188 + $0x28] sm:$0xff]
          %v2195 = vld [vmem:[%s2188 + $0x30] sm:$0xff]
          %v2196 = vld [vmem:[%s2188 + $0x38] sm:$0xff]
          %v2197 = vld [vmem:[%s2188 + $0x40] sm:$0xff]
          %v2198 = vld [vmem:[%s2188 + $0x48] sm:$0xff]
          %v2199 = vld [vmem:[%s2188 + $0x50] sm:$0xff]
          %v2200 = vld [vmem:[%s2188 + $0x58] sm:$0xff]
          %v2201 = vld [vmem:[%s2188 + $0x60] sm:$0xff]
          %v2202 = vld [vmem:[%s2188 + $0x68] sm:$0xff]
          %v2203 = vld [vmem:[%s2188 + $0x70] sm:$0xff]
          %v2204 = vld [vmem:[%s2188 + $0x78] sm:$0xff]
          %v2205 = vmul.f32 %v2029, %v2189
          %v2206 = vmul.f32 %v2031, %v2190
          %v2207 = vmul.f32 %v2033, %v2191
          %v2208 = vmul.f32 %v2035, %v2192
          %v2209 = vmul.f32 %v2037, %v2193
          %v2210 = vmul.f32 %v2039, %v2194
          %v2211 = vmul.f32 %v2041, %v2195
          %v2212 = vmul.f32 %v2043, %v2196
          %v2213 = vmul.f32 %v2045, %v2197
          %v2214 = vmul.f32 %v2047, %v2198
          %v2215 = vmul.f32 %v2049, %v2199
          %v2216 = vmul.f32 %v2051, %v2200
          %v2217 = vmul.f32 %v2053, %v2201
          %v2218 = vmul.f32 %v2055, %v2202
          %v2219 = vmul.f32 %v2057, %v2203
          %v2220 = vmul.f32 %v2059, %v2204
          %2221 = vadd.xlane.f32.xlu0 %v2157
          %v2222 = vpop.xlane.xlu0 %2221
          %2223 = vadd.xlane.f32.xlu0 %v2159
          %v2224 = vpop.xlane.xlu0 %2223
          %2225 = vadd.xlane.f32.xlu0 %v2161
          %v2226 = vpop.xlane.xlu0 %2225
          %2227 = vadd.xlane.f32.xlu0 %v2163
          %v2228 = vpop.xlane.xlu0 %2227
          %2229 = vadd.xlane.f32.xlu0 %v2165
          %v2230 = vpop.xlane.xlu0 %2229
          %2231 = vadd.xlane.f32.xlu0 %v2167
          %v2232 = vpop.xlane.xlu0 %2231
          %2233 = vadd.xlane.f32.xlu0 %v2169
          %v2234 = vpop.xlane.xlu0 %2233
          %2235 = vadd.xlane.f32.xlu0 %v2171
          %v2236 = vpop.xlane.xlu0 %2235
          %2237 = vadd.xlane.f32.xlu0 %v2173
          %v2238 = vpop.xlane.xlu0 %2237
          %2239 = vadd.xlane.f32.xlu0 %v2175
          %v2240 = vpop.xlane.xlu0 %2239
          %2241 = vadd.xlane.f32.xlu0 %v2177
          %v2242 = vpop.xlane.xlu0 %2241
          %2243 = vadd.xlane.f32.xlu0 %v2179
          %v2244 = vpop.xlane.xlu0 %2243
          %2245 = vadd.xlane.f32.xlu0 %v2181
          %v2246 = vpop.xlane.xlu0 %2245
          %2247 = vadd.xlane.f32.xlu0 %v2183
          %v2248 = vpop.xlane.xlu0 %2247
          %2249 = vadd.xlane.f32.xlu0 %v2185
          %v2250 = vpop.xlane.xlu0 %2249
          %2251 = vadd.xlane.f32.xlu0 %v2187
          %v2252 = vpop.xlane.xlu0 %2251
          %v2253 = vadd.f32 %v2205, %v2222
          %v2254 = vadd.f32 %v2206, %v2224
          %v2255 = vadd.f32 %v2207, %v2226
          %v2256 = vadd.f32 %v2208, %v2228
          %v2257 = vadd.f32 %v2209, %v2230
          %v2258 = vadd.f32 %v2210, %v2232
          %v2259 = vadd.f32 %v2211, %v2234
          %v2260 = vadd.f32 %v2212, %v2236
          %v2261 = vadd.f32 %v2213, %v2238
          %v2262 = vadd.f32 %v2214, %v2240
          %v2263 = vadd.f32 %v2215, %v2242
          %v2264 = vadd.f32 %v2216, %v2244
          %v2265 = vadd.f32 %v2217, %v2246
          %v2266 = vadd.f32 %v2218, %v2248
          %v2267 = vadd.f32 %v2219, %v2250
          %v2268 = vadd.f32 %v2220, %v2252
          %vm2269 = vcmask 7168
          %2270 = vst.msk [vmem:[%s2188] sm:$0xff] %vm2269, %v2253
          %2271 = vst.msk [vmem:[%s2188 + $0x8] sm:$0xff] %vm2269, %v2254
          %2272 = vst.msk [vmem:[%s2188 + $0x10] sm:$0xff] %vm2269, %v2255
          %2273 = vst.msk [vmem:[%s2188 + $0x18] sm:$0xff] %vm2269, %v2256
          %2274 = vst.msk [vmem:[%s2188 + $0x20] sm:$0xff] %vm2269, %v2257
          %2275 = vst.msk [vmem:[%s2188 + $0x28] sm:$0xff] %vm2269, %v2258
          %2276 = vst.msk [vmem:[%s2188 + $0x30] sm:$0xff] %vm2269, %v2259
          %2277 = vst.msk [vmem:[%s2188 + $0x38] sm:$0xff] %vm2269, %v2260
          %2278 = vst.msk [vmem:[%s2188 + $0x40] sm:$0xff] %vm2269, %v2261
          %2279 = vst.msk [vmem:[%s2188 + $0x48] sm:$0xff] %vm2269, %v2262
          %2280 = vst.msk [vmem:[%s2188 + $0x50] sm:$0xff] %vm2269, %v2263
          %2281 = vst.msk [vmem:[%s2188 + $0x58] sm:$0xff] %vm2269, %v2264
          %2282 = vst.msk [vmem:[%s2188 + $0x60] sm:$0xff] %vm2269, %v2265
          %2283 = vst.msk [vmem:[%s2188 + $0x68] sm:$0xff] %vm2269, %v2266
          %2284 = vst.msk [vmem:[%s2188 + $0x70] sm:$0xff] %vm2269, %v2267
          %2285 = vst.msk [vmem:[%s2188 + $0x78] sm:$0xff] %vm2269, %v2268
          %s2286 = scalar_lea.vmem [#allocation3], %s1946
          %v2287 = vld [vmem:[%s2286] sm:$0xff]
          %v2288 = vld [vmem:[%s2286 + $0x8] sm:$0xff]
          %v2289 = vld [vmem:[%s2286 + $0x10] sm:$0xff]
          %v2290 = vld [vmem:[%s2286 + $0x18] sm:$0xff]
          %v2291 = vld [vmem:[%s2286 + $0x20] sm:$0xff]
          %v2292 = vld [vmem:[%s2286 + $0x28] sm:$0xff]
          %v2293 = vld [vmem:[%s2286 + $0x30] sm:$0xff]
          %v2294 = vld [vmem:[%s2286 + $0x38] sm:$0xff]
          %v2295 = vld [vmem:[%s2286 + $0x40] sm:$0xff]
          %v2296 = vld [vmem:[%s2286 + $0x48] sm:$0xff]
          %v2297 = vld [vmem:[%s2286 + $0x50] sm:$0xff]
          %v2298 = vld [vmem:[%s2286 + $0x58] sm:$0xff]
          %v2299 = vld [vmem:[%s2286 + $0x60] sm:$0xff]
          %v2300 = vld [vmem:[%s2286 + $0x68] sm:$0xff]
          %v2301 = vld [vmem:[%s2286 + $0x70] sm:$0xff]
          %v2302 = vld [vmem:[%s2286 + $0x78] sm:$0xff]
          %2304 = vset.pattern.permute.xlu0 0
          %2305 = vperm.xlu0 %2304, %v2029
          %v2306 = vpop.permute.xlu0 %2305
          %2309 = vset.pattern.permute.xlu0 0
          %2310 = vperm.xlu0 %2309, %v2031
          %v2311 = vpop.permute.xlu0 %2310
          %2314 = vset.pattern.permute.xlu0 0
          %2315 = vperm.xlu0 %2314, %v2033
          %v2316 = vpop.permute.xlu0 %2315
          %2319 = vset.pattern.permute.xlu0 0
          %2320 = vperm.xlu0 %2319, %v2035
          %v2321 = vpop.permute.xlu0 %2320
          %2324 = vset.pattern.permute.xlu0 0
          %2325 = vperm.xlu0 %2324, %v2037
          %v2326 = vpop.permute.xlu0 %2325
          %2329 = vset.pattern.permute.xlu0 0
          %2330 = vperm.xlu0 %2329, %v2039
          %v2331 = vpop.permute.xlu0 %2330
          %2334 = vset.pattern.permute.xlu0 0
          %2335 = vperm.xlu0 %2334, %v2041
          %v2336 = vpop.permute.xlu0 %2335
          %2339 = vset.pattern.permute.xlu0 0
          %2340 = vperm.xlu0 %2339, %v2043
          %v2341 = vpop.permute.xlu0 %2340
          %2344 = vset.pattern.permute.xlu0 0
          %2345 = vperm.xlu0 %2344, %v2045
          %v2346 = vpop.permute.xlu0 %2345
          %2349 = vset.pattern.permute.xlu0 0
          %2350 = vperm.xlu0 %2349, %v2047
          %v2351 = vpop.permute.xlu0 %2350
          %2354 = vset.pattern.permute.xlu0 0
          %2355 = vperm.xlu0 %2354, %v2049
          %v2356 = vpop.permute.xlu0 %2355
          %2359 = vset.pattern.permute.xlu0 0
          %2360 = vperm.xlu0 %2359, %v2051
          %v2361 = vpop.permute.xlu0 %2360
          %2364 = vset.pattern.permute.xlu0 0
          %2365 = vperm.xlu0 %2364, %v2053
          %v2366 = vpop.permute.xlu0 %2365
          %2369 = vset.pattern.permute.xlu0 0
          %2370 = vperm.xlu0 %2369, %v2055
          %v2371 = vpop.permute.xlu0 %2370
          %2374 = vset.pattern.permute.xlu0 0
          %2375 = vperm.xlu0 %2374, %v2057
          %v2376 = vpop.permute.xlu0 %2375
          %2379 = vset.pattern.permute.xlu0 0
          %2380 = vperm.xlu0 %2379, %v2059
          %v2381 = vpop.permute.xlu0 %2380
          %v2383 = vmul.f32 %v2306, %v2287
          %v2384 = vmul.f32 %v2311, %v2288
          %v2385 = vmul.f32 %v2316, %v2289
          %v2386 = vmul.f32 %v2321, %v2290
          %v2387 = vmul.f32 %v2326, %v2291
          %v2388 = vmul.f32 %v2331, %v2292
          %v2389 = vmul.f32 %v2336, %v2293
          %v2390 = vmul.f32 %v2341, %v2294
          %v2391 = vmul.f32 %v2346, %v2295
          %v2392 = vmul.f32 %v2351, %v2296
          %v2393 = vmul.f32 %v2356, %v2297
          %v2394 = vmul.f32 %v2361, %v2298
          %v2395 = vmul.f32 %v2366, %v2299
          %v2396 = vmul.f32 %v2371, %v2300
          %v2397 = vmul.f32 %v2376, %v2301
          %v2398 = vmul.f32 %v2381, %v2302
          %v2399 = vpack.c.bf16 %v2159, %v2157
          %v2400 = vpack.c.bf16 %v2163, %v2161
          %v2401 = vpack.c.bf16 %v2167, %v2165
          %v2402 = vpack.c.bf16 %v2171, %v2169
          %v2403 = vpack.c.bf16 %v2175, %v2173
          %v2404 = vpack.c.bf16 %v2179, %v2177
          %v2405 = vpack.c.bf16 %v2183, %v2181
          %v2406 = vpack.c.bf16 %v2187, %v2185
          %2407 = vmatprep.subr.bf16.mxu0 0
          %2408 = vmatpush1.bf16.msra.mxu0 %v1633
          %2409 = vmatprep.subr.bf16.mxu0 0
          %2410 = vmatpush1.bf16.msra.mxu0 %v1632
          %2411 = vmatprep.subr.bf16.mxu0 0
          %2412 = vmatpush1.bf16.msra.mxu0 %v1631
          %2413 = vmatprep.subr.bf16.mxu0 0
          %2414 = vmatpush1.bf16.msra.mxu0 %v1630
          %2415 = vmatprep.subr.bf16.mxu0 0
          %2416 = vmatpush1.bf16.msra.mxu0 %v1629
          %2417 = vmatprep.subr.bf16.mxu0 0
          %2418 = vmatpush1.bf16.msra.mxu0 %v1628
          %2419 = vmatprep.subr.bf16.mxu0 0
          %2420 = vmatpush1.bf16.msra.mxu0 %v1627
          %2421 = vmatprep.subr.bf16.mxu0 0
          %2422 = vmatpush1.bf16.msra.mxu0 %v1626
          %2423 = vmatprep.subr.bf16.mxu0 0
          %2424 = vmatpush2.bf16.msra.mxu0 0
          %2425 = vmatprep.subr.bf16.mxu0 0
          %2426 = vmatpush2.bf16.msra.mxu0 0
          %2427 = vmatprep.subr.bf16.mxu0 0
          %2428 = vmatpush2.bf16.msra.mxu0 0
          %2429 = vmatprep.subr.bf16.mxu0 0
          %2430 = vmatpush2.bf16.msra.mxu0 0
          %2431 = vmatprep.subr.bf16.mxu0 0
          %2432 = vmatpush2.bf16.msra.mxu0 0
          %2433 = vmatprep.subr.bf16.mxu0 0
          %2434 = vmatpush2.bf16.msra.mxu0 0
          %2435 = vmatprep.subr.bf16.mxu0 0
          %2436 = vmatpush2.bf16.msra.mxu0 0
          %2437 = vmatprep.subr.bf16.mxu0 0
          %2438 = vmatpush2.bf16.msra.mxu0 0
          %2439 = vmatprep.mubr.bf16.mxu0 0
          %2440 = vmatmul.mubr.bf16.gmra.mxu0 %v2399
          %v2441 = vpop.f32.mrf.mxu0
          %v2442 = vadd.f32 0.0, %v2441
          %v2443 = vpop.f32.mrf.mxu0
          %v2444 = vpop.f32.mrf.mxu0
          %v2445 = vadd.f32 0.0, %v2444
          %v2446 = vpop.f32.mrf.mxu0
          %2447 = vmatprep.mubr.bf16.mxu0 0
          %2448 = vmatmul.mubr.bf16.gmra.mxu0 %v2400
          %v2449 = vpop.f32.mrf.mxu0
          %v2450 = vadd.f32 0.0, %v2449
          %v2451 = vpop.f32.mrf.mxu0
          %v2452 = vpop.f32.mrf.mxu0
          %v2453 = vadd.f32 0.0, %v2452
          %v2454 = vpop.f32.mrf.mxu0
          %2455 = vmatprep.mubr.bf16.mxu0 0
          %2456 = vmatmul.mubr.bf16.gmra.mxu0 %v2401
          %v2457 = vpop.f32.mrf.mxu0
          %v2458 = vadd.f32 0.0, %v2457
          %v2459 = vpop.f32.mrf.mxu0
          %v2460 = vpop.f32.mrf.mxu0
          %v2461 = vadd.f32 0.0, %v2460
          %v2462 = vpop.f32.mrf.mxu0
          %2463 = vmatprep.mubr.bf16.mxu0 0
          %2464 = vmatmul.mubr.bf16.gmra.mxu0 %v2402
          %v2465 = vpop.f32.mrf.mxu0
          %v2466 = vadd.f32 0.0, %v2465
          %v2467 = vpop.f32.mrf.mxu0
          %v2468 = vpop.f32.mrf.mxu0
          %v2469 = vadd.f32 0.0, %v2468
          %v2470 = vpop.f32.mrf.mxu0
          %2471 = vmatprep.mubr.bf16.mxu0 0
          %2472 = vmatmul.mubr.bf16.gmra.mxu0 %v2403
          %v2473 = vpop.f32.mrf.mxu0
          %v2474 = vadd.f32 0.0, %v2473
          %v2475 = vpop.f32.mrf.mxu0
          %v2476 = vpop.f32.mrf.mxu0
          %v2477 = vadd.f32 0.0, %v2476
          %v2478 = vpop.f32.mrf.mxu0
          %2479 = vmatprep.mubr.bf16.mxu0 0
          %2480 = vmatmul.mubr.bf16.gmra.mxu0 %v2404
          %v2481 = vpop.f32.mrf.mxu0
          %v2482 = vadd.f32 0.0, %v2481
          %v2483 = vpop.f32.mrf.mxu0
          %v2484 = vpop.f32.mrf.mxu0
          %v2485 = vadd.f32 0.0, %v2484
          %v2486 = vpop.f32.mrf.mxu0
          %2487 = vmatprep.mubr.bf16.mxu0 0
          %2488 = vmatmul.mubr.bf16.gmra.mxu0 %v2405
          %v2489 = vpop.f32.mrf.mxu0
          %v2490 = vadd.f32 0.0, %v2489
          %v2491 = vpop.f32.mrf.mxu0
          %v2492 = vpop.f32.mrf.mxu0
          %v2493 = vadd.f32 0.0, %v2492
          %v2494 = vpop.f32.mrf.mxu0
          %2495 = vmatprep.mubr.bf16.mxu0 0
          %2496 = vmatmul.mubr.bf16.gmra.mxu0 %v2406
          %v2497 = vpop.f32.mrf.mxu0
          %v2498 = vadd.f32 0.0, %v2497
          %v2499 = vpop.f32.mrf.mxu0
          %v2500 = vpop.f32.mrf.mxu0
          %v2501 = vadd.f32 0.0, %v2500
          %v2502 = vpop.f32.mrf.mxu0
          %2503 = vdwg.mxu0
          %v2504 = vadd.f32 %v2383, %v2442
          %v2505 = vadd.f32 %v2384, %v2445
          %v2506 = vadd.f32 %v2385, %v2450
          %v2507 = vadd.f32 %v2386, %v2453
          %v2508 = vadd.f32 %v2387, %v2458
          %v2509 = vadd.f32 %v2388, %v2461
          %v2510 = vadd.f32 %v2389, %v2466
          %v2511 = vadd.f32 %v2390, %v2469
          %v2512 = vadd.f32 %v2391, %v2474
          %v2513 = vadd.f32 %v2392, %v2477
          %v2514 = vadd.f32 %v2393, %v2482
          %v2515 = vadd.f32 %v2394, %v2485
          %v2516 = vadd.f32 %v2395, %v2490
          %v2517 = vadd.f32 %v2396, %v2493
          %v2518 = vadd.f32 %v2397, %v2498
          %v2519 = vadd.f32 %v2398, %v2501
          %2520 = vst [vmem:[%s2286] sm:$0xff] %v2504
          %2521 = vst [vmem:[%s2286 + $0x8] sm:$0xff] %v2505
          %2522 = vst [vmem:[%s2286 + $0x10] sm:$0xff] %v2506
          %2523 = vst [vmem:[%s2286 + $0x18] sm:$0xff] %v2507
          %2524 = vst [vmem:[%s2286 + $0x20] sm:$0xff] %v2508
          %2525 = vst [vmem:[%s2286 + $0x28] sm:$0xff] %v2509
          %2526 = vst [vmem:[%s2286 + $0x30] sm:$0xff] %v2510
          %2527 = vst [vmem:[%s2286 + $0x38] sm:$0xff] %v2511
          %2528 = vst [vmem:[%s2286 + $0x40] sm:$0xff] %v2512
          %2529 = vst [vmem:[%s2286 + $0x48] sm:$0xff] %v2513
          %2530 = vst [vmem:[%s2286 + $0x50] sm:$0xff] %v2514
          %2531 = vst [vmem:[%s2286 + $0x58] sm:$0xff] %v2515
          %2532 = vst [vmem:[%s2286 + $0x60] sm:$0xff] %v2516
          %2533 = vst [vmem:[%s2286 + $0x68] sm:$0xff] %v2517
          %2534 = vst [vmem:[%s2286 + $0x70] sm:$0xff] %v2518
          %2535 = vst [vmem:[%s2286 + $0x78] sm:$0xff] %v2519
          %2536 = vst.msk [vmem:[%s1947] sm:$0xff] %vm2269, %v1996
          %2537 = vst.msk [vmem:[%s1947 + $0x8] sm:$0xff] %vm2269, %v1997
          %2538 = vst.msk [vmem:[%s1947 + $0x10] sm:$0xff] %vm2269, %v1998
          %2539 = vst.msk [vmem:[%s1947 + $0x18] sm:$0xff] %vm2269, %v1999
          %2540 = vst.msk [vmem:[%s1947 + $0x20] sm:$0xff] %vm2269, %v2000
          %2541 = vst.msk [vmem:[%s1947 + $0x28] sm:$0xff] %vm2269, %v2001
          %2542 = vst.msk [vmem:[%s1947 + $0x30] sm:$0xff] %vm2269, %v2002
          %2543 = vst.msk [vmem:[%s1947 + $0x38] sm:$0xff] %vm2269, %v2003
          %2544 = vst.msk [vmem:[%s1947 + $0x40] sm:$0xff] %vm2269, %v2004
          %2545 = vst.msk [vmem:[%s1947 + $0x48] sm:$0xff] %vm2269, %v2005
          %2546 = vst.msk [vmem:[%s1947 + $0x50] sm:$0xff] %vm2269, %v2006
          %2547 = vst.msk [vmem:[%s1947 + $0x58] sm:$0xff] %vm2269, %v2007
          %2548 = vst.msk [vmem:[%s1947 + $0x60] sm:$0xff] %vm2269, %v2008
          %2549 = vst.msk [vmem:[%s1947 + $0x68] sm:$0xff] %vm2269, %v2009
          %2550 = vst.msk [vmem:[%s1947 + $0x70] sm:$0xff] %vm2269, %v2010
          %2551 = vst.msk [vmem:[%s1947 + $0x78] sm:$0xff] %vm2269, %v2011
        $region126: #{decoder_layer.4} parent=105 // loop_footer
          %s1146 = sadd.s32 1, %s1142
        $region127: #{decoder_layer.4} parent=105 // loop_footer_branch
          %1141 = sbr.rel target = $region123
        $region128: #{decoder_layer.4} parent=105 // loop_exit
          _
        %p2552 = scmp.eq.s32.totalorder %s31, 1
        // Predicated region
        $region129: #{decoder_layer.4} parent=105 // pred_check
          %p2553 = pneg %p2552
        $region130: #{decoder_layer.4} parent=105 // pred_check_branch
          %2555 = sbr.rel (%p2553) target = $region132
        $region131: #{decoder_layer.4} parent=105 // pred_region
          loop: start=0, step=1, limit=2
          $region133: #{decoder_layer.4} parent=131 // loop_pre_header
            _
          $region134: #{decoder_layer.4} parent=131 // loop_header
            %s2557 = sphi 0, %s2561
            %p2558 = scmp.ge.s32.totalorder %s2557, 2
            %v2562 = vphi 0.0, %v2961
            %v2563 = vphi 0.0, %v2962
            %v2564 = vphi 0.0, %v2963
            %v2565 = vphi 0.0, %v2964
            %v2566 = vphi 0.0, %v2965
            %v2567 = vphi 0.0, %v2966
            %v2568 = vphi 0.0, %v2967
            %v2569 = vphi 0.0, %v2968
            %v2570 = vphi 0.0, %v2969
            %v2571 = vphi 0.0, %v2970
            %v2572 = vphi 0.0, %v2971
            %v2573 = vphi 0.0, %v2972
            %v2574 = vphi 0.0, %v2973
            %v2575 = vphi 0.0, %v2974
            %v2576 = vphi 0.0, %v2975
            %v2577 = vphi 0.0, %v2976
            %v2578 = vphi 0.0, %v2977
            %v2579 = vphi 0.0, %v2978
            %v2580 = vphi 0.0, %v2979
            %v2581 = vphi 0.0, %v2980
            %v2582 = vphi 0.0, %v2981
            %v2583 = vphi 0.0, %v2982
            %v2584 = vphi 0.0, %v2983
            %v2585 = vphi 0.0, %v2984
            %v2586 = vphi 0.0, %v2985
            %v2587 = vphi 0.0, %v2986
            %v2588 = vphi 0.0, %v2987
            %v2589 = vphi 0.0, %v2988
            %v2590 = vphi 0.0, %v2989
            %v2591 = vphi 0.0, %v2990
            %v2592 = vphi 0.0, %v2991
            %v2593 = vphi 0.0, %v2992
          $region135: #{decoder_layer.4} parent=131 // loop_header_branch
            %2560 = sbr.rel (%p2558) target = $region139
          $region136: #{decoder_layer.4} parent=131 // loop_body
            %s2594 = smul.u32 %s2557, 128
            %s2595 = scalar_lea.vmem [#allocation3], %s2594
            %v2596 = vld [vmem:[%s2595] sm:$0xff]
            %v2597 = vld [vmem:[%s2595 + $0x8] sm:$0xff]
            %v2598 = vld [vmem:[%s2595 + $0x10] sm:$0xff]
            %v2599 = vld [vmem:[%s2595 + $0x18] sm:$0xff]
            %v2600 = vld [vmem:[%s2595 + $0x20] sm:$0xff]
            %v2601 = vld [vmem:[%s2595 + $0x28] sm:$0xff]
            %v2602 = vld [vmem:[%s2595 + $0x30] sm:$0xff]
            %v2603 = vld [vmem:[%s2595 + $0x38] sm:$0xff]
            %v2604 = vld [vmem:[%s2595 + $0x40] sm:$0xff]
            %v2605 = vld [vmem:[%s2595 + $0x48] sm:$0xff]
            %v2606 = vld [vmem:[%s2595 + $0x50] sm:$0xff]
            %v2607 = vld [vmem:[%s2595 + $0x58] sm:$0xff]
            %v2608 = vld [vmem:[%s2595 + $0x60] sm:$0xff]
            %v2609 = vld [vmem:[%s2595 + $0x68] sm:$0xff]
            %v2610 = vld [vmem:[%s2595 + $0x70] sm:$0xff]
            %v2611 = vld [vmem:[%s2595 + $0x78] sm:$0xff]
            %s2612 = scalar_lea.vmem [#allocation5], %s2594
            %v2613 = vld [vmem:[%s2612] sm:$0xff]
            %v2614 = vld [vmem:[%s2612 + $0x8] sm:$0xff]
            %v2615 = vld [vmem:[%s2612 + $0x10] sm:$0xff]
            %v2616 = vld [vmem:[%s2612 + $0x18] sm:$0xff]
            %v2617 = vld [vmem:[%s2612 + $0x20] sm:$0xff]
            %v2618 = vld [vmem:[%s2612 + $0x28] sm:$0xff]
            %v2619 = vld [vmem:[%s2612 + $0x30] sm:$0xff]
            %v2620 = vld [vmem:[%s2612 + $0x38] sm:$0xff]
            %v2621 = vld [vmem:[%s2612 + $0x40] sm:$0xff]
            %v2622 = vld [vmem:[%s2612 + $0x48] sm:$0xff]
            %v2623 = vld [vmem:[%s2612 + $0x50] sm:$0xff]
            %v2624 = vld [vmem:[%s2612 + $0x58] sm:$0xff]
            %v2625 = vld [vmem:[%s2612 + $0x60] sm:$0xff]
            %v2626 = vld [vmem:[%s2612 + $0x68] sm:$0xff]
            %v2627 = vld [vmem:[%s2612 + $0x70] sm:$0xff]
            %v2628 = vld [vmem:[%s2612 + $0x78] sm:$0xff]
            %v2629 = vrcp.pop %v2613
            %v2630 = vrcp.pop %v2614
            %v2631 = vrcp.pop %v2615
            %v2632 = vrcp.pop %v2616
            %v2633 = vrcp.pop %v2617
            %v2634 = vrcp.pop %v2618
            %v2635 = vrcp.pop %v2619
            %v2636 = vrcp.pop %v2620
            %v2637 = vrcp.pop %v2621
            %v2638 = vrcp.pop %v2622
            %v2639 = vrcp.pop %v2623
            %v2640 = vrcp.pop %v2624
            %v2641 = vrcp.pop %v2625
            %v2642 = vrcp.pop %v2626
            %v2643 = vrcp.pop %v2627
            %v2644 = vrcp.pop %v2628
            %2646 = vset.pattern.permute.xlu0 0
            %2647 = vperm.xlu0 %2646, %v2629
            %v2648 = vpop.permute.xlu0 %2647
            %2651 = vset.pattern.permute.xlu0 0
            %2652 = vperm.xlu0 %2651, %v2630
            %v2653 = vpop.permute.xlu0 %2652
            %2656 = vset.pattern.permute.xlu0 0
            %2657 = vperm.xlu0 %2656, %v2631
            %v2658 = vpop.permute.xlu0 %2657
            %2661 = vset.pattern.permute.xlu0 0
            %2662 = vperm.xlu0 %2661, %v2632
            %v2663 = vpop.permute.xlu0 %2662
            %2666 = vset.pattern.permute.xlu0 0
            %2667 = vperm.xlu0 %2666, %v2633
            %v2668 = vpop.permute.xlu0 %2667
            %2671 = vset.pattern.permute.xlu0 0
            %2672 = vperm.xlu0 %2671, %v2634
            %v2673 = vpop.permute.xlu0 %2672
            %2676 = vset.pattern.permute.xlu0 0
            %2677 = vperm.xlu0 %2676, %v2635
            %v2678 = vpop.permute.xlu0 %2677
            %2681 = vset.pattern.permute.xlu0 0
            %2682 = vperm.xlu0 %2681, %v2636
            %v2683 = vpop.permute.xlu0 %2682
            %2686 = vset.pattern.permute.xlu0 0
            %2687 = vperm.xlu0 %2686, %v2637
            %v2688 = vpop.permute.xlu0 %2687
            %2691 = vset.pattern.permute.xlu0 0
            %2692 = vperm.xlu0 %2691, %v2638
            %v2693 = vpop.permute.xlu0 %2692
            %2696 = vset.pattern.permute.xlu0 0
            %2697 = vperm.xlu0 %2696, %v2639
            %v2698 = vpop.permute.xlu0 %2697
            %2701 = vset.pattern.permute.xlu0 0
            %2702 = vperm.xlu0 %2701, %v2640
            %v2703 = vpop.permute.xlu0 %2702
            %2706 = vset.pattern.permute.xlu0 0
            %2707 = vperm.xlu0 %2706, %v2641
            %v2708 = vpop.permute.xlu0 %2707
            %2711 = vset.pattern.permute.xlu0 0
            %2712 = vperm.xlu0 %2711, %v2642
            %v2713 = vpop.permute.xlu0 %2712
            %2716 = vset.pattern.permute.xlu0 0
            %2717 = vperm.xlu0 %2716, %v2643
            %v2718 = vpop.permute.xlu0 %2717
            %2721 = vset.pattern.permute.xlu0 0
            %2722 = vperm.xlu0 %2721, %v2644
            %v2723 = vpop.permute.xlu0 %2722
            %v2725 = vmul.f32 %v2596, %v2648
            %v2726 = vmul.f32 %v2597, %v2653
            %v2727 = vmul.f32 %v2598, %v2658
            %v2728 = vmul.f32 %v2599, %v2663
            %v2729 = vmul.f32 %v2600, %v2668
            %v2730 = vmul.f32 %v2601, %v2673
            %v2731 = vmul.f32 %v2602, %v2678
            %v2732 = vmul.f32 %v2603, %v2683
            %v2733 = vmul.f32 %v2604, %v2688
            %v2734 = vmul.f32 %v2605, %v2693
            %v2735 = vmul.f32 %v2606, %v2698
            %v2736 = vmul.f32 %v2607, %v2703
            %v2737 = vmul.f32 %v2608, %v2708
            %v2738 = vmul.f32 %v2609, %v2713
            %v2739 = vmul.f32 %v2610, %v2718
            %v2740 = vmul.f32 %v2611, %v2723
            %v2741 = vpack.c.bf16 %v2726, %v2725
            %v2742 = vpack.c.bf16 %v2728, %v2727
            %v2743 = vpack.c.bf16 %v2730, %v2729
            %v2744 = vpack.c.bf16 %v2732, %v2731
            %v2745 = vpack.c.bf16 %v2734, %v2733
            %v2746 = vpack.c.bf16 %v2736, %v2735
            %v2747 = vpack.c.bf16 %v2738, %v2737
            %v2748 = vpack.c.bf16 %v2740, %v2739
            %s2749 = smul.u32 %s2557, 32
            %s2750 = smul.addr %s2749, 4
            %s2751 = scalar_lea.vmem %s9, %s2750
            %v2752 = vld [vmem:[%s2751] sm:$0xff]
            %v2753 = vld [vmem:[%s2751 + $0x8] sm:$0xff]
            %v2754 = vld [vmem:[%s2751 + $0x10] sm:$0xff]
            %v2755 = vld [vmem:[%s2751 + $0x18] sm:$0xff]
            %v2756 = vld [vmem:[%s2751 + $0x20] sm:$0xff]
            %v2757 = vld [vmem:[%s2751 + $0x28] sm:$0xff]
            %v2758 = vld [vmem:[%s2751 + $0x30] sm:$0xff]
            %v2759 = vld [vmem:[%s2751 + $0x38] sm:$0xff]
            %v2760 = vld [vmem:[%s2751 + $0x40] sm:$0xff]
            %v2761 = vld [vmem:[%s2751 + $0x48] sm:$0xff]
            %v2762 = vld [vmem:[%s2751 + $0x50] sm:$0xff]
            %v2763 = vld [vmem:[%s2751 + $0x58] sm:$0xff]
            %v2764 = vld [vmem:[%s2751 + $0x60] sm:$0xff]
            %v2765 = vld [vmem:[%s2751 + $0x68] sm:$0xff]
            %v2766 = vld [vmem:[%s2751 + $0x70] sm:$0xff]
            %v2767 = vld [vmem:[%s2751 + $0x78] sm:$0xff]
            %v2784 = vunpack.c.l.b16 %v2752
            %v2785 = vunpack.c.h.b16 %v2752
            %v2786 = vunpack.c.l.b16 %v2753
            %v2787 = vunpack.c.h.b16 %v2753
            %v2788 = vunpack.c.l.b16 %v2754
            %v2789 = vunpack.c.h.b16 %v2754
            %v2790 = vunpack.c.l.b16 %v2755
            %v2791 = vunpack.c.h.b16 %v2755
            %v2792 = vunpack.c.l.b16 %v2756
            %v2793 = vunpack.c.h.b16 %v2756
            %v2794 = vunpack.c.l.b16 %v2757
            %v2795 = vunpack.c.h.b16 %v2757
            %v2796 = vunpack.c.l.b16 %v2758
            %v2797 = vunpack.c.h.b16 %v2758
            %v2798 = vunpack.c.l.b16 %v2759
            %v2799 = vunpack.c.h.b16 %v2759
            %v2800 = vunpack.c.l.b16 %v2760
            %v2801 = vunpack.c.h.b16 %v2760
            %v2802 = vunpack.c.l.b16 %v2761
            %v2803 = vunpack.c.h.b16 %v2761
            %v2804 = vunpack.c.l.b16 %v2762
            %v2805 = vunpack.c.h.b16 %v2762
            %v2806 = vunpack.c.l.b16 %v2763
            %v2807 = vunpack.c.h.b16 %v2763
            %v2808 = vunpack.c.l.b16 %v2764
            %v2809 = vunpack.c.h.b16 %v2764
            %v2810 = vunpack.c.l.b16 %v2765
            %v2811 = vunpack.c.h.b16 %v2765
            %v2812 = vunpack.c.l.b16 %v2766
            %v2813 = vunpack.c.h.b16 %v2766
            %v2814 = vunpack.c.l.b16 %v2767
            %v2815 = vunpack.c.h.b16 %v2767
            %v2816 = vpack.c.b16 %v2786, %v2784
            %v2817 = vpack.c.b16 %v2787, %v2785
            %v2818 = vpack.c.b16 %v2790, %v2788
            %v2819 = vpack.c.b16 %v2791, %v2789
            %v2820 = vpack.c.b16 %v2794, %v2792
            %v2821 = vpack.c.b16 %v2795, %v2793
            %v2822 = vpack.c.b16 %v2798, %v2796
            %v2823 = vpack.c.b16 %v2799, %v2797
            %v2824 = vpack.c.b16 %v2802, %v2800
            %v2825 = vpack.c.b16 %v2803, %v2801
            %v2826 = vpack.c.b16 %v2806, %v2804
            %v2827 = vpack.c.b16 %v2807, %v2805
            %v2828 = vpack.c.b16 %v2810, %v2808
            %v2829 = vpack.c.b16 %v2811, %v2809
            %v2830 = vpack.c.b16 %v2814, %v2812
            %v2831 = vpack.c.b16 %v2815, %v2813
            %2848 = vmatprep.subr.bf16.mxu0 %v2831
            %2849 = vmatpush1.bf16.msra.mxu0 %v2830
            %2850 = vmatprep.subr.bf16.mxu0 %v2829
            %2851 = vmatpush1.bf16.msra.mxu0 %v2828
            %2852 = vmatprep.subr.bf16.mxu0 %v2827
            %2853 = vmatpush1.bf16.msra.mxu0 %v2826
            %2854 = vmatprep.subr.bf16.mxu0 %v2825
            %2855 = vmatpush1.bf16.msra.mxu0 %v2824
            %2856 = vmatprep.subr.bf16.mxu0 %v2823
            %2857 = vmatpush1.bf16.msra.mxu0 %v2822
            %2858 = vmatprep.subr.bf16.mxu0 %v2821
            %2859 = vmatpush1.bf16.msra.mxu0 %v2820
            %2860 = vmatprep.subr.bf16.mxu0 %v2819
            %2861 = vmatpush1.bf16.msra.mxu0 %v2818
            %2862 = vmatprep.subr.bf16.mxu0 %v2817
            %2863 = vmatpush1.bf16.msra.mxu0 %v2816
            %2864 = vmatprep.subr.bf16.mxu0 0
            %2865 = vmatpush2.bf16.msra.mxu0 0
            %2866 = vmatprep.subr.bf16.mxu0 0
            %2867 = vmatpush2.bf16.msra.mxu0 0
            %2868 = vmatprep.subr.bf16.mxu0 0
            %2869 = vmatpush2.bf16.msra.mxu0 0
            %2870 = vmatprep.subr.bf16.mxu0 0
            %2871 = vmatpush2.bf16.msra.mxu0 0
            %2872 = vmatprep.subr.bf16.mxu0 0
            %2873 = vmatpush2.bf16.msra.mxu0 0
            %2874 = vmatprep.subr.bf16.mxu0 0
            %2875 = vmatpush2.bf16.msra.mxu0 0
            %2876 = vmatprep.subr.bf16.mxu0 0
            %2877 = vmatpush2.bf16.msra.mxu0 0
            %2878 = vmatprep.subr.bf16.mxu0 0
            %2879 = vmatpush2.bf16.msra.mxu0 0
            %2880 = vmatprep.mubr.bf16.mxu0 0
            %2881 = vmatmul.mubr.bf16.gmra.mxu0 %v2741
            %v2882 = vpop.f32.mrf.mxu0
            %v2883 = vadd.f32 0.0, %v2882
            %v2884 = vpop.f32.mrf.mxu0
            %v2885 = vadd.f32 0.0, %v2884
            %v2886 = vpop.f32.mrf.mxu0
            %v2887 = vadd.f32 0.0, %v2886
            %v2888 = vpop.f32.mrf.mxu0
            %v2889 = vadd.f32 0.0, %v2888
            %2890 = vmatprep.mubr.bf16.mxu0 0
            %2891 = vmatmul.mubr.bf16.gmra.mxu0 %v2742
            %v2892 = vpop.f32.mrf.mxu0
            %v2893 = vadd.f32 0.0, %v2892
            %v2894 = vpop.f32.mrf.mxu0
            %v2895 = vadd.f32 0.0, %v2894
            %v2896 = vpop.f32.mrf.mxu0
            %v2897 = vadd.f32 0.0, %v2896
            %v2898 = vpop.f32.mrf.mxu0
            %v2899 = vadd.f32 0.0, %v2898
            %2900 = vmatprep.mubr.bf16.mxu0 0
            %2901 = vmatmul.mubr.bf16.gmra.mxu0 %v2743
            %v2902 = vpop.f32.mrf.mxu0
            %v2903 = vadd.f32 0.0, %v2902
            %v2904 = vpop.f32.mrf.mxu0
            %v2905 = vadd.f32 0.0, %v2904
            %v2906 = vpop.f32.mrf.mxu0
            %v2907 = vadd.f32 0.0, %v2906
            %v2908 = vpop.f32.mrf.mxu0
            %v2909 = vadd.f32 0.0, %v2908
            %2910 = vmatprep.mubr.bf16.mxu0 0
            %2911 = vmatmul.mubr.bf16.gmra.mxu0 %v2744
            %v2912 = vpop.f32.mrf.mxu0
            %v2913 = vadd.f32 0.0, %v2912
            %v2914 = vpop.f32.mrf.mxu0
            %v2915 = vadd.f32 0.0, %v2914
            %v2916 = vpop.f32.mrf.mxu0
            %v2917 = vadd.f32 0.0, %v2916
            %v2918 = vpop.f32.mrf.mxu0
            %v2919 = vadd.f32 0.0, %v2918
            %2920 = vmatprep.mubr.bf16.mxu0 0
            %2921 = vmatmul.mubr.bf16.gmra.mxu0 %v2745
            %v2922 = vpop.f32.mrf.mxu0
            %v2923 = vadd.f32 0.0, %v2922
            %v2924 = vpop.f32.mrf.mxu0
            %v2925 = vadd.f32 0.0, %v2924
            %v2926 = vpop.f32.mrf.mxu0
            %v2927 = vadd.f32 0.0, %v2926
            %v2928 = vpop.f32.mrf.mxu0
            %v2929 = vadd.f32 0.0, %v2928
            %2930 = vmatprep.mubr.bf16.mxu0 0
            %2931 = vmatmul.mubr.bf16.gmra.mxu0 %v2746
            %v2932 = vpop.f32.mrf.mxu0
            %v2933 = vadd.f32 0.0, %v2932
            %v2934 = vpop.f32.mrf.mxu0
            %v2935 = vadd.f32 0.0, %v2934
            %v2936 = vpop.f32.mrf.mxu0
            %v2937 = vadd.f32 0.0, %v2936
            %v2938 = vpop.f32.mrf.mxu0
            %v2939 = vadd.f32 0.0, %v2938
            %2940 = vmatprep.mubr.bf16.mxu0 0
            %2941 = vmatmul.mubr.bf16.gmra.mxu0 %v2747
            %v2942 = vpop.f32.mrf.mxu0
            %v2943 = vadd.f32 0.0, %v2942
            %v2944 = vpop.f32.mrf.mxu0
            %v2945 = vadd.f32 0.0, %v2944
            %v2946 = vpop.f32.mrf.mxu0
            %v2947 = vadd.f32 0.0, %v2946
            %v2948 = vpop.f32.mrf.mxu0
            %v2949 = vadd.f32 0.0, %v2948
            %2950 = vmatprep.mubr.bf16.mxu0 0
            %2951 = vmatmul.mubr.bf16.gmra.mxu0 %v2748
            %v2952 = vpop.f32.mrf.mxu0
            %v2953 = vadd.f32 0.0, %v2952
            %v2954 = vpop.f32.mrf.mxu0
            %v2955 = vadd.f32 0.0, %v2954
            %v2956 = vpop.f32.mrf.mxu0
            %v2957 = vadd.f32 0.0, %v2956
            %v2958 = vpop.f32.mrf.mxu0
            %v2959 = vadd.f32 0.0, %v2958
            %2960 = vdwg.mxu0
            %v2961 = vadd.f32 %v2562, %v2883
            %v2962 = vadd.f32 %v2563, %v2885
            %v2963 = vadd.f32 %v2564, %v2887
            %v2964 = vadd.f32 %v2565, %v2889
            %v2965 = vadd.f32 %v2566, %v2893
            %v2966 = vadd.f32 %v2567, %v2895
            %v2967 = vadd.f32 %v2568, %v2897
            %v2968 = vadd.f32 %v2569, %v2899
            %v2969 = vadd.f32 %v2570, %v2903
            %v2970 = vadd.f32 %v2571, %v2905
            %v2971 = vadd.f32 %v2572, %v2907
            %v2972 = vadd.f32 %v2573, %v2909
            %v2973 = vadd.f32 %v2574, %v2913
            %v2974 = vadd.f32 %v2575, %v2915
            %v2975 = vadd.f32 %v2576, %v2917
            %v2976 = vadd.f32 %v2577, %v2919
            %v2977 = vadd.f32 %v2578, %v2923
            %v2978 = vadd.f32 %v2579, %v2925
            %v2979 = vadd.f32 %v2580, %v2927
            %v2980 = vadd.f32 %v2581, %v2929
            %v2981 = vadd.f32 %v2582, %v2933
            %v2982 = vadd.f32 %v2583, %v2935
            %v2983 = vadd.f32 %v2584, %v2937
            %v2984 = vadd.f32 %v2585, %v2939
            %v2985 = vadd.f32 %v2586, %v2943
            %v2986 = vadd.f32 %v2587, %v2945
            %v2987 = vadd.f32 %v2588, %v2947
            %v2988 = vadd.f32 %v2589, %v2949
            %v2989 = vadd.f32 %v2590, %v2953
            %v2990 = vadd.f32 %v2591, %v2955
            %v2991 = vadd.f32 %v2592, %v2957
            %v2992 = vadd.f32 %v2593, %v2959
          $region137: #{decoder_layer.4} parent=131 // loop_footer
            %s2561 = sadd.s32 1, %s2557
          $region138: #{decoder_layer.4} parent=131 // loop_footer_branch
            %2556 = sbr.rel target = $region134
          $region139: #{decoder_layer.4} parent=131 // loop_exit
            _
          %v2993 = vld [vmem:[%s10] sm:$0x3]
          %v2995 = vlaneseq
          %v2996 = vshrl.u32 %v2995, 7
          %v2997 = vsub.s32 0, %v2996
          %v2998 = vrot.slane %v2993, %v2997
          %v2999 = vlaneseq
          %v3000 = vshrl.u32 %v2999, 7
          %v3001 = vsub.s32 1, %v3000
          %v3002 = vrot.slane %v2993, %v3001
          %v3005 = vadd.f32 %v2562, %v2998
          %v3006 = vadd.f32 %v2563, %v3002
          %v3007 = vadd.f32 %v2564, %v2998
          %v3008 = vadd.f32 %v2565, %v3002
          %v3009 = vadd.f32 %v2566, %v2998
          %v3010 = vadd.f32 %v2567, %v3002
          %v3011 = vadd.f32 %v2568, %v2998
          %v3012 = vadd.f32 %v2569, %v3002
          %v3013 = vadd.f32 %v2570, %v2998
          %v3014 = vadd.f32 %v2571, %v3002
          %v3015 = vadd.f32 %v2572, %v2998
          %v3016 = vadd.f32 %v2573, %v3002
          %v3017 = vadd.f32 %v2574, %v2998
          %v3018 = vadd.f32 %v2575, %v3002
          %v3019 = vadd.f32 %v2576, %v2998
          %v3020 = vadd.f32 %v2577, %v3002
          %v3021 = vadd.f32 %v2578, %v2998
          %v3022 = vadd.f32 %v2579, %v3002
          %v3023 = vadd.f32 %v2580, %v2998
          %v3024 = vadd.f32 %v2581, %v3002
          %v3025 = vadd.f32 %v2582, %v2998
          %v3026 = vadd.f32 %v2583, %v3002
          %v3027 = vadd.f32 %v2584, %v2998
          %v3028 = vadd.f32 %v2585, %v3002
          %v3029 = vadd.f32 %v2586, %v2998
          %v3030 = vadd.f32 %v2587, %v3002
          %v3031 = vadd.f32 %v2588, %v2998
          %v3032 = vadd.f32 %v2589, %v3002
          %v3033 = vadd.f32 %v2590, %v2998
          %v3034 = vadd.f32 %v2591, %v3002
          %v3035 = vadd.f32 %v2592, %v2998
          %v3036 = vadd.f32 %v2593, %v3002
          %v3037 = vld [vmem:[%s583] sm:$0xff]
          %v3038 = vld [vmem:[%s583 + $0x8] sm:$0xff]
          %v3039 = vld [vmem:[%s583 + $0x10] sm:$0xff]
          %v3040 = vld [vmem:[%s583 + $0x18] sm:$0xff]
          %v3041 = vld [vmem:[%s583 + $0x20] sm:$0xff]
          %v3042 = vld [vmem:[%s583 + $0x28] sm:$0xff]
          %v3043 = vld [vmem:[%s583 + $0x30] sm:$0xff]
          %v3044 = vld [vmem:[%s583 + $0x38] sm:$0xff]
          %v3045 = vld [vmem:[%s583 + $0x40] sm:$0xff]
          %v3046 = vld [vmem:[%s583 + $0x48] sm:$0xff]
          %v3047 = vld [vmem:[%s583 + $0x50] sm:$0xff]
          %v3048 = vld [vmem:[%s583 + $0x58] sm:$0xff]
          %v3049 = vld [vmem:[%s583 + $0x60] sm:$0xff]
          %v3050 = vld [vmem:[%s583 + $0x68] sm:$0xff]
          %v3051 = vld [vmem:[%s583 + $0x70] sm:$0xff]
          %v3052 = vld [vmem:[%s583 + $0x78] sm:$0xff]
          %v3053 = vld [vmem:[%s583 + $0x80] sm:$0xff]
          %v3054 = vld [vmem:[%s583 + $0x88] sm:$0xff]
          %v3055 = vld [vmem:[%s583 + $0x90] sm:$0xff]
          %v3056 = vld [vmem:[%s583 + $0x98] sm:$0xff]
          %v3057 = vld [vmem:[%s583 + $0xa0] sm:$0xff]
          %v3058 = vld [vmem:[%s583 + $0xa8] sm:$0xff]
          %v3059 = vld [vmem:[%s583 + $0xb0] sm:$0xff]
          %v3060 = vld [vmem:[%s583 + $0xb8] sm:$0xff]
          %v3061 = vld [vmem:[%s583 + $0xc0] sm:$0xff]
          %v3062 = vld [vmem:[%s583 + $0xc8] sm:$0xff]
          %v3063 = vld [vmem:[%s583 + $0xd0] sm:$0xff]
          %v3064 = vld [vmem:[%s583 + $0xd8] sm:$0xff]
          %v3065 = vld [vmem:[%s583 + $0xe0] sm:$0xff]
          %v3066 = vld [vmem:[%s583 + $0xe8] sm:$0xff]
          %v3067 = vld [vmem:[%s583 + $0xf0] sm:$0xff]
          %v3068 = vld [vmem:[%s583 + $0xf8] sm:$0xff]
          %v3069 = vld [vmem:[%s11] sm:$0x3]
          %v3070 = vld [vmem:[%s12] sm:$0x3]
          %v3071 = vadd.f32 %v3037, %v3005
          %v3072 = vadd.f32 %v3038, %v3006
          %v3073 = vadd.f32 %v3039, %v3007
          %v3074 = vadd.f32 %v3040, %v3008
          %v3075 = vadd.f32 %v3041, %v3009
          %v3076 = vadd.f32 %v3042, %v3010
          %v3077 = vadd.f32 %v3043, %v3011
          %v3078 = vadd.f32 %v3044, %v3012
          %v3079 = vadd.f32 %v3045, %v3013
          %v3080 = vadd.f32 %v3046, %v3014
          %v3081 = vadd.f32 %v3047, %v3015
          %v3082 = vadd.f32 %v3048, %v3016
          %v3083 = vadd.f32 %v3049, %v3017
          %v3084 = vadd.f32 %v3050, %v3018
          %v3085 = vadd.f32 %v3051, %v3019
          %v3086 = vadd.f32 %v3052, %v3020
          %v3087 = vadd.f32 %v3053, %v3021
          %v3088 = vadd.f32 %v3054, %v3022
          %v3089 = vadd.f32 %v3055, %v3023
          %v3090 = vadd.f32 %v3056, %v3024
          %v3091 = vadd.f32 %v3057, %v3025
          %v3092 = vadd.f32 %v3058, %v3026
          %v3093 = vadd.f32 %v3059, %v3027
          %v3094 = vadd.f32 %v3060, %v3028
          %v3095 = vadd.f32 %v3061, %v3029
          %v3096 = vadd.f32 %v3062, %v3030
          %v3097 = vadd.f32 %v3063, %v3031
          %v3098 = vadd.f32 %v3064, %v3032
          %v3099 = vadd.f32 %v3065, %v3033
          %v3100 = vadd.f32 %v3066, %v3034
          %v3101 = vadd.f32 %v3067, %v3035
          %v3102 = vadd.f32 %v3068, %v3036
          %v3103 = vadd.f32 %v3071, %v3072
          %3104 = vadd.xlane.f32.xlu0 %v3103
          %v3105 = vpop.xlane.xlu0 %3104
          %v3106 = vadd.f32 %v3073, %v3074
          %3107 = vadd.xlane.f32.xlu0 %v3106
          %v3108 = vpop.xlane.xlu0 %3107
          %v3109 = vadd.f32 %v3075, %v3076
          %3110 = vadd.xlane.f32.xlu0 %v3109
          %v3111 = vpop.xlane.xlu0 %3110
          %v3112 = vadd.f32 %v3077, %v3078
          %3113 = vadd.xlane.f32.xlu0 %v3112
          %v3114 = vpop.xlane.xlu0 %3113
          %v3115 = vadd.f32 %v3079, %v3080
          %3116 = vadd.xlane.f32.xlu0 %v3115
          %v3117 = vpop.xlane.xlu0 %3116
          %v3118 = vadd.f32 %v3081, %v3082
          %3119 = vadd.xlane.f32.xlu0 %v3118
          %v3120 = vpop.xlane.xlu0 %3119
          %v3121 = vadd.f32 %v3083, %v3084
          %3122 = vadd.xlane.f32.xlu0 %v3121
          %v3123 = vpop.xlane.xlu0 %3122
          %v3124 = vadd.f32 %v3085, %v3086
          %3125 = vadd.xlane.f32.xlu0 %v3124
          %v3126 = vpop.xlane.xlu0 %3125
          %v3127 = vadd.f32 %v3087, %v3088
          %3128 = vadd.xlane.f32.xlu0 %v3127
          %v3129 = vpop.xlane.xlu0 %3128
          %v3130 = vadd.f32 %v3089, %v3090
          %3131 = vadd.xlane.f32.xlu0 %v3130
          %v3132 = vpop.xlane.xlu0 %3131
          %v3133 = vadd.f32 %v3091, %v3092
          %3134 = vadd.xlane.f32.xlu0 %v3133
          %v3135 = vpop.xlane.xlu0 %3134
          %v3136 = vadd.f32 %v3093, %v3094
          %3137 = vadd.xlane.f32.xlu0 %v3136
          %v3138 = vpop.xlane.xlu0 %3137
          %v3139 = vadd.f32 %v3095, %v3096
          %3140 = vadd.xlane.f32.xlu0 %v3139
          %v3141 = vpop.xlane.xlu0 %3140
          %v3142 = vadd.f32 %v3097, %v3098
          %3143 = vadd.xlane.f32.xlu0 %v3142
          %v3144 = vpop.xlane.xlu0 %3143
          %v3145 = vadd.f32 %v3099, %v3100
          %3146 = vadd.xlane.f32.xlu0 %v3145
          %v3147 = vpop.xlane.xlu0 %3146
          %v3148 = vadd.f32 %v3101, %v3102
          %3149 = vadd.xlane.f32.xlu0 %v3148
          %v3150 = vpop.xlane.xlu0 %3149
          %v3151 = vrcp.pop 256.0
          %v3152 = vmul.f32 %v3105, %v3151
          %v3153 = vmul.f32 %v3108, %v3151
          %v3154 = vmul.f32 %v3111, %v3151
          %v3155 = vmul.f32 %v3114, %v3151
          %v3156 = vmul.f32 %v3117, %v3151
          %v3157 = vmul.f32 %v3120, %v3151
          %v3158 = vmul.f32 %v3123, %v3151
          %v3159 = vmul.f32 %v3126, %v3151
          %v3160 = vmul.f32 %v3129, %v3151
          %v3161 = vmul.f32 %v3132, %v3151
          %v3162 = vmul.f32 %v3135, %v3151
          %v3163 = vmul.f32 %v3138, %v3151
          %v3164 = vmul.f32 %v3141, %v3151
          %v3165 = vmul.f32 %v3144, %v3151
          %v3166 = vmul.f32 %v3147, %v3151
          %v3167 = vmul.f32 %v3150, %v3151
          %v3168 = vsub.f32 %v3071, %v3152
          %v3169 = vsub.f32 %v3072, %v3152
          %v3170 = vsub.f32 %v3073, %v3153
          %v3171 = vsub.f32 %v3074, %v3153
          %v3172 = vsub.f32 %v3075, %v3154
          %v3173 = vsub.f32 %v3076, %v3154
          %v3174 = vsub.f32 %v3077, %v3155
          %v3175 = vsub.f32 %v3078, %v3155
          %v3176 = vsub.f32 %v3079, %v3156
          %v3177 = vsub.f32 %v3080, %v3156
          %v3178 = vsub.f32 %v3081, %v3157
          %v3179 = vsub.f32 %v3082, %v3157
          %v3180 = vsub.f32 %v3083, %v3158
          %v3181 = vsub.f32 %v3084, %v3158
          %v3182 = vsub.f32 %v3085, %v3159
          %v3183 = vsub.f32 %v3086, %v3159
          %v3184 = vsub.f32 %v3087, %v3160
          %v3185 = vsub.f32 %v3088, %v3160
          %v3186 = vsub.f32 %v3089, %v3161
          %v3187 = vsub.f32 %v3090, %v3161
          %v3188 = vsub.f32 %v3091, %v3162
          %v3189 = vsub.f32 %v3092, %v3162
          %v3190 = vsub.f32 %v3093, %v3163
          %v3191 = vsub.f32 %v3094, %v3163
          %v3192 = vsub.f32 %v3095, %v3164
          %v3193 = vsub.f32 %v3096, %v3164
          %v3194 = vsub.f32 %v3097, %v3165
          %v3195 = vsub.f32 %v3098, %v3165
          %v3196 = vsub.f32 %v3099, %v3166
          %v3197 = vsub.f32 %v3100, %v3166
          %v3198 = vsub.f32 %v3101, %v3167
          %v3199 = vsub.f32 %v3102, %v3167
          %v3200 = vmul.f32 %v3168, %v3168
          %v3201 = vmul.f32 %v3169, %v3169
          %v3202 = vmul.f32 %v3170, %v3170
          %v3203 = vmul.f32 %v3171, %v3171
          %v3204 = vmul.f32 %v3172, %v3172
          %v3205 = vmul.f32 %v3173, %v3173
          %v3206 = vmul.f32 %v3174, %v3174
          %v3207 = vmul.f32 %v3175, %v3175
          %v3208 = vmul.f32 %v3176, %v3176
          %v3209 = vmul.f32 %v3177, %v3177
          %v3210 = vmul.f32 %v3178, %v3178
          %v3211 = vmul.f32 %v3179, %v3179
          %v3212 = vmul.f32 %v3180, %v3180
          %v3213 = vmul.f32 %v3181, %v3181
          %v3214 = vmul.f32 %v3182, %v3182
          %v3215 = vmul.f32 %v3183, %v3183
          %v3216 = vmul.f32 %v3184, %v3184
          %v3217 = vmul.f32 %v3185, %v3185
          %v3218 = vmul.f32 %v3186, %v3186
          %v3219 = vmul.f32 %v3187, %v3187
          %v3220 = vmul.f32 %v3188, %v3188
          %v3221 = vmul.f32 %v3189, %v3189
          %v3222 = vmul.f32 %v3190, %v3190
          %v3223 = vmul.f32 %v3191, %v3191
          %v3224 = vmul.f32 %v3192, %v3192
          %v3225 = vmul.f32 %v3193, %v3193
          %v3226 = vmul.f32 %v3194, %v3194
          %v3227 = vmul.f32 %v3195, %v3195
          %v3228 = vmul.f32 %v3196, %v3196
          %v3229 = vmul.f32 %v3197, %v3197
          %v3230 = vmul.f32 %v3198, %v3198
          %v3231 = vmul.f32 %v3199, %v3199
          %v3232 = vadd.f32 %v3200, %v3201
          %3233 = vadd.xlane.f32.xlu0 %v3232
          %v3234 = vpop.xlane.xlu0 %3233
          %v3235 = vadd.f32 %v3202, %v3203
          %3236 = vadd.xlane.f32.xlu0 %v3235
          %v3237 = vpop.xlane.xlu0 %3236
          %v3238 = vadd.f32 %v3204, %v3205
          %3239 = vadd.xlane.f32.xlu0 %v3238
          %v3240 = vpop.xlane.xlu0 %3239
          %v3241 = vadd.f32 %v3206, %v3207
          %3242 = vadd.xlane.f32.xlu0 %v3241
          %v3243 = vpop.xlane.xlu0 %3242
          %v3244 = vadd.f32 %v3208, %v3209
          %3245 = vadd.xlane.f32.xlu0 %v3244
          %v3246 = vpop.xlane.xlu0 %3245
          %v3247 = vadd.f32 %v3210, %v3211
          %3248 = vadd.xlane.f32.xlu0 %v3247
          %v3249 = vpop.xlane.xlu0 %3248
          %v3250 = vadd.f32 %v3212, %v3213
          %3251 = vadd.xlane.f32.xlu0 %v3250
          %v3252 = vpop.xlane.xlu0 %3251
          %v3253 = vadd.f32 %v3214, %v3215
          %3254 = vadd.xlane.f32.xlu0 %v3253
          %v3255 = vpop.xlane.xlu0 %3254
          %v3256 = vadd.f32 %v3216, %v3217
          %3257 = vadd.xlane.f32.xlu0 %v3256
          %v3258 = vpop.xlane.xlu0 %3257
          %v3259 = vadd.f32 %v3218, %v3219
          %3260 = vadd.xlane.f32.xlu0 %v3259
          %v3261 = vpop.xlane.xlu0 %3260
          %v3262 = vadd.f32 %v3220, %v3221
          %3263 = vadd.xlane.f32.xlu0 %v3262
          %v3264 = vpop.xlane.xlu0 %3263
          %v3265 = vadd.f32 %v3222, %v3223
          %3266 = vadd.xlane.f32.xlu0 %v3265
          %v3267 = vpop.xlane.xlu0 %3266
          %v3268 = vadd.f32 %v3224, %v3225
          %3269 = vadd.xlane.f32.xlu0 %v3268
          %v3270 = vpop.xlane.xlu0 %3269
          %v3271 = vadd.f32 %v3226, %v3227
          %3272 = vadd.xlane.f32.xlu0 %v3271
          %v3273 = vpop.xlane.xlu0 %3272
          %v3274 = vadd.f32 %v3228, %v3229
          %3275 = vadd.xlane.f32.xlu0 %v3274
          %v3276 = vpop.xlane.xlu0 %3275
          %v3277 = vadd.f32 %v3230, %v3231
          %3278 = vadd.xlane.f32.xlu0 %v3277
          %v3279 = vpop.xlane.xlu0 %3278
          %v3280 = vmul.f32 %v3234, %v3151
          %v3281 = vmul.f32 %v3237, %v3151
          %v3282 = vmul.f32 %v3240, %v3151
          %v3283 = vmul.f32 %v3243, %v3151
          %v3284 = vmul.f32 %v3246, %v3151
          %v3285 = vmul.f32 %v3249, %v3151
          %v3286 = vmul.f32 %v3252, %v3151
          %v3287 = vmul.f32 %v3255, %v3151
          %v3288 = vmul.f32 %v3258, %v3151
          %v3289 = vmul.f32 %v3261, %v3151
          %v3290 = vmul.f32 %v3264, %v3151
          %v3291 = vmul.f32 %v3267, %v3151
          %v3292 = vmul.f32 %v3270, %v3151
          %v3293 = vmul.f32 %v3273, %v3151
          %v3294 = vmul.f32 %v3276, %v3151
          %v3295 = vmul.f32 %v3279, %v3151
          %v3296 = vadd.f32 %v3280, 1e-05
          %v3297 = vadd.f32 %v3281, 1e-05
          %v3298 = vadd.f32 %v3282, 1e-05
          %v3299 = vadd.f32 %v3283, 1e-05
          %v3300 = vadd.f32 %v3284, 1e-05
          %v3301 = vadd.f32 %v3285, 1e-05
          %v3302 = vadd.f32 %v3286, 1e-05
          %v3303 = vadd.f32 %v3287, 1e-05
          %v3304 = vadd.f32 %v3288, 1e-05
          %v3305 = vadd.f32 %v3289, 1e-05
          %v3306 = vadd.f32 %v3290, 1e-05
          %v3307 = vadd.f32 %v3291, 1e-05
          %v3308 = vadd.f32 %v3292, 1e-05
          %v3309 = vadd.f32 %v3293, 1e-05
          %v3310 = vadd.f32 %v3294, 1e-05
          %v3311 = vadd.f32 %v3295, 1e-05
          %v3312 = vrsqrt.pop %v3296
          %v3313 = vrsqrt.pop %v3297
          %v3314 = vrsqrt.pop %v3298
          %v3315 = vrsqrt.pop %v3299
          %v3316 = vrsqrt.pop %v3300
          %v3317 = vrsqrt.pop %v3301
          %v3318 = vrsqrt.pop %v3302
          %v3319 = vrsqrt.pop %v3303
          %v3320 = vrsqrt.pop %v3304
          %v3321 = vrsqrt.pop %v3305
          %v3322 = vrsqrt.pop %v3306
          %v3323 = vrsqrt.pop %v3307
          %v3324 = vrsqrt.pop %v3308
          %v3325 = vrsqrt.pop %v3309
          %v3326 = vrsqrt.pop %v3310
          %v3327 = vrsqrt.pop %v3311
          %v3328 = vmul.f32 %v3168, %v3312
          %v3329 = vmul.f32 %v3169, %v3312
          %v3330 = vmul.f32 %v3170, %v3313
          %v3331 = vmul.f32 %v3171, %v3313
          %v3332 = vmul.f32 %v3172, %v3314
          %v3333 = vmul.f32 %v3173, %v3314
          %v3334 = vmul.f32 %v3174, %v3315
          %v3335 = vmul.f32 %v3175, %v3315
          %v3336 = vmul.f32 %v3176, %v3316
          %v3337 = vmul.f32 %v3177, %v3316
          %v3338 = vmul.f32 %v3178, %v3317
          %v3339 = vmul.f32 %v3179, %v3317
          %v3340 = vmul.f32 %v3180, %v3318
          %v3341 = vmul.f32 %v3181, %v3318
          %v3342 = vmul.f32 %v3182, %v3319
          %v3343 = vmul.f32 %v3183, %v3319
          %v3344 = vmul.f32 %v3184, %v3320
          %v3345 = vmul.f32 %v3185, %v3320
          %v3346 = vmul.f32 %v3186, %v3321
          %v3347 = vmul.f32 %v3187, %v3321
          %v3348 = vmul.f32 %v3188, %v3322
          %v3349 = vmul.f32 %v3189, %v3322
          %v3350 = vmul.f32 %v3190, %v3323
          %v3351 = vmul.f32 %v3191, %v3323
          %v3352 = vmul.f32 %v3192, %v3324
          %v3353 = vmul.f32 %v3193, %v3324
          %v3354 = vmul.f32 %v3194, %v3325
          %v3355 = vmul.f32 %v3195, %v3325
          %v3356 = vmul.f32 %v3196, %v3326
          %v3357 = vmul.f32 %v3197, %v3326
          %v3358 = vmul.f32 %v3198, %v3327
          %v3359 = vmul.f32 %v3199, %v3327
          %v3361 = vlaneseq
          %v3362 = vshrl.u32 %v3361, 7
          %v3363 = vsub.s32 0, %v3362
          %v3364 = vrot.slane %v3069, %v3363
          %v3365 = vlaneseq
          %v3366 = vshrl.u32 %v3365, 7
          %v3367 = vsub.s32 1, %v3366
          %v3368 = vrot.slane %v3069, %v3367
          %v3371 = vmul.f32 %v3328, %v3364
          %v3372 = vmul.f32 %v3329, %v3368
          %v3373 = vmul.f32 %v3330, %v3364
          %v3374 = vmul.f32 %v3331, %v3368
          %v3375 = vmul.f32 %v3332, %v3364
          %v3376 = vmul.f32 %v3333, %v3368
          %v3377 = vmul.f32 %v3334, %v3364
          %v3378 = vmul.f32 %v3335, %v3368
          %v3379 = vmul.f32 %v3336, %v3364
          %v3380 = vmul.f32 %v3337, %v3368
          %v3381 = vmul.f32 %v3338, %v3364
          %v3382 = vmul.f32 %v3339, %v3368
          %v3383 = vmul.f32 %v3340, %v3364
          %v3384 = vmul.f32 %v3341, %v3368
          %v3385 = vmul.f32 %v3342, %v3364
          %v3386 = vmul.f32 %v3343, %v3368
          %v3387 = vmul.f32 %v3344, %v3364
          %v3388 = vmul.f32 %v3345, %v3368
          %v3389 = vmul.f32 %v3346, %v3364
          %v3390 = vmul.f32 %v3347, %v3368
          %v3391 = vmul.f32 %v3348, %v3364
          %v3392 = vmul.f32 %v3349, %v3368
          %v3393 = vmul.f32 %v3350, %v3364
          %v3394 = vmul.f32 %v3351, %v3368
          %v3395 = vmul.f32 %v3352, %v3364
          %v3396 = vmul.f32 %v3353, %v3368
          %v3397 = vmul.f32 %v3354, %v3364
          %v3398 = vmul.f32 %v3355, %v3368
          %v3399 = vmul.f32 %v3356, %v3364
          %v3400 = vmul.f32 %v3357, %v3368
          %v3401 = vmul.f32 %v3358, %v3364
          %v3402 = vmul.f32 %v3359, %v3368
          %v3404 = vlaneseq
          %v3405 = vshrl.u32 %v3404, 7
          %v3406 = vsub.s32 0, %v3405
          %v3407 = vrot.slane %v3070, %v3406
          %v3408 = vlaneseq
          %v3409 = vshrl.u32 %v3408, 7
          %v3410 = vsub.s32 1, %v3409
          %v3411 = vrot.slane %v3070, %v3410
          %v3414 = vadd.f32 %v3371, %v3407
          %v3415 = vadd.f32 %v3372, %v3411
          %v3416 = vadd.f32 %v3373, %v3407
          %v3417 = vadd.f32 %v3374, %v3411
          %v3418 = vadd.f32 %v3375, %v3407
          %v3419 = vadd.f32 %v3376, %v3411
          %v3420 = vadd.f32 %v3377, %v3407
          %v3421 = vadd.f32 %v3378, %v3411
          %v3422 = vadd.f32 %v3379, %v3407
          %v3423 = vadd.f32 %v3380, %v3411
          %v3424 = vadd.f32 %v3381, %v3407
          %v3425 = vadd.f32 %v3382, %v3411
          %v3426 = vadd.f32 %v3383, %v3407
          %v3427 = vadd.f32 %v3384, %v3411
          %v3428 = vadd.f32 %v3385, %v3407
          %v3429 = vadd.f32 %v3386, %v3411
          %v3430 = vadd.f32 %v3387, %v3407
          %v3431 = vadd.f32 %v3388, %v3411
          %v3432 = vadd.f32 %v3389, %v3407
          %v3433 = vadd.f32 %v3390, %v3411
          %v3434 = vadd.f32 %v3391, %v3407
          %v3435 = vadd.f32 %v3392, %v3411
          %v3436 = vadd.f32 %v3393, %v3407
          %v3437 = vadd.f32 %v3394, %v3411
          %v3438 = vadd.f32 %v3395, %v3407
          %v3439 = vadd.f32 %v3396, %v3411
          %v3440 = vadd.f32 %v3397, %v3407
          %v3441 = vadd.f32 %v3398, %v3411
          %v3442 = vadd.f32 %v3399, %v3407
          %v3443 = vadd.f32 %v3400, %v3411
          %v3444 = vadd.f32 %v3401, %v3407
          %v3445 = vadd.f32 %v3402, %v3411
          %3446 = vst [vmem:[%s606] sm:$0xff] %v3414
          %3447 = vst [vmem:[%s606 + $0x8] sm:$0xff] %v3415
          %3448 = vst [vmem:[%s606 + $0x10] sm:$0xff] %v3416
          %3449 = vst [vmem:[%s606 + $0x18] sm:$0xff] %v3417
          %3450 = vst [vmem:[%s606 + $0x20] sm:$0xff] %v3418
          %3451 = vst [vmem:[%s606 + $0x28] sm:$0xff] %v3419
          %3452 = vst [vmem:[%s606 + $0x30] sm:$0xff] %v3420
          %3453 = vst [vmem:[%s606 + $0x38] sm:$0xff] %v3421
          %3454 = vst [vmem:[%s606 + $0x40] sm:$0xff] %v3422
          %3455 = vst [vmem:[%s606 + $0x48] sm:$0xff] %v3423
          %3456 = vst [vmem:[%s606 + $0x50] sm:$0xff] %v3424
          %3457 = vst [vmem:[%s606 + $0x58] sm:$0xff] %v3425
          %3458 = vst [vmem:[%s606 + $0x60] sm:$0xff] %v3426
          %3459 = vst [vmem:[%s606 + $0x68] sm:$0xff] %v3427
          %3460 = vst [vmem:[%s606 + $0x70] sm:$0xff] %v3428
          %3461 = vst [vmem:[%s606 + $0x78] sm:$0xff] %v3429
          %3462 = vst [vmem:[%s606 + $0x80] sm:$0xff] %v3430
          %3463 = vst [vmem:[%s606 + $0x88] sm:$0xff] %v3431
          %3464 = vst [vmem:[%s606 + $0x90] sm:$0xff] %v3432
          %3465 = vst [vmem:[%s606 + $0x98] sm:$0xff] %v3433
          %3466 = vst [vmem:[%s606 + $0xa0] sm:$0xff] %v3434
          %3467 = vst [vmem:[%s606 + $0xa8] sm:$0xff] %v3435
          %3468 = vst [vmem:[%s606 + $0xb0] sm:$0xff] %v3436
          %3469 = vst [vmem:[%s606 + $0xb8] sm:$0xff] %v3437
          %3470 = vst [vmem:[%s606 + $0xc0] sm:$0xff] %v3438
          %3471 = vst [vmem:[%s606 + $0xc8] sm:$0xff] %v3439
          %3472 = vst [vmem:[%s606 + $0xd0] sm:$0xff] %v3440
          %3473 = vst [vmem:[%s606 + $0xd8] sm:$0xff] %v3441
          %3474 = vst [vmem:[%s606 + $0xe0] sm:$0xff] %v3442
          %3475 = vst [vmem:[%s606 + $0xe8] sm:$0xff] %v3443
          %3476 = vst [vmem:[%s606 + $0xf0] sm:$0xff] %v3444
          %3477 = vst [vmem:[%s606 + $0xf8] sm:$0xff] %v3445
        $region132: #{decoder_layer.4} parent=105 // pred_fallthru
          _
        %s3478 = smul.u32 16, %s30
        %p3479 = scmp.lt.s32.totalorder %s29, 1
        %s3480 = scalar_select %p3479, %s29, 1
        %p3481 = scmp.lt.s32.totalorder %s3478, 15
        %s3482 = scalar_select %p3481, %s3478, 15
        %s3483 = smul.addr %s3482, 2
        %s3484 = smul.addr %s3480, 32
        %s3485 = sadd.s32 %s3483, %s3484
        %s3486 = smul.addr %s3485, 8
        %s3487 = scalar_lea.vmem %s13, %s3486
        // Predicated region
        $region140: #{decoder_layer.4} parent=105 // pred_check
          %p3488 = pneg %p359
        $region141: #{decoder_layer.4} parent=105 // pred_check_branch
          %3490 = sbr.rel (%p3488) target = $region143
        $region142: #{decoder_layer.4} parent=105 // pred_region
          %s3491 = smul.u32 16, %s30
        $region143: #{decoder_layer.4} parent=105 // pred_fallthru
          _
      $region106: #{decoder_layer.4} parent=5 // pred_fallthru
        _
      %p3492 = scmp.le.s32.totalorder 2, %s19
      // Predicated region
      $region144: #{decoder_layer.4} parent=5 // pred_check
        %p3493 = pneg %p3492
      $region145: #{decoder_layer.4} parent=5 // pred_check_branch
        %3495 = sbr.rel (%p3493) target = $region147
      $region146: #{decoder_layer.4} parent=5 // pred_region
        %s3496 = ssub.s32 %s19, 2
        // Predicated region
        $region148: #{decoder_layer.4} parent=146 // pred_check
          %p3497 = pneg %p365
        $region149: #{decoder_layer.4} parent=146 // pred_check_branch
          %3499 = sbr.rel (%p3497) target = $region151
        $region150: #{decoder_layer.4} parent=146 // pred_region
          %s3500 = smul.u32 16, %s33
          %p3501 = scmp.lt.s32.totalorder %s32, 1
          %s3502 = scalar_select %p3501, %s32, 1
          %p3503 = scmp.lt.s32.totalorder %s3500, 15
          %s3504 = scalar_select %p3503, %s3500, 15
          %s3505 = smul.addr %s3504, 2
          %s3506 = smul.addr %s3502, 32
          %s3507 = sadd.s32 %s3505, %s3506
          %s3508 = smul.addr %s3507, 8
          %s3509 = scalar_lea.vmem %s13, %s3508
        $region151: #{decoder_layer.4} parent=146 // pred_fallthru
          _
      $region147: #{decoder_layer.4} parent=5 // pred_fallthru
        _
    $region6: #{decoder_layer.4} parent=1 // loop_footer
      %s23 = sadd.s32 1, %s19
    $region7: #{decoder_layer.4} parent=1 // loop_footer_branch
      %18 = sbr.rel target = $region3
    $region8: #{decoder_layer.4} parent=1 // loop_exit
      _

</llo_original>
